<compile_context>
chip_gen: v7x
topology: tpu7x:2x2x1
jax: 0.10.0
libtpu: 0.0.40
codegen_flags: <defaults>
</compile_context>

<pallas_src>
import functools

import jax
import jax.numpy as jnp
import numpy as np
from jax import lax
from jax.experimental import pallas as pl
from jax.experimental.pallas import tpu as pltpu


# --------------------------- small helpers -----------------------------------

def _pick_th(ho, cap=48):
    """Largest even divisor of `ho` that is <= cap (conv row-tile height)."""
    best = 2
    for t in range(2, min(ho, cap) + 1, 2):
        if ho % t == 0:
            best = t
    return best


def _pick_tk(k, cap=8192):
    """Largest multiple of 128 that divides k and is <= cap (K tile)."""
    best = 128
    for t in range(128, cap + 1, 128):
        if k % t == 0:
            best = t
    return best


def _pack_dy(x_nhwc):
    """(N, H, W, C) -> (N, H-2, W, 3C); channel index dy*C + c = x[:, y+dy, :, c]."""
    return jnp.concatenate([x_nhwc[:, 0:-2], x_nhwc[:, 1:-1], x_nhwc[:, 2:]],
                           axis=-1)


# ----------------- fused Conv3x3 + bias + ReLU + MaxPool2 kernel --------------

def _conv_pool_kernel(x_ref, w_ref, b_ref, o_ref, y_ref):
    # x_ref: (th, W, 3C)  dy-packed rows (bf16)
    # w_ref: (3, 3C, Cout) per-dx weights (bf16)
    # b_ref: (1, Cout)     bias (f32)
    # o_ref: (th//2, Wp, Cout) pooled output (bf16)
    # y_ref: VMEM scratch (Wo, Cout) f32
    n_pairs, wp, cout = o_ref.shape
    wo = 2 * wp
    bias = b_ref[...]                                   # (1, Cout), hoisted

    def conv_row(r):
        row = x_ref[r]                                  # (W, 3C)
        acc = jnp.zeros((wo, cout), jnp.float32)
        for dx in range(3):                             # shifted-window taps
            a = row[dx:dx + wo, :]                      # (Wo, 3C)
            acc = acc + jnp.dot(a, w_ref[dx],
                                preferred_element_type=jnp.float32)
        return acc

    def row_pair(pr, carry):
        r0 = 2 * pr
        y_ref[...] = conv_row(r0)                       # stash first conv row
        acc1 = conv_row(r0 + 1)                         # second conv row
        # bias + ReLU + H-pool (max over the row pair); relu(max(a,b)+bias) is
        # identical to max(relu(a+bias), relu(b+bias)).
        y = jnp.maximum(jnp.maximum(y_ref[...], acc1) + bias, 0.0)
        y_ref[...] = y
        # W-pool: stride-2 reads of even / odd columns.
        pooled = jnp.maximum(y_ref[pl.ds(0, wp, stride=2), :],
                             y_ref[pl.ds(1, wp, stride=2), :])
        o_ref[pr] = pooled.astype(o_ref.dtype)
        return carry

    lax.fori_loop(0, n_pairs, row_pair, 0)


def conv3x3_relu_pool(x_nhwc, w_dx, bias_row):
    """x: (N,H,W,C) bf16, w_dx: (3, 3C, Cout) bf16, bias_row: (1, Cout) f32."""
    n, h, w, c = x_nhwc.shape
    cout = w_dx.shape[-1]
    ho, wo = h - 2, w - 2
    hp, wp = ho // 2, wo // 2
    xp = _pack_dy(x_nhwc)                               # (N, Ho, W, 3C), cheap XLA glue
    th = _pick_th(ho)
    grid = (n, ho // th)
    return pl.pallas_call(
        _conv_pool_kernel,
        out_shape=jax.ShapeDtypeStruct((n, hp, wp, cout), jnp.bfloat16),
        grid_spec=pltpu.PrefetchScalarGridSpec(
            num_scalar_prefetch=0,
            grid=grid,
            in_specs=[
                pl.BlockSpec((None, th, w, 3 * c), lambda i, t: (i, t, 0, 0)),
                pl.BlockSpec((3, 3 * c, cout), lambda i, t: (0, 0, 0)),
                pl.BlockSpec((1, cout), lambda i, t: (0, 0)),
            ],
            out_specs=pl.BlockSpec((None, th // 2, wp, cout),
                                   lambda i, t: (i, t, 0, 0)),
            scratch_shapes=[pltpu.VMEM((wo, cout), jnp.float32)],
        ),
        compiler_params=pltpu.CompilerParams(
            dimension_semantics=("parallel", "parallel")),
    )(xp, w_dx, bias_row)


# ------------------------- fused Linear (+bias, +ReLU) ------------------------

def _matmul_bias_kernel(a_ref, b_ref, bias_ref, o_ref, acc_ref, *, apply_relu):
    k = pl.program_id(1)                                # K is the last grid axis

    @pl.when(k == 0)
    def _():
        acc_ref[...] = jnp.zeros_like(acc_ref)

    acc_ref[...] += jnp.dot(a_ref[...], b_ref[...],
                            preferred_element_type=jnp.float32)

    @pl.when(k == pl.num_programs(1) - 1)
    def _():
        out = acc_ref[...] + bias_ref[...]
        if apply_relu:
            out = jnp.maximum(out, 0.0)
        o_ref[...] = out.astype(o_ref.dtype)


def linear(x, w_kn, bias_1n, *, relu, out_dtype):
    """out = (relu?)(x @ w + b); x:(M,K) bf16, w:(K,N) bf16 pre-transposed."""
    m, k = x.shape
    kw, n = w_kn.shape
    assert k == kw and k % 128 == 0
    tk = _pick_tk(k)                                    # no K padding: tk divides K
    tn = n if n <= 128 else 128                         # N=256 split in 2 (v7x megacore)
    assert n % tn == 0
    grid = (n // tn, k // tk)
    kernel = functools.partial(_matmul_bias_kernel, apply_relu=relu)
    return pl.pallas_call(
        kernel,
        out_shape=jax.ShapeDtypeStruct((m, n), out_dtype),
        grid_spec=pltpu.PrefetchScalarGridSpec(
            num_scalar_prefetch=0,
            grid=grid,
            in_specs=[
                pl.BlockSpec((m, tk), lambda j, kk: (0, kk)),
                pl.BlockSpec((tk, tn), lambda j, kk: (kk, j)),
                pl.BlockSpec((1, tn), lambda j, kk: (0, j)),
            ],
            out_specs=pl.BlockSpec((m, tn), lambda j, kk: (0, j)),
            scratch_shapes=[pltpu.VMEM((m, tn), jnp.float32)],
        ),
        compiler_params=pltpu.CompilerParams(
            dimension_semantics=("parallel", "arbitrary")),
    )(x, w_kn, bias_1n)


# ------------------------------ forward pass ----------------------------------

def convnet_forward(x_nchw, q):
    x = jnp.transpose(x_nchw, (0, 2, 3, 1)).astype(jnp.bfloat16)   # NCHW -> NHWC bf16
    x = conv3x3_relu_pool(x, q['c1w'], q['c1b'])        # (N,110,110, 32)
    x = conv3x3_relu_pool(x, q['c2w'], q['c2b'])        # (N, 54, 54, 64)
    x = conv3x3_relu_pool(x, q['c3w'], q['c3b'])        # (N, 26, 26,128)
    flat = x.reshape(x.shape[0], -1)                    # NHWC flatten (fc1 cols permuted)
    h = linear(flat, q['fc1w'], q['fc1b'], relu=True, out_dtype=jnp.bfloat16)
    # TODO(synk): nn.Dropout(0.5) implemented as identity (eval-mode semantics).
    h = linear(h, q['fc2w'], q['fc2b'], relu=True, out_dtype=jnp.bfloat16)
    return linear(h, q['fc3w'], q['fc3b'], relu=False, out_dtype=jnp.float32)


# ------------------ one-time parameter re-layout (outside jit) ----------------

def prepare_params(p):
    def conv_w(w):
        cout, cin = w.shape[0], w.shape[1]
        # (Cout, Cin, kh, kw) -> (kw=dx, kh=dy, Cin, Cout) -> (3, 3*Cin, Cout)
        return (jnp.transpose(w, (3, 2, 1, 0))
                .reshape(3, 3 * cin, cout).astype(jnp.bfloat16))

    # fc1: permute columns from torch's (c, h, w) flatten order to NHWC (h, w, c)
    # and pre-transpose to (K, N); done once, host/eager side.
    fc1 = (p['fc1_w'].reshape(256, 128, 26, 26)
           .transpose(0, 2, 3, 1).reshape(256, -1))
    return {
        'c1w': conv_w(p['conv1_w']), 'c1b': p['conv1_b'].reshape(1, -1),
        'c2w': conv_w(p['conv2_w']), 'c2b': p['conv2_b'].reshape(1, -1),
        'c3w': conv_w(p['conv3_w']), 'c3b': p['conv3_b'].reshape(1, -1),
        'fc1w': fc1.T.astype(jnp.bfloat16), 'fc1b': p['fc1_b'].reshape(1, -1),
        'fc2w': p['fc2_w'].T.astype(jnp.bfloat16), 'fc2b': p['fc2_b'].reshape(1, -1),
        'fc3w': p['fc3_w'].T.astype(jnp.bfloat16), 'fc3b': p['fc3_b'].reshape(1, -1),
    }


# --------------------------- reference (pure JAX) ------------------------------

def reference_forward(x_nchw, p):
    def conv_relu(x, w, b):
        y = lax.conv_general_dilated(
            x, w, window_strides=(1, 1), padding='VALID',
            dimension_numbers=('NCHW', 'OIHW', 'NCHW'))
        return jnp.maximum(y + b[None, :, None, None], 0.0)

    def pool(x):
        return lax.reduce_window(x, -jnp.inf, lax.max,
                                 (1, 1, 2, 2), (1, 1, 2, 2), 'VALID')

    h = pool(conv_relu(x_nchw, p['conv1_w'], p['conv1_b']))
    h = pool(conv_relu(h, p['conv2_w'], p['conv2_b']))
    h = pool(conv_relu(h, p['conv3_w'], p['conv3_b']))
    h = h.reshape(h.shape[0], -1)
    h = jnp.maximum(h @ p['fc1_w'].T + p['fc1_b'], 0.0)
    h = jnp.maximum(h @ p['fc2_w'].T + p['fc2_b'], 0.0)
    return h @ p['fc3_w'].T + p['fc3_b']


# --------------------------------- params --------------------------------------

def init_params(key):
    ks = jax.random.split(key, 12)

    def init(k, shape, fan_in):
        return (jax.random.normal(k, shape, jnp.float32)
                / np.float32(np.sqrt(fan_in))).astype(jnp.float32)

    return {
        'conv1_w': init(ks[0], (32, 3, 3, 3), 3 * 9),
        'conv1_b': init(ks[1], (32,), 3 * 9),
        'conv2_w': init(ks[2], (64, 32, 3, 3), 32 * 9),
        'conv2_b': init(ks[3], (64,), 32 * 9),
        'conv3_w': init(ks[4], (128, 64, 3, 3), 64 * 9),
        'conv3_b': init(ks[5], (128,), 64 * 9),
        'fc1_w': init(ks[6], (256, 128 * 26 * 26), 128 * 26 * 26),
        'fc1_b': init(ks[7], (256,), 128 * 26 * 26),
        'fc2_w': init(ks[8], (256, 256), 256),
        'fc2_b': init(ks[9], (256,), 256),
        'fc3_w': init(ks[10], (2, 256), 256),
        'fc3_b': init(ks[11], (2,), 256),
    }


if __name__ == "__main__":
    key = jax.random.PRNGKey(0)
    pkey, xkey = jax.random.split(key)
    params = init_params(pkey)
    prepped = prepare_params(params)          # one-time weight re-layout (bf16)

    # 222x222 input is forced by the hard-coded Linear(128*26*26, 256).
    x = jax.random.normal(xkey, (2, 3, 222, 222), jnp.float32)

    fwd = jax.jit(convnet_forward)
    logits = jax.block_until_ready(fwd(x, prepped))
    assert logits.shape == (2, 2), logits.shape

    ref = jax.block_until_ready(jax.jit(reference_forward)(x, params))
    np.testing.assert_allclose(np.asarray(logits), np.asarray(ref),
                               rtol=5e-2, atol=1e-1)
    print("KERNEL_OK")
</pallas_src>

<mosaic_0001>
module attributes {stable_mosaic.version = 11 : i64} {
  func.func @_conv_pool_kernel(%arg0: i32, %arg1: i32, %arg2: memref<1x44x222x9xbf16, #tpu.memory_space<vmem>>, %arg3: memref<3x9x32xbf16, #tpu.memory_space<vmem>>, %arg4: memref<1x32xf32, #tpu.memory_space<vmem>>, %arg5: memref<1x22x110x32xbf16, #tpu.memory_space<vmem>>, %arg6: memref<220x32xf32, #tpu.memory_space<vmem>>) attributes {dimension_semantics = [#tpu.dimension_semantics<parallel>, #tpu.dimension_semantics<parallel>], iteration_bounds = array<i64: 2, 5>, scalar_prefetch = 0 : i64, scratch_operands = 1 : i64, tpu.core_type = #tpu.core_type<tc>, window_params = [{transform_indices = @transform_0, window_bounds = array<i64: 1, 44, 222, 9>}, {pipeline_mode = #tpu.pipeline_mode<synchronous>, transform_indices = @transform_1, window_bounds = array<i64: 3, 9, 32>}, {pipeline_mode = #tpu.pipeline_mode<synchronous>, transform_indices = @transform_2, window_bounds = array<i64: 1, 32>}, {transform_indices = @transform_3, window_bounds = array<i64: 1, 22, 110, 32>}]} {
    %c0 = arith.constant 0 : index
    %c0_0 = arith.constant 0 : index
    %0 = vector.load %arg4[%c0, %c0_0] : memref<1x32xf32, #tpu.memory_space<vmem>>, vector<1x32xf32>
    %c0_i32 = arith.constant 0 : i32
    %c22_i32 = arith.constant 22 : i32
    %1 = arith.addi %c0_i32, %c22_i32 : i32
    %c1_i32 = arith.constant 1 : i32
    scf.for %arg7 = %c0_i32 to %1 step %c1_i32  : i32 {
      %c2_i32 = arith.constant 2 : i32
      %2 = arith.muli %c2_i32, %arg7 : i32
      %c0_2 = arith.constant 0 : index
      %3 = arith.index_cast %2 : i32 to index
      %c0_3 = arith.constant 0 : index
      %c0_4 = arith.constant 0 : index
      %4 = vector.load %arg2[%c0_2, %3, %c0_3, %c0_4] : memref<1x44x222x9xbf16, #tpu.memory_space<vmem>>, vector<1x1x222x9xbf16>
      %5 = vector.shape_cast %4 : vector<1x1x222x9xbf16> to vector<222x9xbf16>
      %cst = arith.constant 0.000000e+00 : f32
      %6 = vector.broadcast %cst : f32 to vector<220x32xf32>
      %7 = vector.extract_strided_slice %5 {offsets = [0, 0], sizes = [220, 9], strides = [1, 1]} : vector<222x9xbf16> to vector<220x9xbf16>
      %c0_5 = arith.constant 0 : index
      %c0_6 = arith.constant 0 : index
      %c0_7 = arith.constant 0 : index
      %8 = vector.load %arg3[%c0_5, %c0_6, %c0_7] : memref<3x9x32xbf16, #tpu.memory_space<vmem>>, vector<1x9x32xbf16>
      %9 = vector.shape_cast %8 : vector<1x9x32xbf16> to vector<9x32xbf16>
      %cst_8 = arith.constant dense<0.000000e+00> : vector<220x32xf32>
      %10 = tpu.matmul %7, %9, %cst_8 {dimension_numbers = #tpu.dot_dimension_numbers<[1], [0], [0], [1], [0, 0, 1, 1], [], []>} : vector<220x9xbf16>, vector<9x32xbf16>, vector<220x32xf32> -> vector<220x32xf32>
      %11 = arith.addf %6, %10 : vector<220x32xf32>
      %12 = vector.extract_strided_slice %5 {offsets = [1, 0], sizes = [220, 9], strides = [1, 1]} : vector<222x9xbf16> to vector<220x9xbf16>
      %c1 = arith.constant 1 : index
      %c0_9 = arith.constant 0 : index
      %c0_10 = arith.constant 0 : index
      %13 = vector.load %arg3[%c1, %c0_9, %c0_10] : memref<3x9x32xbf16, #tpu.memory_space<vmem>>, vector<1x9x32xbf16>
      %14 = vector.shape_cast %13 : vector<1x9x32xbf16> to vector<9x32xbf16>
      %cst_11 = arith.constant dense<0.000000e+00> : vector<220x32xf32>
      %15 = tpu.matmul %12, %14, %cst_11 {dimension_numbers = #tpu.dot_dimension_numbers<[1], [0], [0], [1], [0, 0, 1, 1], [], []>} : vector<220x9xbf16>, vector<9x32xbf16>, vector<220x32xf32> -> vector<220x32xf32>
      %16 = arith.addf %11, %15 : vector<220x32xf32>
      %17 = vector.extract_strided_slice %5 {offsets = [2, 0], sizes = [220, 9], strides = [1, 1]} : vector<222x9xbf16> to vector<220x9xbf16>
      %c2 = arith.constant 2 : index
      %c0_12 = arith.constant 0 : index
      %c0_13 = arith.constant 0 : index
      %18 = vector.load %arg3[%c2, %c0_12, %c0_13] : memref<3x9x32xbf16, #tpu.memory_space<vmem>>, vector<1x9x32xbf16>
      %19 = vector.shape_cast %18 : vector<1x9x32xbf16> to vector<9x32xbf16>
      %cst_14 = arith.constant dense<0.000000e+00> : vector<220x32xf32>
      %20 = tpu.matmul %17, %19, %cst_14 {dimension_numbers = #tpu.dot_dimension_numbers<[1], [0], [0], [1], [0, 0, 1, 1], [], []>} : vector<220x9xbf16>, vector<9x32xbf16>, vector<220x32xf32> -> vector<220x32xf32>
      %21 = arith.addf %16, %20 : vector<220x32xf32>
      %c0_15 = arith.constant 0 : index
      %c0_16 = arith.constant 0 : index
      %22 = vector.load %arg6[%c0_15, %c0_16] : memref<220x32xf32, #tpu.memory_space<vmem>>, vector<220x32xf32>
      tpu.vector_store %arg6[%c0_15, %c0_16], %21 {strides = array<i32>} : memref<220x32xf32, #tpu.memory_space<vmem>>, vector<220x32xf32>,
      %c1_i32_17 = arith.constant 1 : i32
      %23 = arith.addi %2, %c1_i32_17 : i32
      %c0_18 = arith.constant 0 : index
      %24 = arith.index_cast %23 : i32 to index
      %c0_19 = arith.constant 0 : index
      %c0_20 = arith.constant 0 : index
      %25 = vector.load %arg2[%c0_18, %24, %c0_19, %c0_20] : memref<1x44x222x9xbf16, #tpu.memory_space<vmem>>, vector<1x1x222x9xbf16>
      %26 = vector.shape_cast %25 : vector<1x1x222x9xbf16> to vector<222x9xbf16>
      %cst_21 = arith.constant 0.000000e+00 : f32
      %27 = vector.broadcast %cst_21 : f32 to vector<220x32xf32>
      %28 = vector.extract_strided_slice %26 {offsets = [0, 0], sizes = [220, 9], strides = [1, 1]} : vector<222x9xbf16> to vector<220x9xbf16>
      %c0_22 = arith.constant 0 : index
      %c0_23 = arith.constant 0 : index
      %c0_24 = arith.constant 0 : index
      %29 = vector.load %arg3[%c0_22, %c0_23, %c0_24] : memref<3x9x32xbf16, #tpu.memory_space<vmem>>, vector<1x9x32xbf16>
      %30 = vector.shape_cast %29 : vector<1x9x32xbf16> to vector<9x32xbf16>
      %cst_25 = arith.constant dense<0.000000e+00> : vector<220x32xf32>
      %31 = tpu.matmul %28, %30, %cst_25 {dimension_numbers = #tpu.dot_dimension_numbers<[1], [0], [0], [1], [0, 0, 1, 1], [], []>} : vector<220x9xbf16>, vector<9x32xbf16>, vector<220x32xf32> -> vector<220x32xf32>
      %32 = arith.addf %27, %31 : vector<220x32xf32>
      %33 = vector.extract_strided_slice %26 {offsets = [1, 0], sizes = [220, 9], strides = [1, 1]} : vector<222x9xbf16> to vector<220x9xbf16>
      %c1_26 = arith.constant 1 : index
      %c0_27 = arith.constant 0 : index
      %c0_28 = arith.constant 0 : index
      %34 = vector.load %arg3[%c1_26, %c0_27, %c0_28] : memref<3x9x32xbf16, #tpu.memory_space<vmem>>, vector<1x9x32xbf16>
      %35 = vector.shape_cast %34 : vector<1x9x32xbf16> to vector<9x32xbf16>
      %cst_29 = arith.constant dense<0.000000e+00> : vector<220x32xf32>
      %36 = tpu.matmul %33, %35, %cst_29 {dimension_numbers = #tpu.dot_dimension_numbers<[1], [0], [0], [1], [0, 0, 1, 1], [], []>} : vector<220x9xbf16>, vector<9x32xbf16>, vector<220x32xf32> -> vector<220x32xf32>
      %37 = arith.addf %32, %36 : vector<220x32xf32>
      %38 = vector.extract_strided_slice %26 {offsets = [2, 0], sizes = [220, 9], strides = [1, 1]} : vector<222x9xbf16> to vector<220x9xbf16>
      %c2_30 = arith.constant 2 : index
      %c0_31 = arith.constant 0 : index
      %c0_32 = arith.constant 0 : index
      %39 = vector.load %arg3[%c2_30, %c0_31, %c0_32] : memref<3x9x32xbf16, #tpu.memory_space<vmem>>, vector<1x9x32xbf16>
      %40 = vector.shape_cast %39 : vector<1x9x32xbf16> to vector<9x32xbf16>
      %cst_33 = arith.constant dense<0.000000e+00> : vector<220x32xf32>
      %41 = tpu.matmul %38, %40, %cst_33 {dimension_numbers = #tpu.dot_dimension_numbers<[1], [0], [0], [1], [0, 0, 1, 1], [], []>} : vector<220x9xbf16>, vector<9x32xbf16>, vector<220x32xf32> -> vector<220x32xf32>
      %42 = arith.addf %37, %41 : vector<220x32xf32>
      %c0_34 = arith.constant 0 : index
      %c0_35 = arith.constant 0 : index
      %43 = vector.load %arg6[%c0_34, %c0_35] : memref<220x32xf32, #tpu.memory_space<vmem>>, vector<220x32xf32>
      %44 = arith.maximumf %43, %42 : vector<220x32xf32>
      %45 = vector.broadcast %0 : vector<1x32xf32> to vector<220x32xf32>
      %46 = arith.addf %44, %45 : vector<220x32xf32>
      %cst_36 = arith.constant 0.000000e+00 : f32
      %47 = vector.broadcast %cst_36 : f32 to vector<220x32xf32>
      %48 = arith.maximumf %46, %47 : vector<220x32xf32>
      %c0_37 = arith.constant 0 : index
      %c0_38 = arith.constant 0 : index
      %49 = vector.load %arg6[%c0_37, %c0_38] : memref<220x32xf32, #tpu.memory_space<vmem>>, vector<220x32xf32>
      tpu.vector_store %arg6[%c0_37, %c0_38], %48 {strides = array<i32>} : memref<220x32xf32, #tpu.memory_space<vmem>>, vector<220x32xf32>,
      %c0_39 = arith.constant 0 : index
      %c0_40 = arith.constant 0 : index
      %50 = tpu.strided_load %arg6[%c0_39, %c0_40] {strides = array<i32: 2, 1>} : memref<220x32xf32, #tpu.memory_space<vmem>>, vector<110x32xf32>
      %c1_41 = arith.constant 1 : index
      %c0_42 = arith.constant 0 : index
      %51 = tpu.strided_load %arg6[%c1_41, %c0_42] {strides = array<i32: 2, 1>} : memref<220x32xf32, #tpu.memory_space<vmem>>, vector<110x32xf32>
      %52 = arith.maximumf %50, %51 : vector<110x32xf32>
      %53 = arith.truncf %52 : vector<110x32xf32> to vector<110x32xbf16>
      %c0_43 = arith.constant 0 : index
      %54 = arith.index_cast %arg7 : i32 to index
      %c0_44 = arith.constant 0 : index
      %c0_45 = arith.constant 0 : index
      %55 = vector.load %arg5[%c0_43, %54, %c0_44, %c0_45] : memref<1x22x110x32xbf16, #tpu.memory_space<vmem>>, vector<1x1x110x32xbf16>
      %56 = vector.shape_cast %55 : vector<1x1x110x32xbf16> to vector<110x32xbf16>
      %57 = vector.shape_cast %53 : vector<110x32xbf16> to vector<1x1x110x32xbf16>
      tpu.vector_store %arg5[%c0_43, %54, %c0_44, %c0_45], %57 {strides = array<i32>} : memref<1x22x110x32xbf16, #tpu.memory_space<vmem>>, vector<1x1x110x32xbf16>,
    }
    %c22_i32_1 = arith.constant 22 : i32
    return
  }
  func.func @transform_0(%arg0: i32, %arg1: i32) -> (i32, i32, i32, i32) {
    %c0_i32 = arith.constant 0 : i32
    %c0_i32_0 = arith.constant 0 : i32
    %c0_i32_1 = arith.constant 0 : i32
    return %arg0, %arg1, %c0_i32, %c0_i32_0 : i32, i32, i32, i32
  }
  func.func @transform_1(%arg0: i32, %arg1: i32) -> (i32, i32, i32) {
    %c0_i32 = arith.constant 0 : i32
    %c0_i32_0 = arith.constant 0 : i32
    %c0_i32_1 = arith.constant 0 : i32
    %c0_i32_2 = arith.constant 0 : i32
    return %c0_i32, %c0_i32_0, %c0_i32_1 : i32, i32, i32
  }
  func.func @transform_2(%arg0: i32, %arg1: i32) -> (i32, i32) {
    %c0_i32 = arith.constant 0 : i32
    %c0_i32_0 = arith.constant 0 : i32
    %c0_i32_1 = arith.constant 0 : i32
    return %c0_i32, %c0_i32_0 : i32, i32
  }
  func.func @transform_3(%arg0: i32, %arg1: i32) -> (i32, i32, i32, i32) {
    %c0_i32 = arith.constant 0 : i32
    %c0_i32_0 = arith.constant 0 : i32
    %c0_i32_1 = arith.constant 0 : i32
    return %arg0, %arg1, %c0_i32, %c0_i32_0 : i32, i32, i32, i32
  }
}

module attributes {stable_mosaic.version = 11 : i64} {
  func.func @_conv_pool_kernel(%arg0: i32, %arg1: i32, %arg2: memref<1x36x110x96xbf16, #tpu.memory_space<vmem>>, %arg3: memref<3x96x64xbf16, #tpu.memory_space<vmem>>, %arg4: memref<1x64xf32, #tpu.memory_space<vmem>>, %arg5: memref<1x18x54x64xbf16, #tpu.memory_space<vmem>>, %arg6: memref<108x64xf32, #tpu.memory_space<vmem>>) attributes {dimension_semantics = [#tpu.dimension_semantics<parallel>, #tpu.dimension_semantics<parallel>], iteration_bounds = array<i64: 2, 3>, scalar_prefetch = 0 : i64, scratch_operands = 1 : i64, tpu.core_type = #tpu.core_type<tc>, window_params = [{transform_indices = @transform_0, window_bounds = array<i64: 1, 36, 110, 96>}, {pipeline_mode = #tpu.pipeline_mode<synchronous>, transform_indices = @transform_1, window_bounds = array<i64: 3, 96, 64>}, {pipeline_mode = #tpu.pipeline_mode<synchronous>, transform_indices = @transform_2, window_bounds = array<i64: 1, 64>}, {transform_indices = @transform_3, window_bounds = array<i64: 1, 18, 54, 64>}]} {
    %c0 = arith.constant 0 : index
    %c0_0 = arith.constant 0 : index
    %0 = vector.load %arg4[%c0, %c0_0] : memref<1x64xf32, #tpu.memory_space<vmem>>, vector<1x64xf32>
    %c0_i32 = arith.constant 0 : i32
    %c18_i32 = arith.constant 18 : i32
    %1 = arith.addi %c0_i32, %c18_i32 : i32
    %c1_i32 = arith.constant 1 : i32
    scf.for %arg7 = %c0_i32 to %1 step %c1_i32  : i32 {
      %c2_i32 = arith.constant 2 : i32
      %2 = arith.muli %c2_i32, %arg7 : i32
      %c0_2 = arith.constant 0 : index
      %3 = arith.index_cast %2 : i32 to index
      %c0_3 = arith.constant 0 : index
      %c0_4 = arith.constant 0 : index
      %4 = vector.load %arg2[%c0_2, %3, %c0_3, %c0_4] : memref<1x36x110x96xbf16, #tpu.memory_space<vmem>>, vector<1x1x110x96xbf16>
      %5 = vector.shape_cast %4 : vector<1x1x110x96xbf16> to vector<110x96xbf16>
      %cst = arith.constant 0.000000e+00 : f32
      %6 = vector.broadcast %cst : f32 to vector<108x64xf32>
      %7 = vector.extract_strided_slice %5 {offsets = [0, 0], sizes = [108, 96], strides = [1, 1]} : vector<110x96xbf16> to vector<108x96xbf16>
      %c0_5 = arith.constant 0 : index
      %c0_6 = arith.constant 0 : index
      %c0_7 = arith.constant 0 : index
      %8 = vector.load %arg3[%c0_5, %c0_6, %c0_7] : memref<3x96x64xbf16, #tpu.memory_space<vmem>>, vector<1x96x64xbf16>
      %9 = vector.shape_cast %8 : vector<1x96x64xbf16> to vector<96x64xbf16>
      %cst_8 = arith.constant dense<0.000000e+00> : vector<108x64xf32>
      %10 = tpu.matmul %7, %9, %cst_8 {dimension_numbers = #tpu.dot_dimension_numbers<[1], [0], [0], [1], [0, 0, 1, 1], [], []>} : vector<108x96xbf16>, vector<96x64xbf16>, vector<108x64xf32> -> vector<108x64xf32>
      %11 = arith.addf %6, %10 : vector<108x64xf32>
      %12 = vector.extract_strided_slice %5 {offsets = [1, 0], sizes = [108, 96], strides = [1, 1]} : vector<110x96xbf16> to vector<108x96xbf16>
      %c1 = arith.constant 1 : index
      %c0_9 = arith.constant 0 : index
      %c0_10 = arith.constant 0 : index
      %13 = vector.load %arg3[%c1, %c0_9, %c0_10] : memref<3x96x64xbf16, #tpu.memory_space<vmem>>, vector<1x96x64xbf16>
      %14 = vector.shape_cast %13 : vector<1x96x64xbf16> to vector<96x64xbf16>
      %cst_11 = arith.constant dense<0.000000e+00> : vector<108x64xf32>
      %15 = tpu.matmul %12, %14, %cst_11 {dimension_numbers = #tpu.dot_dimension_numbers<[1], [0], [0], [1], [0, 0, 1, 1], [], []>} : vector<108x96xbf16>, vector<96x64xbf16>, vector<108x64xf32> -> vector<108x64xf32>
      %16 = arith.addf %11, %15 : vector<108x64xf32>
      %17 = vector.extract_strided_slice %5 {offsets = [2, 0], sizes = [108, 96], strides = [1, 1]} : vector<110x96xbf16> to vector<108x96xbf16>
      %c2 = arith.constant 2 : index
      %c0_12 = arith.constant 0 : index
      %c0_13 = arith.constant 0 : index
      %18 = vector.load %arg3[%c2, %c0_12, %c0_13] : memref<3x96x64xbf16, #tpu.memory_space<vmem>>, vector<1x96x64xbf16>
      %19 = vector.shape_cast %18 : vector<1x96x64xbf16> to vector<96x64xbf16>
      %cst_14 = arith.constant dense<0.000000e+00> : vector<108x64xf32>
      %20 = tpu.matmul %17, %19, %cst_14 {dimension_numbers = #tpu.dot_dimension_numbers<[1], [0], [0], [1], [0, 0, 1, 1], [], []>} : vector<108x96xbf16>, vector<96x64xbf16>, vector<108x64xf32> -> vector<108x64xf32>
      %21 = arith.addf %16, %20 : vector<108x64xf32>
      %c0_15 = arith.constant 0 : index
      %c0_16 = arith.constant 0 : index
      %22 = vector.load %arg6[%c0_15, %c0_16] : memref<108x64xf32, #tpu.memory_space<vmem>>, vector<108x64xf32>
      tpu.vector_store %arg6[%c0_15, %c0_16], %21 {strides = array<i32>} : memref<108x64xf32, #tpu.memory_space<vmem>>, vector<108x64xf32>,
      %c1_i32_17 = arith.constant 1 : i32
      %23 = arith.addi %2, %c1_i32_17 : i32
      %c0_18 = arith.constant 0 : index
      %24 = arith.index_cast %23 : i32 to index
      %c0_19 = arith.constant 0 : index
      %c0_20 = arith.constant 0 : index
      %25 = vector.load %arg2[%c0_18, %24, %c0_19, %c0_20] : memref<1x36x110x96xbf16, #tpu.memory_space<vmem>>, vector<1x1x110x96xbf16>
      %26 = vector.shape_cast %25 : vector<1x1x110x96xbf16> to vector<110x96xbf16>
      %cst_21 = arith.constant 0.000000e+00 : f32
      %27 = vector.broadcast %cst_21 : f32 to vector<108x64xf32>
      %28 = vector.extract_strided_slice %26 {offsets = [0, 0], sizes = [108, 96], strides = [1, 1]} : vector<110x96xbf16> to vector<108x96xbf16>
      %c0_22 = arith.constant 0 : index
      %c0_23 = arith.constant 0 : index
      %c0_24 = arith.constant 0 : index
      %29 = vector.load %arg3[%c0_22, %c0_23, %c0_24] : memref<3x96x64xbf16, #tpu.memory_space<vmem>>, vector<1x96x64xbf16>
      %30 = vector.shape_cast %29 : vector<1x96x64xbf16> to vector<96x64xbf16>
      %cst_25 = arith.constant dense<0.000000e+00> : vector<108x64xf32>
      %31 = tpu.matmul %28, %30, %cst_25 {dimension_numbers = #tpu.dot_dimension_numbers<[1], [0], [0], [1], [0, 0, 1, 1], [], []>} : vector<108x96xbf16>, vector<96x64xbf16>, vector<108x64xf32> -> vector<108x64xf32>
      %32 = arith.addf %27, %31 : vector<108x64xf32>
      %33 = vector.extract_strided_slice %26 {offsets = [1, 0], sizes = [108, 96], strides = [1, 1]} : vector<110x96xbf16> to vector<108x96xbf16>
      %c1_26 = arith.constant 1 : index
      %c0_27 = arith.constant 0 : index
      %c0_28 = arith.constant 0 : index
      %34 = vector.load %arg3[%c1_26, %c0_27, %c0_28] : memref<3x96x64xbf16, #tpu.memory_space<vmem>>, vector<1x96x64xbf16>
      %35 = vector.shape_cast %34 : vector<1x96x64xbf16> to vector<96x64xbf16>
      %cst_29 = arith.constant dense<0.000000e+00> : vector<108x64xf32>
      %36 = tpu.matmul %33, %35, %cst_29 {dimension_numbers = #tpu.dot_dimension_numbers<[1], [0], [0], [1], [0, 0, 1, 1], [], []>} : vector<108x96xbf16>, vector<96x64xbf16>, vector<108x64xf32> -> vector<108x64xf32>
      %37 = arith.addf %32, %36 : vector<108x64xf32>
      %38 = vector.extract_strided_slice %26 {offsets = [2, 0], sizes = [108, 96], strides = [1, 1]} : vector<110x96xbf16> to vector<108x96xbf16>
      %c2_30 = arith.constant 2 : index
      %c0_31 = arith.constant 0 : index
      %c0_32 = arith.constant 0 : index
      %39 = vector.load %arg3[%c2_30, %c0_31, %c0_32] : memref<3x96x64xbf16, #tpu.memory_space<vmem>>, vector<1x96x64xbf16>
      %40 = vector.shape_cast %39 : vector<1x96x64xbf16> to vector<96x64xbf16>
      %cst_33 = arith.constant dense<0.000000e+00> : vector<108x64xf32>
      %41 = tpu.matmul %38, %40, %cst_33 {dimension_numbers = #tpu.dot_dimension_numbers<[1], [0], [0], [1], [0, 0, 1, 1], [], []>} : vector<108x96xbf16>, vector<96x64xbf16>, vector<108x64xf32> -> vector<108x64xf32>
      %42 = arith.addf %37, %41 : vector<108x64xf32>
      %c0_34 = arith.constant 0 : index
      %c0_35 = arith.constant 0 : index
      %43 = vector.load %arg6[%c0_34, %c0_35] : memref<108x64xf32, #tpu.memory_space<vmem>>, vector<108x64xf32>
      %44 = arith.maximumf %43, %42 : vector<108x64xf32>
      %45 = vector.broadcast %0 : vector<1x64xf32> to vector<108x64xf32>
      %46 = arith.addf %44, %45 : vector<108x64xf32>
      %cst_36 = arith.constant 0.000000e+00 : f32
      %47 = vector.broadcast %cst_36 : f32 to vector<108x64xf32>
      %48 = arith.maximumf %46, %47 : vector<108x64xf32>
      %c0_37 = arith.constant 0 : index
      %c0_38 = arith.constant 0 : index
      %49 = vector.load %arg6[%c0_37, %c0_38] : memref<108x64xf32, #tpu.memory_space<vmem>>, vector<108x64xf32>
      tpu.vector_store %arg6[%c0_37, %c0_38], %48 {strides = array<i32>} : memref<108x64xf32, #tpu.memory_space<vmem>>, vector<108x64xf32>,
      %c0_39 = arith.constant 0 : index
      %c0_40 = arith.constant 0 : index
      %50 = tpu.strided_load %arg6[%c0_39, %c0_40] {strides = array<i32: 2, 1>} : memref<108x64xf32, #tpu.memory_space<vmem>>, vector<54x64xf32>
      %c1_41 = arith.constant 1 : index
      %c0_42 = arith.constant 0 : index
      %51 = tpu.strided_load %arg6[%c1_41, %c0_42] {strides = array<i32: 2, 1>} : memref<108x64xf32, #tpu.memory_space<vmem>>, vector<54x64xf32>
      %52 = arith.maximumf %50, %51 : vector<54x64xf32>
      %53 = arith.truncf %52 : vector<54x64xf32> to vector<54x64xbf16>
      %c0_43 = arith.constant 0 : index
      %54 = arith.index_cast %arg7 : i32 to index
      %c0_44 = arith.constant 0 : index
      %c0_45 = arith.constant 0 : index
      %55 = vector.load %arg5[%c0_43, %54, %c0_44, %c0_45] : memref<1x18x54x64xbf16, #tpu.memory_space<vmem>>, vector<1x1x54x64xbf16>
      %56 = vector.shape_cast %55 : vector<1x1x54x64xbf16> to vector<54x64xbf16>
      %57 = vector.shape_cast %53 : vector<54x64xbf16> to vector<1x1x54x64xbf16>
      tpu.vector_store %arg5[%c0_43, %54, %c0_44, %c0_45], %57 {strides = array<i32>} : memref<1x18x54x64xbf16, #tpu.memory_space<vmem>>, vector<1x1x54x64xbf16>,
    }
    %c18_i32_1 = arith.constant 18 : i32
    return
  }
  func.func @transform_0(%arg0: i32, %arg1: i32) -> (i32, i32, i32, i32) {
    %c0_i32 = arith.constant 0 : i32
    %c0_i32_0 = arith.constant 0 : i32
    %c0_i32_1 = arith.constant 0 : i32
    return %arg0, %arg1, %c0_i32, %c0_i32_0 : i32, i32, i32, i32
  }
  func.func @transform_1(%arg0: i32, %arg1: i32) -> (i32, i32, i32) {
    %c0_i32 = arith.constant 0 : i32
    %c0_i32_0 = arith.constant 0 : i32
    %c0_i32_1 = arith.constant 0 : i32
    %c0_i32_2 = arith.constant 0 : i32
    return %c0_i32, %c0_i32_0, %c0_i32_1 : i32, i32, i32
  }
  func.func @transform_2(%arg0: i32, %arg1: i32) -> (i32, i32) {
    %c0_i32 = arith.constant 0 : i32
    %c0_i32_0 = arith.constant 0 : i32
    %c0_i32_1 = arith.constant 0 : i32
    return %c0_i32, %c0_i32_0 : i32, i32
  }
  func.func @transform_3(%arg0: i32, %arg1: i32) -> (i32, i32, i32, i32) {
    %c0_i32 = arith.constant 0 : i32
    %c0_i32_0 = arith.constant 0 : i32
    %c0_i32_1 = arith.constant 0 : i32
    return %arg0, %arg1, %c0_i32, %c0_i32_0 : i32, i32, i32, i32
  }
}

module attributes {stable_mosaic.version = 11 : i64} {
  func.func @_conv_pool_kernel(%arg0: i32, %arg1: i32, %arg2: memref<1x26x54x192xbf16, #tpu.memory_space<vmem>>, %arg3: memref<3x192x128xbf16, #tpu.memory_space<vmem>>, %arg4: memref<1x128xf32, #tpu.memory_space<vmem>>, %arg5: memref<1x13x26x128xbf16, #tpu.memory_space<vmem>>, %arg6: memref<52x128xf32, #tpu.memory_space<vmem>>) attributes {dimension_semantics = [#tpu.dimension_semantics<parallel>, #tpu.dimension_semantics<parallel>], iteration_bounds = array<i64: 2, 2>, scalar_prefetch = 0 : i64, scratch_operands = 1 : i64, tpu.core_type = #tpu.core_type<tc>, window_params = [{transform_indices = @transform_0, window_bounds = array<i64: 1, 26, 54, 192>}, {pipeline_mode = #tpu.pipeline_mode<synchronous>, transform_indices = @transform_1, window_bounds = array<i64: 3, 192, 128>}, {pipeline_mode = #tpu.pipeline_mode<synchronous>, transform_indices = @transform_2, window_bounds = array<i64: 1, 128>}, {transform_indices = @transform_3, window_bounds = array<i64: 1, 13, 26, 128>}]} {
    %c0 = arith.constant 0 : index
    %c0_0 = arith.constant 0 : index
    %0 = vector.load %arg4[%c0, %c0_0] : memref<1x128xf32, #tpu.memory_space<vmem>>, vector<1x128xf32>
    %c0_i32 = arith.constant 0 : i32
    %c13_i32 = arith.constant 13 : i32
    %1 = arith.addi %c0_i32, %c13_i32 : i32
    %c1_i32 = arith.constant 1 : i32
    scf.for %arg7 = %c0_i32 to %1 step %c1_i32  : i32 {
      %c2_i32 = arith.constant 2 : i32
      %2 = arith.muli %c2_i32, %arg7 : i32
      %c0_2 = arith.constant 0 : index
      %3 = arith.index_cast %2 : i32 to index
      %c0_3 = arith.constant 0 : index
      %c0_4 = arith.constant 0 : index
      %4 = vector.load %arg2[%c0_2, %3, %c0_3, %c0_4] : memref<1x26x54x192xbf16, #tpu.memory_space<vmem>>, vector<1x1x54x192xbf16>
      %5 = vector.shape_cast %4 : vector<1x1x54x192xbf16> to vector<54x192xbf16>
      %cst = arith.constant 0.000000e+00 : f32
      %6 = vector.broadcast %cst : f32 to vector<52x128xf32>
      %7 = vector.extract_strided_slice %5 {offsets = [0, 0], sizes = [52, 192], strides = [1, 1]} : vector<54x192xbf16> to vector<52x192xbf16>
      %c0_5 = arith.constant 0 : index
      %c0_6 = arith.constant 0 : index
      %c0_7 = arith.constant 0 : index
      %8 = vector.load %arg3[%c0_5, %c0_6, %c0_7] : memref<3x192x128xbf16, #tpu.memory_space<vmem>>, vector<1x192x128xbf16>
      %9 = vector.shape_cast %8 : vector<1x192x128xbf16> to vector<192x128xbf16>
      %cst_8 = arith.constant dense<0.000000e+00> : vector<52x128xf32>
      %10 = tpu.matmul %7, %9, %cst_8 {dimension_numbers = #tpu.dot_dimension_numbers<[1], [0], [0], [1], [0, 0, 1, 1], [], []>} : vector<52x192xbf16>, vector<192x128xbf16>, vector<52x128xf32> -> vector<52x128xf32>
      %11 = arith.addf %6, %10 : vector<52x128xf32>
      %12 = vector.extract_strided_slice %5 {offsets = [1, 0], sizes = [52, 192], strides = [1, 1]} : vector<54x192xbf16> to vector<52x192xbf16>
      %c1 = arith.constant 1 : index
      %c0_9 = arith.constant 0 : index
      %c0_10 = arith.constant 0 : index
      %13 = vector.load %arg3[%c1, %c0_9, %c0_10] : memref<3x192x128xbf16, #tpu.memory_space<vmem>>, vector<1x192x128xbf16>
      %14 = vector.shape_cast %13 : vector<1x192x128xbf16> to vector<192x128xbf16>
      %cst_11 = arith.constant dense<0.000000e+00> : vector<52x128xf32>
      %15 = tpu.matmul %12, %14, %cst_11 {dimension_numbers = #tpu.dot_dimension_numbers<[1], [0], [0], [1], [0, 0, 1, 1], [], []>} : vector<52x192xbf16>, vector<192x128xbf16>, vector<52x128xf32> -> vector<52x128xf32>
      %16 = arith.addf %11, %15 : vector<52x128xf32>
      %17 = vector.extract_strided_slice %5 {offsets = [2, 0], sizes = [52, 192], strides = [1, 1]} : vector<54x192xbf16> to vector<52x192xbf16>
      %c2 = arith.constant 2 : index
      %c0_12 = arith.constant 0 : index
      %c0_13 = arith.constant 0 : index
      %18 = vector.load %arg3[%c2, %c0_12, %c0_13] : memref<3x192x128xbf16, #tpu.memory_space<vmem>>, vector<1x192x128xbf16>
      %19 = vector.shape_cast %18 : vector<1x192x128xbf16> to vector<192x128xbf16>
      %cst_14 = arith.constant dense<0.000000e+00> : vector<52x128xf32>
      %20 = tpu.matmul %17, %19, %cst_14 {dimension_numbers = #tpu.dot_dimension_numbers<[1], [0], [0], [1], [0, 0, 1, 1], [], []>} : vector<52x192xbf16>, vector<192x128xbf16>, vector<52x128xf32> -> vector<52x128xf32>
      %21 = arith.addf %16, %20 : vector<52x128xf32>
      %c0_15 = arith.constant 0 : index
      %c0_16 = arith.constant 0 : index
      %22 = vector.load %arg6[%c0_15, %c0_16] : memref<52x128xf32, #tpu.memory_space<vmem>>, vector<52x128xf32>
      tpu.vector_store %arg6[%c0_15, %c0_16], %21 {strides = array<i32>} : memref<52x128xf32, #tpu.memory_space<vmem>>, vector<52x128xf32>,
      %c1_i32_17 = arith.constant 1 : i32
      %23 = arith.addi %2, %c1_i32_17 : i32
      %c0_18 = arith.constant 0 : index
      %24 = arith.index_cast %23 : i32 to index
      %c0_19 = arith.constant 0 : index
      %c0_20 = arith.constant 0 : index
      %25 = vector.load %arg2[%c0_18, %24, %c0_19, %c0_20] : memref<1x26x54x192xbf16, #tpu.memory_space<vmem>>, vector<1x1x54x192xbf16>
      %26 = vector.shape_cast %25 : vector<1x1x54x192xbf16> to vector<54x192xbf16>
      %cst_21 = arith.constant 0.000000e+00 : f32
      %27 = vector.broadcast %cst_21 : f32 to vector<52x128xf32>
      %28 = vector.extract_strided_slice %26 {offsets = [0, 0], sizes = [52, 192], strides = [1, 1]} : vector<54x192xbf16> to vector<52x192xbf16>
      %c0_22 = arith.constant 0 : index
      %c0_23 = arith.constant 0 : index
      %c0_24 = arith.constant 0 : index
      %29 = vector.load %arg3[%c0_22, %c0_23, %c0_24] : memref<3x192x128xbf16, #tpu.memory_space<vmem>>, vector<1x192x128xbf16>
      %30 = vector.shape_cast %29 : vector<1x192x128xbf16> to vector<192x128xbf16>
      %cst_25 = arith.constant dense<0.000000e+00> : vector<52x128xf32>
      %31 = tpu.matmul %28, %30, %cst_25 {dimension_numbers = #tpu.dot_dimension_numbers<[1], [0], [0], [1], [0, 0, 1, 1], [], []>} : vector<52x192xbf16>, vector<192x128xbf16>, vector<52x128xf32> -> vector<52x128xf32>
      %32 = arith.addf %27, %31 : vector<52x128xf32>
      %33 = vector.extract_strided_slice %26 {offsets = [1, 0], sizes = [52, 192], strides = [1, 1]} : vector<54x192xbf16> to vector<52x192xbf16>
      %c1_26 = arith.constant 1 : index
      %c0_27 = arith.constant 0 : index
      %c0_28 = arith.constant 0 : index
      %34 = vector.load %arg3[%c1_26, %c0_27, %c0_28] : memref<3x192x128xbf16, #tpu.memory_space<vmem>>, vector<1x192x128xbf16>
      %35 = vector.shape_cast %34 : vector<1x192x128xbf16> to vector<192x128xbf16>
      %cst_29 = arith.constant dense<0.000000e+00> : vector<52x128xf32>
      %36 = tpu.matmul %33, %35, %cst_29 {dimension_numbers = #tpu.dot_dimension_numbers<[1], [0], [0], [1], [0, 0, 1, 1], [], []>} : vector<52x192xbf16>, vector<192x128xbf16>, vector<52x128xf32> -> vector<52x128xf32>
      %37 = arith.addf %32, %36 : vector<52x128xf32>
      %38 = vector.extract_strided_slice %26 {offsets = [2, 0], sizes = [52, 192], strides = [1, 1]} : vector<54x192xbf16> to vector<52x192xbf16>
      %c2_30 = arith.constant 2 : index
      %c0_31 = arith.constant 0 : index
      %c0_32 = arith.constant 0 : index
      %39 = vector.load %arg3[%c2_30, %c0_31, %c0_32] : memref<3x192x128xbf16, #tpu.memory_space<vmem>>, vector<1x192x128xbf16>
      %40 = vector.shape_cast %39 : vector<1x192x128xbf16> to vector<192x128xbf16>
      %cst_33 = arith.constant dense<0.000000e+00> : vector<52x128xf32>
      %41 = tpu.matmul %38, %40, %cst_33 {dimension_numbers = #tpu.dot_dimension_numbers<[1], [0], [0], [1], [0, 0, 1, 1], [], []>} : vector<52x192xbf16>, vector<192x128xbf16>, vector<52x128xf32> -> vector<52x128xf32>
      %42 = arith.addf %37, %41 : vector<52x128xf32>
      %c0_34 = arith.constant 0 : index
      %c0_35 = arith.constant 0 : index
      %43 = vector.load %arg6[%c0_34, %c0_35] : memref<52x128xf32, #tpu.memory_space<vmem>>, vector<52x128xf32>
      %44 = arith.maximumf %43, %42 : vector<52x128xf32>
      %45 = vector.broadcast %0 : vector<1x128xf32> to vector<52x128xf32>
      %46 = arith.addf %44, %45 : vector<52x128xf32>
      %cst_36 = arith.constant 0.000000e+00 : f32
      %47 = vector.broadcast %cst_36 : f32 to vector<52x128xf32>
      %48 = arith.maximumf %46, %47 : vector<52x128xf32>
      %c0_37 = arith.constant 0 : index
      %c0_38 = arith.constant 0 : index
      %49 = vector.load %arg6[%c0_37, %c0_38] : memref<52x128xf32, #tpu.memory_space<vmem>>, vector<52x128xf32>
      tpu.vector_store %arg6[%c0_37, %c0_38], %48 {strides = array<i32>} : memref<52x128xf32, #tpu.memory_space<vmem>>, vector<52x128xf32>,
      %c0_39 = arith.constant 0 : index
      %c0_40 = arith.constant 0 : index
      %50 = tpu.strided_load %arg6[%c0_39, %c0_40] {strides = array<i32: 2, 1>} : memref<52x128xf32, #tpu.memory_space<vmem>>, vector<26x128xf32>
      %c1_41 = arith.constant 1 : index
      %c0_42 = arith.constant 0 : index
      %51 = tpu.strided_load %arg6[%c1_41, %c0_42] {strides = array<i32: 2, 1>} : memref<52x128xf32, #tpu.memory_space<vmem>>, vector<26x128xf32>
      %52 = arith.maximumf %50, %51 : vector<26x128xf32>
      %53 = arith.truncf %52 : vector<26x128xf32> to vector<26x128xbf16>
      %c0_43 = arith.constant 0 : index
      %54 = arith.index_cast %arg7 : i32 to index
      %c0_44 = arith.constant 0 : index
      %c0_45 = arith.constant 0 : index
      %55 = vector.load %arg5[%c0_43, %54, %c0_44, %c0_45] : memref<1x13x26x128xbf16, #tpu.memory_space<vmem>>, vector<1x1x26x128xbf16>
      %56 = vector.shape_cast %55 : vector<1x1x26x128xbf16> to vector<26x128xbf16>
      %57 = vector.shape_cast %53 : vector<26x128xbf16> to vector<1x1x26x128xbf16>
      tpu.vector_store %arg5[%c0_43, %54, %c0_44, %c0_45], %57 {strides = array<i32>} : memref<1x13x26x128xbf16, #tpu.memory_space<vmem>>, vector<1x1x26x128xbf16>,
    }
    %c13_i32_1 = arith.constant 13 : i32
    return
  }
  func.func @transform_0(%arg0: i32, %arg1: i32) -> (i32, i32, i32, i32) {
    %c0_i32 = arith.constant 0 : i32
    %c0_i32_0 = arith.constant 0 : i32
    %c0_i32_1 = arith.constant 0 : i32
    return %arg0, %arg1, %c0_i32, %c0_i32_0 : i32, i32, i32, i32
  }
  func.func @transform_1(%arg0: i32, %arg1: i32) -> (i32, i32, i32) {
    %c0_i32 = arith.constant 0 : i32
    %c0_i32_0 = arith.constant 0 : i32
    %c0_i32_1 = arith.constant 0 : i32
    %c0_i32_2 = arith.constant 0 : i32
    return %c0_i32, %c0_i32_0, %c0_i32_1 : i32, i32, i32
  }
  func.func @transform_2(%arg0: i32, %arg1: i32) -> (i32, i32) {
    %c0_i32 = arith.constant 0 : i32
    %c0_i32_0 = arith.constant 0 : i32
    %c0_i32_1 = arith.constant 0 : i32
    return %c0_i32, %c0_i32_0 : i32, i32
  }
  func.func @transform_3(%arg0: i32, %arg1: i32) -> (i32, i32, i32, i32) {
    %c0_i32 = arith.constant 0 : i32
    %c0_i32_0 = arith.constant 0 : i32
    %c0_i32_1 = arith.constant 0 : i32
    return %arg0, %arg1, %c0_i32, %c0_i32_0 : i32, i32, i32, i32
  }
}

module attributes {stable_mosaic.version = 11 : i64} {
  func.func @_matmul_bias_kernel(%arg0: i32, %arg1: i32, %arg2: memref<2x6656xbf16, #tpu.memory_space<vmem>>, %arg3: memref<6656x128xbf16, #tpu.memory_space<vmem>>, %arg4: memref<1x128xf32, #tpu.memory_space<vmem>>, %arg5: memref<2x128xbf16, #tpu.memory_space<vmem>>, %arg6: memref<2x128xf32, #tpu.memory_space<vmem>>) attributes {dimension_semantics = [#tpu.dimension_semantics<parallel>, #tpu.dimension_semantics<arbitrary>], iteration_bounds = array<i64: 2, 13>, scalar_prefetch = 0 : i64, scratch_operands = 1 : i64, tpu.core_type = #tpu.core_type<tc>, window_params = [{transform_indices = @transform_0, window_bounds = array<i64: 2, 6656>}, {transform_indices = @transform_1, window_bounds = array<i64: 6656, 128>}, {transform_indices = @transform_2, window_bounds = array<i64: 1, 128>}, {transform_indices = @transform_3, window_bounds = array<i64: 2, 128>}]} {
    %c0_i32 = arith.constant 0 : i32
    %0 = arith.cmpi eq, %arg1, %c0_i32 : i32
    %1 = arith.extui %0 : i1 to i32
    %c0_i32_0 = arith.constant 0 : i32
    %2 = arith.cmpi ne, %1, %c0_i32_0 : i32
    scf.if %2 {
      %cst_9 = arith.constant 0.000000e+00 : f32
      %12 = vector.broadcast %cst_9 : f32 to vector<2x128xf32>
      %c0_10 = arith.constant 0 : index
      %c0_11 = arith.constant 0 : index
      %13 = vector.load %arg6[%c0_10, %c0_11] : memref<2x128xf32, #tpu.memory_space<vmem>>, vector<2x128xf32>
      tpu.vector_store %arg6[%c0_10, %c0_11], %12 {strides = array<i32>} : memref<2x128xf32, #tpu.memory_space<vmem>>, vector<2x128xf32>,
    } else {
    }
    %c0 = arith.constant 0 : index
    %c0_1 = arith.constant 0 : index
    %3 = vector.load %arg6[%c0, %c0_1] : memref<2x128xf32, #tpu.memory_space<vmem>>, vector<2x128xf32>
    %c0_2 = arith.constant 0 : index
    %c0_3 = arith.constant 0 : index
    %4 = vector.load %arg2[%c0_2, %c0_3] : memref<2x6656xbf16, #tpu.memory_space<vmem>>, vector<2x6656xbf16>
    %c0_4 = arith.constant 0 : index
    %c0_5 = arith.constant 0 : index
    %5 = vector.load %arg3[%c0_4, %c0_5] : memref<6656x128xbf16, #tpu.memory_space<vmem>>, vector<6656x128xbf16>
    %cst = arith.constant dense<0.000000e+00> : vector<2x128xf32>
    %6 = tpu.matmul %4, %5, %cst {dimension_numbers = #tpu.dot_dimension_numbers<[1], [0], [0], [1], [0, 0, 1, 1], [], []>} : vector<2x6656xbf16>, vector<6656x128xbf16>, vector<2x128xf32> -> vector<2x128xf32>
    %7 = arith.addf %3, %6 : vector<2x128xf32>
    %c0_6 = arith.constant 0 : index
    %c0_7 = arith.constant 0 : index
    %8 = vector.load %arg6[%c0_6, %c0_7] : memref<2x128xf32, #tpu.memory_space<vmem>>, vector<2x128xf32>
    tpu.vector_store %arg6[%c0_6, %c0_7], %7 {strides = array<i32>} : memref<2x128xf32, #tpu.memory_space<vmem>>, vector<2x128xf32>,
    %c12_i32 = arith.constant 12 : i32
    %9 = arith.cmpi eq, %arg1, %c12_i32 : i32
    %10 = arith.extui %9 : i1 to i32
    %c0_i32_8 = arith.constant 0 : i32
    %11 = arith.cmpi ne, %10, %c0_i32_8 : i32
    scf.if %11 {
      %c0_9 = arith.constant 0 : index
      %c0_10 = arith.constant 0 : index
      %12 = vector.load %arg6[%c0_9, %c0_10] : memref<2x128xf32, #tpu.memory_space<vmem>>, vector<2x128xf32>
      %c0_11 = arith.constant 0 : index
      %c0_12 = arith.constant 0 : index
      %13 = vector.load %arg4[%c0_11, %c0_12] : memref<1x128xf32, #tpu.memory_space<vmem>>, vector<1x128xf32>
      %14 = vector.broadcast %13 : vector<1x128xf32> to vector<2x128xf32>
      %15 = arith.addf %12, %14 : vector<2x128xf32>
      %cst_13 = arith.constant 0.000000e+00 : f32
      %16 = vector.broadcast %cst_13 : f32 to vector<2x128xf32>
      %17 = arith.maximumf %15, %16 : vector<2x128xf32>
      %18 = arith.truncf %17 : vector<2x128xf32> to vector<2x128xbf16>
      %c0_14 = arith.constant 0 : index
      %c0_15 = arith.constant 0 : index
      %19 = vector.load %arg5[%c0_14, %c0_15] : memref<2x128xbf16, #tpu.memory_space<vmem>>, vector<2x128xbf16>
      tpu.vector_store %arg5[%c0_14, %c0_15], %18 {strides = array<i32>} : memref<2x128xbf16, #tpu.memory_space<vmem>>, vector<2x128xbf16>,
    } else {
    }
    return
  }
  func.func @transform_0(%arg0: i32, %arg1: i32) -> (i32, i32) {
    %c0_i32 = arith.constant 0 : i32
    %c0_i32_0 = arith.constant 0 : i32
    return %c0_i32, %arg1 : i32, i32
  }
  func.func @transform_1(%arg0: i32, %arg1: i32) -> (i32, i32) {
    %c0_i32 = arith.constant 0 : i32
    return %arg1, %arg0 : i32, i32
  }
  func.func @transform_2(%arg0: i32, %arg1: i32) -> (i32, i32) {
    %c0_i32 = arith.constant 0 : i32
    %c0_i32_0 = arith.constant 0 : i32
    return %c0_i32, %arg0 : i32, i32
  }
  func.func @transform_3(%arg0: i32, %arg1: i32) -> (i32, i32) {
    %c0_i32 = arith.constant 0 : i32
    %c0_i32_0 = arith.constant 0 : i32
    return %c0_i32, %arg0 : i32, i32
  }
}

module attributes {stable_mosaic.version = 11 : i64} {
  func.func @_matmul_bias_kernel(%arg0: i32, %arg1: i32, %arg2: memref<2x256xbf16, #tpu.memory_space<vmem>>, %arg3: memref<256x128xbf16, #tpu.memory_space<vmem>>, %arg4: memref<1x128xf32, #tpu.memory_space<vmem>>, %arg5: memref<2x128xbf16, #tpu.memory_space<vmem>>, %arg6: memref<2x128xf32, #tpu.memory_space<vmem>>) attributes {dimension_semantics = [#tpu.dimension_semantics<parallel>, #tpu.dimension_semantics<arbitrary>], iteration_bounds = array<i64: 2, 1>, scalar_prefetch = 0 : i64, scratch_operands = 1 : i64, tpu.core_type = #tpu.core_type<tc>, window_params = [{transform_indices = @transform_0, window_bounds = array<i64: 2, 256>}, {transform_indices = @transform_1, window_bounds = array<i64: 256, 128>}, {transform_indices = @transform_2, window_bounds = array<i64: 1, 128>}, {transform_indices = @transform_3, window_bounds = array<i64: 2, 128>}]} {
    %c0_i32 = arith.constant 0 : i32
    %0 = arith.cmpi eq, %arg1, %c0_i32 : i32
    %1 = arith.extui %0 : i1 to i32
    %c0_i32_0 = arith.constant 0 : i32
    %2 = arith.cmpi ne, %1, %c0_i32_0 : i32
    scf.if %2 {
      %cst_10 = arith.constant 0.000000e+00 : f32
      %12 = vector.broadcast %cst_10 : f32 to vector<2x128xf32>
      %c0_11 = arith.constant 0 : index
      %c0_12 = arith.constant 0 : index
      %13 = vector.load %arg6[%c0_11, %c0_12] : memref<2x128xf32, #tpu.memory_space<vmem>>, vector<2x128xf32>
      tpu.vector_store %arg6[%c0_11, %c0_12], %12 {strides = array<i32>} : memref<2x128xf32, #tpu.memory_space<vmem>>, vector<2x128xf32>,
    } else {
    }
    %c0 = arith.constant 0 : index
    %c0_1 = arith.constant 0 : index
    %3 = vector.load %arg6[%c0, %c0_1] : memref<2x128xf32, #tpu.memory_space<vmem>>, vector<2x128xf32>
    %c0_2 = arith.constant 0 : index
    %c0_3 = arith.constant 0 : index
    %4 = vector.load %arg2[%c0_2, %c0_3] : memref<2x256xbf16, #tpu.memory_space<vmem>>, vector<2x256xbf16>
    %c0_4 = arith.constant 0 : index
    %c0_5 = arith.constant 0 : index
    %5 = vector.load %arg3[%c0_4, %c0_5] : memref<256x128xbf16, #tpu.memory_space<vmem>>, vector<256x128xbf16>
    %cst = arith.constant dense<0.000000e+00> : vector<2x128xf32>
    %6 = tpu.matmul %4, %5, %cst {dimension_numbers = #tpu.dot_dimension_numbers<[1], [0], [0], [1], [0, 0, 1, 1], [], []>} : vector<2x256xbf16>, vector<256x128xbf16>, vector<2x128xf32> -> vector<2x128xf32>
    %7 = arith.addf %3, %6 : vector<2x128xf32>
    %c0_6 = arith.constant 0 : index
    %c0_7 = arith.constant 0 : index
    %8 = vector.load %arg6[%c0_6, %c0_7] : memref<2x128xf32, #tpu.memory_space<vmem>>, vector<2x128xf32>
    tpu.vector_store %arg6[%c0_6, %c0_7], %7 {strides = array<i32>} : memref<2x128xf32, #tpu.memory_space<vmem>>, vector<2x128xf32>,
    %c0_i32_8 = arith.constant 0 : i32
    %9 = arith.cmpi eq, %arg1, %c0_i32_8 : i32
    %10 = arith.extui %9 : i1 to i32
    %c0_i32_9 = arith.constant 0 : i32
    %11 = arith.cmpi ne, %10, %c0_i32_9 : i32
    scf.if %11 {
      %c0_10 = arith.constant 0 : index
      %c0_11 = arith.constant 0 : index
      %12 = vector.load %arg6[%c0_10, %c0_11] : memref<2x128xf32, #tpu.memory_space<vmem>>, vector<2x128xf32>
      %c0_12 = arith.constant 0 : index
      %c0_13 = arith.constant 0 : index
      %13 = vector.load %arg4[%c0_12, %c0_13] : memref<1x128xf32, #tpu.memory_space<vmem>>, vector<1x128xf32>
      %14 = vector.broadcast %13 : vector<1x128xf32> to vector<2x128xf32>
      %15 = arith.addf %12, %14 : vector<2x128xf32>
      %cst_14 = arith.constant 0.000000e+00 : f32
      %16 = vector.broadcast %cst_14 : f32 to vector<2x128xf32>
      %17 = arith.maximumf %15, %16 : vector<2x128xf32>
      %18 = arith.truncf %17 : vector<2x128xf32> to vector<2x128xbf16>
      %c0_15 = arith.constant 0 : index
      %c0_16 = arith.constant 0 : index
      %19 = vector.load %arg5[%c0_15, %c0_16] : memref<2x128xbf16, #tpu.memory_space<vmem>>, vector<2x128xbf16>
      tpu.vector_store %arg5[%c0_15, %c0_16], %18 {strides = array<i32>} : memref<2x128xbf16, #tpu.memory_space<vmem>>, vector<2x128xbf16>,
    } else {
    }
    return
  }
  func.func @transform_0(%arg0: i32, %arg1: i32) -> (i32, i32) {
    %c0_i32 = arith.constant 0 : i32
    %c0_i32_0 = arith.constant 0 : i32
    return %c0_i32, %arg1 : i32, i32
  }
  func.func @transform_1(%arg0: i32, %arg1: i32) -> (i32, i32) {
    %c0_i32 = arith.constant 0 : i32
    return %arg1, %arg0 : i32, i32
  }
  func.func @transform_2(%arg0: i32, %arg1: i32) -> (i32, i32) {
    %c0_i32 = arith.constant 0 : i32
    %c0_i32_0 = arith.constant 0 : i32
    return %c0_i32, %arg0 : i32, i32
  }
  func.func @transform_3(%arg0: i32, %arg1: i32) -> (i32, i32) {
    %c0_i32 = arith.constant 0 : i32
    %c0_i32_0 = arith.constant 0 : i32
    return %c0_i32, %arg0 : i32, i32
  }
}

module attributes {stable_mosaic.version = 11 : i64} {
  func.func @_matmul_bias_kernel(%arg0: i32, %arg1: i32, %arg2: memref<2x256xbf16, #tpu.memory_space<vmem>>, %arg3: memref<256x2xbf16, #tpu.memory_space<vmem>>, %arg4: memref<1x2xf32, #tpu.memory_space<vmem>>, %arg5: memref<2x2xf32, #tpu.memory_space<vmem>>, %arg6: memref<2x2xf32, #tpu.memory_space<vmem>>) attributes {dimension_semantics = [#tpu.dimension_semantics<parallel>, #tpu.dimension_semantics<arbitrary>], iteration_bounds = array<i64: 1, 1>, scalar_prefetch = 0 : i64, scratch_operands = 1 : i64, tpu.core_type = #tpu.core_type<tc>, window_params = [{transform_indices = @transform_0, window_bounds = array<i64: 2, 256>}, {transform_indices = @transform_1, window_bounds = array<i64: 256, 2>}, {transform_indices = @transform_2, window_bounds = array<i64: 1, 2>}, {transform_indices = @transform_3, window_bounds = array<i64: 2, 2>}]} {
    %c0_i32 = arith.constant 0 : i32
    %0 = arith.cmpi eq, %arg1, %c0_i32 : i32
    %1 = arith.extui %0 : i1 to i32
    %c0_i32_0 = arith.constant 0 : i32
    %2 = arith.cmpi ne, %1, %c0_i32_0 : i32
    scf.if %2 {
      %cst_10 = arith.constant 0.000000e+00 : f32
      %12 = vector.broadcast %cst_10 : f32 to vector<2x2xf32>
      %c0_11 = arith.constant 0 : index
      %c0_12 = arith.constant 0 : index
      %13 = vector.load %arg6[%c0_11, %c0_12] : memref<2x2xf32, #tpu.memory_space<vmem>>, vector<2x2xf32>
      tpu.vector_store %arg6[%c0_11, %c0_12], %12 {strides = array<i32>} : memref<2x2xf32, #tpu.memory_space<vmem>>, vector<2x2xf32>,
    } else {
    }
    %c0 = arith.constant 0 : index
    %c0_1 = arith.constant 0 : index
    %3 = vector.load %arg6[%c0, %c0_1] : memref<2x2xf32, #tpu.memory_space<vmem>>, vector<2x2xf32>
    %c0_2 = arith.constant 0 : index
    %c0_3 = arith.constant 0 : index
    %4 = vector.load %arg2[%c0_2, %c0_3] : memref<2x256xbf16, #tpu.memory_space<vmem>>, vector<2x256xbf16>
    %c0_4 = arith.constant 0 : index
    %c0_5 = arith.constant 0 : index
    %5 = vector.load %arg3[%c0_4, %c0_5] : memref<256x2xbf16, #tpu.memory_space<vmem>>, vector<256x2xbf16>
    %cst = arith.constant dense<0.000000e+00> : vector<2x2xf32>
    %6 = tpu.matmul %4, %5, %cst {dimension_numbers = #tpu.dot_dimension_numbers<[1], [0], [0], [1], [0, 0, 1, 1], [], []>} : vector<2x256xbf16>, vector<256x2xbf16>, vector<2x2xf32> -> vector<2x2xf32>
    %7 = arith.addf %3, %6 : vector<2x2xf32>
    %c0_6 = arith.constant 0 : index
    %c0_7 = arith.constant 0 : index
    %8 = vector.load %arg6[%c0_6, %c0_7] : memref<2x2xf32, #tpu.memory_space<vmem>>, vector<2x2xf32>
    tpu.vector_store %arg6[%c0_6, %c0_7], %7 {strides = array<i32>} : memref<2x2xf32, #tpu.memory_space<vmem>>, vector<2x2xf32>,
    %c0_i32_8 = arith.constant 0 : i32
    %9 = arith.cmpi eq, %arg1, %c0_i32_8 : i32
    %10 = arith.extui %9 : i1 to i32
    %c0_i32_9 = arith.constant 0 : i32
    %11 = arith.cmpi ne, %10, %c0_i32_9 : i32
    scf.if %11 {
      %c0_10 = arith.constant 0 : index
      %c0_11 = arith.constant 0 : index
      %12 = vector.load %arg6[%c0_10, %c0_11] : memref<2x2xf32, #tpu.memory_space<vmem>>, vector<2x2xf32>
      %c0_12 = arith.constant 0 : index
      %c0_13 = arith.constant 0 : index
      %13 = vector.load %arg4[%c0_12, %c0_13] : memref<1x2xf32, #tpu.memory_space<vmem>>, vector<1x2xf32>
      %14 = vector.broadcast %13 : vector<1x2xf32> to vector<2x2xf32>
      %15 = arith.addf %12, %14 : vector<2x2xf32>
      %c0_14 = arith.constant 0 : index
      %c0_15 = arith.constant 0 : index
      %16 = vector.load %arg5[%c0_14, %c0_15] : memref<2x2xf32, #tpu.memory_space<vmem>>, vector<2x2xf32>
      tpu.vector_store %arg5[%c0_14, %c0_15], %15 {strides = array<i32>} : memref<2x2xf32, #tpu.memory_space<vmem>>, vector<2x2xf32>,
    } else {
    }
    return
  }
  func.func @transform_0(%arg0: i32, %arg1: i32) -> (i32, i32) {
    %c0_i32 = arith.constant 0 : i32
    %c0_i32_0 = arith.constant 0 : i32
    return %c0_i32, %arg1 : i32, i32
  }
  func.func @transform_1(%arg0: i32, %arg1: i32) -> (i32, i32) {
    %c0_i32 = arith.constant 0 : i32
    return %arg1, %arg0 : i32, i32
  }
  func.func @transform_2(%arg0: i32, %arg1: i32) -> (i32, i32) {
    %c0_i32 = arith.constant 0 : i32
    %c0_i32_0 = arith.constant 0 : i32
    return %c0_i32, %arg0 : i32, i32
  }
  func.func @transform_3(%arg0: i32, %arg1: i32) -> (i32, i32) {
    %c0_i32 = arith.constant 0 : i32
    %c0_i32_0 = arith.constant 0 : i32
    return %c0_i32, %arg0 : i32, i32
  }
}

</mosaic_0001>

<llo_original>
// kernel: convnet_forward.6
$region0: #{convnet_forward.6}
  #allocation0 [shape = 'u32[]', space=smem, size = 0x4, offset = 0x4, fixed_abs, tag = 'smem constant byte address 0x4 - core index']
  #allocation1 [shape = 'u32[144,128]{1,0:T(1,128)}', space=vmem, size = 0x12000, scoped, tag = 'internal scratch']
  #allocation2 [shape = 'f32[220,32]{1,0:T(8,128)}', space=vmem, size = 0x1c000, scoped, tag = 'scratch operand']
  %s0 = inlined_call_operand.vmem [shape: bf16[2,220,222,9], index: 0, kind: input, shape index: {}]
  %s1 = inlined_call_operand.vmem [shape: bf16[3,9,32], index: 1, kind: input, shape index: {}]
  %s2 = inlined_call_operand.vmem [shape: f32[1,32], index: 2, kind: input, shape index: {}]
  %s3 = inlined_call_operand.vmem [shape: bf16[2,110,110,32], index: 3, kind: output, shape index: {}]
  %s4 = sld [smem:[#allocation0]]
  $region52: #{convnet_forward.6} parent=0
    _
  %s6 = ssub.s32 1, %s4
  %s7 = scalar_select 0, %s6, %s4
  loop: start=0, step=1, limit=12
  $region2: #{convnet_forward.6} parent=0 // loop_pre_header
    _
  $region3: #{convnet_forward.6} parent=0 // loop_header
    %s9 = sphi 0, %s13
    %p10 = scmp.ge.s32.totalorder %s9, 12
    %s16 = sphi 0, %s28
    %s17 = sphi 0, %s24
    %s18 = sphi 0, %s16
    %s19 = sphi 0, %s17
    %s20 = sphi 0, %s18
    %s21 = sphi 0, %s19
    %s33 = sphi 0, %s35
    %s36 = sphi 0, %s33
    %s37 = sphi 0, %s36
    %s53 = sphi 0, %s37
    %s57 = sphi 0, %s57
    %s59 = sphi 0, %s57
    %s60 = sphi 0, %s59
    %s74 = sphi 0, %s60
    %s78 = sphi 0, %s78
    %s80 = sphi 0, %s78
    %s81 = sphi 0, %s80
    %s95 = sphi 0, %s81
    %s103 = sphi 0, %s105
    %s106 = sphi 0, %s103
    %s107 = sphi 0, %s106
    %s123 = sphi 0, %s107
  $region4: #{convnet_forward.6} parent=0 // loop_header_branch
    %12 = sbr.rel (%p10) target = $region8
  $region5: #{convnet_forward.6} parent=0 // loop_body
    %s14 = ssub.s32 %s9, 1
    %s15 = ssub.s32 %s9, 2
    %s22 = sadd.s32 1, %s17
    %p23 = scmp.ge.s32.totalorder %s22, 5
    %s24 = scalar_select %p23, 0, %s22
    %s25 = sadd.s32 1, %s16
    %s26 = scalar_select %p23, %s25, %s16
    %p27 = scmp.ge.s32.totalorder %s26, 2
    %s28 = scalar_select %p27, 0, %s26
    %s29 = ssub.s32 %s16, %s28
    %s30 = ssub.s32 %s17, %s24
    %s31 = sor.u32 %s29, %s30
    %p32 = scmp.eq.s32.totalorder %s31, 0
    %s34 = sadd.s32 %s33, 1
    %s35 = scalar_select %p32, %s33, %s34
    %p38 = pneg %p32
    %p39 = scmp.eq.s32.totalorder %s9, 9
    %p40 = por %p38, %p39
    %p41 = scmp.ne.s32.totalorder %s33, %s36
    %p42 = scmp.eq.s32.totalorder %s9, 0
    %p43 = por %p41, %p42
    %p44 = scmp.ne.s32.totalorder %s33, %s36
    %p45 = scmp.eq.s32.totalorder %s14, 9
    %p46 = por %p44, %p45
    %p47 = scmp.ne.s32.totalorder %s36, %s37
    %p48 = scmp.eq.s32.totalorder %s14, 0
    %p49 = por %p47, %p48
    %p50 = scmp.ne.s32.totalorder %s36, %s37
    %p51 = scmp.eq.s32.totalorder %s15, 9
    %p52 = por %p50, %p51
    %p54 = scmp.ne.s32.totalorder %s37, %s53
    %p55 = scmp.eq.s32.totalorder %s15, 0
    %p56 = por %p54, %p55
    %s58 = sadd.s32 %s57, 1
    %p61 = scmp.eq.s32.totalorder %s9, 9
    %p62 = scmp.ne.s32.totalorder %s57, %s59
    %p63 = scmp.eq.s32.totalorder %s9, 0
    %p64 = por %p62, %p63
    %p65 = scmp.ne.s32.totalorder %s57, %s59
    %p66 = scmp.eq.s32.totalorder %s14, 9
    %p67 = por %p65, %p66
    %p68 = scmp.ne.s32.totalorder %s59, %s60
    %p69 = scmp.eq.s32.totalorder %s14, 0
    %p70 = por %p68, %p69
    %p71 = scmp.ne.s32.totalorder %s59, %s60
    %p72 = scmp.eq.s32.totalorder %s15, 9
    %p73 = por %p71, %p72
    %p75 = scmp.ne.s32.totalorder %s60, %s74
    %p76 = scmp.eq.s32.totalorder %s15, 0
    %p77 = por %p75, %p76
    %s79 = sadd.s32 %s78, 1
    %p82 = scmp.eq.s32.totalorder %s9, 9
    %p83 = scmp.ne.s32.totalorder %s78, %s80
    %p84 = scmp.eq.s32.totalorder %s9, 0
    %p85 = por %p83, %p84
    %p86 = scmp.ne.s32.totalorder %s78, %s80
    %p87 = scmp.eq.s32.totalorder %s14, 9
    %p88 = por %p86, %p87
    %p89 = scmp.ne.s32.totalorder %s80, %s81
    %p90 = scmp.eq.s32.totalorder %s14, 0
    %p91 = por %p89, %p90
    %p92 = scmp.ne.s32.totalorder %s80, %s81
    %p93 = scmp.eq.s32.totalorder %s15, 9
    %p94 = por %p92, %p93
    %p96 = scmp.ne.s32.totalorder %s81, %s95
    %p97 = scmp.eq.s32.totalorder %s15, 0
    %p98 = por %p96, %p97
    %s99 = ssub.s32 %s16, %s28
    %s100 = ssub.s32 %s17, %s24
    %s101 = sor.u32 %s99, %s100
    %p102 = scmp.eq.s32.totalorder %s101, 0
    %s104 = sadd.s32 %s103, 1
    %s105 = scalar_select %p102, %s103, %s104
    %p108 = pneg %p102
    %p109 = scmp.eq.s32.totalorder %s9, 9
    %p110 = por %p108, %p109
    %p111 = scmp.ne.s32.totalorder %s103, %s106
    %p112 = scmp.eq.s32.totalorder %s9, 0
    %p113 = por %p111, %p112
    %p114 = scmp.ne.s32.totalorder %s103, %s106
    %p115 = scmp.eq.s32.totalorder %s14, 9
    %p116 = por %p114, %p115
    %p117 = scmp.ne.s32.totalorder %s106, %s107
    %p118 = scmp.eq.s32.totalorder %s14, 0
    %p119 = por %p117, %p118
    %p120 = scmp.ne.s32.totalorder %s106, %s107
    %p121 = scmp.eq.s32.totalorder %s15, 9
    %p122 = por %p120, %p121
    %p124 = scmp.ne.s32.totalorder %s107, %s123
    %p125 = scmp.eq.s32.totalorder %s15, 0
    %p126 = por %p124, %p125
    %p127 = scmp.le.s32.totalorder 1, %s9
    %p128 = scmp.lt.s32.totalorder %s9, 11
    %p129 = pnand %p127, %p128
    %p130 = pneg %p129
    // Predicated region
    $region9: #{convnet_forward.6} parent=5 // pred_check
      _
    $region10: #{convnet_forward.6} parent=5 // pred_check_branch
      %132 = sbr.rel (%p129) target = $region12
    $region11: #{convnet_forward.6} parent=5 // pred_region
      %s133 = ssub.s32 %s9, 1
      // Predicated region
      $region13: #{convnet_forward.6} parent=11 // pred_check
        %p134 = pneg %p70
      $region14: #{convnet_forward.6} parent=11 // pred_check_branch
        %136 = sbr.rel (%p134) target = $region16
      $region15: #{convnet_forward.6} parent=11 // pred_region
        _
      $region16: #{convnet_forward.6} parent=11 // pred_fallthru
        _
      // Predicated region
      $region17: #{convnet_forward.6} parent=11 // pred_check
        %p137 = pneg %p91
      $region18: #{convnet_forward.6} parent=11 // pred_check_branch
        %139 = sbr.rel (%p137) target = $region20
      $region19: #{convnet_forward.6} parent=11 // pred_region
        _
      $region20: #{convnet_forward.6} parent=11 // pred_fallthru
        _
    $region12: #{convnet_forward.6} parent=5 // pred_fallthru
      _
    %p140 = scmp.lt.s32.totalorder %s9, 10
    // Predicated region
    $region21: #{convnet_forward.6} parent=5 // pred_check
      %p141 = pneg %p140
    $region22: #{convnet_forward.6} parent=5 // pred_check_branch
      %143 = sbr.rel (%p141) target = $region24
    $region23: #{convnet_forward.6} parent=5 // pred_region
      // Predicated region
      $region25: #{convnet_forward.6} parent=23 // pred_check
        %p144 = pneg %p43
      $region26: #{convnet_forward.6} parent=23 // pred_check_branch
        %146 = sbr.rel (%p144) target = $region28
      $region27: #{convnet_forward.6} parent=23 // pred_region
        %s147 = smul.u32 44, %s17
        %p148 = scmp.lt.s32.totalorder %s16, 1
        %s149 = scalar_select %p148, %s16, 1
        %p150 = scmp.lt.s32.totalorder %s147, 219
        %s151 = scalar_select %p150, %s147, 219
        %s152 = smul.addr %s151, 28
        %s153 = smul.addr %s149, 6160
        %s154 = sadd.s32 %s152, %s153
        %s155 = smul.addr %s154, 4
        %s156 = scalar_lea.vmem %s0, %s155
        %s157 = smul.u32 44, %s17
      $region28: #{convnet_forward.6} parent=23 // pred_fallthru
        _
    $region24: #{convnet_forward.6} parent=5 // pred_fallthru
      _
    %p158 = scmp.le.s32.totalorder 1, %s9
    %p159 = scmp.lt.s32.totalorder %s9, 11
    %p160 = pnand %p158, %p159
    %p161 = pneg %p160
    // Predicated region
    $region29: #{convnet_forward.6} parent=5 // pred_check
      _
    $region30: #{convnet_forward.6} parent=5 // pred_check_branch
      %163 = sbr.rel (%p160) target = $region32
    $region31: #{convnet_forward.6} parent=5 // pred_region
      %s164 = ssub.s32 %s9, 1
      %s165 = smul.u32 44, %s19
      %p166 = scmp.lt.s32.totalorder %s18, 1
      %s167 = scalar_select %p166, %s18, 1
      %p168 = scmp.lt.s32.totalorder %s165, 219
      %s169 = scalar_select %p168, %s165, 219
      %s170 = smul.addr %s169, 28
      %s171 = smul.addr %s167, 6160
      %s172 = sadd.s32 %s170, %s171
      %s173 = smul.addr %s172, 4
      %s174 = scalar_lea.vmem %s0, %s173
      %p175 = pneg %p49
      %p176 = pneg %p46
      %p177 = pneg %p70
      %p178 = pneg %p67
      %p179 = pneg %p91
      %p180 = pneg %p88
      %p181 = pneg %p119
      %p182 = pneg %p116
      %s183 = smul.u32 22, %s19
      %p184 = scmp.lt.s32.totalorder %s18, 1
      %s185 = scalar_select %p184, %s18, 1
      %p186 = scmp.lt.s32.totalorder %s183, 109
      %s187 = scalar_select %p186, %s183, 109
      %s188 = smul.addr %s187, 14
      %s189 = smul.addr %s185, 1540
      %s190 = sadd.s32 %s188, %s189
      %s191 = smul.addr %s190, 4
      %s192 = scalar_lea.vmem %s3, %s191
      %s193 = smul.u32 44, %s19
      %p194 = scmp.lt.s32.totalorder %s18, 1
      %s195 = scalar_select %p194, %s18, 1
      %p196 = scmp.lt.s32.totalorder %s193, 219
      %s197 = scalar_select %p196, %s193, 219
      %s198 = smul.addr %s197, 28
      %s199 = smul.addr %s195, 6160
      %s200 = sadd.s32 %s198, %s199
      %s201 = smul.addr %s200, 4
      %s202 = scalar_lea.vmem %s0, %s201
      %s203 = smul.u32 44, %s19
      %s204 = smul.u32 22, %s19
      %p205 = scmp.lt.s32.totalorder %s18, 1
      %s206 = scalar_select %p205, %s18, 1
      %p207 = scmp.lt.s32.totalorder %s204, 109
      %s208 = scalar_select %p207, %s204, 109
      %s209 = smul.addr %s208, 14
      %s210 = smul.addr %s206, 1540
      %s211 = sadd.s32 %s209, %s210
      %s212 = smul.addr %s211, 4
      %s213 = scalar_lea.vmem %s3, %s212
      %s214 = smul.u32 22, %s19
      %v216 = vld [vmem:[%s2] sm:$0x1]
      loop: start=0, step=1, limit=22
      $region33: #{convnet_forward.6} parent=31 // loop_pre_header
        _
      $region34: #{convnet_forward.6} parent=31 // loop_header
        %s218 = sphi 0, %s222
        %p219 = scmp.ge.s32.totalorder %s218, 22
      $region35: #{convnet_forward.6} parent=31 // loop_header_branch
        %221 = sbr.rel (%p219) target = $region39
      $region36: #{convnet_forward.6} parent=31 // loop_body
        %s223 = smul.u32 %s218, 2
        %s224 = smul.u32 %s223, 28
        %s225 = smul.addr %s224, 4
        %s226 = scalar_lea.vmem %s202, %s225
        %v227 = vld [vmem:[%s226] sm:$0xf]
        %v228 = vld [vmem:[%s226 + $0x4] sm:$0xf]
        %v229 = vld [vmem:[%s226 + $0x8] sm:$0xf]
        %v230 = vld [vmem:[%s226 + $0xc] sm:$0xf]
        %v231 = vld [vmem:[%s226 + $0x10] sm:$0xf]
        %v232 = vld [vmem:[%s226 + $0x14] sm:$0xf]
        %v233 = vld [vmem:[%s226 + $0x18] sm:$0xf]
        %v234 = vld [vmem:[%s226 + $0x1c] sm:$0xf]
        %v235 = vld [vmem:[%s226 + $0x20] sm:$0xf]
        %v236 = vld [vmem:[%s226 + $0x24] sm:$0xf]
        %v237 = vld [vmem:[%s226 + $0x28] sm:$0xf]
        %v238 = vld [vmem:[%s226 + $0x2c] sm:$0xf]
        %v239 = vld [vmem:[%s226 + $0x30] sm:$0xf]
        %v240 = vld [vmem:[%s226 + $0x34] sm:$0xf]
        %v241 = vld [vmem:[%s226 + $0x38] sm:$0xf]
        %v242 = vld [vmem:[%s226 + $0x3c] sm:$0xf]
        %v243 = vld [vmem:[%s226 + $0x40] sm:$0xf]
        %v244 = vld [vmem:[%s226 + $0x44] sm:$0xf]
        %v245 = vld [vmem:[%s226 + $0x48] sm:$0xf]
        %v246 = vld [vmem:[%s226 + $0x4c] sm:$0xf]
        %v247 = vld [vmem:[%s226 + $0x50] sm:$0xf]
        %v248 = vld [vmem:[%s226 + $0x54] sm:$0xf]
        %v249 = vld [vmem:[%s226 + $0x58] sm:$0xf]
        %v250 = vld [vmem:[%s226 + $0x5c] sm:$0xf]
        %v251 = vld [vmem:[%s226 + $0x60] sm:$0xf]
        %v252 = vld [vmem:[%s226 + $0x64] sm:$0xf]
        %v253 = vld [vmem:[%s226 + $0x68] sm:$0xf]
        %v254 = vld [vmem:[%s226 + $0x6c] sm:$0x7]
        %v255 = vld [vmem:[%s1] sm:$0xf]
        %v256 = vld [vmem:[%s1 + $0x4] sm:$0x1]
        %s257 = scalar_lea.vmem %s1, 8
        %v258 = vld [vmem:[%s257] sm:$0xf]
        %v259 = vld [vmem:[%s257 + $0x4] sm:$0x1]
        %v288 = vunpack.c.l.b16 %v227
        %v289 = vunpack.c.l.b16 %v228
        %v290 = vunpack.c.l.b16 %v229
        %v291 = vunpack.c.l.b16 %v230
        %v292 = vunpack.c.l.b16 %v231
        %v293 = vunpack.c.l.b16 %v232
        %v294 = vunpack.c.l.b16 %v233
        %v295 = vunpack.c.l.b16 %v234
        %v296 = vunpack.c.l.b16 %v235
        %v297 = vunpack.c.l.b16 %v236
        %v298 = vunpack.c.l.b16 %v237
        %v299 = vunpack.c.l.b16 %v238
        %v300 = vunpack.c.l.b16 %v239
        %v301 = vunpack.c.l.b16 %v240
        %v302 = vunpack.c.l.b16 %v241
        %v303 = vunpack.c.l.b16 %v242
        %v304 = vunpack.c.l.b16 %v243
        %v305 = vunpack.c.l.b16 %v244
        %v306 = vunpack.c.l.b16 %v245
        %v307 = vunpack.c.l.b16 %v246
        %v308 = vunpack.c.l.b16 %v247
        %v309 = vunpack.c.l.b16 %v248
        %v310 = vunpack.c.l.b16 %v249
        %v311 = vunpack.c.l.b16 %v250
        %v312 = vunpack.c.l.b16 %v251
        %v313 = vunpack.c.l.b16 %v252
        %v314 = vunpack.c.l.b16 %v253
        %v315 = vunpack.c.l.b16 %v254
        %v316 = vpack.c.b16 %v289, %v288
        %v317 = vpack.c.b16 %v291, %v290
        %v318 = vpack.c.b16 %v293, %v292
        %v319 = vpack.c.b16 %v295, %v294
        %v320 = vpack.c.b16 %v297, %v296
        %v321 = vpack.c.b16 %v299, %v298
        %v322 = vpack.c.b16 %v301, %v300
        %v323 = vpack.c.b16 %v303, %v302
        %v324 = vpack.c.b16 %v305, %v304
        %v325 = vpack.c.b16 %v307, %v306
        %v326 = vpack.c.b16 %v309, %v308
        %v327 = vpack.c.b16 %v311, %v310
        %v328 = vpack.c.b16 %v313, %v312
        %v329 = vpack.c.b16 %v315, %v314
        %vm330 = vsmask.f32 7424
        %v332 = vshrl.u32 %v316, 16
        %v334 = vshll.u32 %v316, 16
        %v336 = vrot.slane %v334, 1
        %v337 = vor.u32 %v332, %v336
        %v339 = vshll.u32 %v317, 16
        %v341 = vrot.slane %v339, 1
        %v342 = vsel %vm330, %v337, %v341
        %v343 = vshrl.u32 %v317, 16
        %v345 = vor.u32 %v343, %v341
        %v347 = vshll.u32 %v318, 16
        %v349 = vrot.slane %v347, 1
        %v350 = vsel %vm330, %v345, %v349
        %v351 = vshrl.u32 %v318, 16
        %v353 = vor.u32 %v351, %v349
        %v355 = vshll.u32 %v319, 16
        %v357 = vrot.slane %v355, 1
        %v358 = vsel %vm330, %v353, %v357
        %v359 = vshrl.u32 %v319, 16
        %v361 = vor.u32 %v359, %v357
        %v363 = vshll.u32 %v320, 16
        %v365 = vrot.slane %v363, 1
        %v366 = vsel %vm330, %v361, %v365
        %v367 = vshrl.u32 %v320, 16
        %v369 = vor.u32 %v367, %v365
        %v371 = vshll.u32 %v321, 16
        %v373 = vrot.slane %v371, 1
        %v374 = vsel %vm330, %v369, %v373
        %v375 = vshrl.u32 %v321, 16
        %v377 = vor.u32 %v375, %v373
        %v379 = vshll.u32 %v322, 16
        %v381 = vrot.slane %v379, 1
        %v382 = vsel %vm330, %v377, %v381
        %v383 = vshrl.u32 %v322, 16
        %v385 = vor.u32 %v383, %v381
        %v387 = vshll.u32 %v323, 16
        %v389 = vrot.slane %v387, 1
        %v390 = vsel %vm330, %v385, %v389
        %v391 = vshrl.u32 %v323, 16
        %v393 = vor.u32 %v391, %v389
        %v395 = vshll.u32 %v324, 16
        %v397 = vrot.slane %v395, 1
        %v398 = vsel %vm330, %v393, %v397
        %v399 = vshrl.u32 %v324, 16
        %v401 = vor.u32 %v399, %v397
        %v403 = vshll.u32 %v325, 16
        %v405 = vrot.slane %v403, 1
        %v406 = vsel %vm330, %v401, %v405
        %v407 = vshrl.u32 %v325, 16
        %v409 = vor.u32 %v407, %v405
        %v411 = vshll.u32 %v326, 16
        %v413 = vrot.slane %v411, 1
        %v414 = vsel %vm330, %v409, %v413
        %v415 = vshrl.u32 %v326, 16
        %v417 = vor.u32 %v415, %v413
        %v419 = vshll.u32 %v327, 16
        %v421 = vrot.slane %v419, 1
        %v422 = vsel %vm330, %v417, %v421
        %v423 = vshrl.u32 %v327, 16
        %v425 = vor.u32 %v423, %v421
        %v427 = vshll.u32 %v328, 16
        %v429 = vrot.slane %v427, 1
        %v430 = vsel %vm330, %v425, %v429
        %v431 = vshrl.u32 %v328, 16
        %v433 = vor.u32 %v431, %v429
        %v435 = vshll.u32 %v329, 16
        %v437 = vrot.slane %v435, 1
        %v438 = vsel %vm330, %v433, %v437
        %v439 = vshrl.u32 %v329, 16
        %v441 = vor.u32 %v439, %v437
        %v444 = vunpack.c.l.b16 %v258
        %v445 = vunpack.c.l.b16 %v259
        %v446 = vpack.c.b16 %v445, %v444
        %vm447 = vcmask 72704
        %v449 = vsel %vm447, %v342, 0
        %v452 = vsel %vm447, %v350, 0
        %v455 = vsel %vm447, %v358, 0
        %v458 = vsel %vm447, %v366, 0
        %v461 = vsel %vm447, %v374, 0
        %v464 = vsel %vm447, %v382, 0
        %v467 = vsel %vm447, %v390, 0
        %v470 = vsel %vm447, %v398, 0
        %v473 = vsel %vm447, %v406, 0
        %v476 = vsel %vm447, %v414, 0
        %v479 = vsel %vm447, %v422, 0
        %v482 = vsel %vm447, %v430, 0
        %v485 = vsel %vm447, %v438, 0
        %v488 = vsel %vm447, %v441, 0
        %vm490 = vcmask 1043456
        %vm491 = vcmask 1044480
        %v492 = vsel %vm490, 4294967295, 65535
        %v493 = vsel %vm491, %v492, 0
        %v495 = vand.u32 %v446, %v493
        %497 = vmatprep.subr.bf16.mxu0 0
        %498 = vmatpush1.bf16.msra.mxu0 %v495
        %499 = vmatprep.subr.bf16.mxu0 0
        %500 = vmatpush1.bf16.msra.mxu0 0
        %501 = vmatprep.subr.bf16.mxu0 0
        %502 = vmatpush1.bf16.msra.mxu0 0
        %503 = vmatprep.subr.bf16.mxu0 0
        %504 = vmatpush1.bf16.msra.mxu0 0
        %505 = vmatprep.subr.bf16.mxu0 0
        %506 = vmatpush1.bf16.msra.mxu0 0
        %507 = vmatprep.subr.bf16.mxu0 0
        %508 = vmatpush1.bf16.msra.mxu0 0
        %509 = vmatprep.subr.bf16.mxu0 0
        %510 = vmatpush1.bf16.msra.mxu0 0
        %511 = vmatprep.subr.bf16.mxu0 0
        %512 = vmatpush1.bf16.msra.mxu0 0
        %513 = vmatprep.subr.bf16.mxu0 0
        %514 = vmatpush1.bf16.msra.mxu0 0
        %515 = vmatprep.subr.bf16.mxu0 0
        %516 = vmatpush1.bf16.msra.mxu0 0
        %517 = vmatprep.subr.bf16.mxu0 0
        %518 = vmatpush1.bf16.msra.mxu0 0
        %519 = vmatprep.subr.bf16.mxu0 0
        %520 = vmatpush1.bf16.msra.mxu0 0
        %521 = vmatprep.subr.bf16.mxu0 0
        %522 = vmatpush1.bf16.msra.mxu0 0
        %523 = vmatprep.subr.bf16.mxu0 0
        %524 = vmatpush1.bf16.msra.mxu0 0
        %525 = vmatprep.subr.bf16.mxu0 0
        %526 = vmatpush1.bf16.msra.mxu0 0
        %527 = vmatprep.subr.bf16.mxu0 0
        %528 = vmatpush1.bf16.msra.mxu0 0
        %529 = vmatprep.mubr.bf16.mxu0 0
        %530 = vmatmul.mubr.bf16.gmra.mrb[0].mxu0 %v449
        %v531 = vpop.f32.mrb[0].mxu0
        %v532 = vadd.f32 0.0, %v531
        %v533 = vpop.f32.mrb[0].mxu0
        %v534 = vpop.f32.mrb[0].mxu0
        %v535 = vadd.f32 0.0, %v534
        %v536 = vpop.f32.mrb[0].mxu0
        %537 = vmatprep.mubr.bf16.mxu0 0
        %538 = vmatmul.mubr.bf16.gmra.mrb[0].mxu0 %v452
        %v539 = vpop.f32.mrb[0].mxu0
        %v540 = vadd.f32 0.0, %v539
        %v541 = vpop.f32.mrb[0].mxu0
        %v542 = vpop.f32.mrb[0].mxu0
        %v543 = vadd.f32 0.0, %v542
        %v544 = vpop.f32.mrb[0].mxu0
        %545 = vmatprep.mubr.bf16.mxu0 0
        %546 = vmatmul.mubr.bf16.gmra.mrb[0].mxu0 %v455
        %v547 = vpop.f32.mrb[0].mxu0
        %v548 = vadd.f32 0.0, %v547
        %v549 = vpop.f32.mrb[0].mxu0
        %v550 = vpop.f32.mrb[0].mxu0
        %v551 = vadd.f32 0.0, %v550
        %v552 = vpop.f32.mrb[0].mxu0
        %553 = vmatprep.mubr.bf16.mxu0 0
        %554 = vmatmul.mubr.bf16.gmra.mrb[0].mxu0 %v458
        %v555 = vpop.f32.mrb[0].mxu0
        %v556 = vadd.f32 0.0, %v555
        %v557 = vpop.f32.mrb[0].mxu0
        %v558 = vpop.f32.mrb[0].mxu0
        %v559 = vadd.f32 0.0, %v558
        %v560 = vpop.f32.mrb[0].mxu0
        %561 = vmatprep.mubr.bf16.mxu0 0
        %562 = vmatmul.mubr.bf16.gmra.mrb[0].mxu0 %v461
        %v563 = vpop.f32.mrb[0].mxu0
        %v564 = vadd.f32 0.0, %v563
        %v565 = vpop.f32.mrb[0].mxu0
        %v566 = vpop.f32.mrb[0].mxu0
        %v567 = vadd.f32 0.0, %v566
        %v568 = vpop.f32.mrb[0].mxu0
        %569 = vmatprep.mubr.bf16.mxu0 0
        %570 = vmatmul.mubr.bf16.gmra.mrb[0].mxu0 %v464
        %v571 = vpop.f32.mrb[0].mxu0
        %v572 = vadd.f32 0.0, %v571
        %v573 = vpop.f32.mrb[0].mxu0
        %v574 = vpop.f32.mrb[0].mxu0
        %v575 = vadd.f32 0.0, %v574
        %v576 = vpop.f32.mrb[0].mxu0
        %577 = vmatprep.mubr.bf16.mxu0 0
        %578 = vmatmul.mubr.bf16.gmra.mrb[0].mxu0 %v467
        %v579 = vpop.f32.mrb[0].mxu0
        %v580 = vadd.f32 0.0, %v579
        %v581 = vpop.f32.mrb[0].mxu0
        %v582 = vpop.f32.mrb[0].mxu0
        %v583 = vadd.f32 0.0, %v582
        %v584 = vpop.f32.mrb[0].mxu0
        %585 = vmatprep.mubr.bf16.mxu0 0
        %586 = vmatmul.mubr.bf16.gmra.mrb[0].mxu0 %v470
        %v587 = vpop.f32.mrb[0].mxu0
        %v588 = vadd.f32 0.0, %v587
        %v589 = vpop.f32.mrb[0].mxu0
        %v590 = vpop.f32.mrb[0].mxu0
        %v591 = vadd.f32 0.0, %v590
        %v592 = vpop.f32.mrb[0].mxu0
        %593 = vmatprep.mubr.bf16.mxu0 0
        %594 = vmatmul.mubr.bf16.gmra.mrb[0].mxu0 %v473
        %v595 = vpop.f32.mrb[0].mxu0
        %v596 = vadd.f32 0.0, %v595
        %v597 = vpop.f32.mrb[0].mxu0
        %v598 = vpop.f32.mrb[0].mxu0
        %v599 = vadd.f32 0.0, %v598
        %v600 = vpop.f32.mrb[0].mxu0
        %601 = vmatprep.mubr.bf16.mxu0 0
        %602 = vmatmul.mubr.bf16.gmra.mrb[0].mxu0 %v476
        %v603 = vpop.f32.mrb[0].mxu0
        %v604 = vadd.f32 0.0, %v603
        %v605 = vpop.f32.mrb[0].mxu0
        %v606 = vpop.f32.mrb[0].mxu0
        %v607 = vadd.f32 0.0, %v606
        %v608 = vpop.f32.mrb[0].mxu0
        %609 = vmatprep.mubr.bf16.mxu0 0
        %610 = vmatmul.mubr.bf16.gmra.mrb[0].mxu0 %v479
        %v611 = vpop.f32.mrb[0].mxu0
        %v612 = vadd.f32 0.0, %v611
        %v613 = vpop.f32.mrb[0].mxu0
        %v614 = vpop.f32.mrb[0].mxu0
        %v615 = vadd.f32 0.0, %v614
        %v616 = vpop.f32.mrb[0].mxu0
        %617 = vmatprep.mubr.bf16.mxu0 0
        %618 = vmatmul.mubr.bf16.gmra.mrb[0].mxu0 %v482
        %v619 = vpop.f32.mrb[0].mxu0
        %v620 = vadd.f32 0.0, %v619
        %v621 = vpop.f32.mrb[0].mxu0
        %v622 = vpop.f32.mrb[0].mxu0
        %v623 = vadd.f32 0.0, %v622
        %v624 = vpop.f32.mrb[0].mxu0
        %625 = vmatprep.mubr.bf16.mxu0 0
        %626 = vmatmul.mubr.bf16.gmra.mrb[0].mxu0 %v485
        %v627 = vpop.f32.mrb[0].mxu0
        %v628 = vadd.f32 0.0, %v627
        %v629 = vpop.f32.mrb[0].mxu0
        %v630 = vpop.f32.mrb[0].mxu0
        %v631 = vadd.f32 0.0, %v630
        %v632 = vpop.f32.mrb[0].mxu0
        %633 = vmatprep.mubr.bf16.mxu0 0
        %634 = vmatmul.mubr.bf16.gmra.mrb[0].mxu0 %v488
        %v635 = vpop.f32.mrb[0].mxu0
        %v636 = vadd.f32 0.0, %v635
        %v637 = vpop.f32.mrb[0].mxu0
        %v638 = vpop.f32.mrb[0].mxu0
        %v639 = vadd.f32 0.0, %v638
        %v640 = vpop.f32.mrb[0].mxu0
        %641 = vdwg.mxu0
        %v644 = vunpack.c.l.b16 %v255
        %v645 = vunpack.c.l.b16 %v256
        %v646 = vpack.c.b16 %v645, %v644
        %v647 = vsel %vm447, %v316, 0
        %v649 = vsel %vm447, %v317, 0
        %v651 = vsel %vm447, %v318, 0
        %v653 = vsel %vm447, %v319, 0
        %v655 = vsel %vm447, %v320, 0
        %v657 = vsel %vm447, %v321, 0
        %v659 = vsel %vm447, %v322, 0
        %v661 = vsel %vm447, %v323, 0
        %v663 = vsel %vm447, %v324, 0
        %v665 = vsel %vm447, %v325, 0
        %v667 = vsel %vm447, %v326, 0
        %v669 = vsel %vm447, %v327, 0
        %v671 = vsel %vm447, %v328, 0
        %v673 = vsel %vm447, %v329, 0
        %v676 = vand.u32 %v646, %v493
        %678 = vmatprep.subr.bf16.mxu0 0
        %679 = vmatpush1.bf16.msra.mxu0 %v676
        %680 = vmatprep.subr.bf16.mxu0 0
        %681 = vmatpush1.bf16.msra.mxu0 0
        %682 = vmatprep.subr.bf16.mxu0 0
        %683 = vmatpush1.bf16.msra.mxu0 0
        %684 = vmatprep.subr.bf16.mxu0 0
        %685 = vmatpush1.bf16.msra.mxu0 0
        %686 = vmatprep.subr.bf16.mxu0 0
        %687 = vmatpush1.bf16.msra.mxu0 0
        %688 = vmatprep.subr.bf16.mxu0 0
        %689 = vmatpush1.bf16.msra.mxu0 0
        %690 = vmatprep.subr.bf16.mxu0 0
        %691 = vmatpush1.bf16.msra.mxu0 0
        %692 = vmatprep.subr.bf16.mxu0 0
        %693 = vmatpush1.bf16.msra.mxu0 0
        %694 = vmatprep.subr.bf16.mxu0 0
        %695 = vmatpush1.bf16.msra.mxu0 0
        %696 = vmatprep.subr.bf16.mxu0 0
        %697 = vmatpush1.bf16.msra.mxu0 0
        %698 = vmatprep.subr.bf16.mxu0 0
        %699 = vmatpush1.bf16.msra.mxu0 0
        %700 = vmatprep.subr.bf16.mxu0 0
        %701 = vmatpush1.bf16.msra.mxu0 0
        %702 = vmatprep.subr.bf16.mxu0 0
        %703 = vmatpush1.bf16.msra.mxu0 0
        %704 = vmatprep.subr.bf16.mxu0 0
        %705 = vmatpush1.bf16.msra.mxu0 0
        %706 = vmatprep.subr.bf16.mxu0 0
        %707 = vmatpush1.bf16.msra.mxu0 0
        %708 = vmatprep.subr.bf16.mxu0 0
        %709 = vmatpush1.bf16.msra.mxu0 0
        %710 = vmatprep.mubr.bf16.mxu0 0
        %711 = vmatmul.mubr.bf16.gmra.mrb[0].mxu0 %v647
        %v712 = vpop.f32.mrb[0].mxu0
        %v713 = vadd.f32 %v532, %v712
        %v714 = vpop.f32.mrb[0].mxu0
        %v715 = vpop.f32.mrb[0].mxu0
        %v716 = vadd.f32 %v535, %v715
        %v717 = vpop.f32.mrb[0].mxu0
        %718 = vmatprep.mubr.bf16.mxu0 0
        %719 = vmatmul.mubr.bf16.gmra.mrb[0].mxu0 %v649
        %v720 = vpop.f32.mrb[0].mxu0
        %v721 = vadd.f32 %v540, %v720
        %v722 = vpop.f32.mrb[0].mxu0
        %v723 = vpop.f32.mrb[0].mxu0
        %v724 = vadd.f32 %v543, %v723
        %v725 = vpop.f32.mrb[0].mxu0
        %726 = vmatprep.mubr.bf16.mxu0 0
        %727 = vmatmul.mubr.bf16.gmra.mrb[0].mxu0 %v651
        %v728 = vpop.f32.mrb[0].mxu0
        %v729 = vadd.f32 %v548, %v728
        %v730 = vpop.f32.mrb[0].mxu0
        %v731 = vpop.f32.mrb[0].mxu0
        %v732 = vadd.f32 %v551, %v731
        %v733 = vpop.f32.mrb[0].mxu0
        %734 = vmatprep.mubr.bf16.mxu0 0
        %735 = vmatmul.mubr.bf16.gmra.mrb[0].mxu0 %v653
        %v736 = vpop.f32.mrb[0].mxu0
        %v737 = vadd.f32 %v556, %v736
        %v738 = vpop.f32.mrb[0].mxu0
        %v739 = vpop.f32.mrb[0].mxu0
        %v740 = vadd.f32 %v559, %v739
        %v741 = vpop.f32.mrb[0].mxu0
        %742 = vmatprep.mubr.bf16.mxu0 0
        %743 = vmatmul.mubr.bf16.gmra.mrb[0].mxu0 %v655
        %v744 = vpop.f32.mrb[0].mxu0
        %v745 = vadd.f32 %v564, %v744
        %v746 = vpop.f32.mrb[0].mxu0
        %v747 = vpop.f32.mrb[0].mxu0
        %v748 = vadd.f32 %v567, %v747
        %v749 = vpop.f32.mrb[0].mxu0
        %750 = vmatprep.mubr.bf16.mxu0 0
        %751 = vmatmul.mubr.bf16.gmra.mrb[0].mxu0 %v657
        %v752 = vpop.f32.mrb[0].mxu0
        %v753 = vadd.f32 %v572, %v752
        %v754 = vpop.f32.mrb[0].mxu0
        %v755 = vpop.f32.mrb[0].mxu0
        %v756 = vadd.f32 %v575, %v755
        %v757 = vpop.f32.mrb[0].mxu0
        %758 = vmatprep.mubr.bf16.mxu0 0
        %759 = vmatmul.mubr.bf16.gmra.mrb[0].mxu0 %v659
        %v760 = vpop.f32.mrb[0].mxu0
        %v761 = vadd.f32 %v580, %v760
        %v762 = vpop.f32.mrb[0].mxu0
        %v763 = vpop.f32.mrb[0].mxu0
        %v764 = vadd.f32 %v583, %v763
        %v765 = vpop.f32.mrb[0].mxu0
        %766 = vmatprep.mubr.bf16.mxu0 0
        %767 = vmatmul.mubr.bf16.gmra.mrb[0].mxu0 %v661
        %v768 = vpop.f32.mrb[0].mxu0
        %v769 = vadd.f32 %v588, %v768
        %v770 = vpop.f32.mrb[0].mxu0
        %v771 = vpop.f32.mrb[0].mxu0
        %v772 = vadd.f32 %v591, %v771
        %v773 = vpop.f32.mrb[0].mxu0
        %774 = vmatprep.mubr.bf16.mxu0 0
        %775 = vmatmul.mubr.bf16.gmra.mrb[0].mxu0 %v663
        %v776 = vpop.f32.mrb[0].mxu0
        %v777 = vadd.f32 %v596, %v776
        %v778 = vpop.f32.mrb[0].mxu0
        %v779 = vpop.f32.mrb[0].mxu0
        %v780 = vadd.f32 %v599, %v779
        %v781 = vpop.f32.mrb[0].mxu0
        %782 = vmatprep.mubr.bf16.mxu0 0
        %783 = vmatmul.mubr.bf16.gmra.mrb[0].mxu0 %v665
        %v784 = vpop.f32.mrb[0].mxu0
        %v785 = vadd.f32 %v604, %v784
        %v786 = vpop.f32.mrb[0].mxu0
        %v787 = vpop.f32.mrb[0].mxu0
        %v788 = vadd.f32 %v607, %v787
        %v789 = vpop.f32.mrb[0].mxu0
        %790 = vmatprep.mubr.bf16.mxu0 0
        %791 = vmatmul.mubr.bf16.gmra.mrb[0].mxu0 %v667
        %v792 = vpop.f32.mrb[0].mxu0
        %v793 = vadd.f32 %v612, %v792
        %v794 = vpop.f32.mrb[0].mxu0
        %v795 = vpop.f32.mrb[0].mxu0
        %v796 = vadd.f32 %v615, %v795
        %v797 = vpop.f32.mrb[0].mxu0
        %798 = vmatprep.mubr.bf16.mxu0 0
        %799 = vmatmul.mubr.bf16.gmra.mrb[0].mxu0 %v669
        %v800 = vpop.f32.mrb[0].mxu0
        %v801 = vadd.f32 %v620, %v800
        %v802 = vpop.f32.mrb[0].mxu0
        %v803 = vpop.f32.mrb[0].mxu0
        %v804 = vadd.f32 %v623, %v803
        %v805 = vpop.f32.mrb[0].mxu0
        %806 = vmatprep.mubr.bf16.mxu0 0
        %807 = vmatmul.mubr.bf16.gmra.mrb[0].mxu0 %v671
        %v808 = vpop.f32.mrb[0].mxu0
        %v809 = vadd.f32 %v628, %v808
        %v810 = vpop.f32.mrb[0].mxu0
        %v811 = vpop.f32.mrb[0].mxu0
        %v812 = vadd.f32 %v631, %v811
        %v813 = vpop.f32.mrb[0].mxu0
        %814 = vmatprep.mubr.bf16.mxu0 0
        %815 = vmatmul.mubr.bf16.gmra.mrb[0].mxu0 %v673
        %v816 = vpop.f32.mrb[0].mxu0
        %v817 = vadd.f32 %v636, %v816
        %v818 = vpop.f32.mrb[0].mxu0
        %v819 = vpop.f32.mrb[0].mxu0
        %v820 = vadd.f32 %v639, %v819
        %v821 = vpop.f32.mrb[0].mxu0
        %822 = vdwg.mxu0
        %s823 = scalar_lea.vmem %s1, 16
        %v824 = vld [vmem:[%s823] sm:$0xf]
        %v825 = vld [vmem:[%s823 + $0x4] sm:$0x1]
        %vm826 = vcmask 1046528
        %v827 = vrot.slane %v316, 1
        %v828 = vrot.slane %v317, 1
        %v829 = vsel %vm826, %v827, %v828
        %v830 = vrot.slane %v318, 1
        %v831 = vsel %vm826, %v828, %v830
        %v832 = vrot.slane %v319, 1
        %v833 = vsel %vm826, %v830, %v832
        %v834 = vrot.slane %v320, 1
        %v835 = vsel %vm826, %v832, %v834
        %v836 = vrot.slane %v321, 1
        %v837 = vsel %vm826, %v834, %v836
        %v838 = vrot.slane %v322, 1
        %v839 = vsel %vm826, %v836, %v838
        %v840 = vrot.slane %v323, 1
        %v841 = vsel %vm826, %v838, %v840
        %v842 = vrot.slane %v324, 1
        %v843 = vsel %vm826, %v840, %v842
        %v844 = vrot.slane %v325, 1
        %v845 = vsel %vm826, %v842, %v844
        %v846 = vrot.slane %v326, 1
        %v847 = vsel %vm826, %v844, %v846
        %v848 = vrot.slane %v327, 1
        %v849 = vsel %vm826, %v846, %v848
        %v850 = vrot.slane %v328, 1
        %v851 = vsel %vm826, %v848, %v850
        %v852 = vrot.slane %v329, 1
        %v853 = vsel %vm826, %v850, %v852
        %v856 = vunpack.c.l.b16 %v824
        %v857 = vunpack.c.l.b16 %v825
        %v858 = vpack.c.b16 %v857, %v856
        %v860 = vsel %vm447, %v829, 0
        %v863 = vsel %vm447, %v831, 0
        %v866 = vsel %vm447, %v833, 0
        %v869 = vsel %vm447, %v835, 0
        %v872 = vsel %vm447, %v837, 0
        %v875 = vsel %vm447, %v839, 0
        %v878 = vsel %vm447, %v841, 0
        %v881 = vsel %vm447, %v843, 0
        %v884 = vsel %vm447, %v845, 0
        %v887 = vsel %vm447, %v847, 0
        %v890 = vsel %vm447, %v849, 0
        %v893 = vsel %vm447, %v851, 0
        %v896 = vsel %vm447, %v853, 0
        %v899 = vsel %vm447, %v852, 0
        %v902 = vand.u32 %v858, %v493
        %904 = vmatprep.subr.bf16.mxu0 0
        %905 = vmatpush1.bf16.msra.mxu0 %v902
        %906 = vmatprep.subr.bf16.mxu0 0
        %907 = vmatpush1.bf16.msra.mxu0 0
        %908 = vmatprep.subr.bf16.mxu0 0
        %909 = vmatpush1.bf16.msra.mxu0 0
        %910 = vmatprep.subr.bf16.mxu0 0
        %911 = vmatpush1.bf16.msra.mxu0 0
        %912 = vmatprep.subr.bf16.mxu0 0
        %913 = vmatpush1.bf16.msra.mxu0 0
        %914 = vmatprep.subr.bf16.mxu0 0
        %915 = vmatpush1.bf16.msra.mxu0 0
        %916 = vmatprep.subr.bf16.mxu0 0
        %917 = vmatpush1.bf16.msra.mxu0 0
        %918 = vmatprep.subr.bf16.mxu0 0
        %919 = vmatpush1.bf16.msra.mxu0 0
        %920 = vmatprep.subr.bf16.mxu0 0
        %921 = vmatpush1.bf16.msra.mxu0 0
        %922 = vmatprep.subr.bf16.mxu0 0
        %923 = vmatpush1.bf16.msra.mxu0 0
        %924 = vmatprep.subr.bf16.mxu0 0
        %925 = vmatpush1.bf16.msra.mxu0 0
        %926 = vmatprep.subr.bf16.mxu0 0
        %927 = vmatpush1.bf16.msra.mxu0 0
        %928 = vmatprep.subr.bf16.mxu0 0
        %929 = vmatpush1.bf16.msra.mxu0 0
        %930 = vmatprep.subr.bf16.mxu0 0
        %931 = vmatpush1.bf16.msra.mxu0 0
        %932 = vmatprep.subr.bf16.mxu0 0
        %933 = vmatpush1.bf16.msra.mxu0 0
        %934 = vmatprep.subr.bf16.mxu0 0
        %935 = vmatpush1.bf16.msra.mxu0 0
        %936 = vmatprep.mubr.bf16.mxu0 0
        %937 = vmatmul.mubr.bf16.gmra.mrb[0].mxu0 %v860
        %v938 = vpop.f32.mrb[0].mxu0
        %v939 = vadd.f32 0.0, %v938
        %v940 = vpop.f32.mrb[0].mxu0
        %v941 = vpop.f32.mrb[0].mxu0
        %v942 = vadd.f32 0.0, %v941
        %v943 = vpop.f32.mrb[0].mxu0
        %944 = vmatprep.mubr.bf16.mxu0 0
        %945 = vmatmul.mubr.bf16.gmra.mrb[0].mxu0 %v863
        %v946 = vpop.f32.mrb[0].mxu0
        %v947 = vadd.f32 0.0, %v946
        %v948 = vpop.f32.mrb[0].mxu0
        %v949 = vpop.f32.mrb[0].mxu0
        %v950 = vadd.f32 0.0, %v949
        %v951 = vpop.f32.mrb[0].mxu0
        %952 = vmatprep.mubr.bf16.mxu0 0
        %953 = vmatmul.mubr.bf16.gmra.mrb[0].mxu0 %v866
        %v954 = vpop.f32.mrb[0].mxu0
        %v955 = vadd.f32 0.0, %v954
        %v956 = vpop.f32.mrb[0].mxu0
        %v957 = vpop.f32.mrb[0].mxu0
        %v958 = vadd.f32 0.0, %v957
        %v959 = vpop.f32.mrb[0].mxu0
        %960 = vmatprep.mubr.bf16.mxu0 0
        %961 = vmatmul.mubr.bf16.gmra.mrb[0].mxu0 %v869
        %v962 = vpop.f32.mrb[0].mxu0
        %v963 = vadd.f32 0.0, %v962
        %v964 = vpop.f32.mrb[0].mxu0
        %v965 = vpop.f32.mrb[0].mxu0
        %v966 = vadd.f32 0.0, %v965
        %v967 = vpop.f32.mrb[0].mxu0
        %968 = vmatprep.mubr.bf16.mxu0 0
        %969 = vmatmul.mubr.bf16.gmra.mrb[0].mxu0 %v872
        %v970 = vpop.f32.mrb[0].mxu0
        %v971 = vadd.f32 0.0, %v970
        %v972 = vpop.f32.mrb[0].mxu0
        %v973 = vpop.f32.mrb[0].mxu0
        %v974 = vadd.f32 0.0, %v973
        %v975 = vpop.f32.mrb[0].mxu0
        %976 = vmatprep.mubr.bf16.mxu0 0
        %977 = vmatmul.mubr.bf16.gmra.mrb[0].mxu0 %v875
        %v978 = vpop.f32.mrb[0].mxu0
        %v979 = vadd.f32 0.0, %v978
        %v980 = vpop.f32.mrb[0].mxu0
        %v981 = vpop.f32.mrb[0].mxu0
        %v982 = vadd.f32 0.0, %v981
        %v983 = vpop.f32.mrb[0].mxu0
        %984 = vmatprep.mubr.bf16.mxu0 0
        %985 = vmatmul.mubr.bf16.gmra.mrb[0].mxu0 %v878
        %v986 = vpop.f32.mrb[0].mxu0
        %v987 = vadd.f32 0.0, %v986
        %v988 = vpop.f32.mrb[0].mxu0
        %v989 = vpop.f32.mrb[0].mxu0
        %v990 = vadd.f32 0.0, %v989
        %v991 = vpop.f32.mrb[0].mxu0
        %992 = vmatprep.mubr.bf16.mxu0 0
        %993 = vmatmul.mubr.bf16.gmra.mrb[0].mxu0 %v881
        %v994 = vpop.f32.mrb[0].mxu0
        %v995 = vadd.f32 0.0, %v994
        %v996 = vpop.f32.mrb[0].mxu0
        %v997 = vpop.f32.mrb[0].mxu0
        %v998 = vadd.f32 0.0, %v997
        %v999 = vpop.f32.mrb[0].mxu0
        %1000 = vmatprep.mubr.bf16.mxu0 0
        %1001 = vmatmul.mubr.bf16.gmra.mrb[0].mxu0 %v884
        %v1002 = vpop.f32.mrb[0].mxu0
        %v1003 = vadd.f32 0.0, %v1002
        %v1004 = vpop.f32.mrb[0].mxu0
        %v1005 = vpop.f32.mrb[0].mxu0
        %v1006 = vadd.f32 0.0, %v1005
        %v1007 = vpop.f32.mrb[0].mxu0
        %1008 = vmatprep.mubr.bf16.mxu0 0
        %1009 = vmatmul.mubr.bf16.gmra.mrb[0].mxu0 %v887
        %v1010 = vpop.f32.mrb[0].mxu0
        %v1011 = vadd.f32 0.0, %v1010
        %v1012 = vpop.f32.mrb[0].mxu0
        %v1013 = vpop.f32.mrb[0].mxu0
        %v1014 = vadd.f32 0.0, %v1013
        %v1015 = vpop.f32.mrb[0].mxu0
        %1016 = vmatprep.mubr.bf16.mxu0 0
        %1017 = vmatmul.mubr.bf16.gmra.mrb[0].mxu0 %v890
        %v1018 = vpop.f32.mrb[0].mxu0
        %v1019 = vadd.f32 0.0, %v1018
        %v1020 = vpop.f32.mrb[0].mxu0
        %v1021 = vpop.f32.mrb[0].mxu0
        %v1022 = vadd.f32 0.0, %v1021
        %v1023 = vpop.f32.mrb[0].mxu0
        %1024 = vmatprep.mubr.bf16.mxu0 0
        %1025 = vmatmul.mubr.bf16.gmra.mrb[0].mxu0 %v893
        %v1026 = vpop.f32.mrb[0].mxu0
        %v1027 = vadd.f32 0.0, %v1026
        %v1028 = vpop.f32.mrb[0].mxu0
        %v1029 = vpop.f32.mrb[0].mxu0
        %v1030 = vadd.f32 0.0, %v1029
        %v1031 = vpop.f32.mrb[0].mxu0
        %1032 = vmatprep.mubr.bf16.mxu0 0
        %1033 = vmatmul.mubr.bf16.gmra.mrb[0].mxu0 %v896
        %v1034 = vpop.f32.mrb[0].mxu0
        %v1035 = vadd.f32 0.0, %v1034
        %v1036 = vpop.f32.mrb[0].mxu0
        %v1037 = vpop.f32.mrb[0].mxu0
        %v1038 = vadd.f32 0.0, %v1037
        %v1039 = vpop.f32.mrb[0].mxu0
        %1040 = vmatprep.mubr.bf16.mxu0 0
        %1041 = vmatmul.mubr.bf16.gmra.mrb[0].mxu0 %v899
        %v1042 = vpop.f32.mrb[0].mxu0
        %v1043 = vadd.f32 0.0, %v1042
        %v1044 = vpop.f32.mrb[0].mxu0
        %v1045 = vpop.f32.mrb[0].mxu0
        %v1046 = vadd.f32 0.0, %v1045
        %v1047 = vpop.f32.mrb[0].mxu0
        %1048 = vdwg.mxu0
        %v1049 = vadd.f32 %v713, %v939
        %v1050 = vadd.f32 %v716, %v942
        %v1051 = vadd.f32 %v721, %v947
        %v1052 = vadd.f32 %v724, %v950
        %v1053 = vadd.f32 %v729, %v955
        %v1054 = vadd.f32 %v732, %v958
        %v1055 = vadd.f32 %v737, %v963
        %v1056 = vadd.f32 %v740, %v966
        %v1057 = vadd.f32 %v745, %v971
        %v1058 = vadd.f32 %v748, %v974
        %v1059 = vadd.f32 %v753, %v979
        %v1060 = vadd.f32 %v756, %v982
        %v1061 = vadd.f32 %v761, %v987
        %v1062 = vadd.f32 %v764, %v990
        %v1063 = vadd.f32 %v769, %v995
        %v1064 = vadd.f32 %v772, %v998
        %v1065 = vadd.f32 %v777, %v1003
        %v1066 = vadd.f32 %v780, %v1006
        %v1067 = vadd.f32 %v785, %v1011
        %v1068 = vadd.f32 %v788, %v1014
        %v1069 = vadd.f32 %v793, %v1019
        %v1070 = vadd.f32 %v796, %v1022
        %v1071 = vadd.f32 %v801, %v1027
        %v1072 = vadd.f32 %v804, %v1030
        %v1073 = vadd.f32 %v809, %v1035
        %v1074 = vadd.f32 %v812, %v1038
        %v1075 = vadd.f32 %v817, %v1043
        %v1076 = vadd.f32 %v820, %v1046
        %vm1077 = vcmask 261120
        %1078 = vst.msk [vmem:[#allocation2] sm:$0xff] %vm1077, %v1049
        %1079 = vst.msk [vmem:[#allocation2 + $0x8] sm:$0xff] %vm1077, %v1050
        %1080 = vst.msk [vmem:[#allocation2 + $0x10] sm:$0xff] %vm1077, %v1051
        %1081 = vst.msk [vmem:[#allocation2 + $0x18] sm:$0xff] %vm1077, %v1052
        %1082 = vst.msk [vmem:[#allocation2 + $0x20] sm:$0xff] %vm1077, %v1053
        %1083 = vst.msk [vmem:[#allocation2 + $0x28] sm:$0xff] %vm1077, %v1054
        %1084 = vst.msk [vmem:[#allocation2 + $0x30] sm:$0xff] %vm1077, %v1055
        %1085 = vst.msk [vmem:[#allocation2 + $0x38] sm:$0xff] %vm1077, %v1056
        %1086 = vst.msk [vmem:[#allocation2 + $0x40] sm:$0xff] %vm1077, %v1057
        %1087 = vst.msk [vmem:[#allocation2 + $0x48] sm:$0xff] %vm1077, %v1058
        %1088 = vst.msk [vmem:[#allocation2 + $0x50] sm:$0xff] %vm1077, %v1059
        %1089 = vst.msk [vmem:[#allocation2 + $0x58] sm:$0xff] %vm1077, %v1060
        %1090 = vst.msk [vmem:[#allocation2 + $0x60] sm:$0xff] %vm1077, %v1061
        %1091 = vst.msk [vmem:[#allocation2 + $0x68] sm:$0xff] %vm1077, %v1062
        %1092 = vst.msk [vmem:[#allocation2 + $0x70] sm:$0xff] %vm1077, %v1063
        %1093 = vst.msk [vmem:[#allocation2 + $0x78] sm:$0xff] %vm1077, %v1064
        %1094 = vst.msk [vmem:[#allocation2 + $0x80] sm:$0xff] %vm1077, %v1065
        %1095 = vst.msk [vmem:[#allocation2 + $0x88] sm:$0xff] %vm1077, %v1066
        %1096 = vst.msk [vmem:[#allocation2 + $0x90] sm:$0xff] %vm1077, %v1067
        %1097 = vst.msk [vmem:[#allocation2 + $0x98] sm:$0xff] %vm1077, %v1068
        %1098 = vst.msk [vmem:[#allocation2 + $0xa0] sm:$0xff] %vm1077, %v1069
        %1099 = vst.msk [vmem:[#allocation2 + $0xa8] sm:$0xff] %vm1077, %v1070
        %1100 = vst.msk [vmem:[#allocation2 + $0xb0] sm:$0xff] %vm1077, %v1071
        %1101 = vst.msk [vmem:[#allocation2 + $0xb8] sm:$0xff] %vm1077, %v1072
        %1102 = vst.msk [vmem:[#allocation2 + $0xc0] sm:$0xff] %vm1077, %v1073
        %1103 = vst.msk [vmem:[#allocation2 + $0xc8] sm:$0xff] %vm1077, %v1074
        %1104 = vst.msk [vmem:[#allocation2 + $0xd0] sm:$0xff] %vm1077, %v1075
        %vm1105 = vcmask 257024
        %1106 = vst.msk [vmem:[#allocation2 + $0xd8] sm:$0xf] %vm1105, %v1076
        %s1107 = sadd.s32 %s223, 1
        %s1108 = smul.u32 %s1107, 28
        %s1109 = smul.addr %s1108, 4
        %s1110 = scalar_lea.vmem %s202, %s1109
        %v1111 = vld [vmem:[%s1110] sm:$0xf]
        %v1112 = vld [vmem:[%s1110 + $0x4] sm:$0xf]
        %v1113 = vld [vmem:[%s1110 + $0x8] sm:$0xf]
        %v1114 = vld [vmem:[%s1110 + $0xc] sm:$0xf]
        %v1115 = vld [vmem:[%s1110 + $0x10] sm:$0xf]
        %v1116 = vld [vmem:[%s1110 + $0x14] sm:$0xf]
        %v1117 = vld [vmem:[%s1110 + $0x18] sm:$0xf]
        %v1118 = vld [vmem:[%s1110 + $0x1c] sm:$0xf]
        %v1119 = vld [vmem:[%s1110 + $0x20] sm:$0xf]
        %v1120 = vld [vmem:[%s1110 + $0x24] sm:$0xf]
        %v1121 = vld [vmem:[%s1110 + $0x28] sm:$0xf]
        %v1122 = vld [vmem:[%s1110 + $0x2c] sm:$0xf]
        %v1123 = vld [vmem:[%s1110 + $0x30] sm:$0xf]
        %v1124 = vld [vmem:[%s1110 + $0x34] sm:$0xf]
        %v1125 = vld [vmem:[%s1110 + $0x38] sm:$0xf]
        %v1126 = vld [vmem:[%s1110 + $0x3c] sm:$0xf]
        %v1127 = vld [vmem:[%s1110 + $0x40] sm:$0xf]
        %v1128 = vld [vmem:[%s1110 + $0x44] sm:$0xf]
        %v1129 = vld [vmem:[%s1110 + $0x48] sm:$0xf]
        %v1130 = vld [vmem:[%s1110 + $0x4c] sm:$0xf]
        %v1131 = vld [vmem:[%s1110 + $0x50] sm:$0xf]
        %v1132 = vld [vmem:[%s1110 + $0x54] sm:$0xf]
        %v1133 = vld [vmem:[%s1110 + $0x58] sm:$0xf]
        %v1134 = vld [vmem:[%s1110 + $0x5c] sm:$0xf]
        %v1135 = vld [vmem:[%s1110 + $0x60] sm:$0xf]
        %v1136 = vld [vmem:[%s1110 + $0x64] sm:$0xf]
        %v1137 = vld [vmem:[%s1110 + $0x68] sm:$0xf]
        %v1138 = vld [vmem:[%s1110 + $0x6c] sm:$0x7]
        %v1139 = vld [vmem:[%s1] sm:$0xf]
        %v1140 = vld [vmem:[%s1 + $0x4] sm:$0x1]
        %v1141 = vld [vmem:[%s257] sm:$0xf]
        %v1142 = vld [vmem:[%s257 + $0x4] sm:$0x1]
        %v1171 = vunpack.c.l.b16 %v1111
        %v1172 = vunpack.c.l.b16 %v1112
        %v1173 = vunpack.c.l.b16 %v1113
        %v1174 = vunpack.c.l.b16 %v1114
        %v1175 = vunpack.c.l.b16 %v1115
        %v1176 = vunpack.c.l.b16 %v1116
        %v1177 = vunpack.c.l.b16 %v1117
        %v1178 = vunpack.c.l.b16 %v1118
        %v1179 = vunpack.c.l.b16 %v1119
        %v1180 = vunpack.c.l.b16 %v1120
        %v1181 = vunpack.c.l.b16 %v1121
        %v1182 = vunpack.c.l.b16 %v1122
        %v1183 = vunpack.c.l.b16 %v1123
        %v1184 = vunpack.c.l.b16 %v1124
        %v1185 = vunpack.c.l.b16 %v1125
        %v1186 = vunpack.c.l.b16 %v1126
        %v1187 = vunpack.c.l.b16 %v1127
        %v1188 = vunpack.c.l.b16 %v1128
        %v1189 = vunpack.c.l.b16 %v1129
        %v1190 = vunpack.c.l.b16 %v1130
        %v1191 = vunpack.c.l.b16 %v1131
        %v1192 = vunpack.c.l.b16 %v1132
        %v1193 = vunpack.c.l.b16 %v1133
        %v1194 = vunpack.c.l.b16 %v1134
        %v1195 = vunpack.c.l.b16 %v1135
        %v1196 = vunpack.c.l.b16 %v1136
        %v1197 = vunpack.c.l.b16 %v1137
        %v1198 = vunpack.c.l.b16 %v1138
        %v1199 = vpack.c.b16 %v1172, %v1171
        %v1200 = vpack.c.b16 %v1174, %v1173
        %v1201 = vpack.c.b16 %v1176, %v1175
        %v1202 = vpack.c.b16 %v1178, %v1177
        %v1203 = vpack.c.b16 %v1180, %v1179
        %v1204 = vpack.c.b16 %v1182, %v1181
        %v1205 = vpack.c.b16 %v1184, %v1183
        %v1206 = vpack.c.b16 %v1186, %v1185
        %v1207 = vpack.c.b16 %v1188, %v1187
        %v1208 = vpack.c.b16 %v1190, %v1189
        %v1209 = vpack.c.b16 %v1192, %v1191
        %v1210 = vpack.c.b16 %v1194, %v1193
        %v1211 = vpack.c.b16 %v1196, %v1195
        %v1212 = vpack.c.b16 %v1198, %v1197
        %v1214 = vshrl.u32 %v1199, 16
        %v1216 = vshll.u32 %v1199, 16
        %v1218 = vrot.slane %v1216, 1
        %v1219 = vor.u32 %v1214, %v1218
        %v1221 = vshll.u32 %v1200, 16
        %v1223 = vrot.slane %v1221, 1
        %v1224 = vsel %vm330, %v1219, %v1223
        %v1225 = vshrl.u32 %v1200, 16
        %v1227 = vor.u32 %v1225, %v1223
        %v1229 = vshll.u32 %v1201, 16
        %v1231 = vrot.slane %v1229, 1
        %v1232 = vsel %vm330, %v1227, %v1231
        %v1233 = vshrl.u32 %v1201, 16
        %v1235 = vor.u32 %v1233, %v1231
        %v1237 = vshll.u32 %v1202, 16
        %v1239 = vrot.slane %v1237, 1
        %v1240 = vsel %vm330, %v1235, %v1239
        %v1241 = vshrl.u32 %v1202, 16
        %v1243 = vor.u32 %v1241, %v1239
        %v1245 = vshll.u32 %v1203, 16
        %v1247 = vrot.slane %v1245, 1
        %v1248 = vsel %vm330, %v1243, %v1247
        %v1249 = vshrl.u32 %v1203, 16
        %v1251 = vor.u32 %v1249, %v1247
        %v1253 = vshll.u32 %v1204, 16
        %v1255 = vrot.slane %v1253, 1
        %v1256 = vsel %vm330, %v1251, %v1255
        %v1257 = vshrl.u32 %v1204, 16
        %v1259 = vor.u32 %v1257, %v1255
        %v1261 = vshll.u32 %v1205, 16
        %v1263 = vrot.slane %v1261, 1
        %v1264 = vsel %vm330, %v1259, %v1263
        %v1265 = vshrl.u32 %v1205, 16
        %v1267 = vor.u32 %v1265, %v1263
        %v1269 = vshll.u32 %v1206, 16
        %v1271 = vrot.slane %v1269, 1
        %v1272 = vsel %vm330, %v1267, %v1271
        %v1273 = vshrl.u32 %v1206, 16
        %v1275 = vor.u32 %v1273, %v1271
        %v1277 = vshll.u32 %v1207, 16
        %v1279 = vrot.slane %v1277, 1
        %v1280 = vsel %vm330, %v1275, %v1279
        %v1281 = vshrl.u32 %v1207, 16
        %v1283 = vor.u32 %v1281, %v1279
        %v1285 = vshll.u32 %v1208, 16
        %v1287 = vrot.slane %v1285, 1
        %v1288 = vsel %vm330, %v1283, %v1287
        %v1289 = vshrl.u32 %v1208, 16
        %v1291 = vor.u32 %v1289, %v1287
        %v1293 = vshll.u32 %v1209, 16
        %v1295 = vrot.slane %v1293, 1
        %v1296 = vsel %vm330, %v1291, %v1295
        %v1297 = vshrl.u32 %v1209, 16
        %v1299 = vor.u32 %v1297, %v1295
        %v1301 = vshll.u32 %v1210, 16
        %v1303 = vrot.slane %v1301, 1
        %v1304 = vsel %vm330, %v1299, %v1303
        %v1305 = vshrl.u32 %v1210, 16
        %v1307 = vor.u32 %v1305, %v1303
        %v1309 = vshll.u32 %v1211, 16
        %v1311 = vrot.slane %v1309, 1
        %v1312 = vsel %vm330, %v1307, %v1311
        %v1313 = vshrl.u32 %v1211, 16
        %v1315 = vor.u32 %v1313, %v1311
        %v1317 = vshll.u32 %v1212, 16
        %v1319 = vrot.slane %v1317, 1
        %v1320 = vsel %vm330, %v1315, %v1319
        %v1321 = vshrl.u32 %v1212, 16
        %v1323 = vor.u32 %v1321, %v1319
        %v1326 = vunpack.c.l.b16 %v1141
        %v1327 = vunpack.c.l.b16 %v1142
        %v1328 = vpack.c.b16 %v1327, %v1326
        %v1330 = vsel %vm447, %v1224, 0
        %v1333 = vsel %vm447, %v1232, 0
        %v1336 = vsel %vm447, %v1240, 0
        %v1339 = vsel %vm447, %v1248, 0
        %v1342 = vsel %vm447, %v1256, 0
        %v1345 = vsel %vm447, %v1264, 0
        %v1348 = vsel %vm447, %v1272, 0
        %v1351 = vsel %vm447, %v1280, 0
        %v1354 = vsel %vm447, %v1288, 0
        %v1357 = vsel %vm447, %v1296, 0
        %v1360 = vsel %vm447, %v1304, 0
        %v1363 = vsel %vm447, %v1312, 0
        %v1366 = vsel %vm447, %v1320, 0
        %v1369 = vsel %vm447, %v1323, 0
        %v1372 = vand.u32 %v1328, %v493
        %1374 = vmatprep.subr.bf16.mxu0 0
        %1375 = vmatpush1.bf16.msra.mxu0 %v1372
        %1376 = vmatprep.subr.bf16.mxu0 0
        %1377 = vmatpush1.bf16.msra.mxu0 0
        %1378 = vmatprep.subr.bf16.mxu0 0
        %1379 = vmatpush1.bf16.msra.mxu0 0
        %1380 = vmatprep.subr.bf16.mxu0 0
        %1381 = vmatpush1.bf16.msra.mxu0 0
        %1382 = vmatprep.subr.bf16.mxu0 0
        %1383 = vmatpush1.bf16.msra.mxu0 0
        %1384 = vmatprep.subr.bf16.mxu0 0
        %1385 = vmatpush1.bf16.msra.mxu0 0
        %1386 = vmatprep.subr.bf16.mxu0 0
        %1387 = vmatpush1.bf16.msra.mxu0 0
        %1388 = vmatprep.subr.bf16.mxu0 0
        %1389 = vmatpush1.bf16.msra.mxu0 0
        %1390 = vmatprep.subr.bf16.mxu0 0
        %1391 = vmatpush1.bf16.msra.mxu0 0
        %1392 = vmatprep.subr.bf16.mxu0 0
        %1393 = vmatpush1.bf16.msra.mxu0 0
        %1394 = vmatprep.subr.bf16.mxu0 0
        %1395 = vmatpush1.bf16.msra.mxu0 0
        %1396 = vmatprep.subr.bf16.mxu0 0
        %1397 = vmatpush1.bf16.msra.mxu0 0
        %1398 = vmatprep.subr.bf16.mxu0 0
        %1399 = vmatpush1.bf16.msra.mxu0 0
        %1400 = vmatprep.subr.bf16.mxu0 0
        %1401 = vmatpush1.bf16.msra.mxu0 0
        %1402 = vmatprep.subr.bf16.mxu0 0
        %1403 = vmatpush1.bf16.msra.mxu0 0
        %1404 = vmatprep.subr.bf16.mxu0 0
        %1405 = vmatpush1.bf16.msra.mxu0 0
        %1406 = vmatprep.mubr.bf16.mxu0 0
        %1407 = vmatmul.mubr.bf16.gmra.mrb[0].mxu0 %v1330
        %v1408 = vpop.f32.mrb[0].mxu0
        %v1409 = vadd.f32 0.0, %v1408
        %v1410 = vpop.f32.mrb[0].mxu0
        %v1411 = vpop.f32.mrb[0].mxu0
        %v1412 = vadd.f32 0.0, %v1411
        %v1413 = vpop.f32.mrb[0].mxu0
        %1414 = vmatprep.mubr.bf16.mxu0 0
        %1415 = vmatmul.mubr.bf16.gmra.mrb[0].mxu0 %v1333
        %v1416 = vpop.f32.mrb[0].mxu0
        %v1417 = vadd.f32 0.0, %v1416
        %v1418 = vpop.f32.mrb[0].mxu0
        %v1419 = vpop.f32.mrb[0].mxu0
        %v1420 = vadd.f32 0.0, %v1419
        %v1421 = vpop.f32.mrb[0].mxu0
        %1422 = vmatprep.mubr.bf16.mxu0 0
        %1423 = vmatmul.mubr.bf16.gmra.mrb[0].mxu0 %v1336
        %v1424 = vpop.f32.mrb[0].mxu0
        %v1425 = vadd.f32 0.0, %v1424
        %v1426 = vpop.f32.mrb[0].mxu0
        %v1427 = vpop.f32.mrb[0].mxu0
        %v1428 = vadd.f32 0.0, %v1427
        %v1429 = vpop.f32.mrb[0].mxu0
        %1430 = vmatprep.mubr.bf16.mxu0 0
        %1431 = vmatmul.mubr.bf16.gmra.mrb[0].mxu0 %v1339
        %v1432 = vpop.f32.mrb[0].mxu0
        %v1433 = vadd.f32 0.0, %v1432
        %v1434 = vpop.f32.mrb[0].mxu0
        %v1435 = vpop.f32.mrb[0].mxu0
        %v1436 = vadd.f32 0.0, %v1435
        %v1437 = vpop.f32.mrb[0].mxu0
        %1438 = vmatprep.mubr.bf16.mxu0 0
        %1439 = vmatmul.mubr.bf16.gmra.mrb[0].mxu0 %v1342
        %v1440 = vpop.f32.mrb[0].mxu0
        %v1441 = vadd.f32 0.0, %v1440
        %v1442 = vpop.f32.mrb[0].mxu0
        %v1443 = vpop.f32.mrb[0].mxu0
        %v1444 = vadd.f32 0.0, %v1443
        %v1445 = vpop.f32.mrb[0].mxu0
        %1446 = vmatprep.mubr.bf16.mxu0 0
        %1447 = vmatmul.mubr.bf16.gmra.mrb[0].mxu0 %v1345
        %v1448 = vpop.f32.mrb[0].mxu0
        %v1449 = vadd.f32 0.0, %v1448
        %v1450 = vpop.f32.mrb[0].mxu0
        %v1451 = vpop.f32.mrb[0].mxu0
        %v1452 = vadd.f32 0.0, %v1451
        %v1453 = vpop.f32.mrb[0].mxu0
        %1454 = vmatprep.mubr.bf16.mxu0 0
        %1455 = vmatmul.mubr.bf16.gmra.mrb[0].mxu0 %v1348
        %v1456 = vpop.f32.mrb[0].mxu0
        %v1457 = vadd.f32 0.0, %v1456
        %v1458 = vpop.f32.mrb[0].mxu0
        %v1459 = vpop.f32.mrb[0].mxu0
        %v1460 = vadd.f32 0.0, %v1459
        %v1461 = vpop.f32.mrb[0].mxu0
        %1462 = vmatprep.mubr.bf16.mxu0 0
        %1463 = vmatmul.mubr.bf16.gmra.mrb[0].mxu0 %v1351
        %v1464 = vpop.f32.mrb[0].mxu0
        %v1465 = vadd.f32 0.0, %v1464
        %v1466 = vpop.f32.mrb[0].mxu0
        %v1467 = vpop.f32.mrb[0].mxu0
        %v1468 = vadd.f32 0.0, %v1467
        %v1469 = vpop.f32.mrb[0].mxu0
        %1470 = vmatprep.mubr.bf16.mxu0 0
        %1471 = vmatmul.mubr.bf16.gmra.mrb[0].mxu0 %v1354
        %v1472 = vpop.f32.mrb[0].mxu0
        %v1473 = vadd.f32 0.0, %v1472
        %v1474 = vpop.f32.mrb[0].mxu0
        %v1475 = vpop.f32.mrb[0].mxu0
        %v1476 = vadd.f32 0.0, %v1475
        %v1477 = vpop.f32.mrb[0].mxu0
        %1478 = vmatprep.mubr.bf16.mxu0 0
        %1479 = vmatmul.mubr.bf16.gmra.mrb[0].mxu0 %v1357
        %v1480 = vpop.f32.mrb[0].mxu0
        %v1481 = vadd.f32 0.0, %v1480
        %v1482 = vpop.f32.mrb[0].mxu0
        %v1483 = vpop.f32.mrb[0].mxu0
        %v1484 = vadd.f32 0.0, %v1483
        %v1485 = vpop.f32.mrb[0].mxu0
        %1486 = vmatprep.mubr.bf16.mxu0 0
        %1487 = vmatmul.mubr.bf16.gmra.mrb[0].mxu0 %v1360
        %v1488 = vpop.f32.mrb[0].mxu0
        %v1489 = vadd.f32 0.0, %v1488
        %v1490 = vpop.f32.mrb[0].mxu0
        %v1491 = vpop.f32.mrb[0].mxu0
        %v1492 = vadd.f32 0.0, %v1491
        %v1493 = vpop.f32.mrb[0].mxu0
        %1494 = vmatprep.mubr.bf16.mxu0 0
        %1495 = vmatmul.mubr.bf16.gmra.mrb[0].mxu0 %v1363
        %v1496 = vpop.f32.mrb[0].mxu0
        %v1497 = vadd.f32 0.0, %v1496
        %v1498 = vpop.f32.mrb[0].mxu0
        %v1499 = vpop.f32.mrb[0].mxu0
        %v1500 = vadd.f32 0.0, %v1499
        %v1501 = vpop.f32.mrb[0].mxu0
        %1502 = vmatprep.mubr.bf16.mxu0 0
        %1503 = vmatmul.mubr.bf16.gmra.mrb[0].mxu0 %v1366
        %v1504 = vpop.f32.mrb[0].mxu0
        %v1505 = vadd.f32 0.0, %v1504
        %v1506 = vpop.f32.mrb[0].mxu0
        %v1507 = vpop.f32.mrb[0].mxu0
        %v1508 = vadd.f32 0.0, %v1507
        %v1509 = vpop.f32.mrb[0].mxu0
        %1510 = vmatprep.mubr.bf16.mxu0 0
        %1511 = vmatmul.mubr.bf16.gmra.mrb[0].mxu0 %v1369
        %v1512 = vpop.f32.mrb[0].mxu0
        %v1513 = vadd.f32 0.0, %v1512
        %v1514 = vpop.f32.mrb[0].mxu0
        %v1515 = vpop.f32.mrb[0].mxu0
        %v1516 = vadd.f32 0.0, %v1515
        %v1517 = vpop.f32.mrb[0].mxu0
        %1518 = vdwg.mxu0
        %v1521 = vunpack.c.l.b16 %v1139
        %v1522 = vunpack.c.l.b16 %v1140
        %v1523 = vpack.c.b16 %v1522, %v1521
        %v1524 = vsel %vm447, %v1199, 0
        %v1526 = vsel %vm447, %v1200, 0
        %v1528 = vsel %vm447, %v1201, 0
        %v1530 = vsel %vm447, %v1202, 0
        %v1532 = vsel %vm447, %v1203, 0
        %v1534 = vsel %vm447, %v1204, 0
        %v1536 = vsel %vm447, %v1205, 0
        %v1538 = vsel %vm447, %v1206, 0
        %v1540 = vsel %vm447, %v1207, 0
        %v1542 = vsel %vm447, %v1208, 0
        %v1544 = vsel %vm447, %v1209, 0
        %v1546 = vsel %vm447, %v1210, 0
        %v1548 = vsel %vm447, %v1211, 0
        %v1550 = vsel %vm447, %v1212, 0
        %v1553 = vand.u32 %v1523, %v493
        %1555 = vmatprep.subr.bf16.mxu0 0
        %1556 = vmatpush1.bf16.msra.mxu0 %v1553
        %1557 = vmatprep.subr.bf16.mxu0 0
        %1558 = vmatpush1.bf16.msra.mxu0 0
        %1559 = vmatprep.subr.bf16.mxu0 0
        %1560 = vmatpush1.bf16.msra.mxu0 0
        %1561 = vmatprep.subr.bf16.mxu0 0
        %1562 = vmatpush1.bf16.msra.mxu0 0
        %1563 = vmatprep.subr.bf16.mxu0 0
        %1564 = vmatpush1.bf16.msra.mxu0 0
        %1565 = vmatprep.subr.bf16.mxu0 0
        %1566 = vmatpush1.bf16.msra.mxu0 0
        %1567 = vmatprep.subr.bf16.mxu0 0
        %1568 = vmatpush1.bf16.msra.mxu0 0
        %1569 = vmatprep.subr.bf16.mxu0 0
        %1570 = vmatpush1.bf16.msra.mxu0 0
        %1571 = vmatprep.subr.bf16.mxu0 0
        %1572 = vmatpush1.bf16.msra.mxu0 0
        %1573 = vmatprep.subr.bf16.mxu0 0
        %1574 = vmatpush1.bf16.msra.mxu0 0
        %1575 = vmatprep.subr.bf16.mxu0 0
        %1576 = vmatpush1.bf16.msra.mxu0 0
        %1577 = vmatprep.subr.bf16.mxu0 0
        %1578 = vmatpush1.bf16.msra.mxu0 0
        %1579 = vmatprep.subr.bf16.mxu0 0
        %1580 = vmatpush1.bf16.msra.mxu0 0
        %1581 = vmatprep.subr.bf16.mxu0 0
        %1582 = vmatpush1.bf16.msra.mxu0 0
        %1583 = vmatprep.subr.bf16.mxu0 0
        %1584 = vmatpush1.bf16.msra.mxu0 0
        %1585 = vmatprep.subr.bf16.mxu0 0
        %1586 = vmatpush1.bf16.msra.mxu0 0
        %1587 = vmatprep.mubr.bf16.mxu0 0
        %1588 = vmatmul.mubr.bf16.gmra.mrb[0].mxu0 %v1524
        %v1589 = vpop.f32.mrb[0].mxu0
        %v1590 = vadd.f32 %v1409, %v1589
        %v1591 = vpop.f32.mrb[0].mxu0
        %v1592 = vpop.f32.mrb[0].mxu0
        %v1593 = vadd.f32 %v1412, %v1592
        %v1594 = vpop.f32.mrb[0].mxu0
        %1595 = vmatprep.mubr.bf16.mxu0 0
        %1596 = vmatmul.mubr.bf16.gmra.mrb[0].mxu0 %v1526
        %v1597 = vpop.f32.mrb[0].mxu0
        %v1598 = vadd.f32 %v1417, %v1597
        %v1599 = vpop.f32.mrb[0].mxu0
        %v1600 = vpop.f32.mrb[0].mxu0
        %v1601 = vadd.f32 %v1420, %v1600
        %v1602 = vpop.f32.mrb[0].mxu0
        %1603 = vmatprep.mubr.bf16.mxu0 0
        %1604 = vmatmul.mubr.bf16.gmra.mrb[0].mxu0 %v1528
        %v1605 = vpop.f32.mrb[0].mxu0
        %v1606 = vadd.f32 %v1425, %v1605
        %v1607 = vpop.f32.mrb[0].mxu0
        %v1608 = vpop.f32.mrb[0].mxu0
        %v1609 = vadd.f32 %v1428, %v1608
        %v1610 = vpop.f32.mrb[0].mxu0
        %1611 = vmatprep.mubr.bf16.mxu0 0
        %1612 = vmatmul.mubr.bf16.gmra.mrb[0].mxu0 %v1530
        %v1613 = vpop.f32.mrb[0].mxu0
        %v1614 = vadd.f32 %v1433, %v1613
        %v1615 = vpop.f32.mrb[0].mxu0
        %v1616 = vpop.f32.mrb[0].mxu0
        %v1617 = vadd.f32 %v1436, %v1616
        %v1618 = vpop.f32.mrb[0].mxu0
        %1619 = vmatprep.mubr.bf16.mxu0 0
        %1620 = vmatmul.mubr.bf16.gmra.mrb[0].mxu0 %v1532
        %v1621 = vpop.f32.mrb[0].mxu0
        %v1622 = vadd.f32 %v1441, %v1621
        %v1623 = vpop.f32.mrb[0].mxu0
        %v1624 = vpop.f32.mrb[0].mxu0
        %v1625 = vadd.f32 %v1444, %v1624
        %v1626 = vpop.f32.mrb[0].mxu0
        %1627 = vmatprep.mubr.bf16.mxu0 0
        %1628 = vmatmul.mubr.bf16.gmra.mrb[0].mxu0 %v1534
        %v1629 = vpop.f32.mrb[0].mxu0
        %v1630 = vadd.f32 %v1449, %v1629
        %v1631 = vpop.f32.mrb[0].mxu0
        %v1632 = vpop.f32.mrb[0].mxu0
        %v1633 = vadd.f32 %v1452, %v1632
        %v1634 = vpop.f32.mrb[0].mxu0
        %1635 = vmatprep.mubr.bf16.mxu0 0
        %1636 = vmatmul.mubr.bf16.gmra.mrb[0].mxu0 %v1536
        %v1637 = vpop.f32.mrb[0].mxu0
        %v1638 = vadd.f32 %v1457, %v1637
        %v1639 = vpop.f32.mrb[0].mxu0
        %v1640 = vpop.f32.mrb[0].mxu0
        %v1641 = vadd.f32 %v1460, %v1640
        %v1642 = vpop.f32.mrb[0].mxu0
        %1643 = vmatprep.mubr.bf16.mxu0 0
        %1644 = vmatmul.mubr.bf16.gmra.mrb[0].mxu0 %v1538
        %v1645 = vpop.f32.mrb[0].mxu0
        %v1646 = vadd.f32 %v1465, %v1645
        %v1647 = vpop.f32.mrb[0].mxu0
        %v1648 = vpop.f32.mrb[0].mxu0
        %v1649 = vadd.f32 %v1468, %v1648
        %v1650 = vpop.f32.mrb[0].mxu0
        %1651 = vmatprep.mubr.bf16.mxu0 0
        %1652 = vmatmul.mubr.bf16.gmra.mrb[0].mxu0 %v1540
        %v1653 = vpop.f32.mrb[0].mxu0
        %v1654 = vadd.f32 %v1473, %v1653
        %v1655 = vpop.f32.mrb[0].mxu0
        %v1656 = vpop.f32.mrb[0].mxu0
        %v1657 = vadd.f32 %v1476, %v1656
        %v1658 = vpop.f32.mrb[0].mxu0
        %1659 = vmatprep.mubr.bf16.mxu0 0
        %1660 = vmatmul.mubr.bf16.gmra.mrb[0].mxu0 %v1542
        %v1661 = vpop.f32.mrb[0].mxu0
        %v1662 = vadd.f32 %v1481, %v1661
        %v1663 = vpop.f32.mrb[0].mxu0
        %v1664 = vpop.f32.mrb[0].mxu0
        %v1665 = vadd.f32 %v1484, %v1664
        %v1666 = vpop.f32.mrb[0].mxu0
        %1667 = vmatprep.mubr.bf16.mxu0 0
        %1668 = vmatmul.mubr.bf16.gmra.mrb[0].mxu0 %v1544
        %v1669 = vpop.f32.mrb[0].mxu0
        %v1670 = vadd.f32 %v1489, %v1669
        %v1671 = vpop.f32.mrb[0].mxu0
        %v1672 = vpop.f32.mrb[0].mxu0
        %v1673 = vadd.f32 %v1492, %v1672
        %v1674 = vpop.f32.mrb[0].mxu0
        %1675 = vmatprep.mubr.bf16.mxu0 0
        %1676 = vmatmul.mubr.bf16.gmra.mrb[0].mxu0 %v1546
        %v1677 = vpop.f32.mrb[0].mxu0
        %v1678 = vadd.f32 %v1497, %v1677
        %v1679 = vpop.f32.mrb[0].mxu0
        %v1680 = vpop.f32.mrb[0].mxu0
        %v1681 = vadd.f32 %v1500, %v1680
        %v1682 = vpop.f32.mrb[0].mxu0
        %1683 = vmatprep.mubr.bf16.mxu0 0
        %1684 = vmatmul.mubr.bf16.gmra.mrb[0].mxu0 %v1548
        %v1685 = vpop.f32.mrb[0].mxu0
        %v1686 = vadd.f32 %v1505, %v1685
        %v1687 = vpop.f32.mrb[0].mxu0
        %v1688 = vpop.f32.mrb[0].mxu0
        %v1689 = vadd.f32 %v1508, %v1688
        %v1690 = vpop.f32.mrb[0].mxu0
        %1691 = vmatprep.mubr.bf16.mxu0 0
        %1692 = vmatmul.mubr.bf16.gmra.mrb[0].mxu0 %v1550
        %v1693 = vpop.f32.mrb[0].mxu0
        %v1694 = vadd.f32 %v1513, %v1693
        %v1695 = vpop.f32.mrb[0].mxu0
        %v1696 = vpop.f32.mrb[0].mxu0
        %v1697 = vadd.f32 %v1516, %v1696
        %v1698 = vpop.f32.mrb[0].mxu0
        %1699 = vdwg.mxu0
        %v1700 = vld [vmem:[%s823] sm:$0xf]
        %v1701 = vld [vmem:[%s823 + $0x4] sm:$0x1]
        %v1702 = vrot.slane %v1199, 1
        %v1703 = vrot.slane %v1200, 1
        %v1704 = vsel %vm826, %v1702, %v1703
        %v1705 = vrot.slane %v1201, 1
        %v1706 = vsel %vm826, %v1703, %v1705
        %v1707 = vrot.slane %v1202, 1
        %v1708 = vsel %vm826, %v1705, %v1707
        %v1709 = vrot.slane %v1203, 1
        %v1710 = vsel %vm826, %v1707, %v1709
        %v1711 = vrot.slane %v1204, 1
        %v1712 = vsel %vm826, %v1709, %v1711
        %v1713 = vrot.slane %v1205, 1
        %v1714 = vsel %vm826, %v1711, %v1713
        %v1715 = vrot.slane %v1206, 1
        %v1716 = vsel %vm826, %v1713, %v1715
        %v1717 = vrot.slane %v1207, 1
        %v1718 = vsel %vm826, %v1715, %v1717
        %v1719 = vrot.slane %v1208, 1
        %v1720 = vsel %vm826, %v1717, %v1719
        %v1721 = vrot.slane %v1209, 1
        %v1722 = vsel %vm826, %v1719, %v1721
        %v1723 = vrot.slane %v1210, 1
        %v1724 = vsel %vm826, %v1721, %v1723
        %v1725 = vrot.slane %v1211, 1
        %v1726 = vsel %vm826, %v1723, %v1725
        %v1727 = vrot.slane %v1212, 1
        %v1728 = vsel %vm826, %v1725, %v1727
        %v1731 = vunpack.c.l.b16 %v1700
        %v1732 = vunpack.c.l.b16 %v1701
        %v1733 = vpack.c.b16 %v1732, %v1731
        %v1735 = vsel %vm447, %v1704, 0
        %v1738 = vsel %vm447, %v1706, 0
        %v1741 = vsel %vm447, %v1708, 0
        %v1744 = vsel %vm447, %v1710, 0
        %v1747 = vsel %vm447, %v1712, 0
        %v1750 = vsel %vm447, %v1714, 0
        %v1753 = vsel %vm447, %v1716, 0
        %v1756 = vsel %vm447, %v1718, 0
        %v1759 = vsel %vm447, %v1720, 0
        %v1762 = vsel %vm447, %v1722, 0
        %v1765 = vsel %vm447, %v1724, 0
        %v1768 = vsel %vm447, %v1726, 0
        %v1771 = vsel %vm447, %v1728, 0
        %v1774 = vsel %vm447, %v1727, 0
        %v1777 = vand.u32 %v1733, %v493
        %1779 = vmatprep.subr.bf16.mxu0 0
        %1780 = vmatpush1.bf16.msra.mxu0 %v1777
        %1781 = vmatprep.subr.bf16.mxu0 0
        %1782 = vmatpush1.bf16.msra.mxu0 0
        %1783 = vmatprep.subr.bf16.mxu0 0
        %1784 = vmatpush1.bf16.msra.mxu0 0
        %1785 = vmatprep.subr.bf16.mxu0 0
        %1786 = vmatpush1.bf16.msra.mxu0 0
        %1787 = vmatprep.subr.bf16.mxu0 0
        %1788 = vmatpush1.bf16.msra.mxu0 0
        %1789 = vmatprep.subr.bf16.mxu0 0
        %1790 = vmatpush1.bf16.msra.mxu0 0
        %1791 = vmatprep.subr.bf16.mxu0 0
        %1792 = vmatpush1.bf16.msra.mxu0 0
        %1793 = vmatprep.subr.bf16.mxu0 0
        %1794 = vmatpush1.bf16.msra.mxu0 0
        %1795 = vmatprep.subr.bf16.mxu0 0
        %1796 = vmatpush1.bf16.msra.mxu0 0
        %1797 = vmatprep.subr.bf16.mxu0 0
        %1798 = vmatpush1.bf16.msra.mxu0 0
        %1799 = vmatprep.subr.bf16.mxu0 0
        %1800 = vmatpush1.bf16.msra.mxu0 0
        %1801 = vmatprep.subr.bf16.mxu0 0
        %1802 = vmatpush1.bf16.msra.mxu0 0
        %1803 = vmatprep.subr.bf16.mxu0 0
        %1804 = vmatpush1.bf16.msra.mxu0 0
        %1805 = vmatprep.subr.bf16.mxu0 0
        %1806 = vmatpush1.bf16.msra.mxu0 0
        %1807 = vmatprep.subr.bf16.mxu0 0
        %1808 = vmatpush1.bf16.msra.mxu0 0
        %1809 = vmatprep.subr.bf16.mxu0 0
        %1810 = vmatpush1.bf16.msra.mxu0 0
        %1811 = vmatprep.mubr.bf16.mxu0 0
        %1812 = vmatmul.mubr.bf16.gmra.mrb[0].mxu0 %v1735
        %v1813 = vpop.f32.mrb[0].mxu0
        %v1814 = vadd.f32 0.0, %v1813
        %v1815 = vpop.f32.mrb[0].mxu0
        %v1816 = vpop.f32.mrb[0].mxu0
        %v1817 = vadd.f32 0.0, %v1816
        %v1818 = vpop.f32.mrb[0].mxu0
        %1819 = vmatprep.mubr.bf16.mxu0 0
        %1820 = vmatmul.mubr.bf16.gmra.mrb[0].mxu0 %v1738
        %v1821 = vpop.f32.mrb[0].mxu0
        %v1822 = vadd.f32 0.0, %v1821
        %v1823 = vpop.f32.mrb[0].mxu0
        %v1824 = vpop.f32.mrb[0].mxu0
        %v1825 = vadd.f32 0.0, %v1824
        %v1826 = vpop.f32.mrb[0].mxu0
        %1827 = vmatprep.mubr.bf16.mxu0 0
        %1828 = vmatmul.mubr.bf16.gmra.mrb[0].mxu0 %v1741
        %v1829 = vpop.f32.mrb[0].mxu0
        %v1830 = vadd.f32 0.0, %v1829
        %v1831 = vpop.f32.mrb[0].mxu0
        %v1832 = vpop.f32.mrb[0].mxu0
        %v1833 = vadd.f32 0.0, %v1832
        %v1834 = vpop.f32.mrb[0].mxu0
        %1835 = vmatprep.mubr.bf16.mxu0 0
        %1836 = vmatmul.mubr.bf16.gmra.mrb[0].mxu0 %v1744
        %v1837 = vpop.f32.mrb[0].mxu0
        %v1838 = vadd.f32 0.0, %v1837
        %v1839 = vpop.f32.mrb[0].mxu0
        %v1840 = vpop.f32.mrb[0].mxu0
        %v1841 = vadd.f32 0.0, %v1840
        %v1842 = vpop.f32.mrb[0].mxu0
        %1843 = vmatprep.mubr.bf16.mxu0 0
        %1844 = vmatmul.mubr.bf16.gmra.mrb[0].mxu0 %v1747
        %v1845 = vpop.f32.mrb[0].mxu0
        %v1846 = vadd.f32 0.0, %v1845
        %v1847 = vpop.f32.mrb[0].mxu0
        %v1848 = vpop.f32.mrb[0].mxu0
        %v1849 = vadd.f32 0.0, %v1848
        %v1850 = vpop.f32.mrb[0].mxu0
        %1851 = vmatprep.mubr.bf16.mxu0 0
        %1852 = vmatmul.mubr.bf16.gmra.mrb[0].mxu0 %v1750
        %v1853 = vpop.f32.mrb[0].mxu0
        %v1854 = vadd.f32 0.0, %v1853
        %v1855 = vpop.f32.mrb[0].mxu0
        %v1856 = vpop.f32.mrb[0].mxu0
        %v1857 = vadd.f32 0.0, %v1856
        %v1858 = vpop.f32.mrb[0].mxu0
        %1859 = vmatprep.mubr.bf16.mxu0 0
        %1860 = vmatmul.mubr.bf16.gmra.mrb[0].mxu0 %v1753
        %v1861 = vpop.f32.mrb[0].mxu0
        %v1862 = vadd.f32 0.0, %v1861
        %v1863 = vpop.f32.mrb[0].mxu0
        %v1864 = vpop.f32.mrb[0].mxu0
        %v1865 = vadd.f32 0.0, %v1864
        %v1866 = vpop.f32.mrb[0].mxu0
        %1867 = vmatprep.mubr.bf16.mxu0 0
        %1868 = vmatmul.mubr.bf16.gmra.mrb[0].mxu0 %v1756
        %v1869 = vpop.f32.mrb[0].mxu0
        %v1870 = vadd.f32 0.0, %v1869
        %v1871 = vpop.f32.mrb[0].mxu0
        %v1872 = vpop.f32.mrb[0].mxu0
        %v1873 = vadd.f32 0.0, %v1872
        %v1874 = vpop.f32.mrb[0].mxu0
        %1875 = vmatprep.mubr.bf16.mxu0 0
        %1876 = vmatmul.mubr.bf16.gmra.mrb[0].mxu0 %v1759
        %v1877 = vpop.f32.mrb[0].mxu0
        %v1878 = vadd.f32 0.0, %v1877
        %v1879 = vpop.f32.mrb[0].mxu0
        %v1880 = vpop.f32.mrb[0].mxu0
        %v1881 = vadd.f32 0.0, %v1880
        %v1882 = vpop.f32.mrb[0].mxu0
        %1883 = vmatprep.mubr.bf16.mxu0 0
        %1884 = vmatmul.mubr.bf16.gmra.mrb[0].mxu0 %v1762
        %v1885 = vpop.f32.mrb[0].mxu0
        %v1886 = vadd.f32 0.0, %v1885
        %v1887 = vpop.f32.mrb[0].mxu0
        %v1888 = vpop.f32.mrb[0].mxu0
        %v1889 = vadd.f32 0.0, %v1888
        %v1890 = vpop.f32.mrb[0].mxu0
        %1891 = vmatprep.mubr.bf16.mxu0 0
        %1892 = vmatmul.mubr.bf16.gmra.mrb[0].mxu0 %v1765
        %v1893 = vpop.f32.mrb[0].mxu0
        %v1894 = vadd.f32 0.0, %v1893
        %v1895 = vpop.f32.mrb[0].mxu0
        %v1896 = vpop.f32.mrb[0].mxu0
        %v1897 = vadd.f32 0.0, %v1896
        %v1898 = vpop.f32.mrb[0].mxu0
        %1899 = vmatprep.mubr.bf16.mxu0 0
        %1900 = vmatmul.mubr.bf16.gmra.mrb[0].mxu0 %v1768
        %v1901 = vpop.f32.mrb[0].mxu0
        %v1902 = vadd.f32 0.0, %v1901
        %v1903 = vpop.f32.mrb[0].mxu0
        %v1904 = vpop.f32.mrb[0].mxu0
        %v1905 = vadd.f32 0.0, %v1904
        %v1906 = vpop.f32.mrb[0].mxu0
        %1907 = vmatprep.mubr.bf16.mxu0 0
        %1908 = vmatmul.mubr.bf16.gmra.mrb[0].mxu0 %v1771
        %v1909 = vpop.f32.mrb[0].mxu0
        %v1910 = vadd.f32 0.0, %v1909
        %v1911 = vpop.f32.mrb[0].mxu0
        %v1912 = vpop.f32.mrb[0].mxu0
        %v1913 = vadd.f32 0.0, %v1912
        %v1914 = vpop.f32.mrb[0].mxu0
        %1915 = vmatprep.mubr.bf16.mxu0 0
        %1916 = vmatmul.mubr.bf16.gmra.mrb[0].mxu0 %v1774
        %v1917 = vpop.f32.mrb[0].mxu0
        %v1918 = vadd.f32 0.0, %v1917
        %v1919 = vpop.f32.mrb[0].mxu0
        %v1920 = vpop.f32.mrb[0].mxu0
        %v1921 = vadd.f32 0.0, %v1920
        %v1922 = vpop.f32.mrb[0].mxu0
        %1923 = vdwg.mxu0
        %v1924 = vadd.f32 %v1590, %v1814
        %v1925 = vadd.f32 %v1593, %v1817
        %v1926 = vadd.f32 %v1598, %v1822
        %v1927 = vadd.f32 %v1601, %v1825
        %v1928 = vadd.f32 %v1606, %v1830
        %v1929 = vadd.f32 %v1609, %v1833
        %v1930 = vadd.f32 %v1614, %v1838
        %v1931 = vadd.f32 %v1617, %v1841
        %v1932 = vadd.f32 %v1622, %v1846
        %v1933 = vadd.f32 %v1625, %v1849
        %v1934 = vadd.f32 %v1630, %v1854
        %v1935 = vadd.f32 %v1633, %v1857
        %v1936 = vadd.f32 %v1638, %v1862
        %v1937 = vadd.f32 %v1641, %v1865
        %v1938 = vadd.f32 %v1646, %v1870
        %v1939 = vadd.f32 %v1649, %v1873
        %v1940 = vadd.f32 %v1654, %v1878
        %v1941 = vadd.f32 %v1657, %v1881
        %v1942 = vadd.f32 %v1662, %v1886
        %v1943 = vadd.f32 %v1665, %v1889
        %v1944 = vadd.f32 %v1670, %v1894
        %v1945 = vadd.f32 %v1673, %v1897
        %v1946 = vadd.f32 %v1678, %v1902
        %v1947 = vadd.f32 %v1681, %v1905
        %v1948 = vadd.f32 %v1686, %v1910
        %v1949 = vadd.f32 %v1689, %v1913
        %v1950 = vadd.f32 %v1694, %v1918
        %v1951 = vadd.f32 %v1697, %v1921
        %v1952 = vld [vmem:[#allocation2] sm:$0xff]
        %v1953 = vld [vmem:[#allocation2 + $0x8] sm:$0xff]
        %v1954 = vld [vmem:[#allocation2 + $0x10] sm:$0xff]
        %v1955 = vld [vmem:[#allocation2 + $0x18] sm:$0xff]
        %v1956 = vld [vmem:[#allocation2 + $0x20] sm:$0xff]
        %v1957 = vld [vmem:[#allocation2 + $0x28] sm:$0xff]
        %v1958 = vld [vmem:[#allocation2 + $0x30] sm:$0xff]
        %v1959 = vld [vmem:[#allocation2 + $0x38] sm:$0xff]
        %v1960 = vld [vmem:[#allocation2 + $0x40] sm:$0xff]
        %v1961 = vld [vmem:[#allocation2 + $0x48] sm:$0xff]
        %v1962 = vld [vmem:[#allocation2 + $0x50] sm:$0xff]
        %v1963 = vld [vmem:[#allocation2 + $0x58] sm:$0xff]
        %v1964 = vld [vmem:[#allocation2 + $0x60] sm:$0xff]
        %v1965 = vld [vmem:[#allocation2 + $0x68] sm:$0xff]
        %v1966 = vld [vmem:[#allocation2 + $0x70] sm:$0xff]
        %v1967 = vld [vmem:[#allocation2 + $0x78] sm:$0xff]
        %v1968 = vld [vmem:[#allocation2 + $0x80] sm:$0xff]
        %v1969 = vld [vmem:[#allocation2 + $0x88] sm:$0xff]
        %v1970 = vld [vmem:[#allocation2 + $0x90] sm:$0xff]
        %v1971 = vld [vmem:[#allocation2 + $0x98] sm:$0xff]
        %v1972 = vld [vmem:[#allocation2 + $0xa0] sm:$0xff]
        %v1973 = vld [vmem:[#allocation2 + $0xa8] sm:$0xff]
        %v1974 = vld [vmem:[#allocation2 + $0xb0] sm:$0xff]
        %v1975 = vld [vmem:[#allocation2 + $0xb8] sm:$0xff]
        %v1976 = vld [vmem:[#allocation2 + $0xc0] sm:$0xff]
        %v1977 = vld [vmem:[#allocation2 + $0xc8] sm:$0xff]
        %v1978 = vld [vmem:[#allocation2 + $0xd0] sm:$0xff]
        %v1979 = vld [vmem:[#allocation2 + $0xd8] sm:$0xf]
        %v1980 = vmax.f32 %v1952, %v1924
        %v1981 = vmax.f32 %v1953, %v1925
        %v1982 = vmax.f32 %v1954, %v1926
        %v1983 = vmax.f32 %v1955, %v1927
        %v1984 = vmax.f32 %v1956, %v1928
        %v1985 = vmax.f32 %v1957, %v1929
        %v1986 = vmax.f32 %v1958, %v1930
        %v1987 = vmax.f32 %v1959, %v1931
        %v1988 = vmax.f32 %v1960, %v1932
        %v1989 = vmax.f32 %v1961, %v1933
        %v1990 = vmax.f32 %v1962, %v1934
        %v1991 = vmax.f32 %v1963, %v1935
        %v1992 = vmax.f32 %v1964, %v1936
        %v1993 = vmax.f32 %v1965, %v1937
        %v1994 = vmax.f32 %v1966, %v1938
        %v1995 = vmax.f32 %v1967, %v1939
        %v1996 = vmax.f32 %v1968, %v1940
        %v1997 = vmax.f32 %v1969, %v1941
        %v1998 = vmax.f32 %v1970, %v1942
        %v1999 = vmax.f32 %v1971, %v1943
        %v2000 = vmax.f32 %v1972, %v1944
        %v2001 = vmax.f32 %v1973, %v1945
        %v2002 = vmax.f32 %v1974, %v1946
        %v2003 = vmax.f32 %v1975, %v1947
        %v2004 = vmax.f32 %v1976, %v1948
        %v2005 = vmax.f32 %v1977, %v1949
        %v2006 = vmax.f32 %v1978, %v1950
        %v2007 = vmax.f32 %v1979, %v1951
        %v2009 = vlaneseq
        %v2010 = vshrl.u32 %v2009, 7
        %v2011 = vsub.s32 0, %v2010
        %v2012 = vrot.slane %v216, %v2011
        %v2014 = vadd.f32 %v1980, %v2012
        %v2015 = vadd.f32 %v1981, %v2012
        %v2016 = vadd.f32 %v1982, %v2012
        %v2017 = vadd.f32 %v1983, %v2012
        %v2018 = vadd.f32 %v1984, %v2012
        %v2019 = vadd.f32 %v1985, %v2012
        %v2020 = vadd.f32 %v1986, %v2012
        %v2021 = vadd.f32 %v1987, %v2012
        %v2022 = vadd.f32 %v1988, %v2012
        %v2023 = vadd.f32 %v1989, %v2012
        %v2024 = vadd.f32 %v1990, %v2012
        %v2025 = vadd.f32 %v1991, %v2012
        %v2026 = vadd.f32 %v1992, %v2012
        %v2027 = vadd.f32 %v1993, %v2012
        %v2028 = vadd.f32 %v1994, %v2012
        %v2029 = vadd.f32 %v1995, %v2012
        %v2030 = vadd.f32 %v1996, %v2012
        %v2031 = vadd.f32 %v1997, %v2012
        %v2032 = vadd.f32 %v1998, %v2012
        %v2033 = vadd.f32 %v1999, %v2012
        %v2034 = vadd.f32 %v2000, %v2012
        %v2035 = vadd.f32 %v2001, %v2012
        %v2036 = vadd.f32 %v2002, %v2012
        %v2037 = vadd.f32 %v2003, %v2012
        %v2038 = vadd.f32 %v2004, %v2012
        %v2039 = vadd.f32 %v2005, %v2012
        %v2040 = vadd.f32 %v2006, %v2012
        %v2041 = vadd.f32 %v2007, %v2012
        %v2042 = vmax.f32 %v2014, 0.0
        %v2043 = vmax.f32 %v2015, 0.0
        %v2044 = vmax.f32 %v2016, 0.0
        %v2045 = vmax.f32 %v2017, 0.0
        %v2046 = vmax.f32 %v2018, 0.0
        %v2047 = vmax.f32 %v2019, 0.0
        %v2048 = vmax.f32 %v2020, 0.0
        %v2049 = vmax.f32 %v2021, 0.0
        %v2050 = vmax.f32 %v2022, 0.0
        %v2051 = vmax.f32 %v2023, 0.0
        %v2052 = vmax.f32 %v2024, 0.0
        %v2053 = vmax.f32 %v2025, 0.0
        %v2054 = vmax.f32 %v2026, 0.0
        %v2055 = vmax.f32 %v2027, 0.0
        %v2056 = vmax.f32 %v2028, 0.0
        %v2057 = vmax.f32 %v2029, 0.0
        %v2058 = vmax.f32 %v2030, 0.0
        %v2059 = vmax.f32 %v2031, 0.0
        %v2060 = vmax.f32 %v2032, 0.0
        %v2061 = vmax.f32 %v2033, 0.0
        %v2062 = vmax.f32 %v2034, 0.0
        %v2063 = vmax.f32 %v2035, 0.0
        %v2064 = vmax.f32 %v2036, 0.0
        %v2065 = vmax.f32 %v2037, 0.0
        %v2066 = vmax.f32 %v2038, 0.0
        %v2067 = vmax.f32 %v2039, 0.0
        %v2068 = vmax.f32 %v2040, 0.0
        %v2069 = vmax.f32 %v2041, 0.0
        %2070 = vst.msk [vmem:[#allocation2] sm:$0xff] %vm1077, %v2042
        %2071 = vst.msk [vmem:[#allocation2 + $0x8] sm:$0xff] %vm1077, %v2043
        %2072 = vst.msk [vmem:[#allocation2 + $0x10] sm:$0xff] %vm1077, %v2044
        %2073 = vst.msk [vmem:[#allocation2 + $0x18] sm:$0xff] %vm1077, %v2045
        %2074 = vst.msk [vmem:[#allocation2 + $0x20] sm:$0xff] %vm1077, %v2046
        %2075 = vst.msk [vmem:[#allocation2 + $0x28] sm:$0xff] %vm1077, %v2047
        %2076 = vst.msk [vmem:[#allocation2 + $0x30] sm:$0xff] %vm1077, %v2048
        %2077 = vst.msk [vmem:[#allocation2 + $0x38] sm:$0xff] %vm1077, %v2049
        %2078 = vst.msk [vmem:[#allocation2 + $0x40] sm:$0xff] %vm1077, %v2050
        %2079 = vst.msk [vmem:[#allocation2 + $0x48] sm:$0xff] %vm1077, %v2051
        %2080 = vst.msk [vmem:[#allocation2 + $0x50] sm:$0xff] %vm1077, %v2052
        %2081 = vst.msk [vmem:[#allocation2 + $0x58] sm:$0xff] %vm1077, %v2053
        %2082 = vst.msk [vmem:[#allocation2 + $0x60] sm:$0xff] %vm1077, %v2054
        %2083 = vst.msk [vmem:[#allocation2 + $0x68] sm:$0xff] %vm1077, %v2055
        %2084 = vst.msk [vmem:[#allocation2 + $0x70] sm:$0xff] %vm1077, %v2056
        %2085 = vst.msk [vmem:[#allocation2 + $0x78] sm:$0xff] %vm1077, %v2057
        %2086 = vst.msk [vmem:[#allocation2 + $0x80] sm:$0xff] %vm1077, %v2058
        %2087 = vst.msk [vmem:[#allocation2 + $0x88] sm:$0xff] %vm1077, %v2059
        %2088 = vst.msk [vmem:[#allocation2 + $0x90] sm:$0xff] %vm1077, %v2060
        %2089 = vst.msk [vmem:[#allocation2 + $0x98] sm:$0xff] %vm1077, %v2061
        %2090 = vst.msk [vmem:[#allocation2 + $0xa0] sm:$0xff] %vm1077, %v2062
        %2091 = vst.msk [vmem:[#allocation2 + $0xa8] sm:$0xff] %vm1077, %v2063
        %2092 = vst.msk [vmem:[#allocation2 + $0xb0] sm:$0xff] %vm1077, %v2064
        %2093 = vst.msk [vmem:[#allocation2 + $0xb8] sm:$0xff] %vm1077, %v2065
        %2094 = vst.msk [vmem:[#allocation2 + $0xc0] sm:$0xff] %vm1077, %v2066
        %2095 = vst.msk [vmem:[#allocation2 + $0xc8] sm:$0xff] %vm1077, %v2067
        %2096 = vst.msk [vmem:[#allocation2 + $0xd0] sm:$0xff] %vm1077, %v2068
        %2097 = vst.msk [vmem:[#allocation2 + $0xd8] sm:$0xf] %vm1105, %v2069
        %v2098 = vld [vmem:[#allocation2] ss:$2 sm:$0xff]
        %s2099 = scalar_lea.vmem [#allocation2], 16
        %v2100 = vld [vmem:[%s2099] ss:$2 sm:$0xff]
        %s2101 = scalar_lea.vmem [#allocation2], 32
        %v2102 = vld [vmem:[%s2101] ss:$2 sm:$0xff]
        %s2103 = scalar_lea.vmem [#allocation2], 48
        %v2104 = vld [vmem:[%s2103] ss:$2 sm:$0xff]
        %s2105 = scalar_lea.vmem [#allocation2], 64
        %v2106 = vld [vmem:[%s2105] ss:$2 sm:$0xff]
        %s2107 = scalar_lea.vmem [#allocation2], 80
        %v2108 = vld [vmem:[%s2107] ss:$2 sm:$0xff]
        %s2109 = scalar_lea.vmem [#allocation2], 96
        %v2110 = vld [vmem:[%s2109] ss:$2 sm:$0xff]
        %s2111 = scalar_lea.vmem [#allocation2], 112
        %v2112 = vld [vmem:[%s2111] ss:$2 sm:$0xff]
        %s2113 = scalar_lea.vmem [#allocation2], 128
        %v2114 = vld [vmem:[%s2113] ss:$2 sm:$0xff]
        %s2115 = scalar_lea.vmem [#allocation2], 144
        %v2116 = vld [vmem:[%s2115] ss:$2 sm:$0xff]
        %s2117 = scalar_lea.vmem [#allocation2], 160
        %v2118 = vld [vmem:[%s2117] ss:$2 sm:$0xff]
        %s2119 = scalar_lea.vmem [#allocation2], 176
        %v2120 = vld [vmem:[%s2119] ss:$2 sm:$0xff]
        %s2121 = scalar_lea.vmem [#allocation2], 192
        %v2122 = vld [vmem:[%s2121] ss:$2 sm:$0xff]
        %s2123 = scalar_lea.vmem [#allocation2], 208
        %v2124 = vld [vmem:[%s2123] ss:$2 sm:$0x3f]
        %s2125 = scalar_lea.vmem [#allocation2], 1
        %v2126 = vld [vmem:[%s2125] ss:$2 sm:$0xff]
        %s2127 = scalar_lea.vmem [#allocation2], 17
        %v2128 = vld [vmem:[%s2127] ss:$2 sm:$0xff]
        %s2129 = scalar_lea.vmem [#allocation2], 33
        %v2130 = vld [vmem:[%s2129] ss:$2 sm:$0xff]
        %s2131 = scalar_lea.vmem [#allocation2], 49
        %v2132 = vld [vmem:[%s2131] ss:$2 sm:$0xff]
        %s2133 = scalar_lea.vmem [#allocation2], 65
        %v2134 = vld [vmem:[%s2133] ss:$2 sm:$0xff]
        %s2135 = scalar_lea.vmem [#allocation2], 81
        %v2136 = vld [vmem:[%s2135] ss:$2 sm:$0xff]
        %s2137 = scalar_lea.vmem [#allocation2], 97
        %v2138 = vld [vmem:[%s2137] ss:$2 sm:$0xff]
        %s2139 = scalar_lea.vmem [#allocation2], 113
        %v2140 = vld [vmem:[%s2139] ss:$2 sm:$0xff]
        %s2141 = scalar_lea.vmem [#allocation2], 129
        %v2142 = vld [vmem:[%s2141] ss:$2 sm:$0xff]
        %s2143 = scalar_lea.vmem [#allocation2], 145
        %v2144 = vld [vmem:[%s2143] ss:$2 sm:$0xff]
        %s2145 = scalar_lea.vmem [#allocation2], 161
        %v2146 = vld [vmem:[%s2145] ss:$2 sm:$0xff]
        %s2147 = scalar_lea.vmem [#allocation2], 177
        %v2148 = vld [vmem:[%s2147] ss:$2 sm:$0xff]
        %s2149 = scalar_lea.vmem [#allocation2], 193
        %v2150 = vld [vmem:[%s2149] ss:$2 sm:$0xff]
        %s2151 = scalar_lea.vmem [#allocation2], 209
        %v2152 = vld [vmem:[%s2151] ss:$2 sm:$0x3f]
        %v2153 = vmax.f32 %v2098, %v2126
        %v2154 = vmax.f32 %v2100, %v2128
        %v2155 = vmax.f32 %v2102, %v2130
        %v2156 = vmax.f32 %v2104, %v2132
        %v2157 = vmax.f32 %v2106, %v2134
        %v2158 = vmax.f32 %v2108, %v2136
        %v2159 = vmax.f32 %v2110, %v2138
        %v2160 = vmax.f32 %v2112, %v2140
        %v2161 = vmax.f32 %v2114, %v2142
        %v2162 = vmax.f32 %v2116, %v2144
        %v2163 = vmax.f32 %v2118, %v2146
        %v2164 = vmax.f32 %v2120, %v2148
        %v2165 = vmax.f32 %v2122, %v2150
        %v2166 = vmax.f32 %v2124, %v2152
        %v2167 = vpack.c.bf16 %v2154, %v2153
        %v2168 = vpack.c.bf16 %v2156, %v2155
        %v2169 = vpack.c.bf16 %v2158, %v2157
        %v2170 = vpack.c.bf16 %v2160, %v2159
        %v2171 = vpack.c.bf16 %v2162, %v2161
        %v2172 = vpack.c.bf16 %v2164, %v2163
        %v2173 = vpack.c.bf16 %v2166, %v2165
        %v2181 = vunpack.c.l.b16 %v2167
        %v2182 = vunpack.c.h.b16 %v2167
        %v2183 = vunpack.c.l.b16 %v2168
        %v2184 = vunpack.c.h.b16 %v2168
        %v2185 = vunpack.c.l.b16 %v2169
        %v2186 = vunpack.c.h.b16 %v2169
        %v2187 = vunpack.c.l.b16 %v2170
        %v2188 = vunpack.c.h.b16 %v2170
        %v2189 = vunpack.c.l.b16 %v2171
        %v2190 = vunpack.c.h.b16 %v2171
        %v2191 = vunpack.c.l.b16 %v2172
        %v2192 = vunpack.c.h.b16 %v2172
        %v2193 = vunpack.c.l.b16 %v2173
        %v2194 = vunpack.c.h.b16 %v2173
        %v2195 = vpack.c.b16 %v2181, %v2181
        %v2196 = vpack.c.b16 %v2182, %v2182
        %v2197 = vpack.c.b16 %v2183, %v2183
        %v2198 = vpack.c.b16 %v2184, %v2184
        %v2199 = vpack.c.b16 %v2185, %v2185
        %v2200 = vpack.c.b16 %v2186, %v2186
        %v2201 = vpack.c.b16 %v2187, %v2187
        %v2202 = vpack.c.b16 %v2188, %v2188
        %v2203 = vpack.c.b16 %v2189, %v2189
        %v2204 = vpack.c.b16 %v2190, %v2190
        %v2205 = vpack.c.b16 %v2191, %v2191
        %v2206 = vpack.c.b16 %v2192, %v2192
        %v2207 = vpack.c.b16 %v2193, %v2193
        %v2208 = vpack.c.b16 %v2194, %v2194
        %s2223 = smul.u32 %s218, 14
        %s2224 = smul.addr %s2223, 4
        %s2225 = scalar_lea.vmem %s213, %s2224
        %2226 = vst.msk [vmem:[%s2225] sm:$0xf] %vm1105, %v2195
        %2227 = vst.msk [vmem:[%s2225 + $0x4] sm:$0xf] %vm1105, %v2196
        %2228 = vst.msk [vmem:[%s2225 + $0x8] sm:$0xf] %vm1105, %v2197
        %2229 = vst.msk [vmem:[%s2225 + $0xc] sm:$0xf] %vm1105, %v2198
        %2230 = vst.msk [vmem:[%s2225 + $0x10] sm:$0xf] %vm1105, %v2199
        %2231 = vst.msk [vmem:[%s2225 + $0x14] sm:$0xf] %vm1105, %v2200
        %2232 = vst.msk [vmem:[%s2225 + $0x18] sm:$0xf] %vm1105, %v2201
        %2233 = vst.msk [vmem:[%s2225 + $0x1c] sm:$0xf] %vm1105, %v2202
        %2234 = vst.msk [vmem:[%s2225 + $0x20] sm:$0xf] %vm1105, %v2203
        %2235 = vst.msk [vmem:[%s2225 + $0x24] sm:$0xf] %vm1105, %v2204
        %2236 = vst.msk [vmem:[%s2225 + $0x28] sm:$0xf] %vm1105, %v2205
        %2237 = vst.msk [vmem:[%s2225 + $0x2c] sm:$0xf] %vm1105, %v2206
        %2238 = vst.msk [vmem:[%s2225 + $0x30] sm:$0xf] %vm1105, %v2207
        %vm2239 = vcmask 256000
        %2240 = vst.msk [vmem:[%s2225 + $0x34] sm:$0x7] %vm2239, %v2208
      $region37: #{convnet_forward.6} parent=31 // loop_footer
        %s222 = sadd.s32 1, %s218
      $region38: #{convnet_forward.6} parent=31 // loop_footer_branch
        %217 = sbr.rel target = $region34
      $region39: #{convnet_forward.6} parent=31 // loop_exit
        _
      %s2241 = smul.u32 22, %s19
      %p2242 = scmp.lt.s32.totalorder %s18, 1
      %s2243 = scalar_select %p2242, %s18, 1
      %p2244 = scmp.lt.s32.totalorder %s2241, 109
      %s2245 = scalar_select %p2244, %s2241, 109
      %s2246 = smul.addr %s2245, 14
      %s2247 = smul.addr %s2243, 1540
      %s2248 = sadd.s32 %s2246, %s2247
      %s2249 = smul.addr %s2248, 4
      %s2250 = scalar_lea.vmem %s3, %s2249
      // Predicated region
      $region40: #{convnet_forward.6} parent=31 // pred_check
        %p2251 = pneg %p116
      $region41: #{convnet_forward.6} parent=31 // pred_check_branch
        %2253 = sbr.rel (%p2251) target = $region43
      $region42: #{convnet_forward.6} parent=31 // pred_region
        %s2254 = smul.u32 22, %s19
      $region43: #{convnet_forward.6} parent=31 // pred_fallthru
        _
    $region32: #{convnet_forward.6} parent=5 // pred_fallthru
      _
    %p2255 = scmp.le.s32.totalorder 2, %s9
    // Predicated region
    $region44: #{convnet_forward.6} parent=5 // pred_check
      %p2256 = pneg %p2255
    $region45: #{convnet_forward.6} parent=5 // pred_check_branch
      %2258 = sbr.rel (%p2256) target = $region47
    $region46: #{convnet_forward.6} parent=5 // pred_region
      %s2259 = ssub.s32 %s9, 2
      // Predicated region
      $region48: #{convnet_forward.6} parent=46 // pred_check
        %p2260 = pneg %p122
      $region49: #{convnet_forward.6} parent=46 // pred_check_branch
        %2262 = sbr.rel (%p2260) target = $region51
      $region50: #{convnet_forward.6} parent=46 // pred_region
        %s2263 = smul.u32 22, %s21
        %p2264 = scmp.lt.s32.totalorder %s20, 1
        %s2265 = scalar_select %p2264, %s20, 1
        %p2266 = scmp.lt.s32.totalorder %s2263, 109
        %s2267 = scalar_select %p2266, %s2263, 109
        %s2268 = smul.addr %s2267, 14
        %s2269 = smul.addr %s2265, 1540
        %s2270 = sadd.s32 %s2268, %s2269
        %s2271 = smul.addr %s2270, 4
        %s2272 = scalar_lea.vmem %s3, %s2271
      $region51: #{convnet_forward.6} parent=46 // pred_fallthru
        _
    $region47: #{convnet_forward.6} parent=5 // pred_fallthru
      _
  $region6: #{convnet_forward.6} parent=0 // loop_footer
    %s13 = sadd.s32 1, %s9
  $region7: #{convnet_forward.6} parent=0 // loop_footer_branch
    %8 = sbr.rel target = $region3
  $region8: #{convnet_forward.6} parent=0 // loop_exit
    _

// kernel: convnet_forward.7
$region0: #{convnet_forward.7}
  #allocation0 [shape = 'u32[]', space=smem, size = 0x4, offset = 0x4, fixed_abs, tag = 'smem constant byte address 0x4 - core index']
  #allocation1 [shape = 'u32[144,128]{1,0:T(1,128)}', space=vmem, size = 0x12000, scoped, tag = 'internal scratch']
  #allocation2 [shape = 'f32[108,64]{1,0:T(8,128)}', space=vmem, size = 0xe000, scoped, tag = 'scratch operand']
  %s0 = inlined_call_operand.vmem [shape: bf16[2,108,110,96], index: 0, kind: input, shape index: {}]
  %s1 = inlined_call_operand.vmem [shape: bf16[3,96,64], index: 1, kind: input, shape index: {}]
  %s2 = inlined_call_operand.vmem [shape: f32[1,64], index: 2, kind: input, shape index: {}]
  %s3 = inlined_call_operand.vmem [shape: bf16[2,54,54,64], index: 3, kind: output, shape index: {}]
  %s4 = sld [smem:[#allocation0]]
  $region52: #{convnet_forward.7} parent=0
    _
  %s6 = ssub.s32 1, %s4
  %s7 = scalar_select 0, %s6, %s4
  loop: start=0, step=1, limit=8
  $region2: #{convnet_forward.7} parent=0 // loop_pre_header
    _
  $region3: #{convnet_forward.7} parent=0 // loop_header
    %s9 = sphi 0, %s13
    %p10 = scmp.ge.s32.totalorder %s9, 8
    %s16 = sphi 0, %s28
    %s17 = sphi 0, %s24
    %s18 = sphi 0, %s16
    %s19 = sphi 0, %s17
    %s20 = sphi 0, %s18
    %s21 = sphi 0, %s19
    %s33 = sphi 0, %s35
    %s36 = sphi 0, %s33
    %s37 = sphi 0, %s36
    %s53 = sphi 0, %s37
    %s57 = sphi 0, %s57
    %s59 = sphi 0, %s57
    %s60 = sphi 0, %s59
    %s74 = sphi 0, %s60
    %s78 = sphi 0, %s78
    %s80 = sphi 0, %s78
    %s81 = sphi 0, %s80
    %s95 = sphi 0, %s81
    %s103 = sphi 0, %s105
    %s106 = sphi 0, %s103
    %s107 = sphi 0, %s106
    %s123 = sphi 0, %s107
  $region4: #{convnet_forward.7} parent=0 // loop_header_branch
    %12 = sbr.rel (%p10) target = $region8
  $region5: #{convnet_forward.7} parent=0 // loop_body
    %s14 = ssub.s32 %s9, 1
    %s15 = ssub.s32 %s9, 2
    %s22 = sadd.s32 1, %s17
    %p23 = scmp.ge.s32.totalorder %s22, 3
    %s24 = scalar_select %p23, 0, %s22
    %s25 = sadd.s32 1, %s16
    %s26 = scalar_select %p23, %s25, %s16
    %p27 = scmp.ge.s32.totalorder %s26, 2
    %s28 = scalar_select %p27, 0, %s26
    %s29 = ssub.s32 %s16, %s28
    %s30 = ssub.s32 %s17, %s24
    %s31 = sor.u32 %s29, %s30
    %p32 = scmp.eq.s32.totalorder %s31, 0
    %s34 = sadd.s32 %s33, 1
    %s35 = scalar_select %p32, %s33, %s34
    %p38 = pneg %p32
    %p39 = scmp.eq.s32.totalorder %s9, 5
    %p40 = por %p38, %p39
    %p41 = scmp.ne.s32.totalorder %s33, %s36
    %p42 = scmp.eq.s32.totalorder %s9, 0
    %p43 = por %p41, %p42
    %p44 = scmp.ne.s32.totalorder %s33, %s36
    %p45 = scmp.eq.s32.totalorder %s14, 5
    %p46 = por %p44, %p45
    %p47 = scmp.ne.s32.totalorder %s36, %s37
    %p48 = scmp.eq.s32.totalorder %s14, 0
    %p49 = por %p47, %p48
    %p50 = scmp.ne.s32.totalorder %s36, %s37
    %p51 = scmp.eq.s32.totalorder %s15, 5
    %p52 = por %p50, %p51
    %p54 = scmp.ne.s32.totalorder %s37, %s53
    %p55 = scmp.eq.s32.totalorder %s15, 0
    %p56 = por %p54, %p55
    %s58 = sadd.s32 %s57, 1
    %p61 = scmp.eq.s32.totalorder %s9, 5
    %p62 = scmp.ne.s32.totalorder %s57, %s59
    %p63 = scmp.eq.s32.totalorder %s9, 0
    %p64 = por %p62, %p63
    %p65 = scmp.ne.s32.totalorder %s57, %s59
    %p66 = scmp.eq.s32.totalorder %s14, 5
    %p67 = por %p65, %p66
    %p68 = scmp.ne.s32.totalorder %s59, %s60
    %p69 = scmp.eq.s32.totalorder %s14, 0
    %p70 = por %p68, %p69
    %p71 = scmp.ne.s32.totalorder %s59, %s60
    %p72 = scmp.eq.s32.totalorder %s15, 5
    %p73 = por %p71, %p72
    %p75 = scmp.ne.s32.totalorder %s60, %s74
    %p76 = scmp.eq.s32.totalorder %s15, 0
    %p77 = por %p75, %p76
    %s79 = sadd.s32 %s78, 1
    %p82 = scmp.eq.s32.totalorder %s9, 5
    %p83 = scmp.ne.s32.totalorder %s78, %s80
    %p84 = scmp.eq.s32.totalorder %s9, 0
    %p85 = por %p83, %p84
    %p86 = scmp.ne.s32.totalorder %s78, %s80
    %p87 = scmp.eq.s32.totalorder %s14, 5
    %p88 = por %p86, %p87
    %p89 = scmp.ne.s32.totalorder %s80, %s81
    %p90 = scmp.eq.s32.totalorder %s14, 0
    %p91 = por %p89, %p90
    %p92 = scmp.ne.s32.totalorder %s80, %s81
    %p93 = scmp.eq.s32.totalorder %s15, 5
    %p94 = por %p92, %p93
    %p96 = scmp.ne.s32.totalorder %s81, %s95
    %p97 = scmp.eq.s32.totalorder %s15, 0
    %p98 = por %p96, %p97
    %s99 = ssub.s32 %s16, %s28
    %s100 = ssub.s32 %s17, %s24
    %s101 = sor.u32 %s99, %s100
    %p102 = scmp.eq.s32.totalorder %s101, 0
    %s104 = sadd.s32 %s103, 1
    %s105 = scalar_select %p102, %s103, %s104
    %p108 = pneg %p102
    %p109 = scmp.eq.s32.totalorder %s9, 5
    %p110 = por %p108, %p109
    %p111 = scmp.ne.s32.totalorder %s103, %s106
    %p112 = scmp.eq.s32.totalorder %s9, 0
    %p113 = por %p111, %p112
    %p114 = scmp.ne.s32.totalorder %s103, %s106
    %p115 = scmp.eq.s32.totalorder %s14, 5
    %p116 = por %p114, %p115
    %p117 = scmp.ne.s32.totalorder %s106, %s107
    %p118 = scmp.eq.s32.totalorder %s14, 0
    %p119 = por %p117, %p118
    %p120 = scmp.ne.s32.totalorder %s106, %s107
    %p121 = scmp.eq.s32.totalorder %s15, 5
    %p122 = por %p120, %p121
    %p124 = scmp.ne.s32.totalorder %s107, %s123
    %p125 = scmp.eq.s32.totalorder %s15, 0
    %p126 = por %p124, %p125
    %p127 = scmp.le.s32.totalorder 1, %s9
    %p128 = scmp.lt.s32.totalorder %s9, 7
    %p129 = pnand %p127, %p128
    %p130 = pneg %p129
    // Predicated region
    $region9: #{convnet_forward.7} parent=5 // pred_check
      _
    $region10: #{convnet_forward.7} parent=5 // pred_check_branch
      %132 = sbr.rel (%p129) target = $region12
    $region11: #{convnet_forward.7} parent=5 // pred_region
      %s133 = ssub.s32 %s9, 1
      // Predicated region
      $region13: #{convnet_forward.7} parent=11 // pred_check
        %p134 = pneg %p70
      $region14: #{convnet_forward.7} parent=11 // pred_check_branch
        %136 = sbr.rel (%p134) target = $region16
      $region15: #{convnet_forward.7} parent=11 // pred_region
        _
      $region16: #{convnet_forward.7} parent=11 // pred_fallthru
        _
      // Predicated region
      $region17: #{convnet_forward.7} parent=11 // pred_check
        %p137 = pneg %p91
      $region18: #{convnet_forward.7} parent=11 // pred_check_branch
        %139 = sbr.rel (%p137) target = $region20
      $region19: #{convnet_forward.7} parent=11 // pred_region
        _
      $region20: #{convnet_forward.7} parent=11 // pred_fallthru
        _
    $region12: #{convnet_forward.7} parent=5 // pred_fallthru
      _
    %p140 = scmp.lt.s32.totalorder %s9, 6
    // Predicated region
    $region21: #{convnet_forward.7} parent=5 // pred_check
      %p141 = pneg %p140
    $region22: #{convnet_forward.7} parent=5 // pred_check_branch
      %143 = sbr.rel (%p141) target = $region24
    $region23: #{convnet_forward.7} parent=5 // pred_region
      // Predicated region
      $region25: #{convnet_forward.7} parent=23 // pred_check
        %p144 = pneg %p43
      $region26: #{convnet_forward.7} parent=23 // pred_check_branch
        %146 = sbr.rel (%p144) target = $region28
      $region27: #{convnet_forward.7} parent=23 // pred_region
        %s147 = smul.u32 36, %s17
        %p148 = scmp.lt.s32.totalorder %s16, 1
        %s149 = scalar_select %p148, %s16, 1
        %p150 = scmp.lt.s32.totalorder %s147, 107
        %s151 = scalar_select %p150, %s147, 107
        %s152 = smul.addr %s151, 14
        %s153 = smul.addr %s149, 1512
        %s154 = sadd.s32 %s152, %s153
        %s155 = smul.addr %s154, 4
        %s156 = scalar_lea.vmem %s0, %s155
        %s157 = smul.u32 36, %s17
      $region28: #{convnet_forward.7} parent=23 // pred_fallthru
        _
    $region24: #{convnet_forward.7} parent=5 // pred_fallthru
      _
    %p158 = scmp.le.s32.totalorder 1, %s9
    %p159 = scmp.lt.s32.totalorder %s9, 7
    %p160 = pnand %p158, %p159
    %p161 = pneg %p160
    // Predicated region
    $region29: #{convnet_forward.7} parent=5 // pred_check
      _
    $region30: #{convnet_forward.7} parent=5 // pred_check_branch
      %163 = sbr.rel (%p160) target = $region32
    $region31: #{convnet_forward.7} parent=5 // pred_region
      %s164 = ssub.s32 %s9, 1
      %s165 = smul.u32 36, %s19
      %p166 = scmp.lt.s32.totalorder %s18, 1
      %s167 = scalar_select %p166, %s18, 1
      %p168 = scmp.lt.s32.totalorder %s165, 107
      %s169 = scalar_select %p168, %s165, 107
      %s170 = smul.addr %s169, 14
      %s171 = smul.addr %s167, 1512
      %s172 = sadd.s32 %s170, %s171
      %s173 = smul.addr %s172, 4
      %s174 = scalar_lea.vmem %s0, %s173
      %p175 = pneg %p49
      %p176 = pneg %p46
      %p177 = pneg %p70
      %p178 = pneg %p67
      %p179 = pneg %p91
      %p180 = pneg %p88
      %p181 = pneg %p119
      %p182 = pneg %p116
      %s183 = smul.u32 18, %s19
      %p184 = scmp.lt.s32.totalorder %s18, 1
      %s185 = scalar_select %p184, %s18, 1
      %p186 = scmp.lt.s32.totalorder %s183, 53
      %s187 = scalar_select %p186, %s183, 53
      %s188 = smul.addr %s187, 7
      %s189 = smul.addr %s185, 378
      %s190 = sadd.s32 %s188, %s189
      %s191 = smul.addr %s190, 4
      %s192 = scalar_lea.vmem %s3, %s191
      %s193 = smul.u32 36, %s19
      %p194 = scmp.lt.s32.totalorder %s18, 1
      %s195 = scalar_select %p194, %s18, 1
      %p196 = scmp.lt.s32.totalorder %s193, 107
      %s197 = scalar_select %p196, %s193, 107
      %s198 = smul.addr %s197, 14
      %s199 = smul.addr %s195, 1512
      %s200 = sadd.s32 %s198, %s199
      %s201 = smul.addr %s200, 4
      %s202 = scalar_lea.vmem %s0, %s201
      %s203 = smul.u32 36, %s19
      %s204 = smul.u32 18, %s19
      %p205 = scmp.lt.s32.totalorder %s18, 1
      %s206 = scalar_select %p205, %s18, 1
      %p207 = scmp.lt.s32.totalorder %s204, 53
      %s208 = scalar_select %p207, %s204, 53
      %s209 = smul.addr %s208, 7
      %s210 = smul.addr %s206, 378
      %s211 = sadd.s32 %s209, %s210
      %s212 = smul.addr %s211, 4
      %s213 = scalar_lea.vmem %s3, %s212
      %s214 = smul.u32 18, %s19
      %v216 = vld [vmem:[%s2] sm:$0x1]
      loop: start=0, step=1, limit=18
      $region33: #{convnet_forward.7} parent=31 // loop_pre_header
        _
      $region34: #{convnet_forward.7} parent=31 // loop_header
        %s218 = sphi 0, %s222
        %p219 = scmp.ge.s32.totalorder %s218, 18
      $region35: #{convnet_forward.7} parent=31 // loop_header_branch
        %221 = sbr.rel (%p219) target = $region39
      $region36: #{convnet_forward.7} parent=31 // loop_body
        %s223 = smul.u32 %s218, 2
        %s224 = smul.u32 %s223, 14
        %s225 = smul.addr %s224, 4
        %s226 = scalar_lea.vmem %s202, %s225
        %v227 = vld [vmem:[%s226] sm:$0xf]
        %v228 = vld [vmem:[%s226 + $0x4] sm:$0xf]
        %v229 = vld [vmem:[%s226 + $0x8] sm:$0xf]
        %v230 = vld [vmem:[%s226 + $0xc] sm:$0xf]
        %v231 = vld [vmem:[%s226 + $0x10] sm:$0xf]
        %v232 = vld [vmem:[%s226 + $0x14] sm:$0xf]
        %v233 = vld [vmem:[%s226 + $0x18] sm:$0xf]
        %v234 = vld [vmem:[%s226 + $0x1c] sm:$0xf]
        %v235 = vld [vmem:[%s226 + $0x20] sm:$0xf]
        %v236 = vld [vmem:[%s226 + $0x24] sm:$0xf]
        %v237 = vld [vmem:[%s226 + $0x28] sm:$0xf]
        %v238 = vld [vmem:[%s226 + $0x2c] sm:$0xf]
        %v239 = vld [vmem:[%s226 + $0x30] sm:$0xf]
        %v240 = vld [vmem:[%s226 + $0x34] sm:$0x7]
        %v241 = vld [vmem:[%s1] sm:$0xf]
        %v242 = vld [vmem:[%s1 + $0x4] sm:$0xf]
        %v243 = vld [vmem:[%s1 + $0x8] sm:$0xf]
        %v244 = vld [vmem:[%s1 + $0xc] sm:$0xf]
        %v245 = vld [vmem:[%s1 + $0x10] sm:$0xf]
        %v246 = vld [vmem:[%s1 + $0x14] sm:$0xf]
        %v247 = vld [vmem:[%s1 + $0x18] sm:$0xf]
        %v248 = vld [vmem:[%s1 + $0x1c] sm:$0xf]
        %v249 = vld [vmem:[%s1 + $0x20] sm:$0xf]
        %v250 = vld [vmem:[%s1 + $0x24] sm:$0xf]
        %v251 = vld [vmem:[%s1 + $0x28] sm:$0xf]
        %v252 = vld [vmem:[%s1 + $0x2c] sm:$0xf]
        %s253 = scalar_lea.vmem %s1, 48
        %v254 = vld [vmem:[%s253] sm:$0xf]
        %v255 = vld [vmem:[%s253 + $0x4] sm:$0xf]
        %v256 = vld [vmem:[%s253 + $0x8] sm:$0xf]
        %v257 = vld [vmem:[%s253 + $0xc] sm:$0xf]
        %v258 = vld [vmem:[%s253 + $0x10] sm:$0xf]
        %v259 = vld [vmem:[%s253 + $0x14] sm:$0xf]
        %v260 = vld [vmem:[%s253 + $0x18] sm:$0xf]
        %v261 = vld [vmem:[%s253 + $0x1c] sm:$0xf]
        %v262 = vld [vmem:[%s253 + $0x20] sm:$0xf]
        %v263 = vld [vmem:[%s253 + $0x24] sm:$0xf]
        %v264 = vld [vmem:[%s253 + $0x28] sm:$0xf]
        %v265 = vld [vmem:[%s253 + $0x2c] sm:$0xf]
        %v280 = vunpack.c.l.b16 %v227
        %v281 = vunpack.c.l.b16 %v228
        %v282 = vunpack.c.l.b16 %v229
        %v283 = vunpack.c.l.b16 %v230
        %v284 = vunpack.c.l.b16 %v231
        %v285 = vunpack.c.l.b16 %v232
        %v286 = vunpack.c.l.b16 %v233
        %v287 = vunpack.c.l.b16 %v234
        %v288 = vunpack.c.l.b16 %v235
        %v289 = vunpack.c.l.b16 %v236
        %v290 = vunpack.c.l.b16 %v237
        %v291 = vunpack.c.l.b16 %v238
        %v292 = vunpack.c.l.b16 %v239
        %v293 = vunpack.c.l.b16 %v240
        %v294 = vpack.c.b16 %v281, %v280
        %v295 = vpack.c.b16 %v283, %v282
        %v296 = vpack.c.b16 %v285, %v284
        %v297 = vpack.c.b16 %v287, %v286
        %v298 = vpack.c.b16 %v289, %v288
        %v299 = vpack.c.b16 %v291, %v290
        %v300 = vpack.c.b16 %v293, %v292
        %vm301 = vsmask.f32 7424
        %v303 = vshrl.u32 %v294, 16
        %v305 = vshll.u32 %v294, 16
        %v307 = vrot.slane %v305, 1
        %v308 = vor.u32 %v303, %v307
        %v310 = vshll.u32 %v295, 16
        %v312 = vrot.slane %v310, 1
        %v313 = vsel %vm301, %v308, %v312
        %v314 = vshrl.u32 %v295, 16
        %v316 = vor.u32 %v314, %v312
        %v318 = vshll.u32 %v296, 16
        %v320 = vrot.slane %v318, 1
        %v321 = vsel %vm301, %v316, %v320
        %v322 = vshrl.u32 %v296, 16
        %v324 = vor.u32 %v322, %v320
        %v326 = vshll.u32 %v297, 16
        %v328 = vrot.slane %v326, 1
        %v329 = vsel %vm301, %v324, %v328
        %v330 = vshrl.u32 %v297, 16
        %v332 = vor.u32 %v330, %v328
        %v334 = vshll.u32 %v298, 16
        %v336 = vrot.slane %v334, 1
        %v337 = vsel %vm301, %v332, %v336
        %v338 = vshrl.u32 %v298, 16
        %v340 = vor.u32 %v338, %v336
        %v342 = vshll.u32 %v299, 16
        %v344 = vrot.slane %v342, 1
        %v345 = vsel %vm301, %v340, %v344
        %v346 = vshrl.u32 %v299, 16
        %v348 = vor.u32 %v346, %v344
        %v350 = vshll.u32 %v300, 16
        %v352 = vrot.slane %v350, 1
        %v353 = vsel %vm301, %v348, %v352
        %v354 = vshrl.u32 %v300, 16
        %v356 = vor.u32 %v354, %v352
        %v369 = vunpack.c.l.b16 %v254
        %v370 = vunpack.c.l.b16 %v255
        %v371 = vunpack.c.l.b16 %v256
        %v372 = vunpack.c.l.b16 %v257
        %v373 = vunpack.c.l.b16 %v258
        %v374 = vunpack.c.l.b16 %v259
        %v375 = vunpack.c.l.b16 %v260
        %v376 = vunpack.c.l.b16 %v261
        %v377 = vunpack.c.l.b16 %v262
        %v378 = vunpack.c.l.b16 %v263
        %v379 = vunpack.c.l.b16 %v264
        %v380 = vunpack.c.l.b16 %v265
        %v381 = vpack.c.b16 %v370, %v369
        %v382 = vpack.c.b16 %v372, %v371
        %v383 = vpack.c.b16 %v374, %v373
        %v384 = vpack.c.b16 %v376, %v375
        %v385 = vpack.c.b16 %v378, %v377
        %v386 = vpack.c.b16 %v380, %v379
        %vm393 = vcmask 785408
        %v395 = vsel %vm393, %v313, 0
        %v398 = vsel %vm393, %v321, 0
        %v401 = vsel %vm393, %v329, 0
        %v404 = vsel %vm393, %v337, 0
        %v407 = vsel %vm393, %v345, 0
        %v410 = vsel %vm393, %v353, 0
        %v413 = vsel %vm393, %v356, 0
        %415 = vmatprep.subr.bf16.mxu0 0
        %416 = vmatpush1.bf16.msra.mxu0 %v381
        %417 = vmatprep.subr.bf16.mxu0 0
        %418 = vmatpush1.bf16.msra.mxu0 %v382
        %419 = vmatprep.subr.bf16.mxu0 0
        %420 = vmatpush1.bf16.msra.mxu0 %v383
        %421 = vmatprep.subr.bf16.mxu0 0
        %422 = vmatpush1.bf16.msra.mxu0 %v384
        %423 = vmatprep.subr.bf16.mxu0 0
        %424 = vmatpush1.bf16.msra.mxu0 %v385
        %425 = vmatprep.subr.bf16.mxu0 0
        %426 = vmatpush1.bf16.msra.mxu0 %v386
        %427 = vmatprep.subr.bf16.mxu0 0
        %428 = vmatpush1.bf16.msra.mxu0 0
        %429 = vmatprep.subr.bf16.mxu0 0
        %430 = vmatpush1.bf16.msra.mxu0 0
        %431 = vmatprep.subr.bf16.mxu0 0
        %432 = vmatpush1.bf16.msra.mxu0 0
        %433 = vmatprep.subr.bf16.mxu0 0
        %434 = vmatpush1.bf16.msra.mxu0 0
        %435 = vmatprep.subr.bf16.mxu0 0
        %436 = vmatpush1.bf16.msra.mxu0 0
        %437 = vmatprep.subr.bf16.mxu0 0
        %438 = vmatpush1.bf16.msra.mxu0 0
        %439 = vmatprep.subr.bf16.mxu0 0
        %440 = vmatpush1.bf16.msra.mxu0 0
        %441 = vmatprep.subr.bf16.mxu0 0
        %442 = vmatpush1.bf16.msra.mxu0 0
        %443 = vmatprep.subr.bf16.mxu0 0
        %444 = vmatpush1.bf16.msra.mxu0 0
        %445 = vmatprep.subr.bf16.mxu0 0
        %446 = vmatpush1.bf16.msra.mxu0 0
        %447 = vmatprep.mubr.bf16.mxu0 0
        %448 = vmatmul.mubr.bf16.gmra.mrb[0].mxu0 %v395
        %v449 = vpop.f32.mrb[0].mxu0
        %v450 = vadd.f32 0.0, %v449
        %v451 = vpop.f32.mrb[0].mxu0
        %v452 = vpop.f32.mrb[0].mxu0
        %v453 = vadd.f32 0.0, %v452
        %v454 = vpop.f32.mrb[0].mxu0
        %455 = vmatprep.mubr.bf16.mxu0 0
        %456 = vmatmul.mubr.bf16.gmra.mrb[0].mxu0 %v398
        %v457 = vpop.f32.mrb[0].mxu0
        %v458 = vadd.f32 0.0, %v457
        %v459 = vpop.f32.mrb[0].mxu0
        %v460 = vpop.f32.mrb[0].mxu0
        %v461 = vadd.f32 0.0, %v460
        %v462 = vpop.f32.mrb[0].mxu0
        %463 = vmatprep.mubr.bf16.mxu0 0
        %464 = vmatmul.mubr.bf16.gmra.mrb[0].mxu0 %v401
        %v465 = vpop.f32.mrb[0].mxu0
        %v466 = vadd.f32 0.0, %v465
        %v467 = vpop.f32.mrb[0].mxu0
        %v468 = vpop.f32.mrb[0].mxu0
        %v469 = vadd.f32 0.0, %v468
        %v470 = vpop.f32.mrb[0].mxu0
        %471 = vmatprep.mubr.bf16.mxu0 0
        %472 = vmatmul.mubr.bf16.gmra.mrb[0].mxu0 %v404
        %v473 = vpop.f32.mrb[0].mxu0
        %v474 = vadd.f32 0.0, %v473
        %v475 = vpop.f32.mrb[0].mxu0
        %v476 = vpop.f32.mrb[0].mxu0
        %v477 = vadd.f32 0.0, %v476
        %v478 = vpop.f32.mrb[0].mxu0
        %479 = vmatprep.mubr.bf16.mxu0 0
        %480 = vmatmul.mubr.bf16.gmra.mrb[0].mxu0 %v407
        %v481 = vpop.f32.mrb[0].mxu0
        %v482 = vadd.f32 0.0, %v481
        %v483 = vpop.f32.mrb[0].mxu0
        %v484 = vpop.f32.mrb[0].mxu0
        %v485 = vadd.f32 0.0, %v484
        %v486 = vpop.f32.mrb[0].mxu0
        %487 = vmatprep.mubr.bf16.mxu0 0
        %488 = vmatmul.mubr.bf16.gmra.mrb[0].mxu0 %v410
        %v489 = vpop.f32.mrb[0].mxu0
        %v490 = vadd.f32 0.0, %v489
        %v491 = vpop.f32.mrb[0].mxu0
        %v492 = vpop.f32.mrb[0].mxu0
        %v493 = vadd.f32 0.0, %v492
        %v494 = vpop.f32.mrb[0].mxu0
        %495 = vmatprep.mubr.bf16.mxu0 0
        %496 = vmatmul.mubr.bf16.gmra.mrb[0].mxu0 %v413
        %v497 = vpop.f32.mrb[0].mxu0
        %v498 = vadd.f32 0.0, %v497
        %v499 = vpop.f32.mrb[0].mxu0
        %v500 = vpop.f32.mrb[0].mxu0
        %v501 = vadd.f32 0.0, %v500
        %v502 = vpop.f32.mrb[0].mxu0
        %503 = vdwg.mxu0
        %v516 = vunpack.c.l.b16 %v241
        %v517 = vunpack.c.l.b16 %v242
        %v518 = vunpack.c.l.b16 %v243
        %v519 = vunpack.c.l.b16 %v244
        %v520 = vunpack.c.l.b16 %v245
        %v521 = vunpack.c.l.b16 %v246
        %v522 = vunpack.c.l.b16 %v247
        %v523 = vunpack.c.l.b16 %v248
        %v524 = vunpack.c.l.b16 %v249
        %v525 = vunpack.c.l.b16 %v250
        %v526 = vunpack.c.l.b16 %v251
        %v527 = vunpack.c.l.b16 %v252
        %v528 = vpack.c.b16 %v517, %v516
        %v529 = vpack.c.b16 %v519, %v518
        %v530 = vpack.c.b16 %v521, %v520
        %v531 = vpack.c.b16 %v523, %v522
        %v532 = vpack.c.b16 %v525, %v524
        %v533 = vpack.c.b16 %v527, %v526
        %v540 = vsel %vm393, %v294, 0
        %v542 = vsel %vm393, %v295, 0
        %v544 = vsel %vm393, %v296, 0
        %v546 = vsel %vm393, %v297, 0
        %v548 = vsel %vm393, %v298, 0
        %v550 = vsel %vm393, %v299, 0
        %v552 = vsel %vm393, %v300, 0
        %554 = vmatprep.subr.bf16.mxu0 0
        %555 = vmatpush1.bf16.msra.mxu0 %v528
        %556 = vmatprep.subr.bf16.mxu0 0
        %557 = vmatpush1.bf16.msra.mxu0 %v529
        %558 = vmatprep.subr.bf16.mxu0 0
        %559 = vmatpush1.bf16.msra.mxu0 %v530
        %560 = vmatprep.subr.bf16.mxu0 0
        %561 = vmatpush1.bf16.msra.mxu0 %v531
        %562 = vmatprep.subr.bf16.mxu0 0
        %563 = vmatpush1.bf16.msra.mxu0 %v532
        %564 = vmatprep.subr.bf16.mxu0 0
        %565 = vmatpush1.bf16.msra.mxu0 %v533
        %566 = vmatprep.subr.bf16.mxu0 0
        %567 = vmatpush1.bf16.msra.mxu0 0
        %568 = vmatprep.subr.bf16.mxu0 0
        %569 = vmatpush1.bf16.msra.mxu0 0
        %570 = vmatprep.subr.bf16.mxu0 0
        %571 = vmatpush1.bf16.msra.mxu0 0
        %572 = vmatprep.subr.bf16.mxu0 0
        %573 = vmatpush1.bf16.msra.mxu0 0
        %574 = vmatprep.subr.bf16.mxu0 0
        %575 = vmatpush1.bf16.msra.mxu0 0
        %576 = vmatprep.subr.bf16.mxu0 0
        %577 = vmatpush1.bf16.msra.mxu0 0
        %578 = vmatprep.subr.bf16.mxu0 0
        %579 = vmatpush1.bf16.msra.mxu0 0
        %580 = vmatprep.subr.bf16.mxu0 0
        %581 = vmatpush1.bf16.msra.mxu0 0
        %582 = vmatprep.subr.bf16.mxu0 0
        %583 = vmatpush1.bf16.msra.mxu0 0
        %584 = vmatprep.subr.bf16.mxu0 0
        %585 = vmatpush1.bf16.msra.mxu0 0
        %586 = vmatprep.mubr.bf16.mxu0 0
        %587 = vmatmul.mubr.bf16.gmra.mrb[0].mxu0 %v540
        %v588 = vpop.f32.mrb[0].mxu0
        %v589 = vadd.f32 %v450, %v588
        %v590 = vpop.f32.mrb[0].mxu0
        %v591 = vpop.f32.mrb[0].mxu0
        %v592 = vadd.f32 %v453, %v591
        %v593 = vpop.f32.mrb[0].mxu0
        %594 = vmatprep.mubr.bf16.mxu0 0
        %595 = vmatmul.mubr.bf16.gmra.mrb[0].mxu0 %v542
        %v596 = vpop.f32.mrb[0].mxu0
        %v597 = vadd.f32 %v458, %v596
        %v598 = vpop.f32.mrb[0].mxu0
        %v599 = vpop.f32.mrb[0].mxu0
        %v600 = vadd.f32 %v461, %v599
        %v601 = vpop.f32.mrb[0].mxu0
        %602 = vmatprep.mubr.bf16.mxu0 0
        %603 = vmatmul.mubr.bf16.gmra.mrb[0].mxu0 %v544
        %v604 = vpop.f32.mrb[0].mxu0
        %v605 = vadd.f32 %v466, %v604
        %v606 = vpop.f32.mrb[0].mxu0
        %v607 = vpop.f32.mrb[0].mxu0
        %v608 = vadd.f32 %v469, %v607
        %v609 = vpop.f32.mrb[0].mxu0
        %610 = vmatprep.mubr.bf16.mxu0 0
        %611 = vmatmul.mubr.bf16.gmra.mrb[0].mxu0 %v546
        %v612 = vpop.f32.mrb[0].mxu0
        %v613 = vadd.f32 %v474, %v612
        %v614 = vpop.f32.mrb[0].mxu0
        %v615 = vpop.f32.mrb[0].mxu0
        %v616 = vadd.f32 %v477, %v615
        %v617 = vpop.f32.mrb[0].mxu0
        %618 = vmatprep.mubr.bf16.mxu0 0
        %619 = vmatmul.mubr.bf16.gmra.mrb[0].mxu0 %v548
        %v620 = vpop.f32.mrb[0].mxu0
        %v621 = vadd.f32 %v482, %v620
        %v622 = vpop.f32.mrb[0].mxu0
        %v623 = vpop.f32.mrb[0].mxu0
        %v624 = vadd.f32 %v485, %v623
        %v625 = vpop.f32.mrb[0].mxu0
        %626 = vmatprep.mubr.bf16.mxu0 0
        %627 = vmatmul.mubr.bf16.gmra.mrb[0].mxu0 %v550
        %v628 = vpop.f32.mrb[0].mxu0
        %v629 = vadd.f32 %v490, %v628
        %v630 = vpop.f32.mrb[0].mxu0
        %v631 = vpop.f32.mrb[0].mxu0
        %v632 = vadd.f32 %v493, %v631
        %v633 = vpop.f32.mrb[0].mxu0
        %634 = vmatprep.mubr.bf16.mxu0 0
        %635 = vmatmul.mubr.bf16.gmra.mrb[0].mxu0 %v552
        %v636 = vpop.f32.mrb[0].mxu0
        %v637 = vadd.f32 %v498, %v636
        %v638 = vpop.f32.mrb[0].mxu0
        %v639 = vpop.f32.mrb[0].mxu0
        %v640 = vadd.f32 %v501, %v639
        %v641 = vpop.f32.mrb[0].mxu0
        %642 = vdwg.mxu0
        %s643 = scalar_lea.vmem %s1, 96
        %v644 = vld [vmem:[%s643] sm:$0xf]
        %v645 = vld [vmem:[%s643 + $0x4] sm:$0xf]
        %v646 = vld [vmem:[%s643 + $0x8] sm:$0xf]
        %v647 = vld [vmem:[%s643 + $0xc] sm:$0xf]
        %v648 = vld [vmem:[%s643 + $0x10] sm:$0xf]
        %v649 = vld [vmem:[%s643 + $0x14] sm:$0xf]
        %v650 = vld [vmem:[%s643 + $0x18] sm:$0xf]
        %v651 = vld [vmem:[%s643 + $0x1c] sm:$0xf]
        %v652 = vld [vmem:[%s643 + $0x20] sm:$0xf]
        %v653 = vld [vmem:[%s643 + $0x24] sm:$0xf]
        %v654 = vld [vmem:[%s643 + $0x28] sm:$0xf]
        %v655 = vld [vmem:[%s643 + $0x2c] sm:$0xf]
        %vm656 = vcmask 1046528
        %v657 = vrot.slane %v294, 1
        %v658 = vrot.slane %v295, 1
        %v659 = vsel %vm656, %v657, %v658
        %v660 = vrot.slane %v296, 1
        %v661 = vsel %vm656, %v658, %v660
        %v662 = vrot.slane %v297, 1
        %v663 = vsel %vm656, %v660, %v662
        %v664 = vrot.slane %v298, 1
        %v665 = vsel %vm656, %v662, %v664
        %v666 = vrot.slane %v299, 1
        %v667 = vsel %vm656, %v664, %v666
        %v668 = vrot.slane %v300, 1
        %v669 = vsel %vm656, %v666, %v668
        %v682 = vunpack.c.l.b16 %v644
        %v683 = vunpack.c.l.b16 %v645
        %v684 = vunpack.c.l.b16 %v646
        %v685 = vunpack.c.l.b16 %v647
        %v686 = vunpack.c.l.b16 %v648
        %v687 = vunpack.c.l.b16 %v649
        %v688 = vunpack.c.l.b16 %v650
        %v689 = vunpack.c.l.b16 %v651
        %v690 = vunpack.c.l.b16 %v652
        %v691 = vunpack.c.l.b16 %v653
        %v692 = vunpack.c.l.b16 %v654
        %v693 = vunpack.c.l.b16 %v655
        %v694 = vpack.c.b16 %v683, %v682
        %v695 = vpack.c.b16 %v685, %v684
        %v696 = vpack.c.b16 %v687, %v686
        %v697 = vpack.c.b16 %v689, %v688
        %v698 = vpack.c.b16 %v691, %v690
        %v699 = vpack.c.b16 %v693, %v692
        %v707 = vsel %vm393, %v659, 0
        %v710 = vsel %vm393, %v661, 0
        %v713 = vsel %vm393, %v663, 0
        %v716 = vsel %vm393, %v665, 0
        %v719 = vsel %vm393, %v667, 0
        %v722 = vsel %vm393, %v669, 0
        %v725 = vsel %vm393, %v668, 0
        %727 = vmatprep.subr.bf16.mxu0 0
        %728 = vmatpush1.bf16.msra.mxu0 %v694
        %729 = vmatprep.subr.bf16.mxu0 0
        %730 = vmatpush1.bf16.msra.mxu0 %v695
        %731 = vmatprep.subr.bf16.mxu0 0
        %732 = vmatpush1.bf16.msra.mxu0 %v696
        %733 = vmatprep.subr.bf16.mxu0 0
        %734 = vmatpush1.bf16.msra.mxu0 %v697
        %735 = vmatprep.subr.bf16.mxu0 0
        %736 = vmatpush1.bf16.msra.mxu0 %v698
        %737 = vmatprep.subr.bf16.mxu0 0
        %738 = vmatpush1.bf16.msra.mxu0 %v699
        %739 = vmatprep.subr.bf16.mxu0 0
        %740 = vmatpush1.bf16.msra.mxu0 0
        %741 = vmatprep.subr.bf16.mxu0 0
        %742 = vmatpush1.bf16.msra.mxu0 0
        %743 = vmatprep.subr.bf16.mxu0 0
        %744 = vmatpush1.bf16.msra.mxu0 0
        %745 = vmatprep.subr.bf16.mxu0 0
        %746 = vmatpush1.bf16.msra.mxu0 0
        %747 = vmatprep.subr.bf16.mxu0 0
        %748 = vmatpush1.bf16.msra.mxu0 0
        %749 = vmatprep.subr.bf16.mxu0 0
        %750 = vmatpush1.bf16.msra.mxu0 0
        %751 = vmatprep.subr.bf16.mxu0 0
        %752 = vmatpush1.bf16.msra.mxu0 0
        %753 = vmatprep.subr.bf16.mxu0 0
        %754 = vmatpush1.bf16.msra.mxu0 0
        %755 = vmatprep.subr.bf16.mxu0 0
        %756 = vmatpush1.bf16.msra.mxu0 0
        %757 = vmatprep.subr.bf16.mxu0 0
        %758 = vmatpush1.bf16.msra.mxu0 0
        %759 = vmatprep.mubr.bf16.mxu0 0
        %760 = vmatmul.mubr.bf16.gmra.mrb[0].mxu0 %v707
        %v761 = vpop.f32.mrb[0].mxu0
        %v762 = vadd.f32 0.0, %v761
        %v763 = vpop.f32.mrb[0].mxu0
        %v764 = vpop.f32.mrb[0].mxu0
        %v765 = vadd.f32 0.0, %v764
        %v766 = vpop.f32.mrb[0].mxu0
        %767 = vmatprep.mubr.bf16.mxu0 0
        %768 = vmatmul.mubr.bf16.gmra.mrb[0].mxu0 %v710
        %v769 = vpop.f32.mrb[0].mxu0
        %v770 = vadd.f32 0.0, %v769
        %v771 = vpop.f32.mrb[0].mxu0
        %v772 = vpop.f32.mrb[0].mxu0
        %v773 = vadd.f32 0.0, %v772
        %v774 = vpop.f32.mrb[0].mxu0
        %775 = vmatprep.mubr.bf16.mxu0 0
        %776 = vmatmul.mubr.bf16.gmra.mrb[0].mxu0 %v713
        %v777 = vpop.f32.mrb[0].mxu0
        %v778 = vadd.f32 0.0, %v777
        %v779 = vpop.f32.mrb[0].mxu0
        %v780 = vpop.f32.mrb[0].mxu0
        %v781 = vadd.f32 0.0, %v780
        %v782 = vpop.f32.mrb[0].mxu0
        %783 = vmatprep.mubr.bf16.mxu0 0
        %784 = vmatmul.mubr.bf16.gmra.mrb[0].mxu0 %v716
        %v785 = vpop.f32.mrb[0].mxu0
        %v786 = vadd.f32 0.0, %v785
        %v787 = vpop.f32.mrb[0].mxu0
        %v788 = vpop.f32.mrb[0].mxu0
        %v789 = vadd.f32 0.0, %v788
        %v790 = vpop.f32.mrb[0].mxu0
        %791 = vmatprep.mubr.bf16.mxu0 0
        %792 = vmatmul.mubr.bf16.gmra.mrb[0].mxu0 %v719
        %v793 = vpop.f32.mrb[0].mxu0
        %v794 = vadd.f32 0.0, %v793
        %v795 = vpop.f32.mrb[0].mxu0
        %v796 = vpop.f32.mrb[0].mxu0
        %v797 = vadd.f32 0.0, %v796
        %v798 = vpop.f32.mrb[0].mxu0
        %799 = vmatprep.mubr.bf16.mxu0 0
        %800 = vmatmul.mubr.bf16.gmra.mrb[0].mxu0 %v722
        %v801 = vpop.f32.mrb[0].mxu0
        %v802 = vadd.f32 0.0, %v801
        %v803 = vpop.f32.mrb[0].mxu0
        %v804 = vpop.f32.mrb[0].mxu0
        %v805 = vadd.f32 0.0, %v804
        %v806 = vpop.f32.mrb[0].mxu0
        %807 = vmatprep.mubr.bf16.mxu0 0
        %808 = vmatmul.mubr.bf16.gmra.mrb[0].mxu0 %v725
        %v809 = vpop.f32.mrb[0].mxu0
        %v810 = vadd.f32 0.0, %v809
        %v811 = vpop.f32.mrb[0].mxu0
        %v812 = vpop.f32.mrb[0].mxu0
        %v813 = vadd.f32 0.0, %v812
        %v814 = vpop.f32.mrb[0].mxu0
        %815 = vdwg.mxu0
        %v816 = vadd.f32 %v589, %v762
        %v817 = vadd.f32 %v592, %v765
        %v818 = vadd.f32 %v597, %v770
        %v819 = vadd.f32 %v600, %v773
        %v820 = vadd.f32 %v605, %v778
        %v821 = vadd.f32 %v608, %v781
        %v822 = vadd.f32 %v613, %v786
        %v823 = vadd.f32 %v616, %v789
        %v824 = vadd.f32 %v621, %v794
        %v825 = vadd.f32 %v624, %v797
        %v826 = vadd.f32 %v629, %v802
        %v827 = vadd.f32 %v632, %v805
        %v828 = vadd.f32 %v637, %v810
        %v829 = vadd.f32 %v640, %v813
        %vm830 = vcmask 523264
        %831 = vst.msk [vmem:[#allocation2] sm:$0xff] %vm830, %v816
        %832 = vst.msk [vmem:[#allocation2 + $0x8] sm:$0xff] %vm830, %v817
        %833 = vst.msk [vmem:[#allocation2 + $0x10] sm:$0xff] %vm830, %v818
        %834 = vst.msk [vmem:[#allocation2 + $0x18] sm:$0xff] %vm830, %v819
        %835 = vst.msk [vmem:[#allocation2 + $0x20] sm:$0xff] %vm830, %v820
        %836 = vst.msk [vmem:[#allocation2 + $0x28] sm:$0xff] %vm830, %v821
        %837 = vst.msk [vmem:[#allocation2 + $0x30] sm:$0xff] %vm830, %v822
        %838 = vst.msk [vmem:[#allocation2 + $0x38] sm:$0xff] %vm830, %v823
        %839 = vst.msk [vmem:[#allocation2 + $0x40] sm:$0xff] %vm830, %v824
        %840 = vst.msk [vmem:[#allocation2 + $0x48] sm:$0xff] %vm830, %v825
        %841 = vst.msk [vmem:[#allocation2 + $0x50] sm:$0xff] %vm830, %v826
        %842 = vst.msk [vmem:[#allocation2 + $0x58] sm:$0xff] %vm830, %v827
        %843 = vst.msk [vmem:[#allocation2 + $0x60] sm:$0xff] %vm830, %v828
        %vm844 = vcmask 519168
        %845 = vst.msk [vmem:[#allocation2 + $0x68] sm:$0xf] %vm844, %v829
        %s846 = sadd.s32 %s223, 1
        %s847 = smul.u32 %s846, 14
        %s848 = smul.addr %s847, 4
        %s849 = scalar_lea.vmem %s202, %s848
        %v850 = vld [vmem:[%s849] sm:$0xf]
        %v851 = vld [vmem:[%s849 + $0x4] sm:$0xf]
        %v852 = vld [vmem:[%s849 + $0x8] sm:$0xf]
        %v853 = vld [vmem:[%s849 + $0xc] sm:$0xf]
        %v854 = vld [vmem:[%s849 + $0x10] sm:$0xf]
        %v855 = vld [vmem:[%s849 + $0x14] sm:$0xf]
        %v856 = vld [vmem:[%s849 + $0x18] sm:$0xf]
        %v857 = vld [vmem:[%s849 + $0x1c] sm:$0xf]
        %v858 = vld [vmem:[%s849 + $0x20] sm:$0xf]
        %v859 = vld [vmem:[%s849 + $0x24] sm:$0xf]
        %v860 = vld [vmem:[%s849 + $0x28] sm:$0xf]
        %v861 = vld [vmem:[%s849 + $0x2c] sm:$0xf]
        %v862 = vld [vmem:[%s849 + $0x30] sm:$0xf]
        %v863 = vld [vmem:[%s849 + $0x34] sm:$0x7]
        %v864 = vld [vmem:[%s1] sm:$0xf]
        %v865 = vld [vmem:[%s1 + $0x4] sm:$0xf]
        %v866 = vld [vmem:[%s1 + $0x8] sm:$0xf]
        %v867 = vld [vmem:[%s1 + $0xc] sm:$0xf]
        %v868 = vld [vmem:[%s1 + $0x10] sm:$0xf]
        %v869 = vld [vmem:[%s1 + $0x14] sm:$0xf]
        %v870 = vld [vmem:[%s1 + $0x18] sm:$0xf]
        %v871 = vld [vmem:[%s1 + $0x1c] sm:$0xf]
        %v872 = vld [vmem:[%s1 + $0x20] sm:$0xf]
        %v873 = vld [vmem:[%s1 + $0x24] sm:$0xf]
        %v874 = vld [vmem:[%s1 + $0x28] sm:$0xf]
        %v875 = vld [vmem:[%s1 + $0x2c] sm:$0xf]
        %v876 = vld [vmem:[%s253] sm:$0xf]
        %v877 = vld [vmem:[%s253 + $0x4] sm:$0xf]
        %v878 = vld [vmem:[%s253 + $0x8] sm:$0xf]
        %v879 = vld [vmem:[%s253 + $0xc] sm:$0xf]
        %v880 = vld [vmem:[%s253 + $0x10] sm:$0xf]
        %v881 = vld [vmem:[%s253 + $0x14] sm:$0xf]
        %v882 = vld [vmem:[%s253 + $0x18] sm:$0xf]
        %v883 = vld [vmem:[%s253 + $0x1c] sm:$0xf]
        %v884 = vld [vmem:[%s253 + $0x20] sm:$0xf]
        %v885 = vld [vmem:[%s253 + $0x24] sm:$0xf]
        %v886 = vld [vmem:[%s253 + $0x28] sm:$0xf]
        %v887 = vld [vmem:[%s253 + $0x2c] sm:$0xf]
        %v902 = vunpack.c.l.b16 %v850
        %v903 = vunpack.c.l.b16 %v851
        %v904 = vunpack.c.l.b16 %v852
        %v905 = vunpack.c.l.b16 %v853
        %v906 = vunpack.c.l.b16 %v854
        %v907 = vunpack.c.l.b16 %v855
        %v908 = vunpack.c.l.b16 %v856
        %v909 = vunpack.c.l.b16 %v857
        %v910 = vunpack.c.l.b16 %v858
        %v911 = vunpack.c.l.b16 %v859
        %v912 = vunpack.c.l.b16 %v860
        %v913 = vunpack.c.l.b16 %v861
        %v914 = vunpack.c.l.b16 %v862
        %v915 = vunpack.c.l.b16 %v863
        %v916 = vpack.c.b16 %v903, %v902
        %v917 = vpack.c.b16 %v905, %v904
        %v918 = vpack.c.b16 %v907, %v906
        %v919 = vpack.c.b16 %v909, %v908
        %v920 = vpack.c.b16 %v911, %v910
        %v921 = vpack.c.b16 %v913, %v912
        %v922 = vpack.c.b16 %v915, %v914
        %v924 = vshrl.u32 %v916, 16
        %v926 = vshll.u32 %v916, 16
        %v928 = vrot.slane %v926, 1
        %v929 = vor.u32 %v924, %v928
        %v931 = vshll.u32 %v917, 16
        %v933 = vrot.slane %v931, 1
        %v934 = vsel %vm301, %v929, %v933
        %v935 = vshrl.u32 %v917, 16
        %v937 = vor.u32 %v935, %v933
        %v939 = vshll.u32 %v918, 16
        %v941 = vrot.slane %v939, 1
        %v942 = vsel %vm301, %v937, %v941
        %v943 = vshrl.u32 %v918, 16
        %v945 = vor.u32 %v943, %v941
        %v947 = vshll.u32 %v919, 16
        %v949 = vrot.slane %v947, 1
        %v950 = vsel %vm301, %v945, %v949
        %v951 = vshrl.u32 %v919, 16
        %v953 = vor.u32 %v951, %v949
        %v955 = vshll.u32 %v920, 16
        %v957 = vrot.slane %v955, 1
        %v958 = vsel %vm301, %v953, %v957
        %v959 = vshrl.u32 %v920, 16
        %v961 = vor.u32 %v959, %v957
        %v963 = vshll.u32 %v921, 16
        %v965 = vrot.slane %v963, 1
        %v966 = vsel %vm301, %v961, %v965
        %v967 = vshrl.u32 %v921, 16
        %v969 = vor.u32 %v967, %v965
        %v971 = vshll.u32 %v922, 16
        %v973 = vrot.slane %v971, 1
        %v974 = vsel %vm301, %v969, %v973
        %v975 = vshrl.u32 %v922, 16
        %v977 = vor.u32 %v975, %v973
        %v990 = vunpack.c.l.b16 %v876
        %v991 = vunpack.c.l.b16 %v877
        %v992 = vunpack.c.l.b16 %v878
        %v993 = vunpack.c.l.b16 %v879
        %v994 = vunpack.c.l.b16 %v880
        %v995 = vunpack.c.l.b16 %v881
        %v996 = vunpack.c.l.b16 %v882
        %v997 = vunpack.c.l.b16 %v883
        %v998 = vunpack.c.l.b16 %v884
        %v999 = vunpack.c.l.b16 %v885
        %v1000 = vunpack.c.l.b16 %v886
        %v1001 = vunpack.c.l.b16 %v887
        %v1002 = vpack.c.b16 %v991, %v990
        %v1003 = vpack.c.b16 %v993, %v992
        %v1004 = vpack.c.b16 %v995, %v994
        %v1005 = vpack.c.b16 %v997, %v996
        %v1006 = vpack.c.b16 %v999, %v998
        %v1007 = vpack.c.b16 %v1001, %v1000
        %v1015 = vsel %vm393, %v934, 0
        %v1018 = vsel %vm393, %v942, 0
        %v1021 = vsel %vm393, %v950, 0
        %v1024 = vsel %vm393, %v958, 0
        %v1027 = vsel %vm393, %v966, 0
        %v1030 = vsel %vm393, %v974, 0
        %v1033 = vsel %vm393, %v977, 0
        %1035 = vmatprep.subr.bf16.mxu0 0
        %1036 = vmatpush1.bf16.msra.mxu0 %v1002
        %1037 = vmatprep.subr.bf16.mxu0 0
        %1038 = vmatpush1.bf16.msra.mxu0 %v1003
        %1039 = vmatprep.subr.bf16.mxu0 0
        %1040 = vmatpush1.bf16.msra.mxu0 %v1004
        %1041 = vmatprep.subr.bf16.mxu0 0
        %1042 = vmatpush1.bf16.msra.mxu0 %v1005
        %1043 = vmatprep.subr.bf16.mxu0 0
        %1044 = vmatpush1.bf16.msra.mxu0 %v1006
        %1045 = vmatprep.subr.bf16.mxu0 0
        %1046 = vmatpush1.bf16.msra.mxu0 %v1007
        %1047 = vmatprep.subr.bf16.mxu0 0
        %1048 = vmatpush1.bf16.msra.mxu0 0
        %1049 = vmatprep.subr.bf16.mxu0 0
        %1050 = vmatpush1.bf16.msra.mxu0 0
        %1051 = vmatprep.subr.bf16.mxu0 0
        %1052 = vmatpush1.bf16.msra.mxu0 0
        %1053 = vmatprep.subr.bf16.mxu0 0
        %1054 = vmatpush1.bf16.msra.mxu0 0
        %1055 = vmatprep.subr.bf16.mxu0 0
        %1056 = vmatpush1.bf16.msra.mxu0 0
        %1057 = vmatprep.subr.bf16.mxu0 0
        %1058 = vmatpush1.bf16.msra.mxu0 0
        %1059 = vmatprep.subr.bf16.mxu0 0
        %1060 = vmatpush1.bf16.msra.mxu0 0
        %1061 = vmatprep.subr.bf16.mxu0 0
        %1062 = vmatpush1.bf16.msra.mxu0 0
        %1063 = vmatprep.subr.bf16.mxu0 0
        %1064 = vmatpush1.bf16.msra.mxu0 0
        %1065 = vmatprep.subr.bf16.mxu0 0
        %1066 = vmatpush1.bf16.msra.mxu0 0
        %1067 = vmatprep.mubr.bf16.mxu0 0
        %1068 = vmatmul.mubr.bf16.gmra.mrb[0].mxu0 %v1015
        %v1069 = vpop.f32.mrb[0].mxu0
        %v1070 = vadd.f32 0.0, %v1069
        %v1071 = vpop.f32.mrb[0].mxu0
        %v1072 = vpop.f32.mrb[0].mxu0
        %v1073 = vadd.f32 0.0, %v1072
        %v1074 = vpop.f32.mrb[0].mxu0
        %1075 = vmatprep.mubr.bf16.mxu0 0
        %1076 = vmatmul.mubr.bf16.gmra.mrb[0].mxu0 %v1018
        %v1077 = vpop.f32.mrb[0].mxu0
        %v1078 = vadd.f32 0.0, %v1077
        %v1079 = vpop.f32.mrb[0].mxu0
        %v1080 = vpop.f32.mrb[0].mxu0
        %v1081 = vadd.f32 0.0, %v1080
        %v1082 = vpop.f32.mrb[0].mxu0
        %1083 = vmatprep.mubr.bf16.mxu0 0
        %1084 = vmatmul.mubr.bf16.gmra.mrb[0].mxu0 %v1021
        %v1085 = vpop.f32.mrb[0].mxu0
        %v1086 = vadd.f32 0.0, %v1085
        %v1087 = vpop.f32.mrb[0].mxu0
        %v1088 = vpop.f32.mrb[0].mxu0
        %v1089 = vadd.f32 0.0, %v1088
        %v1090 = vpop.f32.mrb[0].mxu0
        %1091 = vmatprep.mubr.bf16.mxu0 0
        %1092 = vmatmul.mubr.bf16.gmra.mrb[0].mxu0 %v1024
        %v1093 = vpop.f32.mrb[0].mxu0
        %v1094 = vadd.f32 0.0, %v1093
        %v1095 = vpop.f32.mrb[0].mxu0
        %v1096 = vpop.f32.mrb[0].mxu0
        %v1097 = vadd.f32 0.0, %v1096
        %v1098 = vpop.f32.mrb[0].mxu0
        %1099 = vmatprep.mubr.bf16.mxu0 0
        %1100 = vmatmul.mubr.bf16.gmra.mrb[0].mxu0 %v1027
        %v1101 = vpop.f32.mrb[0].mxu0
        %v1102 = vadd.f32 0.0, %v1101
        %v1103 = vpop.f32.mrb[0].mxu0
        %v1104 = vpop.f32.mrb[0].mxu0
        %v1105 = vadd.f32 0.0, %v1104
        %v1106 = vpop.f32.mrb[0].mxu0
        %1107 = vmatprep.mubr.bf16.mxu0 0
        %1108 = vmatmul.mubr.bf16.gmra.mrb[0].mxu0 %v1030
        %v1109 = vpop.f32.mrb[0].mxu0
        %v1110 = vadd.f32 0.0, %v1109
        %v1111 = vpop.f32.mrb[0].mxu0
        %v1112 = vpop.f32.mrb[0].mxu0
        %v1113 = vadd.f32 0.0, %v1112
        %v1114 = vpop.f32.mrb[0].mxu0
        %1115 = vmatprep.mubr.bf16.mxu0 0
        %1116 = vmatmul.mubr.bf16.gmra.mrb[0].mxu0 %v1033
        %v1117 = vpop.f32.mrb[0].mxu0
        %v1118 = vadd.f32 0.0, %v1117
        %v1119 = vpop.f32.mrb[0].mxu0
        %v1120 = vpop.f32.mrb[0].mxu0
        %v1121 = vadd.f32 0.0, %v1120
        %v1122 = vpop.f32.mrb[0].mxu0
        %1123 = vdwg.mxu0
        %v1136 = vunpack.c.l.b16 %v864
        %v1137 = vunpack.c.l.b16 %v865
        %v1138 = vunpack.c.l.b16 %v866
        %v1139 = vunpack.c.l.b16 %v867
        %v1140 = vunpack.c.l.b16 %v868
        %v1141 = vunpack.c.l.b16 %v869
        %v1142 = vunpack.c.l.b16 %v870
        %v1143 = vunpack.c.l.b16 %v871
        %v1144 = vunpack.c.l.b16 %v872
        %v1145 = vunpack.c.l.b16 %v873
        %v1146 = vunpack.c.l.b16 %v874
        %v1147 = vunpack.c.l.b16 %v875
        %v1148 = vpack.c.b16 %v1137, %v1136
        %v1149 = vpack.c.b16 %v1139, %v1138
        %v1150 = vpack.c.b16 %v1141, %v1140
        %v1151 = vpack.c.b16 %v1143, %v1142
        %v1152 = vpack.c.b16 %v1145, %v1144
        %v1153 = vpack.c.b16 %v1147, %v1146
        %v1160 = vsel %vm393, %v916, 0
        %v1162 = vsel %vm393, %v917, 0
        %v1164 = vsel %vm393, %v918, 0
        %v1166 = vsel %vm393, %v919, 0
        %v1168 = vsel %vm393, %v920, 0
        %v1170 = vsel %vm393, %v921, 0
        %v1172 = vsel %vm393, %v922, 0
        %1174 = vmatprep.subr.bf16.mxu0 0
        %1175 = vmatpush1.bf16.msra.mxu0 %v1148
        %1176 = vmatprep.subr.bf16.mxu0 0
        %1177 = vmatpush1.bf16.msra.mxu0 %v1149
        %1178 = vmatprep.subr.bf16.mxu0 0
        %1179 = vmatpush1.bf16.msra.mxu0 %v1150
        %1180 = vmatprep.subr.bf16.mxu0 0
        %1181 = vmatpush1.bf16.msra.mxu0 %v1151
        %1182 = vmatprep.subr.bf16.mxu0 0
        %1183 = vmatpush1.bf16.msra.mxu0 %v1152
        %1184 = vmatprep.subr.bf16.mxu0 0
        %1185 = vmatpush1.bf16.msra.mxu0 %v1153
        %1186 = vmatprep.subr.bf16.mxu0 0
        %1187 = vmatpush1.bf16.msra.mxu0 0
        %1188 = vmatprep.subr.bf16.mxu0 0
        %1189 = vmatpush1.bf16.msra.mxu0 0
        %1190 = vmatprep.subr.bf16.mxu0 0
        %1191 = vmatpush1.bf16.msra.mxu0 0
        %1192 = vmatprep.subr.bf16.mxu0 0
        %1193 = vmatpush1.bf16.msra.mxu0 0
        %1194 = vmatprep.subr.bf16.mxu0 0
        %1195 = vmatpush1.bf16.msra.mxu0 0
        %1196 = vmatprep.subr.bf16.mxu0 0
        %1197 = vmatpush1.bf16.msra.mxu0 0
        %1198 = vmatprep.subr.bf16.mxu0 0
        %1199 = vmatpush1.bf16.msra.mxu0 0
        %1200 = vmatprep.subr.bf16.mxu0 0
        %1201 = vmatpush1.bf16.msra.mxu0 0
        %1202 = vmatprep.subr.bf16.mxu0 0
        %1203 = vmatpush1.bf16.msra.mxu0 0
        %1204 = vmatprep.subr.bf16.mxu0 0
        %1205 = vmatpush1.bf16.msra.mxu0 0
        %1206 = vmatprep.mubr.bf16.mxu0 0
        %1207 = vmatmul.mubr.bf16.gmra.mrb[0].mxu0 %v1160
        %v1208 = vpop.f32.mrb[0].mxu0
        %v1209 = vadd.f32 %v1070, %v1208
        %v1210 = vpop.f32.mrb[0].mxu0
        %v1211 = vpop.f32.mrb[0].mxu0
        %v1212 = vadd.f32 %v1073, %v1211
        %v1213 = vpop.f32.mrb[0].mxu0
        %1214 = vmatprep.mubr.bf16.mxu0 0
        %1215 = vmatmul.mubr.bf16.gmra.mrb[0].mxu0 %v1162
        %v1216 = vpop.f32.mrb[0].mxu0
        %v1217 = vadd.f32 %v1078, %v1216
        %v1218 = vpop.f32.mrb[0].mxu0
        %v1219 = vpop.f32.mrb[0].mxu0
        %v1220 = vadd.f32 %v1081, %v1219
        %v1221 = vpop.f32.mrb[0].mxu0
        %1222 = vmatprep.mubr.bf16.mxu0 0
        %1223 = vmatmul.mubr.bf16.gmra.mrb[0].mxu0 %v1164
        %v1224 = vpop.f32.mrb[0].mxu0
        %v1225 = vadd.f32 %v1086, %v1224
        %v1226 = vpop.f32.mrb[0].mxu0
        %v1227 = vpop.f32.mrb[0].mxu0
        %v1228 = vadd.f32 %v1089, %v1227
        %v1229 = vpop.f32.mrb[0].mxu0
        %1230 = vmatprep.mubr.bf16.mxu0 0
        %1231 = vmatmul.mubr.bf16.gmra.mrb[0].mxu0 %v1166
        %v1232 = vpop.f32.mrb[0].mxu0
        %v1233 = vadd.f32 %v1094, %v1232
        %v1234 = vpop.f32.mrb[0].mxu0
        %v1235 = vpop.f32.mrb[0].mxu0
        %v1236 = vadd.f32 %v1097, %v1235
        %v1237 = vpop.f32.mrb[0].mxu0
        %1238 = vmatprep.mubr.bf16.mxu0 0
        %1239 = vmatmul.mubr.bf16.gmra.mrb[0].mxu0 %v1168
        %v1240 = vpop.f32.mrb[0].mxu0
        %v1241 = vadd.f32 %v1102, %v1240
        %v1242 = vpop.f32.mrb[0].mxu0
        %v1243 = vpop.f32.mrb[0].mxu0
        %v1244 = vadd.f32 %v1105, %v1243
        %v1245 = vpop.f32.mrb[0].mxu0
        %1246 = vmatprep.mubr.bf16.mxu0 0
        %1247 = vmatmul.mubr.bf16.gmra.mrb[0].mxu0 %v1170
        %v1248 = vpop.f32.mrb[0].mxu0
        %v1249 = vadd.f32 %v1110, %v1248
        %v1250 = vpop.f32.mrb[0].mxu0
        %v1251 = vpop.f32.mrb[0].mxu0
        %v1252 = vadd.f32 %v1113, %v1251
        %v1253 = vpop.f32.mrb[0].mxu0
        %1254 = vmatprep.mubr.bf16.mxu0 0
        %1255 = vmatmul.mubr.bf16.gmra.mrb[0].mxu0 %v1172
        %v1256 = vpop.f32.mrb[0].mxu0
        %v1257 = vadd.f32 %v1118, %v1256
        %v1258 = vpop.f32.mrb[0].mxu0
        %v1259 = vpop.f32.mrb[0].mxu0
        %v1260 = vadd.f32 %v1121, %v1259
        %v1261 = vpop.f32.mrb[0].mxu0
        %1262 = vdwg.mxu0
        %v1263 = vld [vmem:[%s643] sm:$0xf]
        %v1264 = vld [vmem:[%s643 + $0x4] sm:$0xf]
        %v1265 = vld [vmem:[%s643 + $0x8] sm:$0xf]
        %v1266 = vld [vmem:[%s643 + $0xc] sm:$0xf]
        %v1267 = vld [vmem:[%s643 + $0x10] sm:$0xf]
        %v1268 = vld [vmem:[%s643 + $0x14] sm:$0xf]
        %v1269 = vld [vmem:[%s643 + $0x18] sm:$0xf]
        %v1270 = vld [vmem:[%s643 + $0x1c] sm:$0xf]
        %v1271 = vld [vmem:[%s643 + $0x20] sm:$0xf]
        %v1272 = vld [vmem:[%s643 + $0x24] sm:$0xf]
        %v1273 = vld [vmem:[%s643 + $0x28] sm:$0xf]
        %v1274 = vld [vmem:[%s643 + $0x2c] sm:$0xf]
        %v1275 = vrot.slane %v916, 1
        %v1276 = vrot.slane %v917, 1
        %v1277 = vsel %vm656, %v1275, %v1276
        %v1278 = vrot.slane %v918, 1
        %v1279 = vsel %vm656, %v1276, %v1278
        %v1280 = vrot.slane %v919, 1
        %v1281 = vsel %vm656, %v1278, %v1280
        %v1282 = vrot.slane %v920, 1
        %v1283 = vsel %vm656, %v1280, %v1282
        %v1284 = vrot.slane %v921, 1
        %v1285 = vsel %vm656, %v1282, %v1284
        %v1286 = vrot.slane %v922, 1
        %v1287 = vsel %vm656, %v1284, %v1286
        %v1300 = vunpack.c.l.b16 %v1263
        %v1301 = vunpack.c.l.b16 %v1264
        %v1302 = vunpack.c.l.b16 %v1265
        %v1303 = vunpack.c.l.b16 %v1266
        %v1304 = vunpack.c.l.b16 %v1267
        %v1305 = vunpack.c.l.b16 %v1268
        %v1306 = vunpack.c.l.b16 %v1269
        %v1307 = vunpack.c.l.b16 %v1270
        %v1308 = vunpack.c.l.b16 %v1271
        %v1309 = vunpack.c.l.b16 %v1272
        %v1310 = vunpack.c.l.b16 %v1273
        %v1311 = vunpack.c.l.b16 %v1274
        %v1312 = vpack.c.b16 %v1301, %v1300
        %v1313 = vpack.c.b16 %v1303, %v1302
        %v1314 = vpack.c.b16 %v1305, %v1304
        %v1315 = vpack.c.b16 %v1307, %v1306
        %v1316 = vpack.c.b16 %v1309, %v1308
        %v1317 = vpack.c.b16 %v1311, %v1310
        %v1325 = vsel %vm393, %v1277, 0
        %v1328 = vsel %vm393, %v1279, 0
        %v1331 = vsel %vm393, %v1281, 0
        %v1334 = vsel %vm393, %v1283, 0
        %v1337 = vsel %vm393, %v1285, 0
        %v1340 = vsel %vm393, %v1287, 0
        %v1343 = vsel %vm393, %v1286, 0
        %1345 = vmatprep.subr.bf16.mxu0 0
        %1346 = vmatpush1.bf16.msra.mxu0 %v1312
        %1347 = vmatprep.subr.bf16.mxu0 0
        %1348 = vmatpush1.bf16.msra.mxu0 %v1313
        %1349 = vmatprep.subr.bf16.mxu0 0
        %1350 = vmatpush1.bf16.msra.mxu0 %v1314
        %1351 = vmatprep.subr.bf16.mxu0 0
        %1352 = vmatpush1.bf16.msra.mxu0 %v1315
        %1353 = vmatprep.subr.bf16.mxu0 0
        %1354 = vmatpush1.bf16.msra.mxu0 %v1316
        %1355 = vmatprep.subr.bf16.mxu0 0
        %1356 = vmatpush1.bf16.msra.mxu0 %v1317
        %1357 = vmatprep.subr.bf16.mxu0 0
        %1358 = vmatpush1.bf16.msra.mxu0 0
        %1359 = vmatprep.subr.bf16.mxu0 0
        %1360 = vmatpush1.bf16.msra.mxu0 0
        %1361 = vmatprep.subr.bf16.mxu0 0
        %1362 = vmatpush1.bf16.msra.mxu0 0
        %1363 = vmatprep.subr.bf16.mxu0 0
        %1364 = vmatpush1.bf16.msra.mxu0 0
        %1365 = vmatprep.subr.bf16.mxu0 0
        %1366 = vmatpush1.bf16.msra.mxu0 0
        %1367 = vmatprep.subr.bf16.mxu0 0
        %1368 = vmatpush1.bf16.msra.mxu0 0
        %1369 = vmatprep.subr.bf16.mxu0 0
        %1370 = vmatpush1.bf16.msra.mxu0 0
        %1371 = vmatprep.subr.bf16.mxu0 0
        %1372 = vmatpush1.bf16.msra.mxu0 0
        %1373 = vmatprep.subr.bf16.mxu0 0
        %1374 = vmatpush1.bf16.msra.mxu0 0
        %1375 = vmatprep.subr.bf16.mxu0 0
        %1376 = vmatpush1.bf16.msra.mxu0 0
        %1377 = vmatprep.mubr.bf16.mxu0 0
        %1378 = vmatmul.mubr.bf16.gmra.mrb[0].mxu0 %v1325
        %v1379 = vpop.f32.mrb[0].mxu0
        %v1380 = vadd.f32 0.0, %v1379
        %v1381 = vpop.f32.mrb[0].mxu0
        %v1382 = vpop.f32.mrb[0].mxu0
        %v1383 = vadd.f32 0.0, %v1382
        %v1384 = vpop.f32.mrb[0].mxu0
        %1385 = vmatprep.mubr.bf16.mxu0 0
        %1386 = vmatmul.mubr.bf16.gmra.mrb[0].mxu0 %v1328
        %v1387 = vpop.f32.mrb[0].mxu0
        %v1388 = vadd.f32 0.0, %v1387
        %v1389 = vpop.f32.mrb[0].mxu0
        %v1390 = vpop.f32.mrb[0].mxu0
        %v1391 = vadd.f32 0.0, %v1390
        %v1392 = vpop.f32.mrb[0].mxu0
        %1393 = vmatprep.mubr.bf16.mxu0 0
        %1394 = vmatmul.mubr.bf16.gmra.mrb[0].mxu0 %v1331
        %v1395 = vpop.f32.mrb[0].mxu0
        %v1396 = vadd.f32 0.0, %v1395
        %v1397 = vpop.f32.mrb[0].mxu0
        %v1398 = vpop.f32.mrb[0].mxu0
        %v1399 = vadd.f32 0.0, %v1398
        %v1400 = vpop.f32.mrb[0].mxu0
        %1401 = vmatprep.mubr.bf16.mxu0 0
        %1402 = vmatmul.mubr.bf16.gmra.mrb[0].mxu0 %v1334
        %v1403 = vpop.f32.mrb[0].mxu0
        %v1404 = vadd.f32 0.0, %v1403
        %v1405 = vpop.f32.mrb[0].mxu0
        %v1406 = vpop.f32.mrb[0].mxu0
        %v1407 = vadd.f32 0.0, %v1406
        %v1408 = vpop.f32.mrb[0].mxu0
        %1409 = vmatprep.mubr.bf16.mxu0 0
        %1410 = vmatmul.mubr.bf16.gmra.mrb[0].mxu0 %v1337
        %v1411 = vpop.f32.mrb[0].mxu0
        %v1412 = vadd.f32 0.0, %v1411
        %v1413 = vpop.f32.mrb[0].mxu0
        %v1414 = vpop.f32.mrb[0].mxu0
        %v1415 = vadd.f32 0.0, %v1414
        %v1416 = vpop.f32.mrb[0].mxu0
        %1417 = vmatprep.mubr.bf16.mxu0 0
        %1418 = vmatmul.mubr.bf16.gmra.mrb[0].mxu0 %v1340
        %v1419 = vpop.f32.mrb[0].mxu0
        %v1420 = vadd.f32 0.0, %v1419
        %v1421 = vpop.f32.mrb[0].mxu0
        %v1422 = vpop.f32.mrb[0].mxu0
        %v1423 = vadd.f32 0.0, %v1422
        %v1424 = vpop.f32.mrb[0].mxu0
        %1425 = vmatprep.mubr.bf16.mxu0 0
        %1426 = vmatmul.mubr.bf16.gmra.mrb[0].mxu0 %v1343
        %v1427 = vpop.f32.mrb[0].mxu0
        %v1428 = vadd.f32 0.0, %v1427
        %v1429 = vpop.f32.mrb[0].mxu0
        %v1430 = vpop.f32.mrb[0].mxu0
        %v1431 = vadd.f32 0.0, %v1430
        %v1432 = vpop.f32.mrb[0].mxu0
        %1433 = vdwg.mxu0
        %v1434 = vadd.f32 %v1209, %v1380
        %v1435 = vadd.f32 %v1212, %v1383
        %v1436 = vadd.f32 %v1217, %v1388
        %v1437 = vadd.f32 %v1220, %v1391
        %v1438 = vadd.f32 %v1225, %v1396
        %v1439 = vadd.f32 %v1228, %v1399
        %v1440 = vadd.f32 %v1233, %v1404
        %v1441 = vadd.f32 %v1236, %v1407
        %v1442 = vadd.f32 %v1241, %v1412
        %v1443 = vadd.f32 %v1244, %v1415
        %v1444 = vadd.f32 %v1249, %v1420
        %v1445 = vadd.f32 %v1252, %v1423
        %v1446 = vadd.f32 %v1257, %v1428
        %v1447 = vadd.f32 %v1260, %v1431
        %v1448 = vld [vmem:[#allocation2] sm:$0xff]
        %v1449 = vld [vmem:[#allocation2 + $0x8] sm:$0xff]
        %v1450 = vld [vmem:[#allocation2 + $0x10] sm:$0xff]
        %v1451 = vld [vmem:[#allocation2 + $0x18] sm:$0xff]
        %v1452 = vld [vmem:[#allocation2 + $0x20] sm:$0xff]
        %v1453 = vld [vmem:[#allocation2 + $0x28] sm:$0xff]
        %v1454 = vld [vmem:[#allocation2 + $0x30] sm:$0xff]
        %v1455 = vld [vmem:[#allocation2 + $0x38] sm:$0xff]
        %v1456 = vld [vmem:[#allocation2 + $0x40] sm:$0xff]
        %v1457 = vld [vmem:[#allocation2 + $0x48] sm:$0xff]
        %v1458 = vld [vmem:[#allocation2 + $0x50] sm:$0xff]
        %v1459 = vld [vmem:[#allocation2 + $0x58] sm:$0xff]
        %v1460 = vld [vmem:[#allocation2 + $0x60] sm:$0xff]
        %v1461 = vld [vmem:[#allocation2 + $0x68] sm:$0xf]
        %v1462 = vmax.f32 %v1448, %v1434
        %v1463 = vmax.f32 %v1449, %v1435
        %v1464 = vmax.f32 %v1450, %v1436
        %v1465 = vmax.f32 %v1451, %v1437
        %v1466 = vmax.f32 %v1452, %v1438
        %v1467 = vmax.f32 %v1453, %v1439
        %v1468 = vmax.f32 %v1454, %v1440
        %v1469 = vmax.f32 %v1455, %v1441
        %v1470 = vmax.f32 %v1456, %v1442
        %v1471 = vmax.f32 %v1457, %v1443
        %v1472 = vmax.f32 %v1458, %v1444
        %v1473 = vmax.f32 %v1459, %v1445
        %v1474 = vmax.f32 %v1460, %v1446
        %v1475 = vmax.f32 %v1461, %v1447
        %v1477 = vlaneseq
        %v1478 = vshrl.u32 %v1477, 7
        %v1479 = vsub.s32 0, %v1478
        %v1480 = vrot.slane %v216, %v1479
        %v1482 = vadd.f32 %v1462, %v1480
        %v1483 = vadd.f32 %v1463, %v1480
        %v1484 = vadd.f32 %v1464, %v1480
        %v1485 = vadd.f32 %v1465, %v1480
        %v1486 = vadd.f32 %v1466, %v1480
        %v1487 = vadd.f32 %v1467, %v1480
        %v1488 = vadd.f32 %v1468, %v1480
        %v1489 = vadd.f32 %v1469, %v1480
        %v1490 = vadd.f32 %v1470, %v1480
        %v1491 = vadd.f32 %v1471, %v1480
        %v1492 = vadd.f32 %v1472, %v1480
        %v1493 = vadd.f32 %v1473, %v1480
        %v1494 = vadd.f32 %v1474, %v1480
        %v1495 = vadd.f32 %v1475, %v1480
        %v1496 = vmax.f32 %v1482, 0.0
        %v1497 = vmax.f32 %v1483, 0.0
        %v1498 = vmax.f32 %v1484, 0.0
        %v1499 = vmax.f32 %v1485, 0.0
        %v1500 = vmax.f32 %v1486, 0.0
        %v1501 = vmax.f32 %v1487, 0.0
        %v1502 = vmax.f32 %v1488, 0.0
        %v1503 = vmax.f32 %v1489, 0.0
        %v1504 = vmax.f32 %v1490, 0.0
        %v1505 = vmax.f32 %v1491, 0.0
        %v1506 = vmax.f32 %v1492, 0.0
        %v1507 = vmax.f32 %v1493, 0.0
        %v1508 = vmax.f32 %v1494, 0.0
        %v1509 = vmax.f32 %v1495, 0.0
        %1510 = vst.msk [vmem:[#allocation2] sm:$0xff] %vm830, %v1496
        %1511 = vst.msk [vmem:[#allocation2 + $0x8] sm:$0xff] %vm830, %v1497
        %1512 = vst.msk [vmem:[#allocation2 + $0x10] sm:$0xff] %vm830, %v1498
        %1513 = vst.msk [vmem:[#allocation2 + $0x18] sm:$0xff] %vm830, %v1499
        %1514 = vst.msk [vmem:[#allocation2 + $0x20] sm:$0xff] %vm830, %v1500
        %1515 = vst.msk [vmem:[#allocation2 + $0x28] sm:$0xff] %vm830, %v1501
        %1516 = vst.msk [vmem:[#allocation2 + $0x30] sm:$0xff] %vm830, %v1502
        %1517 = vst.msk [vmem:[#allocation2 + $0x38] sm:$0xff] %vm830, %v1503
        %1518 = vst.msk [vmem:[#allocation2 + $0x40] sm:$0xff] %vm830, %v1504
        %1519 = vst.msk [vmem:[#allocation2 + $0x48] sm:$0xff] %vm830, %v1505
        %1520 = vst.msk [vmem:[#allocation2 + $0x50] sm:$0xff] %vm830, %v1506
        %1521 = vst.msk [vmem:[#allocation2 + $0x58] sm:$0xff] %vm830, %v1507
        %1522 = vst.msk [vmem:[#allocation2 + $0x60] sm:$0xff] %vm830, %v1508
        %1523 = vst.msk [vmem:[#allocation2 + $0x68] sm:$0xf] %vm844, %v1509
        %v1524 = vld [vmem:[#allocation2] ss:$2 sm:$0xff]
        %s1525 = scalar_lea.vmem [#allocation2], 16
        %v1526 = vld [vmem:[%s1525] ss:$2 sm:$0xff]
        %s1527 = scalar_lea.vmem [#allocation2], 32
        %v1528 = vld [vmem:[%s1527] ss:$2 sm:$0xff]
        %s1529 = scalar_lea.vmem [#allocation2], 48
        %v1530 = vld [vmem:[%s1529] ss:$2 sm:$0xff]
        %s1531 = scalar_lea.vmem [#allocation2], 64
        %v1532 = vld [vmem:[%s1531] ss:$2 sm:$0xff]
        %s1533 = scalar_lea.vmem [#allocation2], 80
        %v1534 = vld [vmem:[%s1533] ss:$2 sm:$0xff]
        %s1535 = scalar_lea.vmem [#allocation2], 96
        %v1536 = vld [vmem:[%s1535] ss:$2 sm:$0x3f]
        %s1537 = scalar_lea.vmem [#allocation2], 1
        %v1538 = vld [vmem:[%s1537] ss:$2 sm:$0xff]
        %s1539 = scalar_lea.vmem [#allocation2], 17
        %v1540 = vld [vmem:[%s1539] ss:$2 sm:$0xff]
        %s1541 = scalar_lea.vmem [#allocation2], 33
        %v1542 = vld [vmem:[%s1541] ss:$2 sm:$0xff]
        %s1543 = scalar_lea.vmem [#allocation2], 49
        %v1544 = vld [vmem:[%s1543] ss:$2 sm:$0xff]
        %s1545 = scalar_lea.vmem [#allocation2], 65
        %v1546 = vld [vmem:[%s1545] ss:$2 sm:$0xff]
        %s1547 = scalar_lea.vmem [#allocation2], 81
        %v1548 = vld [vmem:[%s1547] ss:$2 sm:$0xff]
        %s1549 = scalar_lea.vmem [#allocation2], 97
        %v1550 = vld [vmem:[%s1549] ss:$2 sm:$0x3f]
        %v1551 = vmax.f32 %v1524, %v1538
        %v1552 = vmax.f32 %v1526, %v1540
        %v1553 = vmax.f32 %v1528, %v1542
        %v1554 = vmax.f32 %v1530, %v1544
        %v1555 = vmax.f32 %v1532, %v1546
        %v1556 = vmax.f32 %v1534, %v1548
        %v1557 = vmax.f32 %v1536, %v1550
        %v1558 = vpack.c.bf16 %v1552, %v1551
        %v1559 = vpack.c.bf16 %v1554, %v1553
        %v1560 = vpack.c.bf16 %v1556, %v1555
        %v1561 = vpack.c.bf16 %v1557, %v1557
        %v1566 = vunpack.c.l.b16 %v1558
        %v1567 = vunpack.c.h.b16 %v1558
        %v1568 = vunpack.c.l.b16 %v1559
        %v1569 = vunpack.c.h.b16 %v1559
        %v1570 = vunpack.c.l.b16 %v1560
        %v1571 = vunpack.c.h.b16 %v1560
        %v1572 = vunpack.c.l.b16 %v1561
        %v1573 = vpack.c.b16 %v1566, %v1566
        %v1574 = vpack.c.b16 %v1567, %v1567
        %v1575 = vpack.c.b16 %v1568, %v1568
        %v1576 = vpack.c.b16 %v1569, %v1569
        %v1577 = vpack.c.b16 %v1570, %v1570
        %v1578 = vpack.c.b16 %v1571, %v1571
        %v1579 = vpack.c.b16 %v1572, %v1572
        %s1587 = smul.u32 %s218, 7
        %s1588 = smul.addr %s1587, 4
        %s1589 = scalar_lea.vmem %s213, %s1588
        %1590 = vst.msk [vmem:[%s1589] sm:$0xf] %vm844, %v1573
        %1591 = vst.msk [vmem:[%s1589 + $0x4] sm:$0xf] %vm844, %v1574
        %1592 = vst.msk [vmem:[%s1589 + $0x8] sm:$0xf] %vm844, %v1575
        %1593 = vst.msk [vmem:[%s1589 + $0xc] sm:$0xf] %vm844, %v1576
        %1594 = vst.msk [vmem:[%s1589 + $0x10] sm:$0xf] %vm844, %v1577
        %1595 = vst.msk [vmem:[%s1589 + $0x14] sm:$0xf] %vm844, %v1578
        %vm1596 = vcmask 518144
        %1597 = vst.msk [vmem:[%s1589 + $0x18] sm:$0x7] %vm1596, %v1579
      $region37: #{convnet_forward.7} parent=31 // loop_footer
        %s222 = sadd.s32 1, %s218
      $region38: #{convnet_forward.7} parent=31 // loop_footer_branch
        %217 = sbr.rel target = $region34
      $region39: #{convnet_forward.7} parent=31 // loop_exit
        _
      %s1598 = smul.u32 18, %s19
      %p1599 = scmp.lt.s32.totalorder %s18, 1
      %s1600 = scalar_select %p1599, %s18, 1
      %p1601 = scmp.lt.s32.totalorder %s1598, 53
      %s1602 = scalar_select %p1601, %s1598, 53
      %s1603 = smul.addr %s1602, 7
      %s1604 = smul.addr %s1600, 378
      %s1605 = sadd.s32 %s1603, %s1604
      %s1606 = smul.addr %s1605, 4
      %s1607 = scalar_lea.vmem %s3, %s1606
      // Predicated region
      $region40: #{convnet_forward.7} parent=31 // pred_check
        %p1608 = pneg %p116
      $region41: #{convnet_forward.7} parent=31 // pred_check_branch
        %1610 = sbr.rel (%p1608) target = $region43
      $region42: #{convnet_forward.7} parent=31 // pred_region
        %s1611 = smul.u32 18, %s19
      $region43: #{convnet_forward.7} parent=31 // pred_fallthru
        _
    $region32: #{convnet_forward.7} parent=5 // pred_fallthru
      _
    %p1612 = scmp.le.s32.totalorder 2, %s9
    // Predicated region
    $region44: #{convnet_forward.7} parent=5 // pred_check
      %p1613 = pneg %p1612
    $region45: #{convnet_forward.7} parent=5 // pred_check_branch
      %1615 = sbr.rel (%p1613) target = $region47
    $region46: #{convnet_forward.7} parent=5 // pred_region
      %s1616 = ssub.s32 %s9, 2
      // Predicated region
      $region48: #{convnet_forward.7} parent=46 // pred_check
        %p1617 = pneg %p122
      $region49: #{convnet_forward.7} parent=46 // pred_check_branch
        %1619 = sbr.rel (%p1617) target = $region51
      $region50: #{convnet_forward.7} parent=46 // pred_region
        %s1620 = smul.u32 18, %s21
        %p1621 = scmp.lt.s32.totalorder %s20, 1
        %s1622 = scalar_select %p1621, %s20, 1
        %p1623 = scmp.lt.s32.totalorder %s1620, 53
        %s1624 = scalar_select %p1623, %s1620, 53
        %s1625 = smul.addr %s1624, 7
        %s1626 = smul.addr %s1622, 378
        %s1627 = sadd.s32 %s1625, %s1626
        %s1628 = smul.addr %s1627, 4
        %s1629 = scalar_lea.vmem %s3, %s1628
      $region51: #{convnet_forward.7} parent=46 // pred_fallthru
        _
    $region47: #{convnet_forward.7} parent=5 // pred_fallthru
      _
  $region6: #{convnet_forward.7} parent=0 // loop_footer
    %s13 = sadd.s32 1, %s9
  $region7: #{convnet_forward.7} parent=0 // loop_footer_branch
    %8 = sbr.rel target = $region3
  $region8: #{convnet_forward.7} parent=0 // loop_exit
    _

// kernel: convnet_forward.8
$region0: #{convnet_forward.8}
  #allocation0 [shape = 'u32[]', space=smem, size = 0x4, offset = 0x4, fixed_abs, tag = 'smem constant byte address 0x4 - core index']
  #allocation1 [shape = 'u32[144,128]{1,0:T(1,128)}', space=vmem, size = 0x12000, scoped, tag = 'internal scratch']
  #allocation2 [shape = 'f32[52,128]{1,0:T(8,128)}', space=vmem, size = 0x7000, scoped, tag = 'scratch operand']
  %s0 = inlined_call_operand.vmem [shape: bf16[2,52,54,192], index: 0, kind: input, shape index: {}]
  %s1 = inlined_call_operand.vmem [shape: bf16[3,192,128], index: 1, kind: input, shape index: {}]
  %s2 = inlined_call_operand.vmem [shape: f32[1,128], index: 2, kind: input, shape index: {}]
  %s3 = inlined_call_operand.vmem [shape: bf16[2,26,26,128], index: 3, kind: output, shape index: {}]
  %s4 = sld [smem:[#allocation0]]
  $region52: #{convnet_forward.8} parent=0
    _
  %s6 = ssub.s32 1, %s4
  %s7 = scalar_select 0, %s6, %s4
  loop: start=0, step=1, limit=6
  $region2: #{convnet_forward.8} parent=0 // loop_pre_header
    _
  $region3: #{convnet_forward.8} parent=0 // loop_header
    %s9 = sphi 0, %s13
    %p10 = scmp.ge.s32.totalorder %s9, 6
    %s16 = sphi 0, %s28
    %s17 = sphi 0, %s24
    %s18 = sphi 0, %s16
    %s19 = sphi 0, %s17
    %s20 = sphi 0, %s18
    %s21 = sphi 0, %s19
    %s33 = sphi 0, %s35
    %s36 = sphi 0, %s33
    %s37 = sphi 0, %s36
    %s53 = sphi 0, %s37
    %s57 = sphi 0, %s57
    %s59 = sphi 0, %s57
    %s60 = sphi 0, %s59
    %s74 = sphi 0, %s60
    %s78 = sphi 0, %s78
    %s80 = sphi 0, %s78
    %s81 = sphi 0, %s80
    %s95 = sphi 0, %s81
    %s103 = sphi 0, %s105
    %s106 = sphi 0, %s103
    %s107 = sphi 0, %s106
    %s123 = sphi 0, %s107
  $region4: #{convnet_forward.8} parent=0 // loop_header_branch
    %12 = sbr.rel (%p10) target = $region8
  $region5: #{convnet_forward.8} parent=0 // loop_body
    %s14 = ssub.s32 %s9, 1
    %s15 = ssub.s32 %s9, 2
    %s22 = sadd.s32 1, %s17
    %p23 = scmp.ge.s32.totalorder %s22, 2
    %s24 = scalar_select %p23, 0, %s22
    %s25 = sadd.s32 1, %s16
    %s26 = scalar_select %p23, %s25, %s16
    %p27 = scmp.ge.s32.totalorder %s26, 2
    %s28 = scalar_select %p27, 0, %s26
    %s29 = ssub.s32 %s16, %s28
    %s30 = ssub.s32 %s17, %s24
    %s31 = sor.u32 %s29, %s30
    %p32 = scmp.eq.s32.totalorder %s31, 0
    %s34 = sadd.s32 %s33, 1
    %s35 = scalar_select %p32, %s33, %s34
    %p38 = pneg %p32
    %p39 = scmp.eq.s32.totalorder %s9, 3
    %p40 = por %p38, %p39
    %p41 = scmp.ne.s32.totalorder %s33, %s36
    %p42 = scmp.eq.s32.totalorder %s9, 0
    %p43 = por %p41, %p42
    %p44 = scmp.ne.s32.totalorder %s33, %s36
    %p45 = scmp.eq.s32.totalorder %s14, 3
    %p46 = por %p44, %p45
    %p47 = scmp.ne.s32.totalorder %s36, %s37
    %p48 = scmp.eq.s32.totalorder %s14, 0
    %p49 = por %p47, %p48
    %p50 = scmp.ne.s32.totalorder %s36, %s37
    %p51 = scmp.eq.s32.totalorder %s15, 3
    %p52 = por %p50, %p51
    %p54 = scmp.ne.s32.totalorder %s37, %s53
    %p55 = scmp.eq.s32.totalorder %s15, 0
    %p56 = por %p54, %p55
    %s58 = sadd.s32 %s57, 1
    %p61 = scmp.eq.s32.totalorder %s9, 3
    %p62 = scmp.ne.s32.totalorder %s57, %s59
    %p63 = scmp.eq.s32.totalorder %s9, 0
    %p64 = por %p62, %p63
    %p65 = scmp.ne.s32.totalorder %s57, %s59
    %p66 = scmp.eq.s32.totalorder %s14, 3
    %p67 = por %p65, %p66
    %p68 = scmp.ne.s32.totalorder %s59, %s60
    %p69 = scmp.eq.s32.totalorder %s14, 0
    %p70 = por %p68, %p69
    %p71 = scmp.ne.s32.totalorder %s59, %s60
    %p72 = scmp.eq.s32.totalorder %s15, 3
    %p73 = por %p71, %p72
    %p75 = scmp.ne.s32.totalorder %s60, %s74
    %p76 = scmp.eq.s32.totalorder %s15, 0
    %p77 = por %p75, %p76
    %s79 = sadd.s32 %s78, 1
    %p82 = scmp.eq.s32.totalorder %s9, 3
    %p83 = scmp.ne.s32.totalorder %s78, %s80
    %p84 = scmp.eq.s32.totalorder %s9, 0
    %p85 = por %p83, %p84
    %p86 = scmp.ne.s32.totalorder %s78, %s80
    %p87 = scmp.eq.s32.totalorder %s14, 3
    %p88 = por %p86, %p87
    %p89 = scmp.ne.s32.totalorder %s80, %s81
    %p90 = scmp.eq.s32.totalorder %s14, 0
    %p91 = por %p89, %p90
    %p92 = scmp.ne.s32.totalorder %s80, %s81
    %p93 = scmp.eq.s32.totalorder %s15, 3
    %p94 = por %p92, %p93
    %p96 = scmp.ne.s32.totalorder %s81, %s95
    %p97 = scmp.eq.s32.totalorder %s15, 0
    %p98 = por %p96, %p97
    %s99 = ssub.s32 %s16, %s28
    %s100 = ssub.s32 %s17, %s24
    %s101 = sor.u32 %s99, %s100
    %p102 = scmp.eq.s32.totalorder %s101, 0
    %s104 = sadd.s32 %s103, 1
    %s105 = scalar_select %p102, %s103, %s104
    %p108 = pneg %p102
    %p109 = scmp.eq.s32.totalorder %s9, 3
    %p110 = por %p108, %p109
    %p111 = scmp.ne.s32.totalorder %s103, %s106
    %p112 = scmp.eq.s32.totalorder %s9, 0
    %p113 = por %p111, %p112
    %p114 = scmp.ne.s32.totalorder %s103, %s106
    %p115 = scmp.eq.s32.totalorder %s14, 3
    %p116 = por %p114, %p115
    %p117 = scmp.ne.s32.totalorder %s106, %s107
    %p118 = scmp.eq.s32.totalorder %s14, 0
    %p119 = por %p117, %p118
    %p120 = scmp.ne.s32.totalorder %s106, %s107
    %p121 = scmp.eq.s32.totalorder %s15, 3
    %p122 = por %p120, %p121
    %p124 = scmp.ne.s32.totalorder %s107, %s123
    %p125 = scmp.eq.s32.totalorder %s15, 0
    %p126 = por %p124, %p125
    %p127 = scmp.le.s32.totalorder 1, %s9
    %p128 = scmp.lt.s32.totalorder %s9, 5
    %p129 = pnand %p127, %p128
    %p130 = pneg %p129
    // Predicated region
    $region9: #{convnet_forward.8} parent=5 // pred_check
      _
    $region10: #{convnet_forward.8} parent=5 // pred_check_branch
      %132 = sbr.rel (%p129) target = $region12
    $region11: #{convnet_forward.8} parent=5 // pred_region
      %s133 = ssub.s32 %s9, 1
      // Predicated region
      $region13: #{convnet_forward.8} parent=11 // pred_check
        %p134 = pneg %p70
      $region14: #{convnet_forward.8} parent=11 // pred_check_branch
        %136 = sbr.rel (%p134) target = $region16
      $region15: #{convnet_forward.8} parent=11 // pred_region
        _
      $region16: #{convnet_forward.8} parent=11 // pred_fallthru
        _
      // Predicated region
      $region17: #{convnet_forward.8} parent=11 // pred_check
        %p137 = pneg %p91
      $region18: #{convnet_forward.8} parent=11 // pred_check_branch
        %139 = sbr.rel (%p137) target = $region20
      $region19: #{convnet_forward.8} parent=11 // pred_region
        _
      $region20: #{convnet_forward.8} parent=11 // pred_fallthru
        _
    $region12: #{convnet_forward.8} parent=5 // pred_fallthru
      _
    %p140 = scmp.lt.s32.totalorder %s9, 4
    // Predicated region
    $region21: #{convnet_forward.8} parent=5 // pred_check
      %p141 = pneg %p140
    $region22: #{convnet_forward.8} parent=5 // pred_check_branch
      %143 = sbr.rel (%p141) target = $region24
    $region23: #{convnet_forward.8} parent=5 // pred_region
      // Predicated region
      $region25: #{convnet_forward.8} parent=23 // pred_check
        %p144 = pneg %p43
      $region26: #{convnet_forward.8} parent=23 // pred_check_branch
        %146 = sbr.rel (%p144) target = $region28
      $region27: #{convnet_forward.8} parent=23 // pred_region
        %s147 = smul.u32 26, %s17
        %p148 = scmp.lt.s32.totalorder %s16, 1
        %s149 = scalar_select %p148, %s16, 1
        %p150 = scmp.lt.s32.totalorder %s147, 51
        %s151 = scalar_select %p150, %s147, 51
        %s152 = smul.addr %s151, 14
        %s153 = smul.addr %s149, 728
        %s154 = sadd.s32 %s152, %s153
        %s155 = smul.addr %s154, 4
        %s156 = scalar_lea.vmem %s0, %s155
        %s157 = smul.u32 26, %s17
      $region28: #{convnet_forward.8} parent=23 // pred_fallthru
        _
    $region24: #{convnet_forward.8} parent=5 // pred_fallthru
      _
    %p158 = scmp.le.s32.totalorder 1, %s9
    %p159 = scmp.lt.s32.totalorder %s9, 5
    %p160 = pnand %p158, %p159
    %p161 = pneg %p160
    // Predicated region
    $region29: #{convnet_forward.8} parent=5 // pred_check
      _
    $region30: #{convnet_forward.8} parent=5 // pred_check_branch
      %163 = sbr.rel (%p160) target = $region32
    $region31: #{convnet_forward.8} parent=5 // pred_region
      %s164 = ssub.s32 %s9, 1
      %s165 = smul.u32 26, %s19
      %p166 = scmp.lt.s32.totalorder %s18, 1
      %s167 = scalar_select %p166, %s18, 1
      %p168 = scmp.lt.s32.totalorder %s165, 51
      %s169 = scalar_select %p168, %s165, 51
      %s170 = smul.addr %s169, 14
      %s171 = smul.addr %s167, 728
      %s172 = sadd.s32 %s170, %s171
      %s173 = smul.addr %s172, 4
      %s174 = scalar_lea.vmem %s0, %s173
      %p175 = pneg %p49
      %p176 = pneg %p46
      %p177 = pneg %p70
      %p178 = pneg %p67
      %p179 = pneg %p91
      %p180 = pneg %p88
      %p181 = pneg %p119
      %p182 = pneg %p116
      %s183 = smul.u32 13, %s19
      %p184 = scmp.lt.s32.totalorder %s18, 1
      %s185 = scalar_select %p184, %s18, 1
      %p186 = scmp.lt.s32.totalorder %s183, 25
      %s187 = scalar_select %p186, %s183, 25
      %s188 = smul.addr %s187, 4
      %s189 = smul.addr %s185, 104
      %s190 = sadd.s32 %s188, %s189
      %s191 = smul.addr %s190, 4
      %s192 = scalar_lea.vmem %s3, %s191
      %s193 = smul.u32 26, %s19
      %p194 = scmp.lt.s32.totalorder %s18, 1
      %s195 = scalar_select %p194, %s18, 1
      %p196 = scmp.lt.s32.totalorder %s193, 51
      %s197 = scalar_select %p196, %s193, 51
      %s198 = smul.addr %s197, 14
      %s199 = smul.addr %s195, 728
      %s200 = sadd.s32 %s198, %s199
      %s201 = smul.addr %s200, 4
      %s202 = scalar_lea.vmem %s0, %s201
      %s203 = smul.u32 26, %s19
      %s204 = smul.u32 13, %s19
      %p205 = scmp.lt.s32.totalorder %s18, 1
      %s206 = scalar_select %p205, %s18, 1
      %p207 = scmp.lt.s32.totalorder %s204, 25
      %s208 = scalar_select %p207, %s204, 25
      %s209 = smul.addr %s208, 4
      %s210 = smul.addr %s206, 104
      %s211 = sadd.s32 %s209, %s210
      %s212 = smul.addr %s211, 4
      %s213 = scalar_lea.vmem %s3, %s212
      %s214 = smul.u32 13, %s19
      %v216 = vld [vmem:[%s2] sm:$0x1]
      loop: start=0, step=1, limit=13
      $region33: #{convnet_forward.8} parent=31 // loop_pre_header
        _
      $region34: #{convnet_forward.8} parent=31 // loop_header
        %s218 = sphi 0, %s222
        %p219 = scmp.ge.s32.totalorder %s218, 13
      $region35: #{convnet_forward.8} parent=31 // loop_header_branch
        %221 = sbr.rel (%p219) target = $region39
      $region36: #{convnet_forward.8} parent=31 // loop_body
        %s223 = smul.u32 %s218, 2
        %s224 = smul.u32 %s223, 14
        %s225 = smul.addr %s224, 4
        %s226 = scalar_lea.vmem %s202, %s225
        %v227 = vld [vmem:[%s226] sm:$0xff]
        %v228 = vld [vmem:[%s226 + $0x8] sm:$0xff]
        %v229 = vld [vmem:[%s226 + $0x10] sm:$0xff]
        %v230 = vld [vmem:[%s226 + $0x18] sm:$0xff]
        %v231 = vld [vmem:[%s226 + $0x20] sm:$0xff]
        %v232 = vld [vmem:[%s226 + $0x28] sm:$0xff]
        %v233 = vld [vmem:[%s226 + $0x30] sm:$0x77]
        %v234 = vld [vmem:[%s1] sm:$0xf]
        %v235 = vld [vmem:[%s1 + $0x4] sm:$0xf]
        %v236 = vld [vmem:[%s1 + $0x8] sm:$0xf]
        %v237 = vld [vmem:[%s1 + $0xc] sm:$0xf]
        %v238 = vld [vmem:[%s1 + $0x10] sm:$0xf]
        %v239 = vld [vmem:[%s1 + $0x14] sm:$0xf]
        %v240 = vld [vmem:[%s1 + $0x18] sm:$0xf]
        %v241 = vld [vmem:[%s1 + $0x1c] sm:$0xf]
        %v242 = vld [vmem:[%s1 + $0x20] sm:$0xf]
        %v243 = vld [vmem:[%s1 + $0x24] sm:$0xf]
        %v244 = vld [vmem:[%s1 + $0x28] sm:$0xf]
        %v245 = vld [vmem:[%s1 + $0x2c] sm:$0xf]
        %v246 = vld [vmem:[%s1 + $0x30] sm:$0xf]
        %v247 = vld [vmem:[%s1 + $0x34] sm:$0xf]
        %v248 = vld [vmem:[%s1 + $0x38] sm:$0xf]
        %v249 = vld [vmem:[%s1 + $0x3c] sm:$0xf]
        %v250 = vld [vmem:[%s1 + $0x40] sm:$0xf]
        %v251 = vld [vmem:[%s1 + $0x44] sm:$0xf]
        %v252 = vld [vmem:[%s1 + $0x48] sm:$0xf]
        %v253 = vld [vmem:[%s1 + $0x4c] sm:$0xf]
        %v254 = vld [vmem:[%s1 + $0x50] sm:$0xf]
        %v255 = vld [vmem:[%s1 + $0x54] sm:$0xf]
        %v256 = vld [vmem:[%s1 + $0x58] sm:$0xf]
        %v257 = vld [vmem:[%s1 + $0x5c] sm:$0xf]
        %s258 = scalar_lea.vmem %s1, 96
        %v259 = vld [vmem:[%s258] sm:$0xf]
        %v260 = vld [vmem:[%s258 + $0x4] sm:$0xf]
        %v261 = vld [vmem:[%s258 + $0x8] sm:$0xf]
        %v262 = vld [vmem:[%s258 + $0xc] sm:$0xf]
        %v263 = vld [vmem:[%s258 + $0x10] sm:$0xf]
        %v264 = vld [vmem:[%s258 + $0x14] sm:$0xf]
        %v265 = vld [vmem:[%s258 + $0x18] sm:$0xf]
        %v266 = vld [vmem:[%s258 + $0x1c] sm:$0xf]
        %v267 = vld [vmem:[%s258 + $0x20] sm:$0xf]
        %v268 = vld [vmem:[%s258 + $0x24] sm:$0xf]
        %v269 = vld [vmem:[%s258 + $0x28] sm:$0xf]
        %v270 = vld [vmem:[%s258 + $0x2c] sm:$0xf]
        %v271 = vld [vmem:[%s258 + $0x30] sm:$0xf]
        %v272 = vld [vmem:[%s258 + $0x34] sm:$0xf]
        %v273 = vld [vmem:[%s258 + $0x38] sm:$0xf]
        %v274 = vld [vmem:[%s258 + $0x3c] sm:$0xf]
        %v275 = vld [vmem:[%s258 + $0x40] sm:$0xf]
        %v276 = vld [vmem:[%s258 + $0x44] sm:$0xf]
        %v277 = vld [vmem:[%s258 + $0x48] sm:$0xf]
        %v278 = vld [vmem:[%s258 + $0x4c] sm:$0xf]
        %v279 = vld [vmem:[%s258 + $0x50] sm:$0xf]
        %v280 = vld [vmem:[%s258 + $0x54] sm:$0xf]
        %v281 = vld [vmem:[%s258 + $0x58] sm:$0xf]
        %v282 = vld [vmem:[%s258 + $0x5c] sm:$0xf]
        %v290 = vunpack.c.l.b16 %v227
        %v291 = vunpack.c.h.b16 %v227
        %v292 = vunpack.c.l.b16 %v228
        %v293 = vunpack.c.h.b16 %v228
        %v294 = vunpack.c.l.b16 %v229
        %v295 = vunpack.c.h.b16 %v229
        %v296 = vunpack.c.l.b16 %v230
        %v297 = vunpack.c.h.b16 %v230
        %v298 = vunpack.c.l.b16 %v231
        %v299 = vunpack.c.h.b16 %v231
        %v300 = vunpack.c.l.b16 %v232
        %v301 = vunpack.c.h.b16 %v232
        %v302 = vunpack.c.l.b16 %v233
        %v303 = vunpack.c.h.b16 %v233
        %v304 = vpack.c.b16 %v292, %v290
        %v305 = vpack.c.b16 %v293, %v291
        %v306 = vpack.c.b16 %v296, %v294
        %v307 = vpack.c.b16 %v297, %v295
        %v308 = vpack.c.b16 %v300, %v298
        %v309 = vpack.c.b16 %v301, %v299
        %v310 = vpack.c.b16 %v302, %v302
        %v311 = vpack.c.b16 %v303, %v303
        %vm312 = vsmask.f32 7424
        %v314 = vshrl.u32 %v304, 16
        %v316 = vshll.u32 %v304, 16
        %v318 = vrot.slane %v316, 1
        %v319 = vor.u32 %v314, %v318
        %v321 = vshll.u32 %v306, 16
        %v323 = vrot.slane %v321, 1
        %v324 = vsel %vm312, %v319, %v323
        %v326 = vshrl.u32 %v305, 16
        %v328 = vshll.u32 %v305, 16
        %v330 = vrot.slane %v328, 1
        %v331 = vor.u32 %v326, %v330
        %v333 = vshll.u32 %v307, 16
        %v335 = vrot.slane %v333, 1
        %v336 = vsel %vm312, %v331, %v335
        %v337 = vshrl.u32 %v306, 16
        %v339 = vor.u32 %v337, %v323
        %v341 = vshll.u32 %v308, 16
        %v343 = vrot.slane %v341, 1
        %v344 = vsel %vm312, %v339, %v343
        %v345 = vshrl.u32 %v307, 16
        %v347 = vor.u32 %v345, %v335
        %v349 = vshll.u32 %v309, 16
        %v351 = vrot.slane %v349, 1
        %v352 = vsel %vm312, %v347, %v351
        %v353 = vshrl.u32 %v308, 16
        %v355 = vor.u32 %v353, %v343
        %v357 = vshll.u32 %v310, 16
        %v359 = vrot.slane %v357, 1
        %v360 = vsel %vm312, %v355, %v359
        %v361 = vshrl.u32 %v309, 16
        %v363 = vor.u32 %v361, %v351
        %v365 = vshll.u32 %v311, 16
        %v367 = vrot.slane %v365, 1
        %v368 = vsel %vm312, %v363, %v367
        %v369 = vshrl.u32 %v310, 16
        %v371 = vor.u32 %v369, %v359
        %v372 = vshrl.u32 %v311, 16
        %v374 = vor.u32 %v372, %v367
        %v403 = vunpack.c.l.b16 %v259
        %v404 = vunpack.c.l.b16 %v260
        %v405 = vunpack.c.l.b16 %v261
        %v406 = vunpack.c.l.b16 %v262
        %v407 = vunpack.c.l.b16 %v263
        %v408 = vunpack.c.l.b16 %v264
        %v409 = vunpack.c.l.b16 %v265
        %v410 = vunpack.c.l.b16 %v266
        %v411 = vunpack.c.l.b16 %v267
        %v412 = vunpack.c.l.b16 %v268
        %v413 = vunpack.c.l.b16 %v269
        %v414 = vunpack.c.l.b16 %v270
        %v415 = vunpack.c.l.b16 %v271
        %v416 = vunpack.c.l.b16 %v272
        %v417 = vunpack.c.l.b16 %v273
        %v418 = vunpack.c.l.b16 %v274
        %v419 = vunpack.c.l.b16 %v275
        %v420 = vunpack.c.l.b16 %v276
        %v421 = vunpack.c.l.b16 %v277
        %v422 = vunpack.c.l.b16 %v278
        %v423 = vunpack.c.l.b16 %v279
        %v424 = vunpack.c.l.b16 %v280
        %v425 = vunpack.c.l.b16 %v281
        %v426 = vunpack.c.l.b16 %v282
        %v427 = vpack.c.b16 %v404, %v403
        %v428 = vpack.c.b16 %v406, %v405
        %v429 = vpack.c.b16 %v408, %v407
        %v430 = vpack.c.b16 %v410, %v409
        %v431 = vpack.c.b16 %v412, %v411
        %v432 = vpack.c.b16 %v414, %v413
        %v433 = vpack.c.b16 %v416, %v415
        %v434 = vpack.c.b16 %v418, %v417
        %v435 = vpack.c.b16 %v420, %v419
        %v436 = vpack.c.b16 %v422, %v421
        %v437 = vpack.c.b16 %v424, %v423
        %v438 = vpack.c.b16 %v426, %v425
        %vm451 = vcmask 523264
        %v453 = vsel %vm451, %v336, 0
        %v456 = vsel %vm451, %v352, 0
        %v459 = vsel %vm451, %v368, 0
        %v462 = vsel %vm451, %v374, 0
        %464 = vmatprep.subr.bf16.mxu0 0
        %465 = vmatpush1.bf16.msra.mxu0 %v427
        %466 = vmatprep.subr.bf16.mxu0 0
        %467 = vmatpush1.bf16.msra.mxu0 %v428
        %468 = vmatprep.subr.bf16.mxu0 0
        %469 = vmatpush1.bf16.msra.mxu0 %v429
        %470 = vmatprep.subr.bf16.mxu0 0
        %471 = vmatpush1.bf16.msra.mxu0 %v430
        %472 = vmatprep.subr.bf16.mxu0 0
        %473 = vmatpush1.bf16.msra.mxu0 %v431
        %474 = vmatprep.subr.bf16.mxu0 0
        %475 = vmatpush1.bf16.msra.mxu0 %v432
        %476 = vmatprep.subr.bf16.mxu0 0
        %477 = vmatpush1.bf16.msra.mxu0 %v433
        %478 = vmatprep.subr.bf16.mxu0 0
        %479 = vmatpush1.bf16.msra.mxu0 %v434
        %480 = vmatprep.subr.bf16.mxu0 0
        %481 = vmatpush1.bf16.msra.mxu0 %v435
        %482 = vmatprep.subr.bf16.mxu0 0
        %483 = vmatpush1.bf16.msra.mxu0 %v436
        %484 = vmatprep.subr.bf16.mxu0 0
        %485 = vmatpush1.bf16.msra.mxu0 %v437
        %486 = vmatprep.subr.bf16.mxu0 0
        %487 = vmatpush1.bf16.msra.mxu0 %v438
        %488 = vmatprep.subr.bf16.mxu0 0
        %489 = vmatpush1.bf16.msra.mxu0 0
        %490 = vmatprep.subr.bf16.mxu0 0
        %491 = vmatpush1.bf16.msra.mxu0 0
        %492 = vmatprep.subr.bf16.mxu0 0
        %493 = vmatpush1.bf16.msra.mxu0 0
        %494 = vmatprep.subr.bf16.mxu0 0
        %495 = vmatpush1.bf16.msra.mxu0 0
        %496 = vmatprep.mubr.bf16.mxu0 %v453
        %497 = vmatmul.mubr.bf16.gmra.mrb[0].mxu0 %v324
        %v498 = vpop.f32.mrb[0].mxu0
        %v499 = vadd.f32 0.0, %v498
        %v500 = vpop.f32.mrb[0].mxu0
        %v501 = vpop.f32.mrb[0].mxu0
        %v502 = vadd.f32 0.0, %v501
        %v503 = vpop.f32.mrb[0].mxu0
        %504 = vmatprep.mubr.bf16.mxu0 %v456
        %505 = vmatmul.mubr.bf16.gmra.mrb[0].mxu0 %v344
        %v506 = vpop.f32.mrb[0].mxu0
        %v507 = vadd.f32 0.0, %v506
        %v508 = vpop.f32.mrb[0].mxu0
        %v509 = vpop.f32.mrb[0].mxu0
        %v510 = vadd.f32 0.0, %v509
        %v511 = vpop.f32.mrb[0].mxu0
        %512 = vmatprep.mubr.bf16.mxu0 %v459
        %513 = vmatmul.mubr.bf16.gmra.mrb[0].mxu0 %v360
        %v514 = vpop.f32.mrb[0].mxu0
        %v515 = vadd.f32 0.0, %v514
        %v516 = vpop.f32.mrb[0].mxu0
        %v517 = vpop.f32.mrb[0].mxu0
        %v518 = vadd.f32 0.0, %v517
        %v519 = vpop.f32.mrb[0].mxu0
        %520 = vmatprep.mubr.bf16.mxu0 %v462
        %521 = vmatmul.mubr.bf16.gmra.mrb[0].mxu0 %v371
        %v522 = vpop.f32.mrb[0].mxu0
        %v523 = vadd.f32 0.0, %v522
        %v524 = vpop.f32.mrb[0].mxu0
        %v525 = vpop.f32.mrb[0].mxu0
        %v526 = vpop.f32.mrb[0].mxu0
        %527 = vdwg.mxu0
        %v556 = vunpack.c.l.b16 %v234
        %v557 = vunpack.c.l.b16 %v235
        %v558 = vunpack.c.l.b16 %v236
        %v559 = vunpack.c.l.b16 %v237
        %v560 = vunpack.c.l.b16 %v238
        %v561 = vunpack.c.l.b16 %v239
        %v562 = vunpack.c.l.b16 %v240
        %v563 = vunpack.c.l.b16 %v241
        %v564 = vunpack.c.l.b16 %v242
        %v565 = vunpack.c.l.b16 %v243
        %v566 = vunpack.c.l.b16 %v244
        %v567 = vunpack.c.l.b16 %v245
        %v568 = vunpack.c.l.b16 %v246
        %v569 = vunpack.c.l.b16 %v247
        %v570 = vunpack.c.l.b16 %v248
        %v571 = vunpack.c.l.b16 %v249
        %v572 = vunpack.c.l.b16 %v250
        %v573 = vunpack.c.l.b16 %v251
        %v574 = vunpack.c.l.b16 %v252
        %v575 = vunpack.c.l.b16 %v253
        %v576 = vunpack.c.l.b16 %v254
        %v577 = vunpack.c.l.b16 %v255
        %v578 = vunpack.c.l.b16 %v256
        %v579 = vunpack.c.l.b16 %v257
        %v580 = vpack.c.b16 %v557, %v556
        %v581 = vpack.c.b16 %v559, %v558
        %v582 = vpack.c.b16 %v561, %v560
        %v583 = vpack.c.b16 %v563, %v562
        %v584 = vpack.c.b16 %v565, %v564
        %v585 = vpack.c.b16 %v567, %v566
        %v586 = vpack.c.b16 %v569, %v568
        %v587 = vpack.c.b16 %v571, %v570
        %v588 = vpack.c.b16 %v573, %v572
        %v589 = vpack.c.b16 %v575, %v574
        %v590 = vpack.c.b16 %v577, %v576
        %v591 = vpack.c.b16 %v579, %v578
        %v604 = vsel %vm451, %v305, 0
        %v606 = vsel %vm451, %v307, 0
        %v608 = vsel %vm451, %v309, 0
        %v610 = vsel %vm451, %v311, 0
        %612 = vmatprep.subr.bf16.mxu0 0
        %613 = vmatpush1.bf16.msra.mxu0 %v580
        %614 = vmatprep.subr.bf16.mxu0 0
        %615 = vmatpush1.bf16.msra.mxu0 %v581
        %616 = vmatprep.subr.bf16.mxu0 0
        %617 = vmatpush1.bf16.msra.mxu0 %v582
        %618 = vmatprep.subr.bf16.mxu0 0
        %619 = vmatpush1.bf16.msra.mxu0 %v583
        %620 = vmatprep.subr.bf16.mxu0 0
        %621 = vmatpush1.bf16.msra.mxu0 %v584
        %622 = vmatprep.subr.bf16.mxu0 0
        %623 = vmatpush1.bf16.msra.mxu0 %v585
        %624 = vmatprep.subr.bf16.mxu0 0
        %625 = vmatpush1.bf16.msra.mxu0 %v586
        %626 = vmatprep.subr.bf16.mxu0 0
        %627 = vmatpush1.bf16.msra.mxu0 %v587
        %628 = vmatprep.subr.bf16.mxu0 0
        %629 = vmatpush1.bf16.msra.mxu0 %v588
        %630 = vmatprep.subr.bf16.mxu0 0
        %631 = vmatpush1.bf16.msra.mxu0 %v589
        %632 = vmatprep.subr.bf16.mxu0 0
        %633 = vmatpush1.bf16.msra.mxu0 %v590
        %634 = vmatprep.subr.bf16.mxu0 0
        %635 = vmatpush1.bf16.msra.mxu0 %v591
        %636 = vmatprep.subr.bf16.mxu0 0
        %637 = vmatpush1.bf16.msra.mxu0 0
        %638 = vmatprep.subr.bf16.mxu0 0
        %639 = vmatpush1.bf16.msra.mxu0 0
        %640 = vmatprep.subr.bf16.mxu0 0
        %641 = vmatpush1.bf16.msra.mxu0 0
        %642 = vmatprep.subr.bf16.mxu0 0
        %643 = vmatpush1.bf16.msra.mxu0 0
        %644 = vmatprep.mubr.bf16.mxu0 %v604
        %645 = vmatmul.mubr.bf16.gmra.mrb[0].mxu0 %v304
        %v646 = vpop.f32.mrb[0].mxu0
        %v647 = vadd.f32 %v499, %v646
        %v648 = vpop.f32.mrb[0].mxu0
        %v649 = vpop.f32.mrb[0].mxu0
        %v650 = vadd.f32 %v502, %v649
        %v651 = vpop.f32.mrb[0].mxu0
        %652 = vmatprep.mubr.bf16.mxu0 %v606
        %653 = vmatmul.mubr.bf16.gmra.mrb[0].mxu0 %v306
        %v654 = vpop.f32.mrb[0].mxu0
        %v655 = vadd.f32 %v507, %v654
        %v656 = vpop.f32.mrb[0].mxu0
        %v657 = vpop.f32.mrb[0].mxu0
        %v658 = vadd.f32 %v510, %v657
        %v659 = vpop.f32.mrb[0].mxu0
        %660 = vmatprep.mubr.bf16.mxu0 %v608
        %661 = vmatmul.mubr.bf16.gmra.mrb[0].mxu0 %v308
        %v662 = vpop.f32.mrb[0].mxu0
        %v663 = vadd.f32 %v515, %v662
        %v664 = vpop.f32.mrb[0].mxu0
        %v665 = vpop.f32.mrb[0].mxu0
        %v666 = vadd.f32 %v518, %v665
        %v667 = vpop.f32.mrb[0].mxu0
        %668 = vmatprep.mubr.bf16.mxu0 %v610
        %669 = vmatmul.mubr.bf16.gmra.mrb[0].mxu0 %v310
        %v670 = vpop.f32.mrb[0].mxu0
        %v671 = vadd.f32 %v523, %v670
        %v672 = vpop.f32.mrb[0].mxu0
        %v673 = vpop.f32.mrb[0].mxu0
        %v674 = vpop.f32.mrb[0].mxu0
        %675 = vdwg.mxu0
        %s676 = scalar_lea.vmem %s1, 192
        %v677 = vld [vmem:[%s676] sm:$0xf]
        %v678 = vld [vmem:[%s676 + $0x4] sm:$0xf]
        %v679 = vld [vmem:[%s676 + $0x8] sm:$0xf]
        %v680 = vld [vmem:[%s676 + $0xc] sm:$0xf]
        %v681 = vld [vmem:[%s676 + $0x10] sm:$0xf]
        %v682 = vld [vmem:[%s676 + $0x14] sm:$0xf]
        %v683 = vld [vmem:[%s676 + $0x18] sm:$0xf]
        %v684 = vld [vmem:[%s676 + $0x1c] sm:$0xf]
        %v685 = vld [vmem:[%s676 + $0x20] sm:$0xf]
        %v686 = vld [vmem:[%s676 + $0x24] sm:$0xf]
        %v687 = vld [vmem:[%s676 + $0x28] sm:$0xf]
        %v688 = vld [vmem:[%s676 + $0x2c] sm:$0xf]
        %v689 = vld [vmem:[%s676 + $0x30] sm:$0xf]
        %v690 = vld [vmem:[%s676 + $0x34] sm:$0xf]
        %v691 = vld [vmem:[%s676 + $0x38] sm:$0xf]
        %v692 = vld [vmem:[%s676 + $0x3c] sm:$0xf]
        %v693 = vld [vmem:[%s676 + $0x40] sm:$0xf]
        %v694 = vld [vmem:[%s676 + $0x44] sm:$0xf]
        %v695 = vld [vmem:[%s676 + $0x48] sm:$0xf]
        %v696 = vld [vmem:[%s676 + $0x4c] sm:$0xf]
        %v697 = vld [vmem:[%s676 + $0x50] sm:$0xf]
        %v698 = vld [vmem:[%s676 + $0x54] sm:$0xf]
        %v699 = vld [vmem:[%s676 + $0x58] sm:$0xf]
        %v700 = vld [vmem:[%s676 + $0x5c] sm:$0xf]
        %vm701 = vcmask 1046528
        %v702 = vrot.slane %v304, 1
        %v703 = vrot.slane %v306, 1
        %v704 = vsel %vm701, %v702, %v703
        %v705 = vrot.slane %v305, 1
        %v706 = vrot.slane %v307, 1
        %v707 = vsel %vm701, %v705, %v706
        %v708 = vrot.slane %v308, 1
        %v709 = vsel %vm701, %v703, %v708
        %v710 = vrot.slane %v309, 1
        %v711 = vsel %vm701, %v706, %v710
        %v712 = vrot.slane %v310, 1
        %v713 = vsel %vm701, %v708, %v712
        %v714 = vrot.slane %v311, 1
        %v715 = vsel %vm701, %v710, %v714
        %v744 = vunpack.c.l.b16 %v677
        %v745 = vunpack.c.l.b16 %v678
        %v746 = vunpack.c.l.b16 %v679
        %v747 = vunpack.c.l.b16 %v680
        %v748 = vunpack.c.l.b16 %v681
        %v749 = vunpack.c.l.b16 %v682
        %v750 = vunpack.c.l.b16 %v683
        %v751 = vunpack.c.l.b16 %v684
        %v752 = vunpack.c.l.b16 %v685
        %v753 = vunpack.c.l.b16 %v686
        %v754 = vunpack.c.l.b16 %v687
        %v755 = vunpack.c.l.b16 %v688
        %v756 = vunpack.c.l.b16 %v689
        %v757 = vunpack.c.l.b16 %v690
        %v758 = vunpack.c.l.b16 %v691
        %v759 = vunpack.c.l.b16 %v692
        %v760 = vunpack.c.l.b16 %v693
        %v761 = vunpack.c.l.b16 %v694
        %v762 = vunpack.c.l.b16 %v695
        %v763 = vunpack.c.l.b16 %v696
        %v764 = vunpack.c.l.b16 %v697
        %v765 = vunpack.c.l.b16 %v698
        %v766 = vunpack.c.l.b16 %v699
        %v767 = vunpack.c.l.b16 %v700
        %v768 = vpack.c.b16 %v745, %v744
        %v769 = vpack.c.b16 %v747, %v746
        %v770 = vpack.c.b16 %v749, %v748
        %v771 = vpack.c.b16 %v751, %v750
        %v772 = vpack.c.b16 %v753, %v752
        %v773 = vpack.c.b16 %v755, %v754
        %v774 = vpack.c.b16 %v757, %v756
        %v775 = vpack.c.b16 %v759, %v758
        %v776 = vpack.c.b16 %v761, %v760
        %v777 = vpack.c.b16 %v763, %v762
        %v778 = vpack.c.b16 %v765, %v764
        %v779 = vpack.c.b16 %v767, %v766
        %v793 = vsel %vm451, %v707, 0
        %v796 = vsel %vm451, %v711, 0
        %v799 = vsel %vm451, %v715, 0
        %v802 = vsel %vm451, %v714, 0
        %804 = vmatprep.subr.bf16.mxu0 0
        %805 = vmatpush1.bf16.msra.mxu0 %v768
        %806 = vmatprep.subr.bf16.mxu0 0
        %807 = vmatpush1.bf16.msra.mxu0 %v769
        %808 = vmatprep.subr.bf16.mxu0 0
        %809 = vmatpush1.bf16.msra.mxu0 %v770
        %810 = vmatprep.subr.bf16.mxu0 0
        %811 = vmatpush1.bf16.msra.mxu0 %v771
        %812 = vmatprep.subr.bf16.mxu0 0
        %813 = vmatpush1.bf16.msra.mxu0 %v772
        %814 = vmatprep.subr.bf16.mxu0 0
        %815 = vmatpush1.bf16.msra.mxu0 %v773
        %816 = vmatprep.subr.bf16.mxu0 0
        %817 = vmatpush1.bf16.msra.mxu0 %v774
        %818 = vmatprep.subr.bf16.mxu0 0
        %819 = vmatpush1.bf16.msra.mxu0 %v775
        %820 = vmatprep.subr.bf16.mxu0 0
        %821 = vmatpush1.bf16.msra.mxu0 %v776
        %822 = vmatprep.subr.bf16.mxu0 0
        %823 = vmatpush1.bf16.msra.mxu0 %v777
        %824 = vmatprep.subr.bf16.mxu0 0
        %825 = vmatpush1.bf16.msra.mxu0 %v778
        %826 = vmatprep.subr.bf16.mxu0 0
        %827 = vmatpush1.bf16.msra.mxu0 %v779
        %828 = vmatprep.subr.bf16.mxu0 0
        %829 = vmatpush1.bf16.msra.mxu0 0
        %830 = vmatprep.subr.bf16.mxu0 0
        %831 = vmatpush1.bf16.msra.mxu0 0
        %832 = vmatprep.subr.bf16.mxu0 0
        %833 = vmatpush1.bf16.msra.mxu0 0
        %834 = vmatprep.subr.bf16.mxu0 0
        %835 = vmatpush1.bf16.msra.mxu0 0
        %836 = vmatprep.mubr.bf16.mxu0 %v793
        %837 = vmatmul.mubr.bf16.gmra.mrb[0].mxu0 %v704
        %v838 = vpop.f32.mrb[0].mxu0
        %v839 = vadd.f32 0.0, %v838
        %v840 = vpop.f32.mrb[0].mxu0
        %v841 = vpop.f32.mrb[0].mxu0
        %v842 = vadd.f32 0.0, %v841
        %v843 = vpop.f32.mrb[0].mxu0
        %844 = vmatprep.mubr.bf16.mxu0 %v796
        %845 = vmatmul.mubr.bf16.gmra.mrb[0].mxu0 %v709
        %v846 = vpop.f32.mrb[0].mxu0
        %v847 = vadd.f32 0.0, %v846
        %v848 = vpop.f32.mrb[0].mxu0
        %v849 = vpop.f32.mrb[0].mxu0
        %v850 = vadd.f32 0.0, %v849
        %v851 = vpop.f32.mrb[0].mxu0
        %852 = vmatprep.mubr.bf16.mxu0 %v799
        %853 = vmatmul.mubr.bf16.gmra.mrb[0].mxu0 %v713
        %v854 = vpop.f32.mrb[0].mxu0
        %v855 = vadd.f32 0.0, %v854
        %v856 = vpop.f32.mrb[0].mxu0
        %v857 = vpop.f32.mrb[0].mxu0
        %v858 = vadd.f32 0.0, %v857
        %v859 = vpop.f32.mrb[0].mxu0
        %860 = vmatprep.mubr.bf16.mxu0 %v802
        %861 = vmatmul.mubr.bf16.gmra.mrb[0].mxu0 %v712
        %v862 = vpop.f32.mrb[0].mxu0
        %v863 = vadd.f32 0.0, %v862
        %v864 = vpop.f32.mrb[0].mxu0
        %v865 = vpop.f32.mrb[0].mxu0
        %v866 = vpop.f32.mrb[0].mxu0
        %867 = vdwg.mxu0
        %v868 = vadd.f32 %v647, %v839
        %v869 = vadd.f32 %v650, %v842
        %v870 = vadd.f32 %v655, %v847
        %v871 = vadd.f32 %v658, %v850
        %v872 = vadd.f32 %v663, %v855
        %v873 = vadd.f32 %v666, %v858
        %v874 = vadd.f32 %v671, %v863
        %875 = vst [vmem:[#allocation2] sm:$0xff] %v868
        %876 = vst [vmem:[#allocation2 + $0x8] sm:$0xff] %v869
        %877 = vst [vmem:[#allocation2 + $0x10] sm:$0xff] %v870
        %878 = vst [vmem:[#allocation2 + $0x18] sm:$0xff] %v871
        %879 = vst [vmem:[#allocation2 + $0x20] sm:$0xff] %v872
        %880 = vst [vmem:[#allocation2 + $0x28] sm:$0xff] %v873
        %881 = vst [vmem:[#allocation2 + $0x30] sm:$0xf] %v874
        %s882 = sadd.s32 %s223, 1
        %s883 = smul.u32 %s882, 14
        %s884 = smul.addr %s883, 4
        %s885 = scalar_lea.vmem %s202, %s884
        %v886 = vld [vmem:[%s885] sm:$0xff]
        %v887 = vld [vmem:[%s885 + $0x8] sm:$0xff]
        %v888 = vld [vmem:[%s885 + $0x10] sm:$0xff]
        %v889 = vld [vmem:[%s885 + $0x18] sm:$0xff]
        %v890 = vld [vmem:[%s885 + $0x20] sm:$0xff]
        %v891 = vld [vmem:[%s885 + $0x28] sm:$0xff]
        %v892 = vld [vmem:[%s885 + $0x30] sm:$0x77]
        %v893 = vld [vmem:[%s1] sm:$0xf]
        %v894 = vld [vmem:[%s1 + $0x4] sm:$0xf]
        %v895 = vld [vmem:[%s1 + $0x8] sm:$0xf]
        %v896 = vld [vmem:[%s1 + $0xc] sm:$0xf]
        %v897 = vld [vmem:[%s1 + $0x10] sm:$0xf]
        %v898 = vld [vmem:[%s1 + $0x14] sm:$0xf]
        %v899 = vld [vmem:[%s1 + $0x18] sm:$0xf]
        %v900 = vld [vmem:[%s1 + $0x1c] sm:$0xf]
        %v901 = vld [vmem:[%s1 + $0x20] sm:$0xf]
        %v902 = vld [vmem:[%s1 + $0x24] sm:$0xf]
        %v903 = vld [vmem:[%s1 + $0x28] sm:$0xf]
        %v904 = vld [vmem:[%s1 + $0x2c] sm:$0xf]
        %v905 = vld [vmem:[%s1 + $0x30] sm:$0xf]
        %v906 = vld [vmem:[%s1 + $0x34] sm:$0xf]
        %v907 = vld [vmem:[%s1 + $0x38] sm:$0xf]
        %v908 = vld [vmem:[%s1 + $0x3c] sm:$0xf]
        %v909 = vld [vmem:[%s1 + $0x40] sm:$0xf]
        %v910 = vld [vmem:[%s1 + $0x44] sm:$0xf]
        %v911 = vld [vmem:[%s1 + $0x48] sm:$0xf]
        %v912 = vld [vmem:[%s1 + $0x4c] sm:$0xf]
        %v913 = vld [vmem:[%s1 + $0x50] sm:$0xf]
        %v914 = vld [vmem:[%s1 + $0x54] sm:$0xf]
        %v915 = vld [vmem:[%s1 + $0x58] sm:$0xf]
        %v916 = vld [vmem:[%s1 + $0x5c] sm:$0xf]
        %v917 = vld [vmem:[%s258] sm:$0xf]
        %v918 = vld [vmem:[%s258 + $0x4] sm:$0xf]
        %v919 = vld [vmem:[%s258 + $0x8] sm:$0xf]
        %v920 = vld [vmem:[%s258 + $0xc] sm:$0xf]
        %v921 = vld [vmem:[%s258 + $0x10] sm:$0xf]
        %v922 = vld [vmem:[%s258 + $0x14] sm:$0xf]
        %v923 = vld [vmem:[%s258 + $0x18] sm:$0xf]
        %v924 = vld [vmem:[%s258 + $0x1c] sm:$0xf]
        %v925 = vld [vmem:[%s258 + $0x20] sm:$0xf]
        %v926 = vld [vmem:[%s258 + $0x24] sm:$0xf]
        %v927 = vld [vmem:[%s258 + $0x28] sm:$0xf]
        %v928 = vld [vmem:[%s258 + $0x2c] sm:$0xf]
        %v929 = vld [vmem:[%s258 + $0x30] sm:$0xf]
        %v930 = vld [vmem:[%s258 + $0x34] sm:$0xf]
        %v931 = vld [vmem:[%s258 + $0x38] sm:$0xf]
        %v932 = vld [vmem:[%s258 + $0x3c] sm:$0xf]
        %v933 = vld [vmem:[%s258 + $0x40] sm:$0xf]
        %v934 = vld [vmem:[%s258 + $0x44] sm:$0xf]
        %v935 = vld [vmem:[%s258 + $0x48] sm:$0xf]
        %v936 = vld [vmem:[%s258 + $0x4c] sm:$0xf]
        %v937 = vld [vmem:[%s258 + $0x50] sm:$0xf]
        %v938 = vld [vmem:[%s258 + $0x54] sm:$0xf]
        %v939 = vld [vmem:[%s258 + $0x58] sm:$0xf]
        %v940 = vld [vmem:[%s258 + $0x5c] sm:$0xf]
        %v948 = vunpack.c.l.b16 %v886
        %v949 = vunpack.c.h.b16 %v886
        %v950 = vunpack.c.l.b16 %v887
        %v951 = vunpack.c.h.b16 %v887
        %v952 = vunpack.c.l.b16 %v888
        %v953 = vunpack.c.h.b16 %v888
        %v954 = vunpack.c.l.b16 %v889
        %v955 = vunpack.c.h.b16 %v889
        %v956 = vunpack.c.l.b16 %v890
        %v957 = vunpack.c.h.b16 %v890
        %v958 = vunpack.c.l.b16 %v891
        %v959 = vunpack.c.h.b16 %v891
        %v960 = vunpack.c.l.b16 %v892
        %v961 = vunpack.c.h.b16 %v892
        %v962 = vpack.c.b16 %v950, %v948
        %v963 = vpack.c.b16 %v951, %v949
        %v964 = vpack.c.b16 %v954, %v952
        %v965 = vpack.c.b16 %v955, %v953
        %v966 = vpack.c.b16 %v958, %v956
        %v967 = vpack.c.b16 %v959, %v957
        %v968 = vpack.c.b16 %v960, %v960
        %v969 = vpack.c.b16 %v961, %v961
        %v971 = vshrl.u32 %v962, 16
        %v973 = vshll.u32 %v962, 16
        %v975 = vrot.slane %v973, 1
        %v976 = vor.u32 %v971, %v975
        %v978 = vshll.u32 %v964, 16
        %v980 = vrot.slane %v978, 1
        %v981 = vsel %vm312, %v976, %v980
        %v983 = vshrl.u32 %v963, 16
        %v985 = vshll.u32 %v963, 16
        %v987 = vrot.slane %v985, 1
        %v988 = vor.u32 %v983, %v987
        %v990 = vshll.u32 %v965, 16
        %v992 = vrot.slane %v990, 1
        %v993 = vsel %vm312, %v988, %v992
        %v994 = vshrl.u32 %v964, 16
        %v996 = vor.u32 %v994, %v980
        %v998 = vshll.u32 %v966, 16
        %v1000 = vrot.slane %v998, 1
        %v1001 = vsel %vm312, %v996, %v1000
        %v1002 = vshrl.u32 %v965, 16
        %v1004 = vor.u32 %v1002, %v992
        %v1006 = vshll.u32 %v967, 16
        %v1008 = vrot.slane %v1006, 1
        %v1009 = vsel %vm312, %v1004, %v1008
        %v1010 = vshrl.u32 %v966, 16
        %v1012 = vor.u32 %v1010, %v1000
        %v1014 = vshll.u32 %v968, 16
        %v1016 = vrot.slane %v1014, 1
        %v1017 = vsel %vm312, %v1012, %v1016
        %v1018 = vshrl.u32 %v967, 16
        %v1020 = vor.u32 %v1018, %v1008
        %v1022 = vshll.u32 %v969, 16
        %v1024 = vrot.slane %v1022, 1
        %v1025 = vsel %vm312, %v1020, %v1024
        %v1026 = vshrl.u32 %v968, 16
        %v1028 = vor.u32 %v1026, %v1016
        %v1029 = vshrl.u32 %v969, 16
        %v1031 = vor.u32 %v1029, %v1024
        %v1060 = vunpack.c.l.b16 %v917
        %v1061 = vunpack.c.l.b16 %v918
        %v1062 = vunpack.c.l.b16 %v919
        %v1063 = vunpack.c.l.b16 %v920
        %v1064 = vunpack.c.l.b16 %v921
        %v1065 = vunpack.c.l.b16 %v922
        %v1066 = vunpack.c.l.b16 %v923
        %v1067 = vunpack.c.l.b16 %v924
        %v1068 = vunpack.c.l.b16 %v925
        %v1069 = vunpack.c.l.b16 %v926
        %v1070 = vunpack.c.l.b16 %v927
        %v1071 = vunpack.c.l.b16 %v928
        %v1072 = vunpack.c.l.b16 %v929
        %v1073 = vunpack.c.l.b16 %v930
        %v1074 = vunpack.c.l.b16 %v931
        %v1075 = vunpack.c.l.b16 %v932
        %v1076 = vunpack.c.l.b16 %v933
        %v1077 = vunpack.c.l.b16 %v934
        %v1078 = vunpack.c.l.b16 %v935
        %v1079 = vunpack.c.l.b16 %v936
        %v1080 = vunpack.c.l.b16 %v937
        %v1081 = vunpack.c.l.b16 %v938
        %v1082 = vunpack.c.l.b16 %v939
        %v1083 = vunpack.c.l.b16 %v940
        %v1084 = vpack.c.b16 %v1061, %v1060
        %v1085 = vpack.c.b16 %v1063, %v1062
        %v1086 = vpack.c.b16 %v1065, %v1064
        %v1087 = vpack.c.b16 %v1067, %v1066
        %v1088 = vpack.c.b16 %v1069, %v1068
        %v1089 = vpack.c.b16 %v1071, %v1070
        %v1090 = vpack.c.b16 %v1073, %v1072
        %v1091 = vpack.c.b16 %v1075, %v1074
        %v1092 = vpack.c.b16 %v1077, %v1076
        %v1093 = vpack.c.b16 %v1079, %v1078
        %v1094 = vpack.c.b16 %v1081, %v1080
        %v1095 = vpack.c.b16 %v1083, %v1082
        %v1109 = vsel %vm451, %v993, 0
        %v1112 = vsel %vm451, %v1009, 0
        %v1115 = vsel %vm451, %v1025, 0
        %v1118 = vsel %vm451, %v1031, 0
        %1120 = vmatprep.subr.bf16.mxu0 0
        %1121 = vmatpush1.bf16.msra.mxu0 %v1084
        %1122 = vmatprep.subr.bf16.mxu0 0
        %1123 = vmatpush1.bf16.msra.mxu0 %v1085
        %1124 = vmatprep.subr.bf16.mxu0 0
        %1125 = vmatpush1.bf16.msra.mxu0 %v1086
        %1126 = vmatprep.subr.bf16.mxu0 0
        %1127 = vmatpush1.bf16.msra.mxu0 %v1087
        %1128 = vmatprep.subr.bf16.mxu0 0
        %1129 = vmatpush1.bf16.msra.mxu0 %v1088
        %1130 = vmatprep.subr.bf16.mxu0 0
        %1131 = vmatpush1.bf16.msra.mxu0 %v1089
        %1132 = vmatprep.subr.bf16.mxu0 0
        %1133 = vmatpush1.bf16.msra.mxu0 %v1090
        %1134 = vmatprep.subr.bf16.mxu0 0
        %1135 = vmatpush1.bf16.msra.mxu0 %v1091
        %1136 = vmatprep.subr.bf16.mxu0 0
        %1137 = vmatpush1.bf16.msra.mxu0 %v1092
        %1138 = vmatprep.subr.bf16.mxu0 0
        %1139 = vmatpush1.bf16.msra.mxu0 %v1093
        %1140 = vmatprep.subr.bf16.mxu0 0
        %1141 = vmatpush1.bf16.msra.mxu0 %v1094
        %1142 = vmatprep.subr.bf16.mxu0 0
        %1143 = vmatpush1.bf16.msra.mxu0 %v1095
        %1144 = vmatprep.subr.bf16.mxu0 0
        %1145 = vmatpush1.bf16.msra.mxu0 0
        %1146 = vmatprep.subr.bf16.mxu0 0
        %1147 = vmatpush1.bf16.msra.mxu0 0
        %1148 = vmatprep.subr.bf16.mxu0 0
        %1149 = vmatpush1.bf16.msra.mxu0 0
        %1150 = vmatprep.subr.bf16.mxu0 0
        %1151 = vmatpush1.bf16.msra.mxu0 0
        %1152 = vmatprep.mubr.bf16.mxu0 %v1109
        %1153 = vmatmul.mubr.bf16.gmra.mrb[0].mxu0 %v981
        %v1154 = vpop.f32.mrb[0].mxu0
        %v1155 = vadd.f32 0.0, %v1154
        %v1156 = vpop.f32.mrb[0].mxu0
        %v1157 = vpop.f32.mrb[0].mxu0
        %v1158 = vadd.f32 0.0, %v1157
        %v1159 = vpop.f32.mrb[0].mxu0
        %1160 = vmatprep.mubr.bf16.mxu0 %v1112
        %1161 = vmatmul.mubr.bf16.gmra.mrb[0].mxu0 %v1001
        %v1162 = vpop.f32.mrb[0].mxu0
        %v1163 = vadd.f32 0.0, %v1162
        %v1164 = vpop.f32.mrb[0].mxu0
        %v1165 = vpop.f32.mrb[0].mxu0
        %v1166 = vadd.f32 0.0, %v1165
        %v1167 = vpop.f32.mrb[0].mxu0
        %1168 = vmatprep.mubr.bf16.mxu0 %v1115
        %1169 = vmatmul.mubr.bf16.gmra.mrb[0].mxu0 %v1017
        %v1170 = vpop.f32.mrb[0].mxu0
        %v1171 = vadd.f32 0.0, %v1170
        %v1172 = vpop.f32.mrb[0].mxu0
        %v1173 = vpop.f32.mrb[0].mxu0
        %v1174 = vadd.f32 0.0, %v1173
        %v1175 = vpop.f32.mrb[0].mxu0
        %1176 = vmatprep.mubr.bf16.mxu0 %v1118
        %1177 = vmatmul.mubr.bf16.gmra.mrb[0].mxu0 %v1028
        %v1178 = vpop.f32.mrb[0].mxu0
        %v1179 = vadd.f32 0.0, %v1178
        %v1180 = vpop.f32.mrb[0].mxu0
        %v1181 = vpop.f32.mrb[0].mxu0
        %v1182 = vpop.f32.mrb[0].mxu0
        %1183 = vdwg.mxu0
        %v1212 = vunpack.c.l.b16 %v893
        %v1213 = vunpack.c.l.b16 %v894
        %v1214 = vunpack.c.l.b16 %v895
        %v1215 = vunpack.c.l.b16 %v896
        %v1216 = vunpack.c.l.b16 %v897
        %v1217 = vunpack.c.l.b16 %v898
        %v1218 = vunpack.c.l.b16 %v899
        %v1219 = vunpack.c.l.b16 %v900
        %v1220 = vunpack.c.l.b16 %v901
        %v1221 = vunpack.c.l.b16 %v902
        %v1222 = vunpack.c.l.b16 %v903
        %v1223 = vunpack.c.l.b16 %v904
        %v1224 = vunpack.c.l.b16 %v905
        %v1225 = vunpack.c.l.b16 %v906
        %v1226 = vunpack.c.l.b16 %v907
        %v1227 = vunpack.c.l.b16 %v908
        %v1228 = vunpack.c.l.b16 %v909
        %v1229 = vunpack.c.l.b16 %v910
        %v1230 = vunpack.c.l.b16 %v911
        %v1231 = vunpack.c.l.b16 %v912
        %v1232 = vunpack.c.l.b16 %v913
        %v1233 = vunpack.c.l.b16 %v914
        %v1234 = vunpack.c.l.b16 %v915
        %v1235 = vunpack.c.l.b16 %v916
        %v1236 = vpack.c.b16 %v1213, %v1212
        %v1237 = vpack.c.b16 %v1215, %v1214
        %v1238 = vpack.c.b16 %v1217, %v1216
        %v1239 = vpack.c.b16 %v1219, %v1218
        %v1240 = vpack.c.b16 %v1221, %v1220
        %v1241 = vpack.c.b16 %v1223, %v1222
        %v1242 = vpack.c.b16 %v1225, %v1224
        %v1243 = vpack.c.b16 %v1227, %v1226
        %v1244 = vpack.c.b16 %v1229, %v1228
        %v1245 = vpack.c.b16 %v1231, %v1230
        %v1246 = vpack.c.b16 %v1233, %v1232
        %v1247 = vpack.c.b16 %v1235, %v1234
        %v1260 = vsel %vm451, %v963, 0
        %v1262 = vsel %vm451, %v965, 0
        %v1264 = vsel %vm451, %v967, 0
        %v1266 = vsel %vm451, %v969, 0
        %1268 = vmatprep.subr.bf16.mxu0 0
        %1269 = vmatpush1.bf16.msra.mxu0 %v1236
        %1270 = vmatprep.subr.bf16.mxu0 0
        %1271 = vmatpush1.bf16.msra.mxu0 %v1237
        %1272 = vmatprep.subr.bf16.mxu0 0
        %1273 = vmatpush1.bf16.msra.mxu0 %v1238
        %1274 = vmatprep.subr.bf16.mxu0 0
        %1275 = vmatpush1.bf16.msra.mxu0 %v1239
        %1276 = vmatprep.subr.bf16.mxu0 0
        %1277 = vmatpush1.bf16.msra.mxu0 %v1240
        %1278 = vmatprep.subr.bf16.mxu0 0
        %1279 = vmatpush1.bf16.msra.mxu0 %v1241
        %1280 = vmatprep.subr.bf16.mxu0 0
        %1281 = vmatpush1.bf16.msra.mxu0 %v1242
        %1282 = vmatprep.subr.bf16.mxu0 0
        %1283 = vmatpush1.bf16.msra.mxu0 %v1243
        %1284 = vmatprep.subr.bf16.mxu0 0
        %1285 = vmatpush1.bf16.msra.mxu0 %v1244
        %1286 = vmatprep.subr.bf16.mxu0 0
        %1287 = vmatpush1.bf16.msra.mxu0 %v1245
        %1288 = vmatprep.subr.bf16.mxu0 0
        %1289 = vmatpush1.bf16.msra.mxu0 %v1246
        %1290 = vmatprep.subr.bf16.mxu0 0
        %1291 = vmatpush1.bf16.msra.mxu0 %v1247
        %1292 = vmatprep.subr.bf16.mxu0 0
        %1293 = vmatpush1.bf16.msra.mxu0 0
        %1294 = vmatprep.subr.bf16.mxu0 0
        %1295 = vmatpush1.bf16.msra.mxu0 0
        %1296 = vmatprep.subr.bf16.mxu0 0
        %1297 = vmatpush1.bf16.msra.mxu0 0
        %1298 = vmatprep.subr.bf16.mxu0 0
        %1299 = vmatpush1.bf16.msra.mxu0 0
        %1300 = vmatprep.mubr.bf16.mxu0 %v1260
        %1301 = vmatmul.mubr.bf16.gmra.mrb[0].mxu0 %v962
        %v1302 = vpop.f32.mrb[0].mxu0
        %v1303 = vadd.f32 %v1155, %v1302
        %v1304 = vpop.f32.mrb[0].mxu0
        %v1305 = vpop.f32.mrb[0].mxu0
        %v1306 = vadd.f32 %v1158, %v1305
        %v1307 = vpop.f32.mrb[0].mxu0
        %1308 = vmatprep.mubr.bf16.mxu0 %v1262
        %1309 = vmatmul.mubr.bf16.gmra.mrb[0].mxu0 %v964
        %v1310 = vpop.f32.mrb[0].mxu0
        %v1311 = vadd.f32 %v1163, %v1310
        %v1312 = vpop.f32.mrb[0].mxu0
        %v1313 = vpop.f32.mrb[0].mxu0
        %v1314 = vadd.f32 %v1166, %v1313
        %v1315 = vpop.f32.mrb[0].mxu0
        %1316 = vmatprep.mubr.bf16.mxu0 %v1264
        %1317 = vmatmul.mubr.bf16.gmra.mrb[0].mxu0 %v966
        %v1318 = vpop.f32.mrb[0].mxu0
        %v1319 = vadd.f32 %v1171, %v1318
        %v1320 = vpop.f32.mrb[0].mxu0
        %v1321 = vpop.f32.mrb[0].mxu0
        %v1322 = vadd.f32 %v1174, %v1321
        %v1323 = vpop.f32.mrb[0].mxu0
        %1324 = vmatprep.mubr.bf16.mxu0 %v1266
        %1325 = vmatmul.mubr.bf16.gmra.mrb[0].mxu0 %v968
        %v1326 = vpop.f32.mrb[0].mxu0
        %v1327 = vadd.f32 %v1179, %v1326
        %v1328 = vpop.f32.mrb[0].mxu0
        %v1329 = vpop.f32.mrb[0].mxu0
        %v1330 = vpop.f32.mrb[0].mxu0
        %1331 = vdwg.mxu0
        %v1332 = vld [vmem:[%s676] sm:$0xf]
        %v1333 = vld [vmem:[%s676 + $0x4] sm:$0xf]
        %v1334 = vld [vmem:[%s676 + $0x8] sm:$0xf]
        %v1335 = vld [vmem:[%s676 + $0xc] sm:$0xf]
        %v1336 = vld [vmem:[%s676 + $0x10] sm:$0xf]
        %v1337 = vld [vmem:[%s676 + $0x14] sm:$0xf]
        %v1338 = vld [vmem:[%s676 + $0x18] sm:$0xf]
        %v1339 = vld [vmem:[%s676 + $0x1c] sm:$0xf]
        %v1340 = vld [vmem:[%s676 + $0x20] sm:$0xf]
        %v1341 = vld [vmem:[%s676 + $0x24] sm:$0xf]
        %v1342 = vld [vmem:[%s676 + $0x28] sm:$0xf]
        %v1343 = vld [vmem:[%s676 + $0x2c] sm:$0xf]
        %v1344 = vld [vmem:[%s676 + $0x30] sm:$0xf]
        %v1345 = vld [vmem:[%s676 + $0x34] sm:$0xf]
        %v1346 = vld [vmem:[%s676 + $0x38] sm:$0xf]
        %v1347 = vld [vmem:[%s676 + $0x3c] sm:$0xf]
        %v1348 = vld [vmem:[%s676 + $0x40] sm:$0xf]
        %v1349 = vld [vmem:[%s676 + $0x44] sm:$0xf]
        %v1350 = vld [vmem:[%s676 + $0x48] sm:$0xf]
        %v1351 = vld [vmem:[%s676 + $0x4c] sm:$0xf]
        %v1352 = vld [vmem:[%s676 + $0x50] sm:$0xf]
        %v1353 = vld [vmem:[%s676 + $0x54] sm:$0xf]
        %v1354 = vld [vmem:[%s676 + $0x58] sm:$0xf]
        %v1355 = vld [vmem:[%s676 + $0x5c] sm:$0xf]
        %v1356 = vrot.slane %v962, 1
        %v1357 = vrot.slane %v964, 1
        %v1358 = vsel %vm701, %v1356, %v1357
        %v1359 = vrot.slane %v963, 1
        %v1360 = vrot.slane %v965, 1
        %v1361 = vsel %vm701, %v1359, %v1360
        %v1362 = vrot.slane %v966, 1
        %v1363 = vsel %vm701, %v1357, %v1362
        %v1364 = vrot.slane %v967, 1
        %v1365 = vsel %vm701, %v1360, %v1364
        %v1366 = vrot.slane %v968, 1
        %v1367 = vsel %vm701, %v1362, %v1366
        %v1368 = vrot.slane %v969, 1
        %v1369 = vsel %vm701, %v1364, %v1368
        %v1398 = vunpack.c.l.b16 %v1332
        %v1399 = vunpack.c.l.b16 %v1333
        %v1400 = vunpack.c.l.b16 %v1334
        %v1401 = vunpack.c.l.b16 %v1335
        %v1402 = vunpack.c.l.b16 %v1336
        %v1403 = vunpack.c.l.b16 %v1337
        %v1404 = vunpack.c.l.b16 %v1338
        %v1405 = vunpack.c.l.b16 %v1339
        %v1406 = vunpack.c.l.b16 %v1340
        %v1407 = vunpack.c.l.b16 %v1341
        %v1408 = vunpack.c.l.b16 %v1342
        %v1409 = vunpack.c.l.b16 %v1343
        %v1410 = vunpack.c.l.b16 %v1344
        %v1411 = vunpack.c.l.b16 %v1345
        %v1412 = vunpack.c.l.b16 %v1346
        %v1413 = vunpack.c.l.b16 %v1347
        %v1414 = vunpack.c.l.b16 %v1348
        %v1415 = vunpack.c.l.b16 %v1349
        %v1416 = vunpack.c.l.b16 %v1350
        %v1417 = vunpack.c.l.b16 %v1351
        %v1418 = vunpack.c.l.b16 %v1352
        %v1419 = vunpack.c.l.b16 %v1353
        %v1420 = vunpack.c.l.b16 %v1354
        %v1421 = vunpack.c.l.b16 %v1355
        %v1422 = vpack.c.b16 %v1399, %v1398
        %v1423 = vpack.c.b16 %v1401, %v1400
        %v1424 = vpack.c.b16 %v1403, %v1402
        %v1425 = vpack.c.b16 %v1405, %v1404
        %v1426 = vpack.c.b16 %v1407, %v1406
        %v1427 = vpack.c.b16 %v1409, %v1408
        %v1428 = vpack.c.b16 %v1411, %v1410
        %v1429 = vpack.c.b16 %v1413, %v1412
        %v1430 = vpack.c.b16 %v1415, %v1414
        %v1431 = vpack.c.b16 %v1417, %v1416
        %v1432 = vpack.c.b16 %v1419, %v1418
        %v1433 = vpack.c.b16 %v1421, %v1420
        %v1447 = vsel %vm451, %v1361, 0
        %v1450 = vsel %vm451, %v1365, 0
        %v1453 = vsel %vm451, %v1369, 0
        %v1456 = vsel %vm451, %v1368, 0
        %1458 = vmatprep.subr.bf16.mxu0 0
        %1459 = vmatpush1.bf16.msra.mxu0 %v1422
        %1460 = vmatprep.subr.bf16.mxu0 0
        %1461 = vmatpush1.bf16.msra.mxu0 %v1423
        %1462 = vmatprep.subr.bf16.mxu0 0
        %1463 = vmatpush1.bf16.msra.mxu0 %v1424
        %1464 = vmatprep.subr.bf16.mxu0 0
        %1465 = vmatpush1.bf16.msra.mxu0 %v1425
        %1466 = vmatprep.subr.bf16.mxu0 0
        %1467 = vmatpush1.bf16.msra.mxu0 %v1426
        %1468 = vmatprep.subr.bf16.mxu0 0
        %1469 = vmatpush1.bf16.msra.mxu0 %v1427
        %1470 = vmatprep.subr.bf16.mxu0 0
        %1471 = vmatpush1.bf16.msra.mxu0 %v1428
        %1472 = vmatprep.subr.bf16.mxu0 0
        %1473 = vmatpush1.bf16.msra.mxu0 %v1429
        %1474 = vmatprep.subr.bf16.mxu0 0
        %1475 = vmatpush1.bf16.msra.mxu0 %v1430
        %1476 = vmatprep.subr.bf16.mxu0 0
        %1477 = vmatpush1.bf16.msra.mxu0 %v1431
        %1478 = vmatprep.subr.bf16.mxu0 0
        %1479 = vmatpush1.bf16.msra.mxu0 %v1432
        %1480 = vmatprep.subr.bf16.mxu0 0
        %1481 = vmatpush1.bf16.msra.mxu0 %v1433
        %1482 = vmatprep.subr.bf16.mxu0 0
        %1483 = vmatpush1.bf16.msra.mxu0 0
        %1484 = vmatprep.subr.bf16.mxu0 0
        %1485 = vmatpush1.bf16.msra.mxu0 0
        %1486 = vmatprep.subr.bf16.mxu0 0
        %1487 = vmatpush1.bf16.msra.mxu0 0
        %1488 = vmatprep.subr.bf16.mxu0 0
        %1489 = vmatpush1.bf16.msra.mxu0 0
        %1490 = vmatprep.mubr.bf16.mxu0 %v1447
        %1491 = vmatmul.mubr.bf16.gmra.mrb[0].mxu0 %v1358
        %v1492 = vpop.f32.mrb[0].mxu0
        %v1493 = vadd.f32 0.0, %v1492
        %v1494 = vpop.f32.mrb[0].mxu0
        %v1495 = vpop.f32.mrb[0].mxu0
        %v1496 = vadd.f32 0.0, %v1495
        %v1497 = vpop.f32.mrb[0].mxu0
        %1498 = vmatprep.mubr.bf16.mxu0 %v1450
        %1499 = vmatmul.mubr.bf16.gmra.mrb[0].mxu0 %v1363
        %v1500 = vpop.f32.mrb[0].mxu0
        %v1501 = vadd.f32 0.0, %v1500
        %v1502 = vpop.f32.mrb[0].mxu0
        %v1503 = vpop.f32.mrb[0].mxu0
        %v1504 = vadd.f32 0.0, %v1503
        %v1505 = vpop.f32.mrb[0].mxu0
        %1506 = vmatprep.mubr.bf16.mxu0 %v1453
        %1507 = vmatmul.mubr.bf16.gmra.mrb[0].mxu0 %v1367
        %v1508 = vpop.f32.mrb[0].mxu0
        %v1509 = vadd.f32 0.0, %v1508
        %v1510 = vpop.f32.mrb[0].mxu0
        %v1511 = vpop.f32.mrb[0].mxu0
        %v1512 = vadd.f32 0.0, %v1511
        %v1513 = vpop.f32.mrb[0].mxu0
        %1514 = vmatprep.mubr.bf16.mxu0 %v1456
        %1515 = vmatmul.mubr.bf16.gmra.mrb[0].mxu0 %v1366
        %v1516 = vpop.f32.mrb[0].mxu0
        %v1517 = vadd.f32 0.0, %v1516
        %v1518 = vpop.f32.mrb[0].mxu0
        %v1519 = vpop.f32.mrb[0].mxu0
        %v1520 = vpop.f32.mrb[0].mxu0
        %1521 = vdwg.mxu0
        %v1522 = vadd.f32 %v1303, %v1493
        %v1523 = vadd.f32 %v1306, %v1496
        %v1524 = vadd.f32 %v1311, %v1501
        %v1525 = vadd.f32 %v1314, %v1504
        %v1526 = vadd.f32 %v1319, %v1509
        %v1527 = vadd.f32 %v1322, %v1512
        %v1528 = vadd.f32 %v1327, %v1517
        %v1529 = vld [vmem:[#allocation2] sm:$0xff]
        %v1530 = vld [vmem:[#allocation2 + $0x8] sm:$0xff]
        %v1531 = vld [vmem:[#allocation2 + $0x10] sm:$0xff]
        %v1532 = vld [vmem:[#allocation2 + $0x18] sm:$0xff]
        %v1533 = vld [vmem:[#allocation2 + $0x20] sm:$0xff]
        %v1534 = vld [vmem:[#allocation2 + $0x28] sm:$0xff]
        %v1535 = vld [vmem:[#allocation2 + $0x30] sm:$0xf]
        %v1536 = vmax.f32 %v1529, %v1522
        %v1537 = vmax.f32 %v1530, %v1523
        %v1538 = vmax.f32 %v1531, %v1524
        %v1539 = vmax.f32 %v1532, %v1525
        %v1540 = vmax.f32 %v1533, %v1526
        %v1541 = vmax.f32 %v1534, %v1527
        %v1542 = vmax.f32 %v1535, %v1528
        %v1544 = vlaneseq
        %v1545 = vshrl.u32 %v1544, 7
        %v1546 = vsub.s32 0, %v1545
        %v1547 = vrot.slane %v216, %v1546
        %v1549 = vadd.f32 %v1536, %v1547
        %v1550 = vadd.f32 %v1537, %v1547
        %v1551 = vadd.f32 %v1538, %v1547
        %v1552 = vadd.f32 %v1539, %v1547
        %v1553 = vadd.f32 %v1540, %v1547
        %v1554 = vadd.f32 %v1541, %v1547
        %v1555 = vadd.f32 %v1542, %v1547
        %v1556 = vmax.f32 %v1549, 0.0
        %v1557 = vmax.f32 %v1550, 0.0
        %v1558 = vmax.f32 %v1551, 0.0
        %v1559 = vmax.f32 %v1552, 0.0
        %v1560 = vmax.f32 %v1553, 0.0
        %v1561 = vmax.f32 %v1554, 0.0
        %v1562 = vmax.f32 %v1555, 0.0
        %1563 = vst [vmem:[#allocation2] sm:$0xff] %v1556
        %1564 = vst [vmem:[#allocation2 + $0x8] sm:$0xff] %v1557
        %1565 = vst [vmem:[#allocation2 + $0x10] sm:$0xff] %v1558
        %1566 = vst [vmem:[#allocation2 + $0x18] sm:$0xff] %v1559
        %1567 = vst [vmem:[#allocation2 + $0x20] sm:$0xff] %v1560
        %1568 = vst [vmem:[#allocation2 + $0x28] sm:$0xff] %v1561
        %1569 = vst [vmem:[#allocation2 + $0x30] sm:$0xf] %v1562
        %v1570 = vld [vmem:[#allocation2] ss:$2 sm:$0xff]
        %s1571 = scalar_lea.vmem [#allocation2], 16
        %v1572 = vld [vmem:[%s1571] ss:$2 sm:$0xff]
        %s1573 = scalar_lea.vmem [#allocation2], 32
        %v1574 = vld [vmem:[%s1573] ss:$2 sm:$0xff]
        %s1575 = scalar_lea.vmem [#allocation2], 48
        %v1576 = vld [vmem:[%s1575] ss:$2 sm:$0x3]
        %s1577 = scalar_lea.vmem [#allocation2], 1
        %v1578 = vld [vmem:[%s1577] ss:$2 sm:$0xff]
        %s1579 = scalar_lea.vmem [#allocation2], 17
        %v1580 = vld [vmem:[%s1579] ss:$2 sm:$0xff]
        %s1581 = scalar_lea.vmem [#allocation2], 33
        %v1582 = vld [vmem:[%s1581] ss:$2 sm:$0xff]
        %s1583 = scalar_lea.vmem [#allocation2], 49
        %v1584 = vld [vmem:[%s1583] ss:$2 sm:$0x3]
        %v1585 = vmax.f32 %v1570, %v1578
        %v1586 = vmax.f32 %v1572, %v1580
        %v1587 = vmax.f32 %v1574, %v1582
        %v1588 = vmax.f32 %v1576, %v1584
        %v1589 = vpack.c.bf16 %v1586, %v1585
        %v1590 = vpack.c.bf16 %v1588, %v1587
        %v1593 = vunpack.c.l.b16 %v1589
        %v1594 = vunpack.c.h.b16 %v1589
        %v1595 = vunpack.c.l.b16 %v1590
        %v1596 = vunpack.c.h.b16 %v1590
        %v1597 = vpack.c.b16 %v1593, %v1593
        %v1598 = vpack.c.b16 %v1594, %v1594
        %v1599 = vpack.c.b16 %v1595, %v1595
        %v1600 = vpack.c.b16 %v1596, %v1596
        %s1605 = smul.u32 %s218, 4
        %s1606 = smul.addr %s1605, 4
        %s1607 = scalar_lea.vmem %s213, %s1606
        %1608 = vst [vmem:[%s1607] sm:$0xf] %v1597
        %1609 = vst [vmem:[%s1607 + $0x4] sm:$0xf] %v1598
        %1610 = vst [vmem:[%s1607 + $0x8] sm:$0xf] %v1599
        %1611 = vst [vmem:[%s1607 + $0xc] sm:$0x1] %v1600
      $region37: #{convnet_forward.8} parent=31 // loop_footer
        %s222 = sadd.s32 1, %s218
      $region38: #{convnet_forward.8} parent=31 // loop_footer_branch
        %217 = sbr.rel target = $region34
      $region39: #{convnet_forward.8} parent=31 // loop_exit
        _
      %s1612 = smul.u32 13, %s19
      %p1613 = scmp.lt.s32.totalorder %s18, 1
      %s1614 = scalar_select %p1613, %s18, 1
      %p1615 = scmp.lt.s32.totalorder %s1612, 25
      %s1616 = scalar_select %p1615, %s1612, 25
      %s1617 = smul.addr %s1616, 4
      %s1618 = smul.addr %s1614, 104
      %s1619 = sadd.s32 %s1617, %s1618
      %s1620 = smul.addr %s1619, 4
      %s1621 = scalar_lea.vmem %s3, %s1620
      // Predicated region
      $region40: #{convnet_forward.8} parent=31 // pred_check
        %p1622 = pneg %p116
      $region41: #{convnet_forward.8} parent=31 // pred_check_branch
        %1624 = sbr.rel (%p1622) target = $region43
      $region42: #{convnet_forward.8} parent=31 // pred_region
        %s1625 = smul.u32 13, %s19
      $region43: #{convnet_forward.8} parent=31 // pred_fallthru
        _
    $region32: #{convnet_forward.8} parent=5 // pred_fallthru
      _
    %p1626 = scmp.le.s32.totalorder 2, %s9
    // Predicated region
    $region44: #{convnet_forward.8} parent=5 // pred_check
      %p1627 = pneg %p1626
    $region45: #{convnet_forward.8} parent=5 // pred_check_branch
      %1629 = sbr.rel (%p1627) target = $region47
    $region46: #{convnet_forward.8} parent=5 // pred_region
      %s1630 = ssub.s32 %s9, 2
      // Predicated region
      $region48: #{convnet_forward.8} parent=46 // pred_check
        %p1631 = pneg %p122
      $region49: #{convnet_forward.8} parent=46 // pred_check_branch
        %1633 = sbr.rel (%p1631) target = $region51
      $region50: #{convnet_forward.8} parent=46 // pred_region
        %s1634 = smul.u32 13, %s21
        %p1635 = scmp.lt.s32.totalorder %s20, 1
        %s1636 = scalar_select %p1635, %s20, 1
        %p1637 = scmp.lt.s32.totalorder %s1634, 25
        %s1638 = scalar_select %p1637, %s1634, 25
        %s1639 = smul.addr %s1638, 4
        %s1640 = smul.addr %s1636, 104
        %s1641 = sadd.s32 %s1639, %s1640
        %s1642 = smul.addr %s1641, 4
        %s1643 = scalar_lea.vmem %s3, %s1642
      $region51: #{convnet_forward.8} parent=46 // pred_fallthru
        _
    $region47: #{convnet_forward.8} parent=5 // pred_fallthru
      _
  $region6: #{convnet_forward.8} parent=0 // loop_footer
    %s13 = sadd.s32 1, %s9
  $region7: #{convnet_forward.8} parent=0 // loop_footer_branch
    %8 = sbr.rel target = $region3
  $region8: #{convnet_forward.8} parent=0 // loop_exit
    _

// kernel: convnet_forward.9
$region0: #{convnet_forward.9}
  #allocation0 [shape = 'u32[]', space=smem, size = 0x4, offset = 0x4, fixed_abs, tag = 'smem constant byte address 0x4 - core index']
  #allocation1 [shape = 'u32[144,128]{1,0:T(1,128)}', space=vmem, size = 0x12000, scoped, tag = 'internal scratch']
  #allocation2 [shape = 'f32[2,128]{1,0:T(2,128)}', space=vmem, size = 0x400, scoped, tag = 'scratch operand']
  %s0 = inlined_call_operand.vmem [shape: bf16[2,86528], index: 0, kind: input, shape index: {}]
  %s1 = inlined_call_operand.hbm [shape: bf16[86528,256], index: 1, kind: input, shape index: {}]
  %s2 = inlined_call_operand.vmem [shape: f32[1,256], index: 2, kind: input, shape index: {}]
  %s3 = inlined_call_operand.vmem [shape: bf16[2,256], index: 3, kind: output, shape index: {}]
  %s4 = sld [smem:[#allocation0]]
  $region57: #{convnet_forward.9} parent=0
    _
  %s6 = ssub.s32 1, %s4
  %s7 = scalar_select 0, %s6, %s4
  $region1: #{convnet_forward.9} parent=0
    #allocation3 [shape = 'u8[3407872]{0}', space=vmem, size = 0x340000, scoped, tag = 'input window, operand 1']
    #allocation4 [shape = 's32[2]{0}', space=sflag, size = 0x8, scoped, tag = 'scoped memory for convnet_forward.9']
    %8 = vsyncpa [#allocation4], 0
    %s9 = scalar_lea.sflag [#allocation4], 1
    %10 = vsyncpa %s9, 0
    loop: start=0, step=1, limit=28
    $region2: #{convnet_forward.9} parent=1 // loop_pre_header
      _
    $region3: #{convnet_forward.9} parent=1 // loop_header
      %s12 = sphi 0, %s16
      %p13 = scmp.ge.s32.totalorder %s12, 28
      %s19 = sphi 0, %s31
      %s20 = sphi 0, %s27
      %s21 = sphi 0, %s19
      %s22 = sphi 0, %s20
      %s23 = sphi 0, %s21
      %s24 = sphi 0, %s22
      %s34 = sphi 0, %s36
      %s37 = sphi 0, %s34
      %s38 = sphi 0, %s37
      %s54 = sphi 0, %s38
      %s62 = sphi 0, %s64
      %s65 = sphi 0, %s62
      %s66 = sphi 0, %s65
      %s82 = sphi 0, %s66
      %s88 = sphi 0, %s90
      %s91 = sphi 0, %s88
      %s92 = sphi 0, %s91
      %s108 = sphi 0, %s92
      %s114 = sphi 0, %s116
      %s117 = sphi 0, %s114
      %s118 = sphi 0, %s117
      %s134 = sphi 0, %s118
    $region4: #{convnet_forward.9} parent=1 // loop_header_branch
      %15 = sbr.rel (%p13) target = $region8
    $region5: #{convnet_forward.9} parent=1 // loop_body
      %s17 = ssub.s32 %s12, 1
      %s18 = ssub.s32 %s12, 2
      %s25 = sadd.s32 1, %s20
      %p26 = scmp.ge.s32.totalorder %s25, 13
      %s27 = scalar_select %p26, 0, %s25
      %s28 = sadd.s32 1, %s19
      %s29 = scalar_select %p26, %s28, %s19
      %p30 = scmp.ge.s32.totalorder %s29, 2
      %s31 = scalar_select %p30, 0, %s29
      %s32 = ssub.s32 %s20, %s27
      %p33 = scmp.eq.s32.totalorder %s32, 0
      %s35 = sadd.s32 %s34, 1
      %s36 = scalar_select %p33, %s34, %s35
      %p39 = pneg %p33
      %p40 = scmp.eq.s32.totalorder %s12, 25
      %p41 = por %p39, %p40
      %p42 = scmp.ne.s32.totalorder %s34, %s37
      %p43 = scmp.eq.s32.totalorder %s12, 0
      %p44 = por %p42, %p43
      %p45 = scmp.ne.s32.totalorder %s34, %s37
      %p46 = scmp.eq.s32.totalorder %s17, 25
      %p47 = por %p45, %p46
      %p48 = scmp.ne.s32.totalorder %s37, %s38
      %p49 = scmp.eq.s32.totalorder %s17, 0
      %p50 = por %p48, %p49
      %p51 = scmp.ne.s32.totalorder %s37, %s38
      %p52 = scmp.eq.s32.totalorder %s18, 25
      %p53 = por %p51, %p52
      %p55 = scmp.ne.s32.totalorder %s38, %s54
      %p56 = scmp.eq.s32.totalorder %s18, 0
      %p57 = por %p55, %p56
      %s58 = ssub.s32 %s20, %s27
      %s59 = ssub.s32 %s19, %s31
      %s60 = sor.u32 %s58, %s59
      %p61 = scmp.eq.s32.totalorder %s60, 0
      %s63 = sadd.s32 %s62, 1
      %s64 = scalar_select %p61, %s62, %s63
      %p67 = pneg %p61
      %p68 = scmp.eq.s32.totalorder %s12, 25
      %p69 = por %p67, %p68
      %p70 = scmp.ne.s32.totalorder %s62, %s65
      %p71 = scmp.eq.s32.totalorder %s12, 0
      %p72 = por %p70, %p71
      %p73 = scmp.ne.s32.totalorder %s62, %s65
      %p74 = scmp.eq.s32.totalorder %s17, 25
      %p75 = por %p73, %p74
      %p76 = scmp.ne.s32.totalorder %s65, %s66
      %p77 = scmp.eq.s32.totalorder %s17, 0
      %p78 = por %p76, %p77
      %p79 = scmp.ne.s32.totalorder %s65, %s66
      %p80 = scmp.eq.s32.totalorder %s18, 25
      %p81 = por %p79, %p80
      %p83 = scmp.ne.s32.totalorder %s66, %s82
      %p84 = scmp.eq.s32.totalorder %s18, 0
      %p85 = por %p83, %p84
      %s86 = ssub.s32 %s19, %s31
      %p87 = scmp.eq.s32.totalorder %s86, 0
      %s89 = sadd.s32 %s88, 1
      %s90 = scalar_select %p87, %s88, %s89
      %p93 = pneg %p87
      %p94 = scmp.eq.s32.totalorder %s12, 25
      %p95 = por %p93, %p94
      %p96 = scmp.ne.s32.totalorder %s88, %s91
      %p97 = scmp.eq.s32.totalorder %s12, 0
      %p98 = por %p96, %p97
      %p99 = scmp.ne.s32.totalorder %s88, %s91
      %p100 = scmp.eq.s32.totalorder %s17, 25
      %p101 = por %p99, %p100
      %p102 = scmp.ne.s32.totalorder %s91, %s92
      %p103 = scmp.eq.s32.totalorder %s17, 0
      %p104 = por %p102, %p103
      %p105 = scmp.ne.s32.totalorder %s91, %s92
      %p106 = scmp.eq.s32.totalorder %s18, 25
      %p107 = por %p105, %p106
      %p109 = scmp.ne.s32.totalorder %s92, %s108
      %p110 = scmp.eq.s32.totalorder %s18, 0
      %p111 = por %p109, %p110
      %s112 = ssub.s32 %s19, %s31
      %p113 = scmp.eq.s32.totalorder %s112, 0
      %s115 = sadd.s32 %s114, 1
      %s116 = scalar_select %p113, %s114, %s115
      %p119 = pneg %p113
      %p120 = scmp.eq.s32.totalorder %s12, 25
      %p121 = por %p119, %p120
      %p122 = scmp.ne.s32.totalorder %s114, %s117
      %p123 = scmp.eq.s32.totalorder %s12, 0
      %p124 = por %p122, %p123
      %p125 = scmp.ne.s32.totalorder %s114, %s117
      %p126 = scmp.eq.s32.totalorder %s17, 25
      %p127 = por %p125, %p126
      %p128 = scmp.ne.s32.totalorder %s117, %s118
      %p129 = scmp.eq.s32.totalorder %s17, 0
      %p130 = por %p128, %p129
      %p131 = scmp.ne.s32.totalorder %s117, %s118
      %p132 = scmp.eq.s32.totalorder %s18, 25
      %p133 = por %p131, %p132
      %p135 = scmp.ne.s32.totalorder %s118, %s134
      %p136 = scmp.eq.s32.totalorder %s18, 0
      %p137 = por %p135, %p136
      %p138 = scmp.le.s32.totalorder 1, %s12
      %p139 = scmp.lt.s32.totalorder %s12, 27
      %p140 = pnand %p138, %p139
      %p141 = pneg %p140
      // Predicated region
      $region9: #{convnet_forward.9} parent=5 // pred_check
        _
      $region10: #{convnet_forward.9} parent=5 // pred_check_branch
        %143 = sbr.rel (%p140) target = $region12
      $region11: #{convnet_forward.9} parent=5 // pred_region
        %s144 = ssub.s32 %s12, 1
      $region12: #{convnet_forward.9} parent=5 // pred_fallthru
        _
      %p145 = scmp.lt.s32.totalorder %s12, 26
      // Predicated region
      $region13: #{convnet_forward.9} parent=5 // pred_check
        %p146 = pneg %p145
      $region14: #{convnet_forward.9} parent=5 // pred_check_branch
        %148 = sbr.rel (%p146) target = $region16
      $region15: #{convnet_forward.9} parent=5 // pred_region
        // Predicated region
        $region17: #{convnet_forward.9} parent=15 // pred_check
          %p149 = pneg %p44
        $region18: #{convnet_forward.9} parent=15 // pred_check_branch
          %151 = sbr.rel (%p149) target = $region20
        $region19: #{convnet_forward.9} parent=15 // pred_region
          %s152 = smul.u32 52, %s20
          %p153 = scmp.lt.s32.totalorder %s152, 675
          %s154 = scalar_select %p153, %s152, 675
          %s155 = scalar_lea.vmem %s0, %s154
          %s156 = smul.u32 52, %s20
        $region20: #{convnet_forward.9} parent=15 // pred_fallthru
          _
        // Predicated region
        $region21: #{convnet_forward.9} parent=15 // pred_check
          %p157 = pneg %p72
        $region22: #{convnet_forward.9} parent=15 // pred_check_branch
          %159 = sbr.rel (%p157) target = $region24
        $region23: #{convnet_forward.9} parent=15 // pred_region
          %s160 = sand.u32 %s62, 1
          %s161 = scalar_lea.sflag [#allocation4], %s160
          %s162 = sand.u32 %s62, 1
          %s163 = smul.addr %s162, 3328
          %s164 = scalar_lea.vmem [#allocation3], %s163
          %s165 = smul.u32 832, %s20
          %s167 = ssub.s32 53248, 53248
          %168 = vsyncadd %s161, %s167
          %s169 = smul.addr %s165, 2
          %s170 = sadd.s32 %s19, %s169
          %s171 = smul.addr %s170, 64
          %s172 = scalar_lea.hbm %s1, %s171
          %s173 = sshll.u32 %s164, 4
          %s174 = int_to_ptr.vmem [resolvable:$true] %s173
          %179 = dma.hbm_to_vmem [thread:$0]  %s172, 53248, %s174, %s161, 128, 64, 4
        $region24: #{convnet_forward.9} parent=15 // pred_fallthru
          _
        // Predicated region
        $region25: #{convnet_forward.9} parent=15 // pred_check
          %p180 = pneg %p98
        $region26: #{convnet_forward.9} parent=15 // pred_check_branch
          %182 = sbr.rel (%p180) target = $region28
        $region27: #{convnet_forward.9} parent=15 // pred_region
          %p183 = scmp.lt.s32.totalorder %s19, 1
          %s184 = scalar_select %p183, %s19, 1
          %s185 = scalar_lea.vmem %s2, %s184
        $region28: #{convnet_forward.9} parent=15 // pred_fallthru
          _
      $region16: #{convnet_forward.9} parent=5 // pred_fallthru
        _
      %p186 = scmp.le.s32.totalorder 1, %s12
      %p187 = scmp.lt.s32.totalorder %s12, 27
      %p188 = pnand %p186, %p187
      %p189 = pneg %p188
      // Predicated region
      $region29: #{convnet_forward.9} parent=5 // pred_check
        _
      $region30: #{convnet_forward.9} parent=5 // pred_check_branch
        %191 = sbr.rel (%p188) target = $region32
      $region31: #{convnet_forward.9} parent=5 // pred_region
        %s192 = ssub.s32 %s12, 1
        %s193 = sand.u32 %s65, 1
        %s194 = scalar_lea.sflag [#allocation4], %s193
        %s195 = sand.u32 %s65, 1
        %s196 = smul.addr %s195, 3328
        %s197 = scalar_lea.vmem [#allocation3], %s196
        // Predicated region
        $region33: #{convnet_forward.9} parent=31 // pred_check
          %p198 = pneg %p78
        $region34: #{convnet_forward.9} parent=31 // pred_check_branch
          %200 = sbr.rel (%p198) target = $region36
        $region35: #{convnet_forward.9} parent=31 // pred_region
          %201 = dma.done %s194, 53248
        $region36: #{convnet_forward.9} parent=31 // pred_fallthru
          _
        %s202 = smul.u32 52, %s22
        %p203 = scmp.lt.s32.totalorder %s202, 675
        %s204 = scalar_select %p203, %s202, 675
        %s205 = scalar_lea.vmem %s0, %s204
        %p206 = pneg %p50
        %p207 = pneg %p47
        %s208 = sand.u32 %s65, 1
        %s209 = scalar_lea.sflag [#allocation4], %s208
        %s210 = sand.u32 %s65, 1
        %s211 = smul.addr %s210, 3328
        %s212 = scalar_lea.vmem [#allocation3], %s211
        %p213 = pneg %p78
        %p214 = pneg %p75
        %p215 = scmp.lt.s32.totalorder %s21, 1
        %s216 = scalar_select %p215, %s21, 1
        %s217 = scalar_lea.vmem %s2, %s216
        %p218 = pneg %p104
        %p219 = pneg %p101
        %p220 = pneg %p130
        %p221 = pneg %p127
        %p222 = scmp.lt.s32.totalorder %s21, 1
        %s223 = scalar_select %p222, %s21, 1
        %s224 = scalar_lea.vmem %s3, %s223
        %s225 = smul.u32 52, %s22
        %p226 = scmp.lt.s32.totalorder %s225, 675
        %s227 = scalar_select %p226, %s225, 675
        %s228 = scalar_lea.vmem %s0, %s227
        %s229 = smul.u32 52, %s22
        %s230 = smul.u32 832, %s22
        %p231 = scmp.lt.s32.totalorder %s21, 1
        %s232 = scalar_select %p231, %s21, 1
        %s233 = scalar_lea.vmem %s2, %s232
        %p234 = scmp.lt.s32.totalorder %s21, 1
        %s235 = scalar_select %p234, %s21, 1
        %s236 = scalar_lea.vmem %s3, %s235
        %p238 = scmp.eq.s32.totalorder %s22, 0
        // Predicated region
        $region37: #{convnet_forward.9} parent=31 // pred_check
          %p239 = pneg %p238
        $region38: #{convnet_forward.9} parent=31 // pred_check_branch
          %241 = sbr.rel (%p239) target = $region40
        $region39: #{convnet_forward.9} parent=31 // pred_region
          %242 = vst [vmem:[#allocation2] sm:$0x3] 0.0
        $region40: #{convnet_forward.9} parent=31 // pred_fallthru
          _
        %v243 = vld [vmem:[#allocation2] sm:$0x3]
        %v244 = vld [vmem:[%s228] sm:$0xff]
        %v245 = vld [vmem:[%s228 + $0x8] sm:$0xff]
        %v246 = vld [vmem:[%s228 + $0x10] sm:$0xff]
        %v247 = vld [vmem:[%s228 + $0x18] sm:$0xff]
        %v248 = vld [vmem:[%s228 + $0x20] sm:$0xff]
        %v249 = vld [vmem:[%s228 + $0x28] sm:$0xff]
        %v250 = vld [vmem:[%s228 + $0x30] sm:$0xf]
        %v251 = vld [vmem:[%s197] sm:$0xf]
        %v252 = vld [vmem:[%s197 + $0x4] sm:$0xf]
        %v253 = vld [vmem:[%s197 + $0x8] sm:$0xf]
        %v254 = vld [vmem:[%s197 + $0xc] sm:$0xf]
        %v255 = vld [vmem:[%s197 + $0x10] sm:$0xf]
        %v256 = vld [vmem:[%s197 + $0x14] sm:$0xf]
        %v257 = vld [vmem:[%s197 + $0x18] sm:$0xf]
        %v258 = vld [vmem:[%s197 + $0x1c] sm:$0xf]
        %v259 = vld [vmem:[%s197 + $0x20] sm:$0xf]
        %v260 = vld [vmem:[%s197 + $0x24] sm:$0xf]
        %v261 = vld [vmem:[%s197 + $0x28] sm:$0xf]
        %v262 = vld [vmem:[%s197 + $0x2c] sm:$0xf]
        %v263 = vld [vmem:[%s197 + $0x30] sm:$0xf]
        %v264 = vld [vmem:[%s197 + $0x34] sm:$0xf]
        %v265 = vld [vmem:[%s197 + $0x38] sm:$0xf]
        %v266 = vld [vmem:[%s197 + $0x3c] sm:$0xf]
        %v267 = vld [vmem:[%s197 + $0x40] sm:$0xf]
        %v268 = vld [vmem:[%s197 + $0x44] sm:$0xf]
        %v269 = vld [vmem:[%s197 + $0x48] sm:$0xf]
        %v270 = vld [vmem:[%s197 + $0x4c] sm:$0xf]
        %v271 = vld [vmem:[%s197 + $0x50] sm:$0xf]
        %v272 = vld [vmem:[%s197 + $0x54] sm:$0xf]
        %v273 = vld [vmem:[%s197 + $0x58] sm:$0xf]
        %v274 = vld [vmem:[%s197 + $0x5c] sm:$0xf]
        %v275 = vld [vmem:[%s197 + $0x60] sm:$0xf]
        %v276 = vld [vmem:[%s197 + $0x64] sm:$0xf]
        %v277 = vld [vmem:[%s197 + $0x68] sm:$0xf]
        %v278 = vld [vmem:[%s197 + $0x6c] sm:$0xf]
        %v279 = vld [vmem:[%s197 + $0x70] sm:$0xf]
        %v280 = vld [vmem:[%s197 + $0x74] sm:$0xf]
        %v281 = vld [vmem:[%s197 + $0x78] sm:$0xf]
        %v282 = vld [vmem:[%s197 + $0x7c] sm:$0xf]
        %v283 = vld [vmem:[%s197 + $0x80] sm:$0xf]
        %v284 = vld [vmem:[%s197 + $0x84] sm:$0xf]
        %v285 = vld [vmem:[%s197 + $0x88] sm:$0xf]
        %v286 = vld [vmem:[%s197 + $0x8c] sm:$0xf]
        %v287 = vld [vmem:[%s197 + $0x90] sm:$0xf]
        %v288 = vld [vmem:[%s197 + $0x94] sm:$0xf]
        %v289 = vld [vmem:[%s197 + $0x98] sm:$0xf]
        %v290 = vld [vmem:[%s197 + $0x9c] sm:$0xf]
        %v291 = vld [vmem:[%s197 + $0xa0] sm:$0xf]
        %v292 = vld [vmem:[%s197 + $0xa4] sm:$0xf]
        %v293 = vld [vmem:[%s197 + $0xa8] sm:$0xf]
        %v294 = vld [vmem:[%s197 + $0xac] sm:$0xf]
        %v295 = vld [vmem:[%s197 + $0xb0] sm:$0xf]
        %v296 = vld [vmem:[%s197 + $0xb4] sm:$0xf]
        %v297 = vld [vmem:[%s197 + $0xb8] sm:$0xf]
        %v298 = vld [vmem:[%s197 + $0xbc] sm:$0xf]
        %v299 = vld [vmem:[%s197 + $0xc0] sm:$0xf]
        %v300 = vld [vmem:[%s197 + $0xc4] sm:$0xf]
        %v301 = vld [vmem:[%s197 + $0xc8] sm:$0xf]
        %v302 = vld [vmem:[%s197 + $0xcc] sm:$0xf]
        %v303 = vld [vmem:[%s197 + $0xd0] sm:$0xf]
        %v304 = vld [vmem:[%s197 + $0xd4] sm:$0xf]
        %v305 = vld [vmem:[%s197 + $0xd8] sm:$0xf]
        %v306 = vld [vmem:[%s197 + $0xdc] sm:$0xf]
        %v307 = vld [vmem:[%s197 + $0xe0] sm:$0xf]
        %v308 = vld [vmem:[%s197 + $0xe4] sm:$0xf]
        %v309 = vld [vmem:[%s197 + $0xe8] sm:$0xf]
        %v310 = vld [vmem:[%s197 + $0xec] sm:$0xf]
        %v311 = vld [vmem:[%s197 + $0xf0] sm:$0xf]
        %v312 = vld [vmem:[%s197 + $0xf4] sm:$0xf]
        %v313 = vld [vmem:[%s197 + $0xf8] sm:$0xf]
        %v314 = vld [vmem:[%s197 + $0xfc] sm:$0xf]
        %v315 = vld [vmem:[%s197 + $0x100] sm:$0xf]
        %v316 = vld [vmem:[%s197 + $0x104] sm:$0xf]
        %v317 = vld [vmem:[%s197 + $0x108] sm:$0xf]
        %v318 = vld [vmem:[%s197 + $0x10c] sm:$0xf]
        %v319 = vld [vmem:[%s197 + $0x110] sm:$0xf]
        %v320 = vld [vmem:[%s197 + $0x114] sm:$0xf]
        %v321 = vld [vmem:[%s197 + $0x118] sm:$0xf]
        %v322 = vld [vmem:[%s197 + $0x11c] sm:$0xf]
        %v323 = vld [vmem:[%s197 + $0x120] sm:$0xf]
        %v324 = vld [vmem:[%s197 + $0x124] sm:$0xf]
        %v325 = vld [vmem:[%s197 + $0x128] sm:$0xf]
        %v326 = vld [vmem:[%s197 + $0x12c] sm:$0xf]
        %v327 = vld [vmem:[%s197 + $0x130] sm:$0xf]
        %v328 = vld [vmem:[%s197 + $0x134] sm:$0xf]
        %v329 = vld [vmem:[%s197 + $0x138] sm:$0xf]
        %v330 = vld [vmem:[%s197 + $0x13c] sm:$0xf]
        %v331 = vld [vmem:[%s197 + $0x140] sm:$0xf]
        %v332 = vld [vmem:[%s197 + $0x144] sm:$0xf]
        %v333 = vld [vmem:[%s197 + $0x148] sm:$0xf]
        %v334 = vld [vmem:[%s197 + $0x14c] sm:$0xf]
        %v335 = vld [vmem:[%s197 + $0x150] sm:$0xf]
        %v336 = vld [vmem:[%s197 + $0x154] sm:$0xf]
        %v337 = vld [vmem:[%s197 + $0x158] sm:$0xf]
        %v338 = vld [vmem:[%s197 + $0x15c] sm:$0xf]
        %v339 = vld [vmem:[%s197 + $0x160] sm:$0xf]
        %v340 = vld [vmem:[%s197 + $0x164] sm:$0xf]
        %v341 = vld [vmem:[%s197 + $0x168] sm:$0xf]
        %v342 = vld [vmem:[%s197 + $0x16c] sm:$0xf]
        %v343 = vld [vmem:[%s197 + $0x170] sm:$0xf]
        %v344 = vld [vmem:[%s197 + $0x174] sm:$0xf]
        %v345 = vld [vmem:[%s197 + $0x178] sm:$0xf]
        %v346 = vld [vmem:[%s197 + $0x17c] sm:$0xf]
        %v347 = vld [vmem:[%s197 + $0x180] sm:$0xf]
        %v348 = vld [vmem:[%s197 + $0x184] sm:$0xf]
        %v349 = vld [vmem:[%s197 + $0x188] sm:$0xf]
        %v350 = vld [vmem:[%s197 + $0x18c] sm:$0xf]
        %v351 = vld [vmem:[%s197 + $0x190] sm:$0xf]
        %v352 = vld [vmem:[%s197 + $0x194] sm:$0xf]
        %v353 = vld [vmem:[%s197 + $0x198] sm:$0xf]
        %v354 = vld [vmem:[%s197 + $0x19c] sm:$0xf]
        %v355 = vld [vmem:[%s197 + $0x1a0] sm:$0xf]
        %v356 = vld [vmem:[%s197 + $0x1a4] sm:$0xf]
        %v357 = vld [vmem:[%s197 + $0x1a8] sm:$0xf]
        %v358 = vld [vmem:[%s197 + $0x1ac] sm:$0xf]
        %v359 = vld [vmem:[%s197 + $0x1b0] sm:$0xf]
        %v360 = vld [vmem:[%s197 + $0x1b4] sm:$0xf]
        %v361 = vld [vmem:[%s197 + $0x1b8] sm:$0xf]
        %v362 = vld [vmem:[%s197 + $0x1bc] sm:$0xf]
        %v363 = vld [vmem:[%s197 + $0x1c0] sm:$0xf]
        %v364 = vld [vmem:[%s197 + $0x1c4] sm:$0xf]
        %v365 = vld [vmem:[%s197 + $0x1c8] sm:$0xf]
        %v366 = vld [vmem:[%s197 + $0x1cc] sm:$0xf]
        %v367 = vld [vmem:[%s197 + $0x1d0] sm:$0xf]
        %v368 = vld [vmem:[%s197 + $0x1d4] sm:$0xf]
        %v369 = vld [vmem:[%s197 + $0x1d8] sm:$0xf]
        %v370 = vld [vmem:[%s197 + $0x1dc] sm:$0xf]
        %v371 = vld [vmem:[%s197 + $0x1e0] sm:$0xf]
        %v372 = vld [vmem:[%s197 + $0x1e4] sm:$0xf]
        %v373 = vld [vmem:[%s197 + $0x1e8] sm:$0xf]
        %v374 = vld [vmem:[%s197 + $0x1ec] sm:$0xf]
        %v375 = vld [vmem:[%s197 + $0x1f0] sm:$0xf]
        %v376 = vld [vmem:[%s197 + $0x1f4] sm:$0xf]
        %v377 = vld [vmem:[%s197 + $0x1f8] sm:$0xf]
        %v378 = vld [vmem:[%s197 + $0x1fc] sm:$0xf]
        %v379 = vld [vmem:[%s197 + $0x200] sm:$0xf]
        %v380 = vld [vmem:[%s197 + $0x204] sm:$0xf]
        %v381 = vld [vmem:[%s197 + $0x208] sm:$0xf]
        %v382 = vld [vmem:[%s197 + $0x20c] sm:$0xf]
        %v383 = vld [vmem:[%s197 + $0x210] sm:$0xf]
        %v384 = vld [vmem:[%s197 + $0x214] sm:$0xf]
        %v385 = vld [vmem:[%s197 + $0x218] sm:$0xf]
        %v386 = vld [vmem:[%s197 + $0x21c] sm:$0xf]
        %v387 = vld [vmem:[%s197 + $0x220] sm:$0xf]
        %v388 = vld [vmem:[%s197 + $0x224] sm:$0xf]
        %v389 = vld [vmem:[%s197 + $0x228] sm:$0xf]
        %v390 = vld [vmem:[%s197 + $0x22c] sm:$0xf]
        %v391 = vld [vmem:[%s197 + $0x230] sm:$0xf]
        %v392 = vld [vmem:[%s197 + $0x234] sm:$0xf]
        %v393 = vld [vmem:[%s197 + $0x238] sm:$0xf]
        %v394 = vld [vmem:[%s197 + $0x23c] sm:$0xf]
        %v395 = vld [vmem:[%s197 + $0x240] sm:$0xf]
        %v396 = vld [vmem:[%s197 + $0x244] sm:$0xf]
        %v397 = vld [vmem:[%s197 + $0x248] sm:$0xf]
        %v398 = vld [vmem:[%s197 + $0x24c] sm:$0xf]
        %v399 = vld [vmem:[%s197 + $0x250] sm:$0xf]
        %v400 = vld [vmem:[%s197 + $0x254] sm:$0xf]
        %v401 = vld [vmem:[%s197 + $0x258] sm:$0xf]
        %v402 = vld [vmem:[%s197 + $0x25c] sm:$0xf]
        %v403 = vld [vmem:[%s197 + $0x260] sm:$0xf]
        %v404 = vld [vmem:[%s197 + $0x264] sm:$0xf]
        %v405 = vld [vmem:[%s197 + $0x268] sm:$0xf]
        %v406 = vld [vmem:[%s197 + $0x26c] sm:$0xf]
        %v407 = vld [vmem:[%s197 + $0x270] sm:$0xf]
        %v408 = vld [vmem:[%s197 + $0x274] sm:$0xf]
        %v409 = vld [vmem:[%s197 + $0x278] sm:$0xf]
        %v410 = vld [vmem:[%s197 + $0x27c] sm:$0xf]
        %v411 = vld [vmem:[%s197 + $0x280] sm:$0xf]
        %v412 = vld [vmem:[%s197 + $0x284] sm:$0xf]
        %v413 = vld [vmem:[%s197 + $0x288] sm:$0xf]
        %v414 = vld [vmem:[%s197 + $0x28c] sm:$0xf]
        %v415 = vld [vmem:[%s197 + $0x290] sm:$0xf]
        %v416 = vld [vmem:[%s197 + $0x294] sm:$0xf]
        %v417 = vld [vmem:[%s197 + $0x298] sm:$0xf]
        %v418 = vld [vmem:[%s197 + $0x29c] sm:$0xf]
        %v419 = vld [vmem:[%s197 + $0x2a0] sm:$0xf]
        %v420 = vld [vmem:[%s197 + $0x2a4] sm:$0xf]
        %v421 = vld [vmem:[%s197 + $0x2a8] sm:$0xf]
        %v422 = vld [vmem:[%s197 + $0x2ac] sm:$0xf]
        %v423 = vld [vmem:[%s197 + $0x2b0] sm:$0xf]
        %v424 = vld [vmem:[%s197 + $0x2b4] sm:$0xf]
        %v425 = vld [vmem:[%s197 + $0x2b8] sm:$0xf]
        %v426 = vld [vmem:[%s197 + $0x2bc] sm:$0xf]
        %v427 = vld [vmem:[%s197 + $0x2c0] sm:$0xf]
        %v428 = vld [vmem:[%s197 + $0x2c4] sm:$0xf]
        %v429 = vld [vmem:[%s197 + $0x2c8] sm:$0xf]
        %v430 = vld [vmem:[%s197 + $0x2cc] sm:$0xf]
        %v431 = vld [vmem:[%s197 + $0x2d0] sm:$0xf]
        %v432 = vld [vmem:[%s197 + $0x2d4] sm:$0xf]
        %v433 = vld [vmem:[%s197 + $0x2d8] sm:$0xf]
        %v434 = vld [vmem:[%s197 + $0x2dc] sm:$0xf]
        %v435 = vld [vmem:[%s197 + $0x2e0] sm:$0xf]
        %v436 = vld [vmem:[%s197 + $0x2e4] sm:$0xf]
        %v437 = vld [vmem:[%s197 + $0x2e8] sm:$0xf]
        %v438 = vld [vmem:[%s197 + $0x2ec] sm:$0xf]
        %v439 = vld [vmem:[%s197 + $0x2f0] sm:$0xf]
        %v440 = vld [vmem:[%s197 + $0x2f4] sm:$0xf]
        %v441 = vld [vmem:[%s197 + $0x2f8] sm:$0xf]
        %v442 = vld [vmem:[%s197 + $0x2fc] sm:$0xf]
        %v443 = vld [vmem:[%s197 + $0x300] sm:$0xf]
        %v444 = vld [vmem:[%s197 + $0x304] sm:$0xf]
        %v445 = vld [vmem:[%s197 + $0x308] sm:$0xf]
        %v446 = vld [vmem:[%s197 + $0x30c] sm:$0xf]
        %v447 = vld [vmem:[%s197 + $0x310] sm:$0xf]
        %v448 = vld [vmem:[%s197 + $0x314] sm:$0xf]
        %v449 = vld [vmem:[%s197 + $0x318] sm:$0xf]
        %v450 = vld [vmem:[%s197 + $0x31c] sm:$0xf]
        %v451 = vld [vmem:[%s197 + $0x320] sm:$0xf]
        %v452 = vld [vmem:[%s197 + $0x324] sm:$0xf]
        %v453 = vld [vmem:[%s197 + $0x328] sm:$0xf]
        %v454 = vld [vmem:[%s197 + $0x32c] sm:$0xf]
        %v455 = vld [vmem:[%s197 + $0x330] sm:$0xf]
        %v456 = vld [vmem:[%s197 + $0x334] sm:$0xf]
        %v457 = vld [vmem:[%s197 + $0x338] sm:$0xf]
        %v458 = vld [vmem:[%s197 + $0x33c] sm:$0xf]
        %v459 = vld [vmem:[%s197 + $0x340] sm:$0xf]
        %v460 = vld [vmem:[%s197 + $0x344] sm:$0xf]
        %v461 = vld [vmem:[%s197 + $0x348] sm:$0xf]
        %v462 = vld [vmem:[%s197 + $0x34c] sm:$0xf]
        %v463 = vld [vmem:[%s197 + $0x350] sm:$0xf]
        %v464 = vld [vmem:[%s197 + $0x354] sm:$0xf]
        %v465 = vld [vmem:[%s197 + $0x358] sm:$0xf]
        %v466 = vld [vmem:[%s197 + $0x35c] sm:$0xf]
        %v467 = vld [vmem:[%s197 + $0x360] sm:$0xf]
        %v468 = vld [vmem:[%s197 + $0x364] sm:$0xf]
        %v469 = vld [vmem:[%s197 + $0x368] sm:$0xf]
        %v470 = vld [vmem:[%s197 + $0x36c] sm:$0xf]
        %v471 = vld [vmem:[%s197 + $0x370] sm:$0xf]
        %v472 = vld [vmem:[%s197 + $0x374] sm:$0xf]
        %v473 = vld [vmem:[%s197 + $0x378] sm:$0xf]
        %v474 = vld [vmem:[%s197 + $0x37c] sm:$0xf]
        %v475 = vld [vmem:[%s197 + $0x380] sm:$0xf]
        %v476 = vld [vmem:[%s197 + $0x384] sm:$0xf]
        %v477 = vld [vmem:[%s197 + $0x388] sm:$0xf]
        %v478 = vld [vmem:[%s197 + $0x38c] sm:$0xf]
        %v479 = vld [vmem:[%s197 + $0x390] sm:$0xf]
        %v480 = vld [vmem:[%s197 + $0x394] sm:$0xf]
        %v481 = vld [vmem:[%s197 + $0x398] sm:$0xf]
        %v482 = vld [vmem:[%s197 + $0x39c] sm:$0xf]
        %v483 = vld [vmem:[%s197 + $0x3a0] sm:$0xf]
        %v484 = vld [vmem:[%s197 + $0x3a4] sm:$0xf]
        %v485 = vld [vmem:[%s197 + $0x3a8] sm:$0xf]
        %v486 = vld [vmem:[%s197 + $0x3ac] sm:$0xf]
        %v487 = vld [vmem:[%s197 + $0x3b0] sm:$0xf]
        %v488 = vld [vmem:[%s197 + $0x3b4] sm:$0xf]
        %v489 = vld [vmem:[%s197 + $0x3b8] sm:$0xf]
        %v490 = vld [vmem:[%s197 + $0x3bc] sm:$0xf]
        %v491 = vld [vmem:[%s197 + $0x3c0] sm:$0xf]
        %v492 = vld [vmem:[%s197 + $0x3c4] sm:$0xf]
        %v493 = vld [vmem:[%s197 + $0x3c8] sm:$0xf]
        %v494 = vld [vmem:[%s197 + $0x3cc] sm:$0xf]
        %v495 = vld [vmem:[%s197 + $0x3d0] sm:$0xf]
        %v496 = vld [vmem:[%s197 + $0x3d4] sm:$0xf]
        %v497 = vld [vmem:[%s197 + $0x3d8] sm:$0xf]
        %v498 = vld [vmem:[%s197 + $0x3dc] sm:$0xf]
        %v499 = vld [vmem:[%s197 + $0x3e0] sm:$0xf]
        %v500 = vld [vmem:[%s197 + $0x3e4] sm:$0xf]
        %v501 = vld [vmem:[%s197 + $0x3e8] sm:$0xf]
        %v502 = vld [vmem:[%s197 + $0x3ec] sm:$0xf]
        %v503 = vld [vmem:[%s197 + $0x3f0] sm:$0xf]
        %v504 = vld [vmem:[%s197 + $0x3f4] sm:$0xf]
        %v505 = vld [vmem:[%s197 + $0x3f8] sm:$0xf]
        %v506 = vld [vmem:[%s197 + $0x3fc] sm:$0xf]
        %v507 = vld [vmem:[%s197 + $0x400] sm:$0xf]
        %v508 = vld [vmem:[%s197 + $0x404] sm:$0xf]
        %v509 = vld [vmem:[%s197 + $0x408] sm:$0xf]
        %v510 = vld [vmem:[%s197 + $0x40c] sm:$0xf]
        %v511 = vld [vmem:[%s197 + $0x410] sm:$0xf]
        %v512 = vld [vmem:[%s197 + $0x414] sm:$0xf]
        %v513 = vld [vmem:[%s197 + $0x418] sm:$0xf]
        %v514 = vld [vmem:[%s197 + $0x41c] sm:$0xf]
        %v515 = vld [vmem:[%s197 + $0x420] sm:$0xf]
        %v516 = vld [vmem:[%s197 + $0x424] sm:$0xf]
        %v517 = vld [vmem:[%s197 + $0x428] sm:$0xf]
        %v518 = vld [vmem:[%s197 + $0x42c] sm:$0xf]
        %v519 = vld [vmem:[%s197 + $0x430] sm:$0xf]
        %v520 = vld [vmem:[%s197 + $0x434] sm:$0xf]
        %v521 = vld [vmem:[%s197 + $0x438] sm:$0xf]
        %v522 = vld [vmem:[%s197 + $0x43c] sm:$0xf]
        %v523 = vld [vmem:[%s197 + $0x440] sm:$0xf]
        %v524 = vld [vmem:[%s197 + $0x444] sm:$0xf]
        %v525 = vld [vmem:[%s197 + $0x448] sm:$0xf]
        %v526 = vld [vmem:[%s197 + $0x44c] sm:$0xf]
        %v527 = vld [vmem:[%s197 + $0x450] sm:$0xf]
        %v528 = vld [vmem:[%s197 + $0x454] sm:$0xf]
        %v529 = vld [vmem:[%s197 + $0x458] sm:$0xf]
        %v530 = vld [vmem:[%s197 + $0x45c] sm:$0xf]
        %v531 = vld [vmem:[%s197 + $0x460] sm:$0xf]
        %v532 = vld [vmem:[%s197 + $0x464] sm:$0xf]
        %v533 = vld [vmem:[%s197 + $0x468] sm:$0xf]
        %v534 = vld [vmem:[%s197 + $0x46c] sm:$0xf]
        %v535 = vld [vmem:[%s197 + $0x470] sm:$0xf]
        %v536 = vld [vmem:[%s197 + $0x474] sm:$0xf]
        %v537 = vld [vmem:[%s197 + $0x478] sm:$0xf]
        %v538 = vld [vmem:[%s197 + $0x47c] sm:$0xf]
        %v539 = vld [vmem:[%s197 + $0x480] sm:$0xf]
        %v540 = vld [vmem:[%s197 + $0x484] sm:$0xf]
        %v541 = vld [vmem:[%s197 + $0x488] sm:$0xf]
        %v542 = vld [vmem:[%s197 + $0x48c] sm:$0xf]
        %v543 = vld [vmem:[%s197 + $0x490] sm:$0xf]
        %v544 = vld [vmem:[%s197 + $0x494] sm:$0xf]
        %v545 = vld [vmem:[%s197 + $0x498] sm:$0xf]
        %v546 = vld [vmem:[%s197 + $0x49c] sm:$0xf]
        %v547 = vld [vmem:[%s197 + $0x4a0] sm:$0xf]
        %v548 = vld [vmem:[%s197 + $0x4a4] sm:$0xf]
        %v549 = vld [vmem:[%s197 + $0x4a8] sm:$0xf]
        %v550 = vld [vmem:[%s197 + $0x4ac] sm:$0xf]
        %v551 = vld [vmem:[%s197 + $0x4b0] sm:$0xf]
        %v552 = vld [vmem:[%s197 + $0x4b4] sm:$0xf]
        %v553 = vld [vmem:[%s197 + $0x4b8] sm:$0xf]
        %v554 = vld [vmem:[%s197 + $0x4bc] sm:$0xf]
        %v555 = vld [vmem:[%s197 + $0x4c0] sm:$0xf]
        %v556 = vld [vmem:[%s197 + $0x4c4] sm:$0xf]
        %v557 = vld [vmem:[%s197 + $0x4c8] sm:$0xf]
        %v558 = vld [vmem:[%s197 + $0x4cc] sm:$0xf]
        %v559 = vld [vmem:[%s197 + $0x4d0] sm:$0xf]
        %v560 = vld [vmem:[%s197 + $0x4d4] sm:$0xf]
        %v561 = vld [vmem:[%s197 + $0x4d8] sm:$0xf]
        %v562 = vld [vmem:[%s197 + $0x4dc] sm:$0xf]
        %v563 = vld [vmem:[%s197 + $0x4e0] sm:$0xf]
        %v564 = vld [vmem:[%s197 + $0x4e4] sm:$0xf]
        %v565 = vld [vmem:[%s197 + $0x4e8] sm:$0xf]
        %v566 = vld [vmem:[%s197 + $0x4ec] sm:$0xf]
        %v567 = vld [vmem:[%s197 + $0x4f0] sm:$0xf]
        %v568 = vld [vmem:[%s197 + $0x4f4] sm:$0xf]
        %v569 = vld [vmem:[%s197 + $0x4f8] sm:$0xf]
        %v570 = vld [vmem:[%s197 + $0x4fc] sm:$0xf]
        %v571 = vld [vmem:[%s197 + $0x500] sm:$0xf]
        %v572 = vld [vmem:[%s197 + $0x504] sm:$0xf]
        %v573 = vld [vmem:[%s197 + $0x508] sm:$0xf]
        %v574 = vld [vmem:[%s197 + $0x50c] sm:$0xf]
        %v575 = vld [vmem:[%s197 + $0x510] sm:$0xf]
        %v576 = vld [vmem:[%s197 + $0x514] sm:$0xf]
        %v577 = vld [vmem:[%s197 + $0x518] sm:$0xf]
        %v578 = vld [vmem:[%s197 + $0x51c] sm:$0xf]
        %v579 = vld [vmem:[%s197 + $0x520] sm:$0xf]
        %v580 = vld [vmem:[%s197 + $0x524] sm:$0xf]
        %v581 = vld [vmem:[%s197 + $0x528] sm:$0xf]
        %v582 = vld [vmem:[%s197 + $0x52c] sm:$0xf]
        %v583 = vld [vmem:[%s197 + $0x530] sm:$0xf]
        %v584 = vld [vmem:[%s197 + $0x534] sm:$0xf]
        %v585 = vld [vmem:[%s197 + $0x538] sm:$0xf]
        %v586 = vld [vmem:[%s197 + $0x53c] sm:$0xf]
        %v587 = vld [vmem:[%s197 + $0x540] sm:$0xf]
        %v588 = vld [vmem:[%s197 + $0x544] sm:$0xf]
        %v589 = vld [vmem:[%s197 + $0x548] sm:$0xf]
        %v590 = vld [vmem:[%s197 + $0x54c] sm:$0xf]
        %v591 = vld [vmem:[%s197 + $0x550] sm:$0xf]
        %v592 = vld [vmem:[%s197 + $0x554] sm:$0xf]
        %v593 = vld [vmem:[%s197 + $0x558] sm:$0xf]
        %v594 = vld [vmem:[%s197 + $0x55c] sm:$0xf]
        %v595 = vld [vmem:[%s197 + $0x560] sm:$0xf]
        %v596 = vld [vmem:[%s197 + $0x564] sm:$0xf]
        %v597 = vld [vmem:[%s197 + $0x568] sm:$0xf]
        %v598 = vld [vmem:[%s197 + $0x56c] sm:$0xf]
        %v599 = vld [vmem:[%s197 + $0x570] sm:$0xf]
        %v600 = vld [vmem:[%s197 + $0x574] sm:$0xf]
        %v601 = vld [vmem:[%s197 + $0x578] sm:$0xf]
        %v602 = vld [vmem:[%s197 + $0x57c] sm:$0xf]
        %v603 = vld [vmem:[%s197 + $0x580] sm:$0xf]
        %v604 = vld [vmem:[%s197 + $0x584] sm:$0xf]
        %v605 = vld [vmem:[%s197 + $0x588] sm:$0xf]
        %v606 = vld [vmem:[%s197 + $0x58c] sm:$0xf]
        %v607 = vld [vmem:[%s197 + $0x590] sm:$0xf]
        %v608 = vld [vmem:[%s197 + $0x594] sm:$0xf]
        %v609 = vld [vmem:[%s197 + $0x598] sm:$0xf]
        %v610 = vld [vmem:[%s197 + $0x59c] sm:$0xf]
        %v611 = vld [vmem:[%s197 + $0x5a0] sm:$0xf]
        %v612 = vld [vmem:[%s197 + $0x5a4] sm:$0xf]
        %v613 = vld [vmem:[%s197 + $0x5a8] sm:$0xf]
        %v614 = vld [vmem:[%s197 + $0x5ac] sm:$0xf]
        %v615 = vld [vmem:[%s197 + $0x5b0] sm:$0xf]
        %v616 = vld [vmem:[%s197 + $0x5b4] sm:$0xf]
        %v617 = vld [vmem:[%s197 + $0x5b8] sm:$0xf]
        %v618 = vld [vmem:[%s197 + $0x5bc] sm:$0xf]
        %v619 = vld [vmem:[%s197 + $0x5c0] sm:$0xf]
        %v620 = vld [vmem:[%s197 + $0x5c4] sm:$0xf]
        %v621 = vld [vmem:[%s197 + $0x5c8] sm:$0xf]
        %v622 = vld [vmem:[%s197 + $0x5cc] sm:$0xf]
        %v623 = vld [vmem:[%s197 + $0x5d0] sm:$0xf]
        %v624 = vld [vmem:[%s197 + $0x5d4] sm:$0xf]
        %v625 = vld [vmem:[%s197 + $0x5d8] sm:$0xf]
        %v626 = vld [vmem:[%s197 + $0x5dc] sm:$0xf]
        %v627 = vld [vmem:[%s197 + $0x5e0] sm:$0xf]
        %v628 = vld [vmem:[%s197 + $0x5e4] sm:$0xf]
        %v629 = vld [vmem:[%s197 + $0x5e8] sm:$0xf]
        %v630 = vld [vmem:[%s197 + $0x5ec] sm:$0xf]
        %v631 = vld [vmem:[%s197 + $0x5f0] sm:$0xf]
        %v632 = vld [vmem:[%s197 + $0x5f4] sm:$0xf]
        %v633 = vld [vmem:[%s197 + $0x5f8] sm:$0xf]
        %v634 = vld [vmem:[%s197 + $0x5fc] sm:$0xf]
        %v635 = vld [vmem:[%s197 + $0x600] sm:$0xf]
        %v636 = vld [vmem:[%s197 + $0x604] sm:$0xf]
        %v637 = vld [vmem:[%s197 + $0x608] sm:$0xf]
        %v638 = vld [vmem:[%s197 + $0x60c] sm:$0xf]
        %v639 = vld [vmem:[%s197 + $0x610] sm:$0xf]
        %v640 = vld [vmem:[%s197 + $0x614] sm:$0xf]
        %v641 = vld [vmem:[%s197 + $0x618] sm:$0xf]
        %v642 = vld [vmem:[%s197 + $0x61c] sm:$0xf]
        %v643 = vld [vmem:[%s197 + $0x620] sm:$0xf]
        %v644 = vld [vmem:[%s197 + $0x624] sm:$0xf]
        %v645 = vld [vmem:[%s197 + $0x628] sm:$0xf]
        %v646 = vld [vmem:[%s197 + $0x62c] sm:$0xf]
        %v647 = vld [vmem:[%s197 + $0x630] sm:$0xf]
        %v648 = vld [vmem:[%s197 + $0x634] sm:$0xf]
        %v649 = vld [vmem:[%s197 + $0x638] sm:$0xf]
        %v650 = vld [vmem:[%s197 + $0x63c] sm:$0xf]
        %v651 = vld [vmem:[%s197 + $0x640] sm:$0xf]
        %v652 = vld [vmem:[%s197 + $0x644] sm:$0xf]
        %v653 = vld [vmem:[%s197 + $0x648] sm:$0xf]
        %v654 = vld [vmem:[%s197 + $0x64c] sm:$0xf]
        %v655 = vld [vmem:[%s197 + $0x650] sm:$0xf]
        %v656 = vld [vmem:[%s197 + $0x654] sm:$0xf]
        %v657 = vld [vmem:[%s197 + $0x658] sm:$0xf]
        %v658 = vld [vmem:[%s197 + $0x65c] sm:$0xf]
        %v659 = vld [vmem:[%s197 + $0x660] sm:$0xf]
        %v660 = vld [vmem:[%s197 + $0x664] sm:$0xf]
        %v661 = vld [vmem:[%s197 + $0x668] sm:$0xf]
        %v662 = vld [vmem:[%s197 + $0x66c] sm:$0xf]
        %v663 = vld [vmem:[%s197 + $0x670] sm:$0xf]
        %v664 = vld [vmem:[%s197 + $0x674] sm:$0xf]
        %v665 = vld [vmem:[%s197 + $0x678] sm:$0xf]
        %v666 = vld [vmem:[%s197 + $0x67c] sm:$0xf]
        %v667 = vld [vmem:[%s197 + $0x680] sm:$0xf]
        %v668 = vld [vmem:[%s197 + $0x684] sm:$0xf]
        %v669 = vld [vmem:[%s197 + $0x688] sm:$0xf]
        %v670 = vld [vmem:[%s197 + $0x68c] sm:$0xf]
        %v671 = vld [vmem:[%s197 + $0x690] sm:$0xf]
        %v672 = vld [vmem:[%s197 + $0x694] sm:$0xf]
        %v673 = vld [vmem:[%s197 + $0x698] sm:$0xf]
        %v674 = vld [vmem:[%s197 + $0x69c] sm:$0xf]
        %v675 = vld [vmem:[%s197 + $0x6a0] sm:$0xf]
        %v676 = vld [vmem:[%s197 + $0x6a4] sm:$0xf]
        %v677 = vld [vmem:[%s197 + $0x6a8] sm:$0xf]
        %v678 = vld [vmem:[%s197 + $0x6ac] sm:$0xf]
        %v679 = vld [vmem:[%s197 + $0x6b0] sm:$0xf]
        %v680 = vld [vmem:[%s197 + $0x6b4] sm:$0xf]
        %v681 = vld [vmem:[%s197 + $0x6b8] sm:$0xf]
        %v682 = vld [vmem:[%s197 + $0x6bc] sm:$0xf]
        %v683 = vld [vmem:[%s197 + $0x6c0] sm:$0xf]
        %v684 = vld [vmem:[%s197 + $0x6c4] sm:$0xf]
        %v685 = vld [vmem:[%s197 + $0x6c8] sm:$0xf]
        %v686 = vld [vmem:[%s197 + $0x6cc] sm:$0xf]
        %v687 = vld [vmem:[%s197 + $0x6d0] sm:$0xf]
        %v688 = vld [vmem:[%s197 + $0x6d4] sm:$0xf]
        %v689 = vld [vmem:[%s197 + $0x6d8] sm:$0xf]
        %v690 = vld [vmem:[%s197 + $0x6dc] sm:$0xf]
        %v691 = vld [vmem:[%s197 + $0x6e0] sm:$0xf]
        %v692 = vld [vmem:[%s197 + $0x6e4] sm:$0xf]
        %v693 = vld [vmem:[%s197 + $0x6e8] sm:$0xf]
        %v694 = vld [vmem:[%s197 + $0x6ec] sm:$0xf]
        %v695 = vld [vmem:[%s197 + $0x6f0] sm:$0xf]
        %v696 = vld [vmem:[%s197 + $0x6f4] sm:$0xf]
        %v697 = vld [vmem:[%s197 + $0x6f8] sm:$0xf]
        %v698 = vld [vmem:[%s197 + $0x6fc] sm:$0xf]
        %v699 = vld [vmem:[%s197 + $0x700] sm:$0xf]
        %v700 = vld [vmem:[%s197 + $0x704] sm:$0xf]
        %v701 = vld [vmem:[%s197 + $0x708] sm:$0xf]
        %v702 = vld [vmem:[%s197 + $0x70c] sm:$0xf]
        %v703 = vld [vmem:[%s197 + $0x710] sm:$0xf]
        %v704 = vld [vmem:[%s197 + $0x714] sm:$0xf]
        %v705 = vld [vmem:[%s197 + $0x718] sm:$0xf]
        %v706 = vld [vmem:[%s197 + $0x71c] sm:$0xf]
        %v707 = vld [vmem:[%s197 + $0x720] sm:$0xf]
        %v708 = vld [vmem:[%s197 + $0x724] sm:$0xf]
        %v709 = vld [vmem:[%s197 + $0x728] sm:$0xf]
        %v710 = vld [vmem:[%s197 + $0x72c] sm:$0xf]
        %v711 = vld [vmem:[%s197 + $0x730] sm:$0xf]
        %v712 = vld [vmem:[%s197 + $0x734] sm:$0xf]
        %v713 = vld [vmem:[%s197 + $0x738] sm:$0xf]
        %v714 = vld [vmem:[%s197 + $0x73c] sm:$0xf]
        %v715 = vld [vmem:[%s197 + $0x740] sm:$0xf]
        %v716 = vld [vmem:[%s197 + $0x744] sm:$0xf]
        %v717 = vld [vmem:[%s197 + $0x748] sm:$0xf]
        %v718 = vld [vmem:[%s197 + $0x74c] sm:$0xf]
        %v719 = vld [vmem:[%s197 + $0x750] sm:$0xf]
        %v720 = vld [vmem:[%s197 + $0x754] sm:$0xf]
        %v721 = vld [vmem:[%s197 + $0x758] sm:$0xf]
        %v722 = vld [vmem:[%s197 + $0x75c] sm:$0xf]
        %v723 = vld [vmem:[%s197 + $0x760] sm:$0xf]
        %v724 = vld [vmem:[%s197 + $0x764] sm:$0xf]
        %v725 = vld [vmem:[%s197 + $0x768] sm:$0xf]
        %v726 = vld [vmem:[%s197 + $0x76c] sm:$0xf]
        %v727 = vld [vmem:[%s197 + $0x770] sm:$0xf]
        %v728 = vld [vmem:[%s197 + $0x774] sm:$0xf]
        %v729 = vld [vmem:[%s197 + $0x778] sm:$0xf]
        %v730 = vld [vmem:[%s197 + $0x77c] sm:$0xf]
        %v731 = vld [vmem:[%s197 + $0x780] sm:$0xf]
        %v732 = vld [vmem:[%s197 + $0x784] sm:$0xf]
        %v733 = vld [vmem:[%s197 + $0x788] sm:$0xf]
        %v734 = vld [vmem:[%s197 + $0x78c] sm:$0xf]
        %v735 = vld [vmem:[%s197 + $0x790] sm:$0xf]
        %v736 = vld [vmem:[%s197 + $0x794] sm:$0xf]
        %v737 = vld [vmem:[%s197 + $0x798] sm:$0xf]
        %v738 = vld [vmem:[%s197 + $0x79c] sm:$0xf]
        %v739 = vld [vmem:[%s197 + $0x7a0] sm:$0xf]
        %v740 = vld [vmem:[%s197 + $0x7a4] sm:$0xf]
        %v741 = vld [vmem:[%s197 + $0x7a8] sm:$0xf]
        %v742 = vld [vmem:[%s197 + $0x7ac] sm:$0xf]
        %v743 = vld [vmem:[%s197 + $0x7b0] sm:$0xf]
        %v744 = vld [vmem:[%s197 + $0x7b4] sm:$0xf]
        %v745 = vld [vmem:[%s197 + $0x7b8] sm:$0xf]
        %v746 = vld [vmem:[%s197 + $0x7bc] sm:$0xf]
        %v747 = vld [vmem:[%s197 + $0x7c0] sm:$0xf]
        %v748 = vld [vmem:[%s197 + $0x7c4] sm:$0xf]
        %v749 = vld [vmem:[%s197 + $0x7c8] sm:$0xf]
        %v750 = vld [vmem:[%s197 + $0x7cc] sm:$0xf]
        %v751 = vld [vmem:[%s197 + $0x7d0] sm:$0xf]
        %v752 = vld [vmem:[%s197 + $0x7d4] sm:$0xf]
        %v753 = vld [vmem:[%s197 + $0x7d8] sm:$0xf]
        %v754 = vld [vmem:[%s197 + $0x7dc] sm:$0xf]
        %v755 = vld [vmem:[%s197 + $0x7e0] sm:$0xf]
        %v756 = vld [vmem:[%s197 + $0x7e4] sm:$0xf]
        %v757 = vld [vmem:[%s197 + $0x7e8] sm:$0xf]
        %v758 = vld [vmem:[%s197 + $0x7ec] sm:$0xf]
        %v759 = vld [vmem:[%s197 + $0x7f0] sm:$0xf]
        %v760 = vld [vmem:[%s197 + $0x7f4] sm:$0xf]
        %v761 = vld [vmem:[%s197 + $0x7f8] sm:$0xf]
        %v762 = vld [vmem:[%s197 + $0x7fc] sm:$0xf]
        %v763 = vld [vmem:[%s197 + $0x800] sm:$0xf]
        %v764 = vld [vmem:[%s197 + $0x804] sm:$0xf]
        %v765 = vld [vmem:[%s197 + $0x808] sm:$0xf]
        %v766 = vld [vmem:[%s197 + $0x80c] sm:$0xf]
        %v767 = vld [vmem:[%s197 + $0x810] sm:$0xf]
        %v768 = vld [vmem:[%s197 + $0x814] sm:$0xf]
        %v769 = vld [vmem:[%s197 + $0x818] sm:$0xf]
        %v770 = vld [vmem:[%s197 + $0x81c] sm:$0xf]
        %v771 = vld [vmem:[%s197 + $0x820] sm:$0xf]
        %v772 = vld [vmem:[%s197 + $0x824] sm:$0xf]
        %v773 = vld [vmem:[%s197 + $0x828] sm:$0xf]
        %v774 = vld [vmem:[%s197 + $0x82c] sm:$0xf]
        %v775 = vld [vmem:[%s197 + $0x830] sm:$0xf]
        %v776 = vld [vmem:[%s197 + $0x834] sm:$0xf]
        %v777 = vld [vmem:[%s197 + $0x838] sm:$0xf]
        %v778 = vld [vmem:[%s197 + $0x83c] sm:$0xf]
        %v779 = vld [vmem:[%s197 + $0x840] sm:$0xf]
        %v780 = vld [vmem:[%s197 + $0x844] sm:$0xf]
        %v781 = vld [vmem:[%s197 + $0x848] sm:$0xf]
        %v782 = vld [vmem:[%s197 + $0x84c] sm:$0xf]
        %v783 = vld [vmem:[%s197 + $0x850] sm:$0xf]
        %v784 = vld [vmem:[%s197 + $0x854] sm:$0xf]
        %v785 = vld [vmem:[%s197 + $0x858] sm:$0xf]
        %v786 = vld [vmem:[%s197 + $0x85c] sm:$0xf]
        %v787 = vld [vmem:[%s197 + $0x860] sm:$0xf]
        %v788 = vld [vmem:[%s197 + $0x864] sm:$0xf]
        %v789 = vld [vmem:[%s197 + $0x868] sm:$0xf]
        %v790 = vld [vmem:[%s197 + $0x86c] sm:$0xf]
        %v791 = vld [vmem:[%s197 + $0x870] sm:$0xf]
        %v792 = vld [vmem:[%s197 + $0x874] sm:$0xf]
        %v793 = vld [vmem:[%s197 + $0x878] sm:$0xf]
        %v794 = vld [vmem:[%s197 + $0x87c] sm:$0xf]
        %v795 = vld [vmem:[%s197 + $0x880] sm:$0xf]
        %v796 = vld [vmem:[%s197 + $0x884] sm:$0xf]
        %v797 = vld [vmem:[%s197 + $0x888] sm:$0xf]
        %v798 = vld [vmem:[%s197 + $0x88c] sm:$0xf]
        %v799 = vld [vmem:[%s197 + $0x890] sm:$0xf]
        %v800 = vld [vmem:[%s197 + $0x894] sm:$0xf]
        %v801 = vld [vmem:[%s197 + $0x898] sm:$0xf]
        %v802 = vld [vmem:[%s197 + $0x89c] sm:$0xf]
        %v803 = vld [vmem:[%s197 + $0x8a0] sm:$0xf]
        %v804 = vld [vmem:[%s197 + $0x8a4] sm:$0xf]
        %v805 = vld [vmem:[%s197 + $0x8a8] sm:$0xf]
        %v806 = vld [vmem:[%s197 + $0x8ac] sm:$0xf]
        %v807 = vld [vmem:[%s197 + $0x8b0] sm:$0xf]
        %v808 = vld [vmem:[%s197 + $0x8b4] sm:$0xf]
        %v809 = vld [vmem:[%s197 + $0x8b8] sm:$0xf]
        %v810 = vld [vmem:[%s197 + $0x8bc] sm:$0xf]
        %v811 = vld [vmem:[%s197 + $0x8c0] sm:$0xf]
        %v812 = vld [vmem:[%s197 + $0x8c4] sm:$0xf]
        %v813 = vld [vmem:[%s197 + $0x8c8] sm:$0xf]
        %v814 = vld [vmem:[%s197 + $0x8cc] sm:$0xf]
        %v815 = vld [vmem:[%s197 + $0x8d0] sm:$0xf]
        %v816 = vld [vmem:[%s197 + $0x8d4] sm:$0xf]
        %v817 = vld [vmem:[%s197 + $0x8d8] sm:$0xf]
        %v818 = vld [vmem:[%s197 + $0x8dc] sm:$0xf]
        %v819 = vld [vmem:[%s197 + $0x8e0] sm:$0xf]
        %v820 = vld [vmem:[%s197 + $0x8e4] sm:$0xf]
        %v821 = vld [vmem:[%s197 + $0x8e8] sm:$0xf]
        %v822 = vld [vmem:[%s197 + $0x8ec] sm:$0xf]
        %v823 = vld [vmem:[%s197 + $0x8f0] sm:$0xf]
        %v824 = vld [vmem:[%s197 + $0x8f4] sm:$0xf]
        %v825 = vld [vmem:[%s197 + $0x8f8] sm:$0xf]
        %v826 = vld [vmem:[%s197 + $0x8fc] sm:$0xf]
        %v827 = vld [vmem:[%s197 + $0x900] sm:$0xf]
        %v828 = vld [vmem:[%s197 + $0x904] sm:$0xf]
        %v829 = vld [vmem:[%s197 + $0x908] sm:$0xf]
        %v830 = vld [vmem:[%s197 + $0x90c] sm:$0xf]
        %v831 = vld [vmem:[%s197 + $0x910] sm:$0xf]
        %v832 = vld [vmem:[%s197 + $0x914] sm:$0xf]
        %v833 = vld [vmem:[%s197 + $0x918] sm:$0xf]
        %v834 = vld [vmem:[%s197 + $0x91c] sm:$0xf]
        %v835 = vld [vmem:[%s197 + $0x920] sm:$0xf]
        %v836 = vld [vmem:[%s197 + $0x924] sm:$0xf]
        %v837 = vld [vmem:[%s197 + $0x928] sm:$0xf]
        %v838 = vld [vmem:[%s197 + $0x92c] sm:$0xf]
        %v839 = vld [vmem:[%s197 + $0x930] sm:$0xf]
        %v840 = vld [vmem:[%s197 + $0x934] sm:$0xf]
        %v841 = vld [vmem:[%s197 + $0x938] sm:$0xf]
        %v842 = vld [vmem:[%s197 + $0x93c] sm:$0xf]
        %v843 = vld [vmem:[%s197 + $0x940] sm:$0xf]
        %v844 = vld [vmem:[%s197 + $0x944] sm:$0xf]
        %v845 = vld [vmem:[%s197 + $0x948] sm:$0xf]
        %v846 = vld [vmem:[%s197 + $0x94c] sm:$0xf]
        %v847 = vld [vmem:[%s197 + $0x950] sm:$0xf]
        %v848 = vld [vmem:[%s197 + $0x954] sm:$0xf]
        %v849 = vld [vmem:[%s197 + $0x958] sm:$0xf]
        %v850 = vld [vmem:[%s197 + $0x95c] sm:$0xf]
        %v851 = vld [vmem:[%s197 + $0x960] sm:$0xf]
        %v852 = vld [vmem:[%s197 + $0x964] sm:$0xf]
        %v853 = vld [vmem:[%s197 + $0x968] sm:$0xf]
        %v854 = vld [vmem:[%s197 + $0x96c] sm:$0xf]
        %v855 = vld [vmem:[%s197 + $0x970] sm:$0xf]
        %v856 = vld [vmem:[%s197 + $0x974] sm:$0xf]
        %v857 = vld [vmem:[%s197 + $0x978] sm:$0xf]
        %v858 = vld [vmem:[%s197 + $0x97c] sm:$0xf]
        %v859 = vld [vmem:[%s197 + $0x980] sm:$0xf]
        %v860 = vld [vmem:[%s197 + $0x984] sm:$0xf]
        %v861 = vld [vmem:[%s197 + $0x988] sm:$0xf]
        %v862 = vld [vmem:[%s197 + $0x98c] sm:$0xf]
        %v863 = vld [vmem:[%s197 + $0x990] sm:$0xf]
        %v864 = vld [vmem:[%s197 + $0x994] sm:$0xf]
        %v865 = vld [vmem:[%s197 + $0x998] sm:$0xf]
        %v866 = vld [vmem:[%s197 + $0x99c] sm:$0xf]
        %v867 = vld [vmem:[%s197 + $0x9a0] sm:$0xf]
        %v868 = vld [vmem:[%s197 + $0x9a4] sm:$0xf]
        %v869 = vld [vmem:[%s197 + $0x9a8] sm:$0xf]
        %v870 = vld [vmem:[%s197 + $0x9ac] sm:$0xf]
        %v871 = vld [vmem:[%s197 + $0x9b0] sm:$0xf]
        %v872 = vld [vmem:[%s197 + $0x9b4] sm:$0xf]
        %v873 = vld [vmem:[%s197 + $0x9b8] sm:$0xf]
        %v874 = vld [vmem:[%s197 + $0x9bc] sm:$0xf]
        %v875 = vld [vmem:[%s197 + $0x9c0] sm:$0xf]
        %v876 = vld [vmem:[%s197 + $0x9c4] sm:$0xf]
        %v877 = vld [vmem:[%s197 + $0x9c8] sm:$0xf]
        %v878 = vld [vmem:[%s197 + $0x9cc] sm:$0xf]
        %v879 = vld [vmem:[%s197 + $0x9d0] sm:$0xf]
        %v880 = vld [vmem:[%s197 + $0x9d4] sm:$0xf]
        %v881 = vld [vmem:[%s197 + $0x9d8] sm:$0xf]
        %v882 = vld [vmem:[%s197 + $0x9dc] sm:$0xf]
        %v883 = vld [vmem:[%s197 + $0x9e0] sm:$0xf]
        %v884 = vld [vmem:[%s197 + $0x9e4] sm:$0xf]
        %v885 = vld [vmem:[%s197 + $0x9e8] sm:$0xf]
        %v886 = vld [vmem:[%s197 + $0x9ec] sm:$0xf]
        %v887 = vld [vmem:[%s197 + $0x9f0] sm:$0xf]
        %v888 = vld [vmem:[%s197 + $0x9f4] sm:$0xf]
        %v889 = vld [vmem:[%s197 + $0x9f8] sm:$0xf]
        %v890 = vld [vmem:[%s197 + $0x9fc] sm:$0xf]
        %v891 = vld [vmem:[%s197 + $0xa00] sm:$0xf]
        %v892 = vld [vmem:[%s197 + $0xa04] sm:$0xf]
        %v893 = vld [vmem:[%s197 + $0xa08] sm:$0xf]
        %v894 = vld [vmem:[%s197 + $0xa0c] sm:$0xf]
        %v895 = vld [vmem:[%s197 + $0xa10] sm:$0xf]
        %v896 = vld [vmem:[%s197 + $0xa14] sm:$0xf]
        %v897 = vld [vmem:[%s197 + $0xa18] sm:$0xf]
        %v898 = vld [vmem:[%s197 + $0xa1c] sm:$0xf]
        %v899 = vld [vmem:[%s197 + $0xa20] sm:$0xf]
        %v900 = vld [vmem:[%s197 + $0xa24] sm:$0xf]
        %v901 = vld [vmem:[%s197 + $0xa28] sm:$0xf]
        %v902 = vld [vmem:[%s197 + $0xa2c] sm:$0xf]
        %v903 = vld [vmem:[%s197 + $0xa30] sm:$0xf]
        %v904 = vld [vmem:[%s197 + $0xa34] sm:$0xf]
        %v905 = vld [vmem:[%s197 + $0xa38] sm:$0xf]
        %v906 = vld [vmem:[%s197 + $0xa3c] sm:$0xf]
        %v907 = vld [vmem:[%s197 + $0xa40] sm:$0xf]
        %v908 = vld [vmem:[%s197 + $0xa44] sm:$0xf]
        %v909 = vld [vmem:[%s197 + $0xa48] sm:$0xf]
        %v910 = vld [vmem:[%s197 + $0xa4c] sm:$0xf]
        %v911 = vld [vmem:[%s197 + $0xa50] sm:$0xf]
        %v912 = vld [vmem:[%s197 + $0xa54] sm:$0xf]
        %v913 = vld [vmem:[%s197 + $0xa58] sm:$0xf]
        %v914 = vld [vmem:[%s197 + $0xa5c] sm:$0xf]
        %v915 = vld [vmem:[%s197 + $0xa60] sm:$0xf]
        %v916 = vld [vmem:[%s197 + $0xa64] sm:$0xf]
        %v917 = vld [vmem:[%s197 + $0xa68] sm:$0xf]
        %v918 = vld [vmem:[%s197 + $0xa6c] sm:$0xf]
        %v919 = vld [vmem:[%s197 + $0xa70] sm:$0xf]
        %v920 = vld [vmem:[%s197 + $0xa74] sm:$0xf]
        %v921 = vld [vmem:[%s197 + $0xa78] sm:$0xf]
        %v922 = vld [vmem:[%s197 + $0xa7c] sm:$0xf]
        %v923 = vld [vmem:[%s197 + $0xa80] sm:$0xf]
        %v924 = vld [vmem:[%s197 + $0xa84] sm:$0xf]
        %v925 = vld [vmem:[%s197 + $0xa88] sm:$0xf]
        %v926 = vld [vmem:[%s197 + $0xa8c] sm:$0xf]
        %v927 = vld [vmem:[%s197 + $0xa90] sm:$0xf]
        %v928 = vld [vmem:[%s197 + $0xa94] sm:$0xf]
        %v929 = vld [vmem:[%s197 + $0xa98] sm:$0xf]
        %v930 = vld [vmem:[%s197 + $0xa9c] sm:$0xf]
        %v931 = vld [vmem:[%s197 + $0xaa0] sm:$0xf]
        %v932 = vld [vmem:[%s197 + $0xaa4] sm:$0xf]
        %v933 = vld [vmem:[%s197 + $0xaa8] sm:$0xf]
        %v934 = vld [vmem:[%s197 + $0xaac] sm:$0xf]
        %v935 = vld [vmem:[%s197 + $0xab0] sm:$0xf]
        %v936 = vld [vmem:[%s197 + $0xab4] sm:$0xf]
        %v937 = vld [vmem:[%s197 + $0xab8] sm:$0xf]
        %v938 = vld [vmem:[%s197 + $0xabc] sm:$0xf]
        %v939 = vld [vmem:[%s197 + $0xac0] sm:$0xf]
        %v940 = vld [vmem:[%s197 + $0xac4] sm:$0xf]
        %v941 = vld [vmem:[%s197 + $0xac8] sm:$0xf]
        %v942 = vld [vmem:[%s197 + $0xacc] sm:$0xf]
        %v943 = vld [vmem:[%s197 + $0xad0] sm:$0xf]
        %v944 = vld [vmem:[%s197 + $0xad4] sm:$0xf]
        %v945 = vld [vmem:[%s197 + $0xad8] sm:$0xf]
        %v946 = vld [vmem:[%s197 + $0xadc] sm:$0xf]
        %v947 = vld [vmem:[%s197 + $0xae0] sm:$0xf]
        %v948 = vld [vmem:[%s197 + $0xae4] sm:$0xf]
        %v949 = vld [vmem:[%s197 + $0xae8] sm:$0xf]
        %v950 = vld [vmem:[%s197 + $0xaec] sm:$0xf]
        %v951 = vld [vmem:[%s197 + $0xaf0] sm:$0xf]
        %v952 = vld [vmem:[%s197 + $0xaf4] sm:$0xf]
        %v953 = vld [vmem:[%s197 + $0xaf8] sm:$0xf]
        %v954 = vld [vmem:[%s197 + $0xafc] sm:$0xf]
        %v955 = vld [vmem:[%s197 + $0xb00] sm:$0xf]
        %v956 = vld [vmem:[%s197 + $0xb04] sm:$0xf]
        %v957 = vld [vmem:[%s197 + $0xb08] sm:$0xf]
        %v958 = vld [vmem:[%s197 + $0xb0c] sm:$0xf]
        %v959 = vld [vmem:[%s197 + $0xb10] sm:$0xf]
        %v960 = vld [vmem:[%s197 + $0xb14] sm:$0xf]
        %v961 = vld [vmem:[%s197 + $0xb18] sm:$0xf]
        %v962 = vld [vmem:[%s197 + $0xb1c] sm:$0xf]
        %v963 = vld [vmem:[%s197 + $0xb20] sm:$0xf]
        %v964 = vld [vmem:[%s197 + $0xb24] sm:$0xf]
        %v965 = vld [vmem:[%s197 + $0xb28] sm:$0xf]
        %v966 = vld [vmem:[%s197 + $0xb2c] sm:$0xf]
        %v967 = vld [vmem:[%s197 + $0xb30] sm:$0xf]
        %v968 = vld [vmem:[%s197 + $0xb34] sm:$0xf]
        %v969 = vld [vmem:[%s197 + $0xb38] sm:$0xf]
        %v970 = vld [vmem:[%s197 + $0xb3c] sm:$0xf]
        %v971 = vld [vmem:[%s197 + $0xb40] sm:$0xf]
        %v972 = vld [vmem:[%s197 + $0xb44] sm:$0xf]
        %v973 = vld [vmem:[%s197 + $0xb48] sm:$0xf]
        %v974 = vld [vmem:[%s197 + $0xb4c] sm:$0xf]
        %v975 = vld [vmem:[%s197 + $0xb50] sm:$0xf]
        %v976 = vld [vmem:[%s197 + $0xb54] sm:$0xf]
        %v977 = vld [vmem:[%s197 + $0xb58] sm:$0xf]
        %v978 = vld [vmem:[%s197 + $0xb5c] sm:$0xf]
        %v979 = vld [vmem:[%s197 + $0xb60] sm:$0xf]
        %v980 = vld [vmem:[%s197 + $0xb64] sm:$0xf]
        %v981 = vld [vmem:[%s197 + $0xb68] sm:$0xf]
        %v982 = vld [vmem:[%s197 + $0xb6c] sm:$0xf]
        %v983 = vld [vmem:[%s197 + $0xb70] sm:$0xf]
        %v984 = vld [vmem:[%s197 + $0xb74] sm:$0xf]
        %v985 = vld [vmem:[%s197 + $0xb78] sm:$0xf]
        %v986 = vld [vmem:[%s197 + $0xb7c] sm:$0xf]
        %v987 = vld [vmem:[%s197 + $0xb80] sm:$0xf]
        %v988 = vld [vmem:[%s197 + $0xb84] sm:$0xf]
        %v989 = vld [vmem:[%s197 + $0xb88] sm:$0xf]
        %v990 = vld [vmem:[%s197 + $0xb8c] sm:$0xf]
        %v991 = vld [vmem:[%s197 + $0xb90] sm:$0xf]
        %v992 = vld [vmem:[%s197 + $0xb94] sm:$0xf]
        %v993 = vld [vmem:[%s197 + $0xb98] sm:$0xf]
        %v994 = vld [vmem:[%s197 + $0xb9c] sm:$0xf]
        %v995 = vld [vmem:[%s197 + $0xba0] sm:$0xf]
        %v996 = vld [vmem:[%s197 + $0xba4] sm:$0xf]
        %v997 = vld [vmem:[%s197 + $0xba8] sm:$0xf]
        %v998 = vld [vmem:[%s197 + $0xbac] sm:$0xf]
        %v999 = vld [vmem:[%s197 + $0xbb0] sm:$0xf]
        %v1000 = vld [vmem:[%s197 + $0xbb4] sm:$0xf]
        %v1001 = vld [vmem:[%s197 + $0xbb8] sm:$0xf]
        %v1002 = vld [vmem:[%s197 + $0xbbc] sm:$0xf]
        %v1003 = vld [vmem:[%s197 + $0xbc0] sm:$0xf]
        %v1004 = vld [vmem:[%s197 + $0xbc4] sm:$0xf]
        %v1005 = vld [vmem:[%s197 + $0xbc8] sm:$0xf]
        %v1006 = vld [vmem:[%s197 + $0xbcc] sm:$0xf]
        %v1007 = vld [vmem:[%s197 + $0xbd0] sm:$0xf]
        %v1008 = vld [vmem:[%s197 + $0xbd4] sm:$0xf]
        %v1009 = vld [vmem:[%s197 + $0xbd8] sm:$0xf]
        %v1010 = vld [vmem:[%s197 + $0xbdc] sm:$0xf]
        %v1011 = vld [vmem:[%s197 + $0xbe0] sm:$0xf]
        %v1012 = vld [vmem:[%s197 + $0xbe4] sm:$0xf]
        %v1013 = vld [vmem:[%s197 + $0xbe8] sm:$0xf]
        %v1014 = vld [vmem:[%s197 + $0xbec] sm:$0xf]
        %v1015 = vld [vmem:[%s197 + $0xbf0] sm:$0xf]
        %v1016 = vld [vmem:[%s197 + $0xbf4] sm:$0xf]
        %v1017 = vld [vmem:[%s197 + $0xbf8] sm:$0xf]
        %v1018 = vld [vmem:[%s197 + $0xbfc] sm:$0xf]
        %v1019 = vld [vmem:[%s197 + $0xc00] sm:$0xf]
        %v1020 = vld [vmem:[%s197 + $0xc04] sm:$0xf]
        %v1021 = vld [vmem:[%s197 + $0xc08] sm:$0xf]
        %v1022 = vld [vmem:[%s197 + $0xc0c] sm:$0xf]
        %v1023 = vld [vmem:[%s197 + $0xc10] sm:$0xf]
        %v1024 = vld [vmem:[%s197 + $0xc14] sm:$0xf]
        %v1025 = vld [vmem:[%s197 + $0xc18] sm:$0xf]
        %v1026 = vld [vmem:[%s197 + $0xc1c] sm:$0xf]
        %v1027 = vld [vmem:[%s197 + $0xc20] sm:$0xf]
        %v1028 = vld [vmem:[%s197 + $0xc24] sm:$0xf]
        %v1029 = vld [vmem:[%s197 + $0xc28] sm:$0xf]
        %v1030 = vld [vmem:[%s197 + $0xc2c] sm:$0xf]
        %v1031 = vld [vmem:[%s197 + $0xc30] sm:$0xf]
        %v1032 = vld [vmem:[%s197 + $0xc34] sm:$0xf]
        %v1033 = vld [vmem:[%s197 + $0xc38] sm:$0xf]
        %v1034 = vld [vmem:[%s197 + $0xc3c] sm:$0xf]
        %v1035 = vld [vmem:[%s197 + $0xc40] sm:$0xf]
        %v1036 = vld [vmem:[%s197 + $0xc44] sm:$0xf]
        %v1037 = vld [vmem:[%s197 + $0xc48] sm:$0xf]
        %v1038 = vld [vmem:[%s197 + $0xc4c] sm:$0xf]
        %v1039 = vld [vmem:[%s197 + $0xc50] sm:$0xf]
        %v1040 = vld [vmem:[%s197 + $0xc54] sm:$0xf]
        %v1041 = vld [vmem:[%s197 + $0xc58] sm:$0xf]
        %v1042 = vld [vmem:[%s197 + $0xc5c] sm:$0xf]
        %v1043 = vld [vmem:[%s197 + $0xc60] sm:$0xf]
        %v1044 = vld [vmem:[%s197 + $0xc64] sm:$0xf]
        %v1045 = vld [vmem:[%s197 + $0xc68] sm:$0xf]
        %v1046 = vld [vmem:[%s197 + $0xc6c] sm:$0xf]
        %v1047 = vld [vmem:[%s197 + $0xc70] sm:$0xf]
        %v1048 = vld [vmem:[%s197 + $0xc74] sm:$0xf]
        %v1049 = vld [vmem:[%s197 + $0xc78] sm:$0xf]
        %v1050 = vld [vmem:[%s197 + $0xc7c] sm:$0xf]
        %v1051 = vld [vmem:[%s197 + $0xc80] sm:$0xf]
        %v1052 = vld [vmem:[%s197 + $0xc84] sm:$0xf]
        %v1053 = vld [vmem:[%s197 + $0xc88] sm:$0xf]
        %v1054 = vld [vmem:[%s197 + $0xc8c] sm:$0xf]
        %v1055 = vld [vmem:[%s197 + $0xc90] sm:$0xf]
        %v1056 = vld [vmem:[%s197 + $0xc94] sm:$0xf]
        %v1057 = vld [vmem:[%s197 + $0xc98] sm:$0xf]
        %v1058 = vld [vmem:[%s197 + $0xc9c] sm:$0xf]
        %v1059 = vld [vmem:[%s197 + $0xca0] sm:$0xf]
        %v1060 = vld [vmem:[%s197 + $0xca4] sm:$0xf]
        %v1061 = vld [vmem:[%s197 + $0xca8] sm:$0xf]
        %v1062 = vld [vmem:[%s197 + $0xcac] sm:$0xf]
        %v1063 = vld [vmem:[%s197 + $0xcb0] sm:$0xf]
        %v1064 = vld [vmem:[%s197 + $0xcb4] sm:$0xf]
        %v1065 = vld [vmem:[%s197 + $0xcb8] sm:$0xf]
        %v1066 = vld [vmem:[%s197 + $0xcbc] sm:$0xf]
        %v1067 = vld [vmem:[%s197 + $0xcc0] sm:$0xf]
        %v1068 = vld [vmem:[%s197 + $0xcc4] sm:$0xf]
        %v1069 = vld [vmem:[%s197 + $0xcc8] sm:$0xf]
        %v1070 = vld [vmem:[%s197 + $0xccc] sm:$0xf]
        %v1071 = vld [vmem:[%s197 + $0xcd0] sm:$0xf]
        %v1072 = vld [vmem:[%s197 + $0xcd4] sm:$0xf]
        %v1073 = vld [vmem:[%s197 + $0xcd8] sm:$0xf]
        %v1074 = vld [vmem:[%s197 + $0xcdc] sm:$0xf]
        %v1075 = vld [vmem:[%s197 + $0xce0] sm:$0xf]
        %v1076 = vld [vmem:[%s197 + $0xce4] sm:$0xf]
        %v1077 = vld [vmem:[%s197 + $0xce8] sm:$0xf]
        %v1078 = vld [vmem:[%s197 + $0xcec] sm:$0xf]
        %v1079 = vld [vmem:[%s197 + $0xcf0] sm:$0xf]
        %v1080 = vld [vmem:[%s197 + $0xcf4] sm:$0xf]
        %v1081 = vld [vmem:[%s197 + $0xcf8] sm:$0xf]
        %v1082 = vld [vmem:[%s197 + $0xcfc] sm:$0xf]
        %v1090 = vcombine.high %v244, %v244
        %v1092 = vunpack.c.l.s4 1966171168
        %v1093 = vunpack.c.0.s8 %v1092
        %v1094 = vlaneseq
        %v1095 = vshrl.u32 %v1094, 7
        %v1096 = vsub.s32 %v1093, %v1095
        %v1097 = vrot.slane %v244, %v1096
        %v1099 = vunpack.c.l.s4 1966171168
        %v1100 = vunpack.c.0.s8 %v1099
        %v1101 = vlaneseq
        %v1102 = vshrl.u32 %v1101, 7
        %v1103 = vsub.s32 %v1100, %v1102
        %v1104 = vrot.slane %v1090, %v1103
        %v1105 = vcombine.high %v1097, %v1097
        %v1106 = vcombine.high %v1104, %v1104
        %v1108 = vunpack.c.l.s4 1966171168
        %v1109 = vunpack.c.0.s8 %v1108
        %v1110 = vlaneseq
        %v1111 = vshrl.u32 %v1110, 7
        %v1112 = vsub.s32 %v1109, %v1111
        %v1113 = vrot.slane %v1097, %v1112
        %v1115 = vunpack.c.l.s4 1966171168
        %v1116 = vunpack.c.0.s8 %v1115
        %v1117 = vlaneseq
        %v1118 = vshrl.u32 %v1117, 7
        %v1119 = vsub.s32 %v1116, %v1118
        %v1120 = vrot.slane %v1104, %v1119
        %v1122 = vunpack.c.l.s4 1966171168
        %v1123 = vunpack.c.0.s8 %v1122
        %v1124 = vlaneseq
        %v1125 = vshrl.u32 %v1124, 7
        %v1126 = vsub.s32 %v1123, %v1125
        %v1127 = vrot.slane %v1105, %v1126
        %v1129 = vunpack.c.l.s4 1966171168
        %v1130 = vunpack.c.0.s8 %v1129
        %v1131 = vlaneseq
        %v1132 = vshrl.u32 %v1131, 7
        %v1133 = vsub.s32 %v1130, %v1132
        %v1134 = vrot.slane %v1106, %v1133
        %v1135 = vcombine.high %v1113, %v1113
        %v1136 = vcombine.high %v1120, %v1120
        %v1137 = vcombine.high %v1127, %v1127
        %v1138 = vcombine.high %v1134, %v1134
        %v1139 = vcombine.high %v245, %v245
        %v1141 = vunpack.c.l.s4 1966171168
        %v1142 = vunpack.c.0.s8 %v1141
        %v1143 = vlaneseq
        %v1144 = vshrl.u32 %v1143, 7
        %v1145 = vsub.s32 %v1142, %v1144
        %v1146 = vrot.slane %v245, %v1145
        %v1148 = vunpack.c.l.s4 1966171168
        %v1149 = vunpack.c.0.s8 %v1148
        %v1150 = vlaneseq
        %v1151 = vshrl.u32 %v1150, 7
        %v1152 = vsub.s32 %v1149, %v1151
        %v1153 = vrot.slane %v1139, %v1152
        %v1154 = vcombine.high %v1146, %v1146
        %v1155 = vcombine.high %v1153, %v1153
        %v1157 = vunpack.c.l.s4 1966171168
        %v1158 = vunpack.c.0.s8 %v1157
        %v1159 = vlaneseq
        %v1160 = vshrl.u32 %v1159, 7
        %v1161 = vsub.s32 %v1158, %v1160
        %v1162 = vrot.slane %v1146, %v1161
        %v1164 = vunpack.c.l.s4 1966171168
        %v1165 = vunpack.c.0.s8 %v1164
        %v1166 = vlaneseq
        %v1167 = vshrl.u32 %v1166, 7
        %v1168 = vsub.s32 %v1165, %v1167
        %v1169 = vrot.slane %v1153, %v1168
        %v1171 = vunpack.c.l.s4 1966171168
        %v1172 = vunpack.c.0.s8 %v1171
        %v1173 = vlaneseq
        %v1174 = vshrl.u32 %v1173, 7
        %v1175 = vsub.s32 %v1172, %v1174
        %v1176 = vrot.slane %v1154, %v1175
        %v1178 = vunpack.c.l.s4 1966171168
        %v1179 = vunpack.c.0.s8 %v1178
        %v1180 = vlaneseq
        %v1181 = vshrl.u32 %v1180, 7
        %v1182 = vsub.s32 %v1179, %v1181
        %v1183 = vrot.slane %v1155, %v1182
        %v1184 = vcombine.high %v1162, %v1162
        %v1185 = vcombine.high %v1169, %v1169
        %v1186 = vcombine.high %v1176, %v1176
        %v1187 = vcombine.high %v1183, %v1183
        %v1188 = vcombine.high %v246, %v246
        %v1190 = vunpack.c.l.s4 1966171168
        %v1191 = vunpack.c.0.s8 %v1190
        %v1192 = vlaneseq
        %v1193 = vshrl.u32 %v1192, 7
        %v1194 = vsub.s32 %v1191, %v1193
        %v1195 = vrot.slane %v246, %v1194
        %v1197 = vunpack.c.l.s4 1966171168
        %v1198 = vunpack.c.0.s8 %v1197
        %v1199 = vlaneseq
        %v1200 = vshrl.u32 %v1199, 7
        %v1201 = vsub.s32 %v1198, %v1200
        %v1202 = vrot.slane %v1188, %v1201
        %v1203 = vcombine.high %v1195, %v1195
        %v1204 = vcombine.high %v1202, %v1202
        %v1206 = vunpack.c.l.s4 1966171168
        %v1207 = vunpack.c.0.s8 %v1206
        %v1208 = vlaneseq
        %v1209 = vshrl.u32 %v1208, 7
        %v1210 = vsub.s32 %v1207, %v1209
        %v1211 = vrot.slane %v1195, %v1210
        %v1213 = vunpack.c.l.s4 1966171168
        %v1214 = vunpack.c.0.s8 %v1213
        %v1215 = vlaneseq
        %v1216 = vshrl.u32 %v1215, 7
        %v1217 = vsub.s32 %v1214, %v1216
        %v1218 = vrot.slane %v1202, %v1217
        %v1220 = vunpack.c.l.s4 1966171168
        %v1221 = vunpack.c.0.s8 %v1220
        %v1222 = vlaneseq
        %v1223 = vshrl.u32 %v1222, 7
        %v1224 = vsub.s32 %v1221, %v1223
        %v1225 = vrot.slane %v1203, %v1224
        %v1227 = vunpack.c.l.s4 1966171168
        %v1228 = vunpack.c.0.s8 %v1227
        %v1229 = vlaneseq
        %v1230 = vshrl.u32 %v1229, 7
        %v1231 = vsub.s32 %v1228, %v1230
        %v1232 = vrot.slane %v1204, %v1231
        %v1233 = vcombine.high %v1211, %v1211
        %v1234 = vcombine.high %v1218, %v1218
        %v1235 = vcombine.high %v1225, %v1225
        %v1236 = vcombine.high %v1232, %v1232
        %v1237 = vcombine.high %v247, %v247
        %v1239 = vunpack.c.l.s4 1966171168
        %v1240 = vunpack.c.0.s8 %v1239
        %v1241 = vlaneseq
        %v1242 = vshrl.u32 %v1241, 7
        %v1243 = vsub.s32 %v1240, %v1242
        %v1244 = vrot.slane %v247, %v1243
        %v1246 = vunpack.c.l.s4 1966171168
        %v1247 = vunpack.c.0.s8 %v1246
        %v1248 = vlaneseq
        %v1249 = vshrl.u32 %v1248, 7
        %v1250 = vsub.s32 %v1247, %v1249
        %v1251 = vrot.slane %v1237, %v1250
        %v1252 = vcombine.high %v1244, %v1244
        %v1253 = vcombine.high %v1251, %v1251
        %v1255 = vunpack.c.l.s4 1966171168
        %v1256 = vunpack.c.0.s8 %v1255
        %v1257 = vlaneseq
        %v1258 = vshrl.u32 %v1257, 7
        %v1259 = vsub.s32 %v1256, %v1258
        %v1260 = vrot.slane %v1244, %v1259
        %v1262 = vunpack.c.l.s4 1966171168
        %v1263 = vunpack.c.0.s8 %v1262
        %v1264 = vlaneseq
        %v1265 = vshrl.u32 %v1264, 7
        %v1266 = vsub.s32 %v1263, %v1265
        %v1267 = vrot.slane %v1251, %v1266
        %v1269 = vunpack.c.l.s4 1966171168
        %v1270 = vunpack.c.0.s8 %v1269
        %v1271 = vlaneseq
        %v1272 = vshrl.u32 %v1271, 7
        %v1273 = vsub.s32 %v1270, %v1272
        %v1274 = vrot.slane %v1252, %v1273
        %v1276 = vunpack.c.l.s4 1966171168
        %v1277 = vunpack.c.0.s8 %v1276
        %v1278 = vlaneseq
        %v1279 = vshrl.u32 %v1278, 7
        %v1280 = vsub.s32 %v1277, %v1279
        %v1281 = vrot.slane %v1253, %v1280
        %v1282 = vcombine.high %v1260, %v1260
        %v1283 = vcombine.high %v1267, %v1267
        %v1284 = vcombine.high %v1274, %v1274
        %v1285 = vcombine.high %v1281, %v1281
        %v1286 = vcombine.high %v248, %v248
        %v1288 = vunpack.c.l.s4 1966171168
        %v1289 = vunpack.c.0.s8 %v1288
        %v1290 = vlaneseq
        %v1291 = vshrl.u32 %v1290, 7
        %v1292 = vsub.s32 %v1289, %v1291
        %v1293 = vrot.slane %v248, %v1292
        %v1295 = vunpack.c.l.s4 1966171168
        %v1296 = vunpack.c.0.s8 %v1295
        %v1297 = vlaneseq
        %v1298 = vshrl.u32 %v1297, 7
        %v1299 = vsub.s32 %v1296, %v1298
        %v1300 = vrot.slane %v1286, %v1299
        %v1301 = vcombine.high %v1293, %v1293
        %v1302 = vcombine.high %v1300, %v1300
        %v1304 = vunpack.c.l.s4 1966171168
        %v1305 = vunpack.c.0.s8 %v1304
        %v1306 = vlaneseq
        %v1307 = vshrl.u32 %v1306, 7
        %v1308 = vsub.s32 %v1305, %v1307
        %v1309 = vrot.slane %v1293, %v1308
        %v1311 = vunpack.c.l.s4 1966171168
        %v1312 = vunpack.c.0.s8 %v1311
        %v1313 = vlaneseq
        %v1314 = vshrl.u32 %v1313, 7
        %v1315 = vsub.s32 %v1312, %v1314
        %v1316 = vrot.slane %v1300, %v1315
        %v1318 = vunpack.c.l.s4 1966171168
        %v1319 = vunpack.c.0.s8 %v1318
        %v1320 = vlaneseq
        %v1321 = vshrl.u32 %v1320, 7
        %v1322 = vsub.s32 %v1319, %v1321
        %v1323 = vrot.slane %v1301, %v1322
        %v1325 = vunpack.c.l.s4 1966171168
        %v1326 = vunpack.c.0.s8 %v1325
        %v1327 = vlaneseq
        %v1328 = vshrl.u32 %v1327, 7
        %v1329 = vsub.s32 %v1326, %v1328
        %v1330 = vrot.slane %v1302, %v1329
        %v1331 = vcombine.high %v1309, %v1309
        %v1332 = vcombine.high %v1316, %v1316
        %v1333 = vcombine.high %v1323, %v1323
        %v1334 = vcombine.high %v1330, %v1330
        %v1335 = vcombine.high %v249, %v249
        %v1337 = vunpack.c.l.s4 1966171168
        %v1338 = vunpack.c.0.s8 %v1337
        %v1339 = vlaneseq
        %v1340 = vshrl.u32 %v1339, 7
        %v1341 = vsub.s32 %v1338, %v1340
        %v1342 = vrot.slane %v249, %v1341
        %v1344 = vunpack.c.l.s4 1966171168
        %v1345 = vunpack.c.0.s8 %v1344
        %v1346 = vlaneseq
        %v1347 = vshrl.u32 %v1346, 7
        %v1348 = vsub.s32 %v1345, %v1347
        %v1349 = vrot.slane %v1335, %v1348
        %v1350 = vcombine.high %v1342, %v1342
        %v1351 = vcombine.high %v1349, %v1349
        %v1353 = vunpack.c.l.s4 1966171168
        %v1354 = vunpack.c.0.s8 %v1353
        %v1355 = vlaneseq
        %v1356 = vshrl.u32 %v1355, 7
        %v1357 = vsub.s32 %v1354, %v1356
        %v1358 = vrot.slane %v1342, %v1357
        %v1360 = vunpack.c.l.s4 1966171168
        %v1361 = vunpack.c.0.s8 %v1360
        %v1362 = vlaneseq
        %v1363 = vshrl.u32 %v1362, 7
        %v1364 = vsub.s32 %v1361, %v1363
        %v1365 = vrot.slane %v1349, %v1364
        %v1367 = vunpack.c.l.s4 1966171168
        %v1368 = vunpack.c.0.s8 %v1367
        %v1369 = vlaneseq
        %v1370 = vshrl.u32 %v1369, 7
        %v1371 = vsub.s32 %v1368, %v1370
        %v1372 = vrot.slane %v1350, %v1371
        %v1374 = vunpack.c.l.s4 1966171168
        %v1375 = vunpack.c.0.s8 %v1374
        %v1376 = vlaneseq
        %v1377 = vshrl.u32 %v1376, 7
        %v1378 = vsub.s32 %v1375, %v1377
        %v1379 = vrot.slane %v1351, %v1378
        %v1380 = vcombine.high %v1358, %v1358
        %v1381 = vcombine.high %v1365, %v1365
        %v1382 = vcombine.high %v1372, %v1372
        %v1383 = vcombine.high %v1379, %v1379
        %v1385 = vunpack.c.l.s4 1966171168
        %v1386 = vunpack.c.0.s8 %v1385
        %v1387 = vlaneseq
        %v1388 = vshrl.u32 %v1387, 7
        %v1389 = vsub.s32 %v1386, %v1388
        %v1390 = vrot.slane %v250, %v1389
        %v1391 = vcombine.high %v1390, %v1390
        %v1393 = vunpack.c.l.s4 1966171168
        %v1394 = vunpack.c.0.s8 %v1393
        %v1395 = vlaneseq
        %v1396 = vshrl.u32 %v1395, 7
        %v1397 = vsub.s32 %v1394, %v1396
        %v1398 = vrot.slane %v1390, %v1397
        %v1400 = vunpack.c.l.s4 1966171168
        %v1401 = vunpack.c.0.s8 %v1400
        %v1402 = vlaneseq
        %v1403 = vshrl.u32 %v1402, 7
        %v1404 = vsub.s32 %v1401, %v1403
        %v1405 = vrot.slane %v1391, %v1404
        %v1406 = vcombine.high %v1398, %v1398
        %v1407 = vcombine.high %v1405, %v1405
        %v2292 = vunpack.c.l.b16 %v251
        %v2293 = vunpack.c.l.b16 %v252
        %v2294 = vunpack.c.l.b16 %v253
        %v2295 = vunpack.c.l.b16 %v254
        %v2296 = vunpack.c.l.b16 %v255
        %v2297 = vunpack.c.l.b16 %v256
        %v2298 = vunpack.c.l.b16 %v257
        %v2299 = vunpack.c.l.b16 %v258
        %v2300 = vunpack.c.l.b16 %v259
        %v2301 = vunpack.c.l.b16 %v260
        %v2302 = vunpack.c.l.b16 %v261
        %v2303 = vunpack.c.l.b16 %v262
        %v2304 = vunpack.c.l.b16 %v263
        %v2305 = vunpack.c.l.b16 %v264
        %v2306 = vunpack.c.l.b16 %v265
        %v2307 = vunpack.c.l.b16 %v266
        %v2308 = vunpack.c.l.b16 %v267
        %v2309 = vunpack.c.l.b16 %v268
        %v2310 = vunpack.c.l.b16 %v269
        %v2311 = vunpack.c.l.b16 %v270
        %v2312 = vunpack.c.l.b16 %v271
        %v2313 = vunpack.c.l.b16 %v272
        %v2314 = vunpack.c.l.b16 %v273
        %v2315 = vunpack.c.l.b16 %v274
        %v2316 = vunpack.c.l.b16 %v275
        %v2317 = vunpack.c.l.b16 %v276
        %v2318 = vunpack.c.l.b16 %v277
        %v2319 = vunpack.c.l.b16 %v278
        %v2320 = vunpack.c.l.b16 %v279
        %v2321 = vunpack.c.l.b16 %v280
        %v2322 = vunpack.c.l.b16 %v281
        %v2323 = vunpack.c.l.b16 %v282
        %v2324 = vunpack.c.l.b16 %v283
        %v2325 = vunpack.c.l.b16 %v284
        %v2326 = vunpack.c.l.b16 %v285
        %v2327 = vunpack.c.l.b16 %v286
        %v2328 = vunpack.c.l.b16 %v287
        %v2329 = vunpack.c.l.b16 %v288
        %v2330 = vunpack.c.l.b16 %v289
        %v2331 = vunpack.c.l.b16 %v290
        %v2332 = vunpack.c.l.b16 %v291
        %v2333 = vunpack.c.l.b16 %v292
        %v2334 = vunpack.c.l.b16 %v293
        %v2335 = vunpack.c.l.b16 %v294
        %v2336 = vunpack.c.l.b16 %v295
        %v2337 = vunpack.c.l.b16 %v296
        %v2338 = vunpack.c.l.b16 %v297
        %v2339 = vunpack.c.l.b16 %v298
        %v2340 = vunpack.c.l.b16 %v299
        %v2341 = vunpack.c.l.b16 %v300
        %v2342 = vunpack.c.l.b16 %v301
        %v2343 = vunpack.c.l.b16 %v302
        %v2344 = vunpack.c.l.b16 %v303
        %v2345 = vunpack.c.l.b16 %v304
        %v2346 = vunpack.c.l.b16 %v305
        %v2347 = vunpack.c.l.b16 %v306
        %v2348 = vunpack.c.l.b16 %v307
        %v2349 = vunpack.c.l.b16 %v308
        %v2350 = vunpack.c.l.b16 %v309
        %v2351 = vunpack.c.l.b16 %v310
        %v2352 = vunpack.c.l.b16 %v311
        %v2353 = vunpack.c.l.b16 %v312
        %v2354 = vunpack.c.l.b16 %v313
        %v2355 = vunpack.c.l.b16 %v314
        %v2356 = vunpack.c.l.b16 %v315
        %v2357 = vunpack.c.l.b16 %v316
        %v2358 = vunpack.c.l.b16 %v317
        %v2359 = vunpack.c.l.b16 %v318
        %v2360 = vunpack.c.l.b16 %v319
        %v2361 = vunpack.c.l.b16 %v320
        %v2362 = vunpack.c.l.b16 %v321
        %v2363 = vunpack.c.l.b16 %v322
        %v2364 = vunpack.c.l.b16 %v323
        %v2365 = vunpack.c.l.b16 %v324
        %v2366 = vunpack.c.l.b16 %v325
        %v2367 = vunpack.c.l.b16 %v326
        %v2368 = vunpack.c.l.b16 %v327
        %v2369 = vunpack.c.l.b16 %v328
        %v2370 = vunpack.c.l.b16 %v329
        %v2371 = vunpack.c.l.b16 %v330
        %v2372 = vunpack.c.l.b16 %v331
        %v2373 = vunpack.c.l.b16 %v332
        %v2374 = vunpack.c.l.b16 %v333
        %v2375 = vunpack.c.l.b16 %v334
        %v2376 = vunpack.c.l.b16 %v335
        %v2377 = vunpack.c.l.b16 %v336
        %v2378 = vunpack.c.l.b16 %v337
        %v2379 = vunpack.c.l.b16 %v338
        %v2380 = vunpack.c.l.b16 %v339
        %v2381 = vunpack.c.l.b16 %v340
        %v2382 = vunpack.c.l.b16 %v341
        %v2383 = vunpack.c.l.b16 %v342
        %v2384 = vunpack.c.l.b16 %v343
        %v2385 = vunpack.c.l.b16 %v344
        %v2386 = vunpack.c.l.b16 %v345
        %v2387 = vunpack.c.l.b16 %v346
        %v2388 = vunpack.c.l.b16 %v347
        %v2389 = vunpack.c.l.b16 %v348
        %v2390 = vunpack.c.l.b16 %v349
        %v2391 = vunpack.c.l.b16 %v350
        %v2392 = vunpack.c.l.b16 %v351
        %v2393 = vunpack.c.l.b16 %v352
        %v2394 = vunpack.c.l.b16 %v353
        %v2395 = vunpack.c.l.b16 %v354
        %v2396 = vunpack.c.l.b16 %v355
        %v2397 = vunpack.c.l.b16 %v356
        %v2398 = vunpack.c.l.b16 %v357
        %v2399 = vunpack.c.l.b16 %v358
        %v2400 = vunpack.c.l.b16 %v359
        %v2401 = vunpack.c.l.b16 %v360
        %v2402 = vunpack.c.l.b16 %v361
        %v2403 = vunpack.c.l.b16 %v362
        %v2404 = vunpack.c.l.b16 %v363
        %v2405 = vunpack.c.l.b16 %v364
        %v2406 = vunpack.c.l.b16 %v365
        %v2407 = vunpack.c.l.b16 %v366
        %v2408 = vunpack.c.l.b16 %v367
        %v2409 = vunpack.c.l.b16 %v368
        %v2410 = vunpack.c.l.b16 %v369
        %v2411 = vunpack.c.l.b16 %v370
        %v2412 = vunpack.c.l.b16 %v371
        %v2413 = vunpack.c.l.b16 %v372
        %v2414 = vunpack.c.l.b16 %v373
        %v2415 = vunpack.c.l.b16 %v374
        %v2416 = vunpack.c.l.b16 %v375
        %v2417 = vunpack.c.l.b16 %v376
        %v2418 = vunpack.c.l.b16 %v377
        %v2419 = vunpack.c.l.b16 %v378
        %v2420 = vunpack.c.l.b16 %v379
        %v2421 = vunpack.c.l.b16 %v380
        %v2422 = vunpack.c.l.b16 %v381
        %v2423 = vunpack.c.l.b16 %v382
        %v2424 = vunpack.c.l.b16 %v383
        %v2425 = vunpack.c.l.b16 %v384
        %v2426 = vunpack.c.l.b16 %v385
        %v2427 = vunpack.c.l.b16 %v386
        %v2428 = vunpack.c.l.b16 %v387
        %v2429 = vunpack.c.l.b16 %v388
        %v2430 = vunpack.c.l.b16 %v389
        %v2431 = vunpack.c.l.b16 %v390
        %v2432 = vunpack.c.l.b16 %v391
        %v2433 = vunpack.c.l.b16 %v392
        %v2434 = vunpack.c.l.b16 %v393
        %v2435 = vunpack.c.l.b16 %v394
        %v2436 = vunpack.c.l.b16 %v395
        %v2437 = vunpack.c.l.b16 %v396
        %v2438 = vunpack.c.l.b16 %v397
        %v2439 = vunpack.c.l.b16 %v398
        %v2440 = vunpack.c.l.b16 %v399
        %v2441 = vunpack.c.l.b16 %v400
        %v2442 = vunpack.c.l.b16 %v401
        %v2443 = vunpack.c.l.b16 %v402
        %v2444 = vunpack.c.l.b16 %v403
        %v2445 = vunpack.c.l.b16 %v404
        %v2446 = vunpack.c.l.b16 %v405
        %v2447 = vunpack.c.l.b16 %v406
        %v2448 = vunpack.c.l.b16 %v407
        %v2449 = vunpack.c.l.b16 %v408
        %v2450 = vunpack.c.l.b16 %v409
        %v2451 = vunpack.c.l.b16 %v410
        %v2452 = vunpack.c.l.b16 %v411
        %v2453 = vunpack.c.l.b16 %v412
        %v2454 = vunpack.c.l.b16 %v413
        %v2455 = vunpack.c.l.b16 %v414
        %v2456 = vunpack.c.l.b16 %v415
        %v2457 = vunpack.c.l.b16 %v416
        %v2458 = vunpack.c.l.b16 %v417
        %v2459 = vunpack.c.l.b16 %v418
        %v2460 = vunpack.c.l.b16 %v419
        %v2461 = vunpack.c.l.b16 %v420
        %v2462 = vunpack.c.l.b16 %v421
        %v2463 = vunpack.c.l.b16 %v422
        %v2464 = vunpack.c.l.b16 %v423
        %v2465 = vunpack.c.l.b16 %v424
        %v2466 = vunpack.c.l.b16 %v425
        %v2467 = vunpack.c.l.b16 %v426
        %v2468 = vunpack.c.l.b16 %v427
        %v2469 = vunpack.c.l.b16 %v428
        %v2470 = vunpack.c.l.b16 %v429
        %v2471 = vunpack.c.l.b16 %v430
        %v2472 = vunpack.c.l.b16 %v431
        %v2473 = vunpack.c.l.b16 %v432
        %v2474 = vunpack.c.l.b16 %v433
        %v2475 = vunpack.c.l.b16 %v434
        %v2476 = vunpack.c.l.b16 %v435
        %v2477 = vunpack.c.l.b16 %v436
        %v2478 = vunpack.c.l.b16 %v437
        %v2479 = vunpack.c.l.b16 %v438
        %v2480 = vunpack.c.l.b16 %v439
        %v2481 = vunpack.c.l.b16 %v440
        %v2482 = vunpack.c.l.b16 %v441
        %v2483 = vunpack.c.l.b16 %v442
        %v2484 = vunpack.c.l.b16 %v443
        %v2485 = vunpack.c.l.b16 %v444
        %v2486 = vunpack.c.l.b16 %v445
        %v2487 = vunpack.c.l.b16 %v446
        %v2488 = vunpack.c.l.b16 %v447
        %v2489 = vunpack.c.l.b16 %v448
        %v2490 = vunpack.c.l.b16 %v449
        %v2491 = vunpack.c.l.b16 %v450
        %v2492 = vunpack.c.l.b16 %v451
        %v2493 = vunpack.c.l.b16 %v452
        %v2494 = vunpack.c.l.b16 %v453
        %v2495 = vunpack.c.l.b16 %v454
        %v2496 = vunpack.c.l.b16 %v455
        %v2497 = vunpack.c.l.b16 %v456
        %v2498 = vunpack.c.l.b16 %v457
        %v2499 = vunpack.c.l.b16 %v458
        %v2500 = vunpack.c.l.b16 %v459
        %v2501 = vunpack.c.l.b16 %v460
        %v2502 = vunpack.c.l.b16 %v461
        %v2503 = vunpack.c.l.b16 %v462
        %v2504 = vunpack.c.l.b16 %v463
        %v2505 = vunpack.c.l.b16 %v464
        %v2506 = vunpack.c.l.b16 %v465
        %v2507 = vunpack.c.l.b16 %v466
        %v2508 = vunpack.c.l.b16 %v467
        %v2509 = vunpack.c.l.b16 %v468
        %v2510 = vunpack.c.l.b16 %v469
        %v2511 = vunpack.c.l.b16 %v470
        %v2512 = vunpack.c.l.b16 %v471
        %v2513 = vunpack.c.l.b16 %v472
        %v2514 = vunpack.c.l.b16 %v473
        %v2515 = vunpack.c.l.b16 %v474
        %v2516 = vunpack.c.l.b16 %v475
        %v2517 = vunpack.c.l.b16 %v476
        %v2518 = vunpack.c.l.b16 %v477
        %v2519 = vunpack.c.l.b16 %v478
        %v2520 = vunpack.c.l.b16 %v479
        %v2521 = vunpack.c.l.b16 %v480
        %v2522 = vunpack.c.l.b16 %v481
        %v2523 = vunpack.c.l.b16 %v482
        %v2524 = vunpack.c.l.b16 %v483
        %v2525 = vunpack.c.l.b16 %v484
        %v2526 = vunpack.c.l.b16 %v485
        %v2527 = vunpack.c.l.b16 %v486
        %v2528 = vunpack.c.l.b16 %v487
        %v2529 = vunpack.c.l.b16 %v488
        %v2530 = vunpack.c.l.b16 %v489
        %v2531 = vunpack.c.l.b16 %v490
        %v2532 = vunpack.c.l.b16 %v491
        %v2533 = vunpack.c.l.b16 %v492
        %v2534 = vunpack.c.l.b16 %v493
        %v2535 = vunpack.c.l.b16 %v494
        %v2536 = vunpack.c.l.b16 %v495
        %v2537 = vunpack.c.l.b16 %v496
        %v2538 = vunpack.c.l.b16 %v497
        %v2539 = vunpack.c.l.b16 %v498
        %v2540 = vunpack.c.l.b16 %v499
        %v2541 = vunpack.c.l.b16 %v500
        %v2542 = vunpack.c.l.b16 %v501
        %v2543 = vunpack.c.l.b16 %v502
        %v2544 = vunpack.c.l.b16 %v503
        %v2545 = vunpack.c.l.b16 %v504
        %v2546 = vunpack.c.l.b16 %v505
        %v2547 = vunpack.c.l.b16 %v506
        %v2548 = vunpack.c.l.b16 %v507
        %v2549 = vunpack.c.l.b16 %v508
        %v2550 = vunpack.c.l.b16 %v509
        %v2551 = vunpack.c.l.b16 %v510
        %v2552 = vunpack.c.l.b16 %v511
        %v2553 = vunpack.c.l.b16 %v512
        %v2554 = vunpack.c.l.b16 %v513
        %v2555 = vunpack.c.l.b16 %v514
        %v2556 = vunpack.c.l.b16 %v515
        %v2557 = vunpack.c.l.b16 %v516
        %v2558 = vunpack.c.l.b16 %v517
        %v2559 = vunpack.c.l.b16 %v518
        %v2560 = vunpack.c.l.b16 %v519
        %v2561 = vunpack.c.l.b16 %v520
        %v2562 = vunpack.c.l.b16 %v521
        %v2563 = vunpack.c.l.b16 %v522
        %v2564 = vunpack.c.l.b16 %v523
        %v2565 = vunpack.c.l.b16 %v524
        %v2566 = vunpack.c.l.b16 %v525
        %v2567 = vunpack.c.l.b16 %v526
        %v2568 = vunpack.c.l.b16 %v527
        %v2569 = vunpack.c.l.b16 %v528
        %v2570 = vunpack.c.l.b16 %v529
        %v2571 = vunpack.c.l.b16 %v530
        %v2572 = vunpack.c.l.b16 %v531
        %v2573 = vunpack.c.l.b16 %v532
        %v2574 = vunpack.c.l.b16 %v533
        %v2575 = vunpack.c.l.b16 %v534
        %v2576 = vunpack.c.l.b16 %v535
        %v2577 = vunpack.c.l.b16 %v536
        %v2578 = vunpack.c.l.b16 %v537
        %v2579 = vunpack.c.l.b16 %v538
        %v2580 = vunpack.c.l.b16 %v539
        %v2581 = vunpack.c.l.b16 %v540
        %v2582 = vunpack.c.l.b16 %v541
        %v2583 = vunpack.c.l.b16 %v542
        %v2584 = vunpack.c.l.b16 %v543
        %v2585 = vunpack.c.l.b16 %v544
        %v2586 = vunpack.c.l.b16 %v545
        %v2587 = vunpack.c.l.b16 %v546
        %v2588 = vunpack.c.l.b16 %v547
        %v2589 = vunpack.c.l.b16 %v548
        %v2590 = vunpack.c.l.b16 %v549
        %v2591 = vunpack.c.l.b16 %v550
        %v2592 = vunpack.c.l.b16 %v551
        %v2593 = vunpack.c.l.b16 %v552
        %v2594 = vunpack.c.l.b16 %v553
        %v2595 = vunpack.c.l.b16 %v554
        %v2596 = vunpack.c.l.b16 %v555
        %v2597 = vunpack.c.l.b16 %v556
        %v2598 = vunpack.c.l.b16 %v557
        %v2599 = vunpack.c.l.b16 %v558
        %v2600 = vunpack.c.l.b16 %v559
        %v2601 = vunpack.c.l.b16 %v560
        %v2602 = vunpack.c.l.b16 %v561
        %v2603 = vunpack.c.l.b16 %v562
        %v2604 = vunpack.c.l.b16 %v563
        %v2605 = vunpack.c.l.b16 %v564
        %v2606 = vunpack.c.l.b16 %v565
        %v2607 = vunpack.c.l.b16 %v566
        %v2608 = vunpack.c.l.b16 %v567
        %v2609 = vunpack.c.l.b16 %v568
        %v2610 = vunpack.c.l.b16 %v569
        %v2611 = vunpack.c.l.b16 %v570
        %v2612 = vunpack.c.l.b16 %v571
        %v2613 = vunpack.c.l.b16 %v572
        %v2614 = vunpack.c.l.b16 %v573
        %v2615 = vunpack.c.l.b16 %v574
        %v2616 = vunpack.c.l.b16 %v575
        %v2617 = vunpack.c.l.b16 %v576
        %v2618 = vunpack.c.l.b16 %v577
        %v2619 = vunpack.c.l.b16 %v578
        %v2620 = vunpack.c.l.b16 %v579
        %v2621 = vunpack.c.l.b16 %v580
        %v2622 = vunpack.c.l.b16 %v581
        %v2623 = vunpack.c.l.b16 %v582
        %v2624 = vunpack.c.l.b16 %v583
        %v2625 = vunpack.c.l.b16 %v584
        %v2626 = vunpack.c.l.b16 %v585
        %v2627 = vunpack.c.l.b16 %v586
        %v2628 = vunpack.c.l.b16 %v587
        %v2629 = vunpack.c.l.b16 %v588
        %v2630 = vunpack.c.l.b16 %v589
        %v2631 = vunpack.c.l.b16 %v590
        %v2632 = vunpack.c.l.b16 %v591
        %v2633 = vunpack.c.l.b16 %v592
        %v2634 = vunpack.c.l.b16 %v593
        %v2635 = vunpack.c.l.b16 %v594
        %v2636 = vunpack.c.l.b16 %v595
        %v2637 = vunpack.c.l.b16 %v596
        %v2638 = vunpack.c.l.b16 %v597
        %v2639 = vunpack.c.l.b16 %v598
        %v2640 = vunpack.c.l.b16 %v599
        %v2641 = vunpack.c.l.b16 %v600
        %v2642 = vunpack.c.l.b16 %v601
        %v2643 = vunpack.c.l.b16 %v602
        %v2644 = vunpack.c.l.b16 %v603
        %v2645 = vunpack.c.l.b16 %v604
        %v2646 = vunpack.c.l.b16 %v605
        %v2647 = vunpack.c.l.b16 %v606
        %v2648 = vunpack.c.l.b16 %v607
        %v2649 = vunpack.c.l.b16 %v608
        %v2650 = vunpack.c.l.b16 %v609
        %v2651 = vunpack.c.l.b16 %v610
        %v2652 = vunpack.c.l.b16 %v611
        %v2653 = vunpack.c.l.b16 %v612
        %v2654 = vunpack.c.l.b16 %v613
        %v2655 = vunpack.c.l.b16 %v614
        %v2656 = vunpack.c.l.b16 %v615
        %v2657 = vunpack.c.l.b16 %v616
        %v2658 = vunpack.c.l.b16 %v617
        %v2659 = vunpack.c.l.b16 %v618
        %v2660 = vunpack.c.l.b16 %v619
        %v2661 = vunpack.c.l.b16 %v620
        %v2662 = vunpack.c.l.b16 %v621
        %v2663 = vunpack.c.l.b16 %v622
        %v2664 = vunpack.c.l.b16 %v623
        %v2665 = vunpack.c.l.b16 %v624
        %v2666 = vunpack.c.l.b16 %v625
        %v2667 = vunpack.c.l.b16 %v626
        %v2668 = vunpack.c.l.b16 %v627
        %v2669 = vunpack.c.l.b16 %v628
        %v2670 = vunpack.c.l.b16 %v629
        %v2671 = vunpack.c.l.b16 %v630
        %v2672 = vunpack.c.l.b16 %v631
        %v2673 = vunpack.c.l.b16 %v632
        %v2674 = vunpack.c.l.b16 %v633
        %v2675 = vunpack.c.l.b16 %v634
        %v2676 = vunpack.c.l.b16 %v635
        %v2677 = vunpack.c.l.b16 %v636
        %v2678 = vunpack.c.l.b16 %v637
        %v2679 = vunpack.c.l.b16 %v638
        %v2680 = vunpack.c.l.b16 %v639
        %v2681 = vunpack.c.l.b16 %v640
        %v2682 = vunpack.c.l.b16 %v641
        %v2683 = vunpack.c.l.b16 %v642
        %v2684 = vunpack.c.l.b16 %v643
        %v2685 = vunpack.c.l.b16 %v644
        %v2686 = vunpack.c.l.b16 %v645
        %v2687 = vunpack.c.l.b16 %v646
        %v2688 = vunpack.c.l.b16 %v647
        %v2689 = vunpack.c.l.b16 %v648
        %v2690 = vunpack.c.l.b16 %v649
        %v2691 = vunpack.c.l.b16 %v650
        %v2692 = vunpack.c.l.b16 %v651
        %v2693 = vunpack.c.l.b16 %v652
        %v2694 = vunpack.c.l.b16 %v653
        %v2695 = vunpack.c.l.b16 %v654
        %v2696 = vunpack.c.l.b16 %v655
        %v2697 = vunpack.c.l.b16 %v656
        %v2698 = vunpack.c.l.b16 %v657
        %v2699 = vunpack.c.l.b16 %v658
        %v2700 = vunpack.c.l.b16 %v659
        %v2701 = vunpack.c.l.b16 %v660
        %v2702 = vunpack.c.l.b16 %v661
        %v2703 = vunpack.c.l.b16 %v662
        %v2704 = vunpack.c.l.b16 %v663
        %v2705 = vunpack.c.l.b16 %v664
        %v2706 = vunpack.c.l.b16 %v665
        %v2707 = vunpack.c.l.b16 %v666
        %v2708 = vunpack.c.l.b16 %v667
        %v2709 = vunpack.c.l.b16 %v668
        %v2710 = vunpack.c.l.b16 %v669
        %v2711 = vunpack.c.l.b16 %v670
        %v2712 = vunpack.c.l.b16 %v671
        %v2713 = vunpack.c.l.b16 %v672
        %v2714 = vunpack.c.l.b16 %v673
        %v2715 = vunpack.c.l.b16 %v674
        %v2716 = vunpack.c.l.b16 %v675
        %v2717 = vunpack.c.l.b16 %v676
        %v2718 = vunpack.c.l.b16 %v677
        %v2719 = vunpack.c.l.b16 %v678
        %v2720 = vunpack.c.l.b16 %v679
        %v2721 = vunpack.c.l.b16 %v680
        %v2722 = vunpack.c.l.b16 %v681
        %v2723 = vunpack.c.l.b16 %v682
        %v2724 = vunpack.c.l.b16 %v683
        %v2725 = vunpack.c.l.b16 %v684
        %v2726 = vunpack.c.l.b16 %v685
        %v2727 = vunpack.c.l.b16 %v686
        %v2728 = vunpack.c.l.b16 %v687
        %v2729 = vunpack.c.l.b16 %v688
        %v2730 = vunpack.c.l.b16 %v689
        %v2731 = vunpack.c.l.b16 %v690
        %v2732 = vunpack.c.l.b16 %v691
        %v2733 = vunpack.c.l.b16 %v692
        %v2734 = vunpack.c.l.b16 %v693
        %v2735 = vunpack.c.l.b16 %v694
        %v2736 = vunpack.c.l.b16 %v695
        %v2737 = vunpack.c.l.b16 %v696
        %v2738 = vunpack.c.l.b16 %v697
        %v2739 = vunpack.c.l.b16 %v698
        %v2740 = vunpack.c.l.b16 %v699
        %v2741 = vunpack.c.l.b16 %v700
        %v2742 = vunpack.c.l.b16 %v701
        %v2743 = vunpack.c.l.b16 %v702
        %v2744 = vunpack.c.l.b16 %v703
        %v2745 = vunpack.c.l.b16 %v704
        %v2746 = vunpack.c.l.b16 %v705
        %v2747 = vunpack.c.l.b16 %v706
        %v2748 = vunpack.c.l.b16 %v707
        %v2749 = vunpack.c.l.b16 %v708
        %v2750 = vunpack.c.l.b16 %v709
        %v2751 = vunpack.c.l.b16 %v710
        %v2752 = vunpack.c.l.b16 %v711
        %v2753 = vunpack.c.l.b16 %v712
        %v2754 = vunpack.c.l.b16 %v713
        %v2755 = vunpack.c.l.b16 %v714
        %v2756 = vunpack.c.l.b16 %v715
        %v2757 = vunpack.c.l.b16 %v716
        %v2758 = vunpack.c.l.b16 %v717
        %v2759 = vunpack.c.l.b16 %v718
        %v2760 = vunpack.c.l.b16 %v719
        %v2761 = vunpack.c.l.b16 %v720
        %v2762 = vunpack.c.l.b16 %v721
        %v2763 = vunpack.c.l.b16 %v722
        %v2764 = vunpack.c.l.b16 %v723
        %v2765 = vunpack.c.l.b16 %v724
        %v2766 = vunpack.c.l.b16 %v725
        %v2767 = vunpack.c.l.b16 %v726
        %v2768 = vunpack.c.l.b16 %v727
        %v2769 = vunpack.c.l.b16 %v728
        %v2770 = vunpack.c.l.b16 %v729
        %v2771 = vunpack.c.l.b16 %v730
        %v2772 = vunpack.c.l.b16 %v731
        %v2773 = vunpack.c.l.b16 %v732
        %v2774 = vunpack.c.l.b16 %v733
        %v2775 = vunpack.c.l.b16 %v734
        %v2776 = vunpack.c.l.b16 %v735
        %v2777 = vunpack.c.l.b16 %v736
        %v2778 = vunpack.c.l.b16 %v737
        %v2779 = vunpack.c.l.b16 %v738
        %v2780 = vunpack.c.l.b16 %v739
        %v2781 = vunpack.c.l.b16 %v740
        %v2782 = vunpack.c.l.b16 %v741
        %v2783 = vunpack.c.l.b16 %v742
        %v2784 = vunpack.c.l.b16 %v743
        %v2785 = vunpack.c.l.b16 %v744
        %v2786 = vunpack.c.l.b16 %v745
        %v2787 = vunpack.c.l.b16 %v746
        %v2788 = vunpack.c.l.b16 %v747
        %v2789 = vunpack.c.l.b16 %v748
        %v2790 = vunpack.c.l.b16 %v749
        %v2791 = vunpack.c.l.b16 %v750
        %v2792 = vunpack.c.l.b16 %v751
        %v2793 = vunpack.c.l.b16 %v752
        %v2794 = vunpack.c.l.b16 %v753
        %v2795 = vunpack.c.l.b16 %v754
        %v2796 = vunpack.c.l.b16 %v755
        %v2797 = vunpack.c.l.b16 %v756
        %v2798 = vunpack.c.l.b16 %v757
        %v2799 = vunpack.c.l.b16 %v758
        %v2800 = vunpack.c.l.b16 %v759
        %v2801 = vunpack.c.l.b16 %v760
        %v2802 = vunpack.c.l.b16 %v761
        %v2803 = vunpack.c.l.b16 %v762
        %v2804 = vunpack.c.l.b16 %v763
        %v2805 = vunpack.c.l.b16 %v764
        %v2806 = vunpack.c.l.b16 %v765
        %v2807 = vunpack.c.l.b16 %v766
        %v2808 = vunpack.c.l.b16 %v767
        %v2809 = vunpack.c.l.b16 %v768
        %v2810 = vunpack.c.l.b16 %v769
        %v2811 = vunpack.c.l.b16 %v770
        %v2812 = vunpack.c.l.b16 %v771
        %v2813 = vunpack.c.l.b16 %v772
        %v2814 = vunpack.c.l.b16 %v773
        %v2815 = vunpack.c.l.b16 %v774
        %v2816 = vunpack.c.l.b16 %v775
        %v2817 = vunpack.c.l.b16 %v776
        %v2818 = vunpack.c.l.b16 %v777
        %v2819 = vunpack.c.l.b16 %v778
        %v2820 = vunpack.c.l.b16 %v779
        %v2821 = vunpack.c.l.b16 %v780
        %v2822 = vunpack.c.l.b16 %v781
        %v2823 = vunpack.c.l.b16 %v782
        %v2824 = vunpack.c.l.b16 %v783
        %v2825 = vunpack.c.l.b16 %v784
        %v2826 = vunpack.c.l.b16 %v785
        %v2827 = vunpack.c.l.b16 %v786
        %v2828 = vunpack.c.l.b16 %v787
        %v2829 = vunpack.c.l.b16 %v788
        %v2830 = vunpack.c.l.b16 %v789
        %v2831 = vunpack.c.l.b16 %v790
        %v2832 = vunpack.c.l.b16 %v791
        %v2833 = vunpack.c.l.b16 %v792
        %v2834 = vunpack.c.l.b16 %v793
        %v2835 = vunpack.c.l.b16 %v794
        %v2836 = vunpack.c.l.b16 %v795
        %v2837 = vunpack.c.l.b16 %v796
        %v2838 = vunpack.c.l.b16 %v797
        %v2839 = vunpack.c.l.b16 %v798
        %v2840 = vunpack.c.l.b16 %v799
        %v2841 = vunpack.c.l.b16 %v800
        %v2842 = vunpack.c.l.b16 %v801
        %v2843 = vunpack.c.l.b16 %v802
        %v2844 = vunpack.c.l.b16 %v803
        %v2845 = vunpack.c.l.b16 %v804
        %v2846 = vunpack.c.l.b16 %v805
        %v2847 = vunpack.c.l.b16 %v806
        %v2848 = vunpack.c.l.b16 %v807
        %v2849 = vunpack.c.l.b16 %v808
        %v2850 = vunpack.c.l.b16 %v809
        %v2851 = vunpack.c.l.b16 %v810
        %v2852 = vunpack.c.l.b16 %v811
        %v2853 = vunpack.c.l.b16 %v812
        %v2854 = vunpack.c.l.b16 %v813
        %v2855 = vunpack.c.l.b16 %v814
        %v2856 = vunpack.c.l.b16 %v815
        %v2857 = vunpack.c.l.b16 %v816
        %v2858 = vunpack.c.l.b16 %v817
        %v2859 = vunpack.c.l.b16 %v818
        %v2860 = vunpack.c.l.b16 %v819
        %v2861 = vunpack.c.l.b16 %v820
        %v2862 = vunpack.c.l.b16 %v821
        %v2863 = vunpack.c.l.b16 %v822
        %v2864 = vunpack.c.l.b16 %v823
        %v2865 = vunpack.c.l.b16 %v824
        %v2866 = vunpack.c.l.b16 %v825
        %v2867 = vunpack.c.l.b16 %v826
        %v2868 = vunpack.c.l.b16 %v827
        %v2869 = vunpack.c.l.b16 %v828
        %v2870 = vunpack.c.l.b16 %v829
        %v2871 = vunpack.c.l.b16 %v830
        %v2872 = vunpack.c.l.b16 %v831
        %v2873 = vunpack.c.l.b16 %v832
        %v2874 = vunpack.c.l.b16 %v833
        %v2875 = vunpack.c.l.b16 %v834
        %v2876 = vunpack.c.l.b16 %v835
        %v2877 = vunpack.c.l.b16 %v836
        %v2878 = vunpack.c.l.b16 %v837
        %v2879 = vunpack.c.l.b16 %v838
        %v2880 = vunpack.c.l.b16 %v839
        %v2881 = vunpack.c.l.b16 %v840
        %v2882 = vunpack.c.l.b16 %v841
        %v2883 = vunpack.c.l.b16 %v842
        %v2884 = vunpack.c.l.b16 %v843
        %v2885 = vunpack.c.l.b16 %v844
        %v2886 = vunpack.c.l.b16 %v845
        %v2887 = vunpack.c.l.b16 %v846
        %v2888 = vunpack.c.l.b16 %v847
        %v2889 = vunpack.c.l.b16 %v848
        %v2890 = vunpack.c.l.b16 %v849
        %v2891 = vunpack.c.l.b16 %v850
        %v2892 = vunpack.c.l.b16 %v851
        %v2893 = vunpack.c.l.b16 %v852
        %v2894 = vunpack.c.l.b16 %v853
        %v2895 = vunpack.c.l.b16 %v854
        %v2896 = vunpack.c.l.b16 %v855
        %v2897 = vunpack.c.l.b16 %v856
        %v2898 = vunpack.c.l.b16 %v857
        %v2899 = vunpack.c.l.b16 %v858
        %v2900 = vunpack.c.l.b16 %v859
        %v2901 = vunpack.c.l.b16 %v860
        %v2902 = vunpack.c.l.b16 %v861
        %v2903 = vunpack.c.l.b16 %v862
        %v2904 = vunpack.c.l.b16 %v863
        %v2905 = vunpack.c.l.b16 %v864
        %v2906 = vunpack.c.l.b16 %v865
        %v2907 = vunpack.c.l.b16 %v866
        %v2908 = vunpack.c.l.b16 %v867
        %v2909 = vunpack.c.l.b16 %v868
        %v2910 = vunpack.c.l.b16 %v869
        %v2911 = vunpack.c.l.b16 %v870
        %v2912 = vunpack.c.l.b16 %v871
        %v2913 = vunpack.c.l.b16 %v872
        %v2914 = vunpack.c.l.b16 %v873
        %v2915 = vunpack.c.l.b16 %v874
        %v2916 = vunpack.c.l.b16 %v875
        %v2917 = vunpack.c.l.b16 %v876
        %v2918 = vunpack.c.l.b16 %v877
        %v2919 = vunpack.c.l.b16 %v878
        %v2920 = vunpack.c.l.b16 %v879
        %v2921 = vunpack.c.l.b16 %v880
        %v2922 = vunpack.c.l.b16 %v881
        %v2923 = vunpack.c.l.b16 %v882
        %v2924 = vunpack.c.l.b16 %v883
        %v2925 = vunpack.c.l.b16 %v884
        %v2926 = vunpack.c.l.b16 %v885
        %v2927 = vunpack.c.l.b16 %v886
        %v2928 = vunpack.c.l.b16 %v887
        %v2929 = vunpack.c.l.b16 %v888
        %v2930 = vunpack.c.l.b16 %v889
        %v2931 = vunpack.c.l.b16 %v890
        %v2932 = vunpack.c.l.b16 %v891
        %v2933 = vunpack.c.l.b16 %v892
        %v2934 = vunpack.c.l.b16 %v893
        %v2935 = vunpack.c.l.b16 %v894
        %v2936 = vunpack.c.l.b16 %v895
        %v2937 = vunpack.c.l.b16 %v896
        %v2938 = vunpack.c.l.b16 %v897
        %v2939 = vunpack.c.l.b16 %v898
        %v2940 = vunpack.c.l.b16 %v899
        %v2941 = vunpack.c.l.b16 %v900
        %v2942 = vunpack.c.l.b16 %v901
        %v2943 = vunpack.c.l.b16 %v902
        %v2944 = vunpack.c.l.b16 %v903
        %v2945 = vunpack.c.l.b16 %v904
        %v2946 = vunpack.c.l.b16 %v905
        %v2947 = vunpack.c.l.b16 %v906
        %v2948 = vunpack.c.l.b16 %v907
        %v2949 = vunpack.c.l.b16 %v908
        %v2950 = vunpack.c.l.b16 %v909
        %v2951 = vunpack.c.l.b16 %v910
        %v2952 = vunpack.c.l.b16 %v911
        %v2953 = vunpack.c.l.b16 %v912
        %v2954 = vunpack.c.l.b16 %v913
        %v2955 = vunpack.c.l.b16 %v914
        %v2956 = vunpack.c.l.b16 %v915
        %v2957 = vunpack.c.l.b16 %v916
        %v2958 = vunpack.c.l.b16 %v917
        %v2959 = vunpack.c.l.b16 %v918
        %v2960 = vunpack.c.l.b16 %v919
        %v2961 = vunpack.c.l.b16 %v920
        %v2962 = vunpack.c.l.b16 %v921
        %v2963 = vunpack.c.l.b16 %v922
        %v2964 = vunpack.c.l.b16 %v923
        %v2965 = vunpack.c.l.b16 %v924
        %v2966 = vunpack.c.l.b16 %v925
        %v2967 = vunpack.c.l.b16 %v926
        %v2968 = vunpack.c.l.b16 %v927
        %v2969 = vunpack.c.l.b16 %v928
        %v2970 = vunpack.c.l.b16 %v929
        %v2971 = vunpack.c.l.b16 %v930
        %v2972 = vunpack.c.l.b16 %v931
        %v2973 = vunpack.c.l.b16 %v932
        %v2974 = vunpack.c.l.b16 %v933
        %v2975 = vunpack.c.l.b16 %v934
        %v2976 = vunpack.c.l.b16 %v935
        %v2977 = vunpack.c.l.b16 %v936
        %v2978 = vunpack.c.l.b16 %v937
        %v2979 = vunpack.c.l.b16 %v938
        %v2980 = vunpack.c.l.b16 %v939
        %v2981 = vunpack.c.l.b16 %v940
        %v2982 = vunpack.c.l.b16 %v941
        %v2983 = vunpack.c.l.b16 %v942
        %v2984 = vunpack.c.l.b16 %v943
        %v2985 = vunpack.c.l.b16 %v944
        %v2986 = vunpack.c.l.b16 %v945
        %v2987 = vunpack.c.l.b16 %v946
        %v2988 = vunpack.c.l.b16 %v947
        %v2989 = vunpack.c.l.b16 %v948
        %v2990 = vunpack.c.l.b16 %v949
        %v2991 = vunpack.c.l.b16 %v950
        %v2992 = vunpack.c.l.b16 %v951
        %v2993 = vunpack.c.l.b16 %v952
        %v2994 = vunpack.c.l.b16 %v953
        %v2995 = vunpack.c.l.b16 %v954
        %v2996 = vunpack.c.l.b16 %v955
        %v2997 = vunpack.c.l.b16 %v956
        %v2998 = vunpack.c.l.b16 %v957
        %v2999 = vunpack.c.l.b16 %v958
        %v3000 = vunpack.c.l.b16 %v959
        %v3001 = vunpack.c.l.b16 %v960
        %v3002 = vunpack.c.l.b16 %v961
        %v3003 = vunpack.c.l.b16 %v962
        %v3004 = vunpack.c.l.b16 %v963
        %v3005 = vunpack.c.l.b16 %v964
        %v3006 = vunpack.c.l.b16 %v965
        %v3007 = vunpack.c.l.b16 %v966
        %v3008 = vunpack.c.l.b16 %v967
        %v3009 = vunpack.c.l.b16 %v968
        %v3010 = vunpack.c.l.b16 %v969
        %v3011 = vunpack.c.l.b16 %v970
        %v3012 = vunpack.c.l.b16 %v971
        %v3013 = vunpack.c.l.b16 %v972
        %v3014 = vunpack.c.l.b16 %v973
        %v3015 = vunpack.c.l.b16 %v974
        %v3016 = vunpack.c.l.b16 %v975
        %v3017 = vunpack.c.l.b16 %v976
        %v3018 = vunpack.c.l.b16 %v977
        %v3019 = vunpack.c.l.b16 %v978
        %v3020 = vunpack.c.l.b16 %v979
        %v3021 = vunpack.c.l.b16 %v980
        %v3022 = vunpack.c.l.b16 %v981
        %v3023 = vunpack.c.l.b16 %v982
        %v3024 = vunpack.c.l.b16 %v983
        %v3025 = vunpack.c.l.b16 %v984
        %v3026 = vunpack.c.l.b16 %v985
        %v3027 = vunpack.c.l.b16 %v986
        %v3028 = vunpack.c.l.b16 %v987
        %v3029 = vunpack.c.l.b16 %v988
        %v3030 = vunpack.c.l.b16 %v989
        %v3031 = vunpack.c.l.b16 %v990
        %v3032 = vunpack.c.l.b16 %v991
        %v3033 = vunpack.c.l.b16 %v992
        %v3034 = vunpack.c.l.b16 %v993
        %v3035 = vunpack.c.l.b16 %v994
        %v3036 = vunpack.c.l.b16 %v995
        %v3037 = vunpack.c.l.b16 %v996
        %v3038 = vunpack.c.l.b16 %v997
        %v3039 = vunpack.c.l.b16 %v998
        %v3040 = vunpack.c.l.b16 %v999
        %v3041 = vunpack.c.l.b16 %v1000
        %v3042 = vunpack.c.l.b16 %v1001
        %v3043 = vunpack.c.l.b16 %v1002
        %v3044 = vunpack.c.l.b16 %v1003
        %v3045 = vunpack.c.l.b16 %v1004
        %v3046 = vunpack.c.l.b16 %v1005
        %v3047 = vunpack.c.l.b16 %v1006
        %v3048 = vunpack.c.l.b16 %v1007
        %v3049 = vunpack.c.l.b16 %v1008
        %v3050 = vunpack.c.l.b16 %v1009
        %v3051 = vunpack.c.l.b16 %v1010
        %v3052 = vunpack.c.l.b16 %v1011
        %v3053 = vunpack.c.l.b16 %v1012
        %v3054 = vunpack.c.l.b16 %v1013
        %v3055 = vunpack.c.l.b16 %v1014
        %v3056 = vunpack.c.l.b16 %v1015
        %v3057 = vunpack.c.l.b16 %v1016
        %v3058 = vunpack.c.l.b16 %v1017
        %v3059 = vunpack.c.l.b16 %v1018
        %v3060 = vunpack.c.l.b16 %v1019
        %v3061 = vunpack.c.l.b16 %v1020
        %v3062 = vunpack.c.l.b16 %v1021
        %v3063 = vunpack.c.l.b16 %v1022
        %v3064 = vunpack.c.l.b16 %v1023
        %v3065 = vunpack.c.l.b16 %v1024
        %v3066 = vunpack.c.l.b16 %v1025
        %v3067 = vunpack.c.l.b16 %v1026
        %v3068 = vunpack.c.l.b16 %v1027
        %v3069 = vunpack.c.l.b16 %v1028
        %v3070 = vunpack.c.l.b16 %v1029
        %v3071 = vunpack.c.l.b16 %v1030
        %v3072 = vunpack.c.l.b16 %v1031
        %v3073 = vunpack.c.l.b16 %v1032
        %v3074 = vunpack.c.l.b16 %v1033
        %v3075 = vunpack.c.l.b16 %v1034
        %v3076 = vunpack.c.l.b16 %v1035
        %v3077 = vunpack.c.l.b16 %v1036
        %v3078 = vunpack.c.l.b16 %v1037
        %v3079 = vunpack.c.l.b16 %v1038
        %v3080 = vunpack.c.l.b16 %v1039
        %v3081 = vunpack.c.l.b16 %v1040
        %v3082 = vunpack.c.l.b16 %v1041
        %v3083 = vunpack.c.l.b16 %v1042
        %v3084 = vunpack.c.l.b16 %v1043
        %v3085 = vunpack.c.l.b16 %v1044
        %v3086 = vunpack.c.l.b16 %v1045
        %v3087 = vunpack.c.l.b16 %v1046
        %v3088 = vunpack.c.l.b16 %v1047
        %v3089 = vunpack.c.l.b16 %v1048
        %v3090 = vunpack.c.l.b16 %v1049
        %v3091 = vunpack.c.l.b16 %v1050
        %v3092 = vunpack.c.l.b16 %v1051
        %v3093 = vunpack.c.l.b16 %v1052
        %v3094 = vunpack.c.l.b16 %v1053
        %v3095 = vunpack.c.l.b16 %v1054
        %v3096 = vunpack.c.l.b16 %v1055
        %v3097 = vunpack.c.l.b16 %v1056
        %v3098 = vunpack.c.l.b16 %v1057
        %v3099 = vunpack.c.l.b16 %v1058
        %v3100 = vunpack.c.l.b16 %v1059
        %v3101 = vunpack.c.l.b16 %v1060
        %v3102 = vunpack.c.l.b16 %v1061
        %v3103 = vunpack.c.l.b16 %v1062
        %v3104 = vunpack.c.l.b16 %v1063
        %v3105 = vunpack.c.l.b16 %v1064
        %v3106 = vunpack.c.l.b16 %v1065
        %v3107 = vunpack.c.l.b16 %v1066
        %v3108 = vunpack.c.l.b16 %v1067
        %v3109 = vunpack.c.l.b16 %v1068
        %v3110 = vunpack.c.l.b16 %v1069
        %v3111 = vunpack.c.l.b16 %v1070
        %v3112 = vunpack.c.l.b16 %v1071
        %v3113 = vunpack.c.l.b16 %v1072
        %v3114 = vunpack.c.l.b16 %v1073
        %v3115 = vunpack.c.l.b16 %v1074
        %v3116 = vunpack.c.l.b16 %v1075
        %v3117 = vunpack.c.l.b16 %v1076
        %v3118 = vunpack.c.l.b16 %v1077
        %v3119 = vunpack.c.l.b16 %v1078
        %v3120 = vunpack.c.l.b16 %v1079
        %v3121 = vunpack.c.l.b16 %v1080
        %v3122 = vunpack.c.l.b16 %v1081
        %v3123 = vunpack.c.l.b16 %v1082
        %v3124 = vpack.c.b16 %v2293, %v2292
        %v3125 = vpack.c.b16 %v2295, %v2294
        %v3126 = vpack.c.b16 %v2297, %v2296
        %v3127 = vpack.c.b16 %v2299, %v2298
        %v3128 = vpack.c.b16 %v2301, %v2300
        %v3129 = vpack.c.b16 %v2303, %v2302
        %v3130 = vpack.c.b16 %v2305, %v2304
        %v3131 = vpack.c.b16 %v2307, %v2306
        %v3132 = vpack.c.b16 %v2309, %v2308
        %v3133 = vpack.c.b16 %v2311, %v2310
        %v3134 = vpack.c.b16 %v2313, %v2312
        %v3135 = vpack.c.b16 %v2315, %v2314
        %v3136 = vpack.c.b16 %v2317, %v2316
        %v3137 = vpack.c.b16 %v2319, %v2318
        %v3138 = vpack.c.b16 %v2321, %v2320
        %v3139 = vpack.c.b16 %v2323, %v2322
        %v3140 = vpack.c.b16 %v2325, %v2324
        %v3141 = vpack.c.b16 %v2327, %v2326
        %v3142 = vpack.c.b16 %v2329, %v2328
        %v3143 = vpack.c.b16 %v2331, %v2330
        %v3144 = vpack.c.b16 %v2333, %v2332
        %v3145 = vpack.c.b16 %v2335, %v2334
        %v3146 = vpack.c.b16 %v2337, %v2336
        %v3147 = vpack.c.b16 %v2339, %v2338
        %v3148 = vpack.c.b16 %v2341, %v2340
        %v3149 = vpack.c.b16 %v2343, %v2342
        %v3150 = vpack.c.b16 %v2345, %v2344
        %v3151 = vpack.c.b16 %v2347, %v2346
        %v3152 = vpack.c.b16 %v2349, %v2348
        %v3153 = vpack.c.b16 %v2351, %v2350
        %v3154 = vpack.c.b16 %v2353, %v2352
        %v3155 = vpack.c.b16 %v2355, %v2354
        %v3156 = vpack.c.b16 %v2357, %v2356
        %v3157 = vpack.c.b16 %v2359, %v2358
        %v3158 = vpack.c.b16 %v2361, %v2360
        %v3159 = vpack.c.b16 %v2363, %v2362
        %v3160 = vpack.c.b16 %v2365, %v2364
        %v3161 = vpack.c.b16 %v2367, %v2366
        %v3162 = vpack.c.b16 %v2369, %v2368
        %v3163 = vpack.c.b16 %v2371, %v2370
        %v3164 = vpack.c.b16 %v2373, %v2372
        %v3165 = vpack.c.b16 %v2375, %v2374
        %v3166 = vpack.c.b16 %v2377, %v2376
        %v3167 = vpack.c.b16 %v2379, %v2378
        %v3168 = vpack.c.b16 %v2381, %v2380
        %v3169 = vpack.c.b16 %v2383, %v2382
        %v3170 = vpack.c.b16 %v2385, %v2384
        %v3171 = vpack.c.b16 %v2387, %v2386
        %v3172 = vpack.c.b16 %v2389, %v2388
        %v3173 = vpack.c.b16 %v2391, %v2390
        %v3174 = vpack.c.b16 %v2393, %v2392
        %v3175 = vpack.c.b16 %v2395, %v2394
        %v3176 = vpack.c.b16 %v2397, %v2396
        %v3177 = vpack.c.b16 %v2399, %v2398
        %v3178 = vpack.c.b16 %v2401, %v2400
        %v3179 = vpack.c.b16 %v2403, %v2402
        %v3180 = vpack.c.b16 %v2405, %v2404
        %v3181 = vpack.c.b16 %v2407, %v2406
        %v3182 = vpack.c.b16 %v2409, %v2408
        %v3183 = vpack.c.b16 %v2411, %v2410
        %v3184 = vpack.c.b16 %v2413, %v2412
        %v3185 = vpack.c.b16 %v2415, %v2414
        %v3186 = vpack.c.b16 %v2417, %v2416
        %v3187 = vpack.c.b16 %v2419, %v2418
        %v3188 = vpack.c.b16 %v2421, %v2420
        %v3189 = vpack.c.b16 %v2423, %v2422
        %v3190 = vpack.c.b16 %v2425, %v2424
        %v3191 = vpack.c.b16 %v2427, %v2426
        %v3192 = vpack.c.b16 %v2429, %v2428
        %v3193 = vpack.c.b16 %v2431, %v2430
        %v3194 = vpack.c.b16 %v2433, %v2432
        %v3195 = vpack.c.b16 %v2435, %v2434
        %v3196 = vpack.c.b16 %v2437, %v2436
        %v3197 = vpack.c.b16 %v2439, %v2438
        %v3198 = vpack.c.b16 %v2441, %v2440
        %v3199 = vpack.c.b16 %v2443, %v2442
        %v3200 = vpack.c.b16 %v2445, %v2444
        %v3201 = vpack.c.b16 %v2447, %v2446
        %v3202 = vpack.c.b16 %v2449, %v2448
        %v3203 = vpack.c.b16 %v2451, %v2450
        %v3204 = vpack.c.b16 %v2453, %v2452
        %v3205 = vpack.c.b16 %v2455, %v2454
        %v3206 = vpack.c.b16 %v2457, %v2456
        %v3207 = vpack.c.b16 %v2459, %v2458
        %v3208 = vpack.c.b16 %v2461, %v2460
        %v3209 = vpack.c.b16 %v2463, %v2462
        %v3210 = vpack.c.b16 %v2465, %v2464
        %v3211 = vpack.c.b16 %v2467, %v2466
        %v3212 = vpack.c.b16 %v2469, %v2468
        %v3213 = vpack.c.b16 %v2471, %v2470
        %v3214 = vpack.c.b16 %v2473, %v2472
        %v3215 = vpack.c.b16 %v2475, %v2474
        %v3216 = vpack.c.b16 %v2477, %v2476
        %v3217 = vpack.c.b16 %v2479, %v2478
        %v3218 = vpack.c.b16 %v2481, %v2480
        %v3219 = vpack.c.b16 %v2483, %v2482
        %v3220 = vpack.c.b16 %v2485, %v2484
        %v3221 = vpack.c.b16 %v2487, %v2486
        %v3222 = vpack.c.b16 %v2489, %v2488
        %v3223 = vpack.c.b16 %v2491, %v2490
        %v3224 = vpack.c.b16 %v2493, %v2492
        %v3225 = vpack.c.b16 %v2495, %v2494
        %v3226 = vpack.c.b16 %v2497, %v2496
        %v3227 = vpack.c.b16 %v2499, %v2498
        %v3228 = vpack.c.b16 %v2501, %v2500
        %v3229 = vpack.c.b16 %v2503, %v2502
        %v3230 = vpack.c.b16 %v2505, %v2504
        %v3231 = vpack.c.b16 %v2507, %v2506
        %v3232 = vpack.c.b16 %v2509, %v2508
        %v3233 = vpack.c.b16 %v2511, %v2510
        %v3234 = vpack.c.b16 %v2513, %v2512
        %v3235 = vpack.c.b16 %v2515, %v2514
        %v3236 = vpack.c.b16 %v2517, %v2516
        %v3237 = vpack.c.b16 %v2519, %v2518
        %v3238 = vpack.c.b16 %v2521, %v2520
        %v3239 = vpack.c.b16 %v2523, %v2522
        %v3240 = vpack.c.b16 %v2525, %v2524
        %v3241 = vpack.c.b16 %v2527, %v2526
        %v3242 = vpack.c.b16 %v2529, %v2528
        %v3243 = vpack.c.b16 %v2531, %v2530
        %v3244 = vpack.c.b16 %v2533, %v2532
        %v3245 = vpack.c.b16 %v2535, %v2534
        %v3246 = vpack.c.b16 %v2537, %v2536
        %v3247 = vpack.c.b16 %v2539, %v2538
        %v3248 = vpack.c.b16 %v2541, %v2540
        %v3249 = vpack.c.b16 %v2543, %v2542
        %v3250 = vpack.c.b16 %v2545, %v2544
        %v3251 = vpack.c.b16 %v2547, %v2546
        %v3252 = vpack.c.b16 %v2549, %v2548
        %v3253 = vpack.c.b16 %v2551, %v2550
        %v3254 = vpack.c.b16 %v2553, %v2552
        %v3255 = vpack.c.b16 %v2555, %v2554
        %v3256 = vpack.c.b16 %v2557, %v2556
        %v3257 = vpack.c.b16 %v2559, %v2558
        %v3258 = vpack.c.b16 %v2561, %v2560
        %v3259 = vpack.c.b16 %v2563, %v2562
        %v3260 = vpack.c.b16 %v2565, %v2564
        %v3261 = vpack.c.b16 %v2567, %v2566
        %v3262 = vpack.c.b16 %v2569, %v2568
        %v3263 = vpack.c.b16 %v2571, %v2570
        %v3264 = vpack.c.b16 %v2573, %v2572
        %v3265 = vpack.c.b16 %v2575, %v2574
        %v3266 = vpack.c.b16 %v2577, %v2576
        %v3267 = vpack.c.b16 %v2579, %v2578
        %v3268 = vpack.c.b16 %v2581, %v2580
        %v3269 = vpack.c.b16 %v2583, %v2582
        %v3270 = vpack.c.b16 %v2585, %v2584
        %v3271 = vpack.c.b16 %v2587, %v2586
        %v3272 = vpack.c.b16 %v2589, %v2588
        %v3273 = vpack.c.b16 %v2591, %v2590
        %v3274 = vpack.c.b16 %v2593, %v2592
        %v3275 = vpack.c.b16 %v2595, %v2594
        %v3276 = vpack.c.b16 %v2597, %v2596
        %v3277 = vpack.c.b16 %v2599, %v2598
        %v3278 = vpack.c.b16 %v2601, %v2600
        %v3279 = vpack.c.b16 %v2603, %v2602
        %v3280 = vpack.c.b16 %v2605, %v2604
        %v3281 = vpack.c.b16 %v2607, %v2606
        %v3282 = vpack.c.b16 %v2609, %v2608
        %v3283 = vpack.c.b16 %v2611, %v2610
        %v3284 = vpack.c.b16 %v2613, %v2612
        %v3285 = vpack.c.b16 %v2615, %v2614
        %v3286 = vpack.c.b16 %v2617, %v2616
        %v3287 = vpack.c.b16 %v2619, %v2618
        %v3288 = vpack.c.b16 %v2621, %v2620
        %v3289 = vpack.c.b16 %v2623, %v2622
        %v3290 = vpack.c.b16 %v2625, %v2624
        %v3291 = vpack.c.b16 %v2627, %v2626
        %v3292 = vpack.c.b16 %v2629, %v2628
        %v3293 = vpack.c.b16 %v2631, %v2630
        %v3294 = vpack.c.b16 %v2633, %v2632
        %v3295 = vpack.c.b16 %v2635, %v2634
        %v3296 = vpack.c.b16 %v2637, %v2636
        %v3297 = vpack.c.b16 %v2639, %v2638
        %v3298 = vpack.c.b16 %v2641, %v2640
        %v3299 = vpack.c.b16 %v2643, %v2642
        %v3300 = vpack.c.b16 %v2645, %v2644
        %v3301 = vpack.c.b16 %v2647, %v2646
        %v3302 = vpack.c.b16 %v2649, %v2648
        %v3303 = vpack.c.b16 %v2651, %v2650
        %v3304 = vpack.c.b16 %v2653, %v2652
        %v3305 = vpack.c.b16 %v2655, %v2654
        %v3306 = vpack.c.b16 %v2657, %v2656
        %v3307 = vpack.c.b16 %v2659, %v2658
        %v3308 = vpack.c.b16 %v2661, %v2660
        %v3309 = vpack.c.b16 %v2663, %v2662
        %v3310 = vpack.c.b16 %v2665, %v2664
        %v3311 = vpack.c.b16 %v2667, %v2666
        %v3312 = vpack.c.b16 %v2669, %v2668
        %v3313 = vpack.c.b16 %v2671, %v2670
        %v3314 = vpack.c.b16 %v2673, %v2672
        %v3315 = vpack.c.b16 %v2675, %v2674
        %v3316 = vpack.c.b16 %v2677, %v2676
        %v3317 = vpack.c.b16 %v2679, %v2678
        %v3318 = vpack.c.b16 %v2681, %v2680
        %v3319 = vpack.c.b16 %v2683, %v2682
        %v3320 = vpack.c.b16 %v2685, %v2684
        %v3321 = vpack.c.b16 %v2687, %v2686
        %v3322 = vpack.c.b16 %v2689, %v2688
        %v3323 = vpack.c.b16 %v2691, %v2690
        %v3324 = vpack.c.b16 %v2693, %v2692
        %v3325 = vpack.c.b16 %v2695, %v2694
        %v3326 = vpack.c.b16 %v2697, %v2696
        %v3327 = vpack.c.b16 %v2699, %v2698
        %v3328 = vpack.c.b16 %v2701, %v2700
        %v3329 = vpack.c.b16 %v2703, %v2702
        %v3330 = vpack.c.b16 %v2705, %v2704
        %v3331 = vpack.c.b16 %v2707, %v2706
        %v3332 = vpack.c.b16 %v2709, %v2708
        %v3333 = vpack.c.b16 %v2711, %v2710
        %v3334 = vpack.c.b16 %v2713, %v2712
        %v3335 = vpack.c.b16 %v2715, %v2714
        %v3336 = vpack.c.b16 %v2717, %v2716
        %v3337 = vpack.c.b16 %v2719, %v2718
        %v3338 = vpack.c.b16 %v2721, %v2720
        %v3339 = vpack.c.b16 %v2723, %v2722
        %v3340 = vpack.c.b16 %v2725, %v2724
        %v3341 = vpack.c.b16 %v2727, %v2726
        %v3342 = vpack.c.b16 %v2729, %v2728
        %v3343 = vpack.c.b16 %v2731, %v2730
        %v3344 = vpack.c.b16 %v2733, %v2732
        %v3345 = vpack.c.b16 %v2735, %v2734
        %v3346 = vpack.c.b16 %v2737, %v2736
        %v3347 = vpack.c.b16 %v2739, %v2738
        %v3348 = vpack.c.b16 %v2741, %v2740
        %v3349 = vpack.c.b16 %v2743, %v2742
        %v3350 = vpack.c.b16 %v2745, %v2744
        %v3351 = vpack.c.b16 %v2747, %v2746
        %v3352 = vpack.c.b16 %v2749, %v2748
        %v3353 = vpack.c.b16 %v2751, %v2750
        %v3354 = vpack.c.b16 %v2753, %v2752
        %v3355 = vpack.c.b16 %v2755, %v2754
        %v3356 = vpack.c.b16 %v2757, %v2756
        %v3357 = vpack.c.b16 %v2759, %v2758
        %v3358 = vpack.c.b16 %v2761, %v2760
        %v3359 = vpack.c.b16 %v2763, %v2762
        %v3360 = vpack.c.b16 %v2765, %v2764
        %v3361 = vpack.c.b16 %v2767, %v2766
        %v3362 = vpack.c.b16 %v2769, %v2768
        %v3363 = vpack.c.b16 %v2771, %v2770
        %v3364 = vpack.c.b16 %v2773, %v2772
        %v3365 = vpack.c.b16 %v2775, %v2774
        %v3366 = vpack.c.b16 %v2777, %v2776
        %v3367 = vpack.c.b16 %v2779, %v2778
        %v3368 = vpack.c.b16 %v2781, %v2780
        %v3369 = vpack.c.b16 %v2783, %v2782
        %v3370 = vpack.c.b16 %v2785, %v2784
        %v3371 = vpack.c.b16 %v2787, %v2786
        %v3372 = vpack.c.b16 %v2789, %v2788
        %v3373 = vpack.c.b16 %v2791, %v2790
        %v3374 = vpack.c.b16 %v2793, %v2792
        %v3375 = vpack.c.b16 %v2795, %v2794
        %v3376 = vpack.c.b16 %v2797, %v2796
        %v3377 = vpack.c.b16 %v2799, %v2798
        %v3378 = vpack.c.b16 %v2801, %v2800
        %v3379 = vpack.c.b16 %v2803, %v2802
        %v3380 = vpack.c.b16 %v2805, %v2804
        %v3381 = vpack.c.b16 %v2807, %v2806
        %v3382 = vpack.c.b16 %v2809, %v2808
        %v3383 = vpack.c.b16 %v2811, %v2810
        %v3384 = vpack.c.b16 %v2813, %v2812
        %v3385 = vpack.c.b16 %v2815, %v2814
        %v3386 = vpack.c.b16 %v2817, %v2816
        %v3387 = vpack.c.b16 %v2819, %v2818
        %v3388 = vpack.c.b16 %v2821, %v2820
        %v3389 = vpack.c.b16 %v2823, %v2822
        %v3390 = vpack.c.b16 %v2825, %v2824
        %v3391 = vpack.c.b16 %v2827, %v2826
        %v3392 = vpack.c.b16 %v2829, %v2828
        %v3393 = vpack.c.b16 %v2831, %v2830
        %v3394 = vpack.c.b16 %v2833, %v2832
        %v3395 = vpack.c.b16 %v2835, %v2834
        %v3396 = vpack.c.b16 %v2837, %v2836
        %v3397 = vpack.c.b16 %v2839, %v2838
        %v3398 = vpack.c.b16 %v2841, %v2840
        %v3399 = vpack.c.b16 %v2843, %v2842
        %v3400 = vpack.c.b16 %v2845, %v2844
        %v3401 = vpack.c.b16 %v2847, %v2846
        %v3402 = vpack.c.b16 %v2849, %v2848
        %v3403 = vpack.c.b16 %v2851, %v2850
        %v3404 = vpack.c.b16 %v2853, %v2852
        %v3405 = vpack.c.b16 %v2855, %v2854
        %v3406 = vpack.c.b16 %v2857, %v2856
        %v3407 = vpack.c.b16 %v2859, %v2858
        %v3408 = vpack.c.b16 %v2861, %v2860
        %v3409 = vpack.c.b16 %v2863, %v2862
        %v3410 = vpack.c.b16 %v2865, %v2864
        %v3411 = vpack.c.b16 %v2867, %v2866
        %v3412 = vpack.c.b16 %v2869, %v2868
        %v3413 = vpack.c.b16 %v2871, %v2870
        %v3414 = vpack.c.b16 %v2873, %v2872
        %v3415 = vpack.c.b16 %v2875, %v2874
        %v3416 = vpack.c.b16 %v2877, %v2876
        %v3417 = vpack.c.b16 %v2879, %v2878
        %v3418 = vpack.c.b16 %v2881, %v2880
        %v3419 = vpack.c.b16 %v2883, %v2882
        %v3420 = vpack.c.b16 %v2885, %v2884
        %v3421 = vpack.c.b16 %v2887, %v2886
        %v3422 = vpack.c.b16 %v2889, %v2888
        %v3423 = vpack.c.b16 %v2891, %v2890
        %v3424 = vpack.c.b16 %v2893, %v2892
        %v3425 = vpack.c.b16 %v2895, %v2894
        %v3426 = vpack.c.b16 %v2897, %v2896
        %v3427 = vpack.c.b16 %v2899, %v2898
        %v3428 = vpack.c.b16 %v2901, %v2900
        %v3429 = vpack.c.b16 %v2903, %v2902
        %v3430 = vpack.c.b16 %v2905, %v2904
        %v3431 = vpack.c.b16 %v2907, %v2906
        %v3432 = vpack.c.b16 %v2909, %v2908
        %v3433 = vpack.c.b16 %v2911, %v2910
        %v3434 = vpack.c.b16 %v2913, %v2912
        %v3435 = vpack.c.b16 %v2915, %v2914
        %v3436 = vpack.c.b16 %v2917, %v2916
        %v3437 = vpack.c.b16 %v2919, %v2918
        %v3438 = vpack.c.b16 %v2921, %v2920
        %v3439 = vpack.c.b16 %v2923, %v2922
        %v3440 = vpack.c.b16 %v2925, %v2924
        %v3441 = vpack.c.b16 %v2927, %v2926
        %v3442 = vpack.c.b16 %v2929, %v2928
        %v3443 = vpack.c.b16 %v2931, %v2930
        %v3444 = vpack.c.b16 %v2933, %v2932
        %v3445 = vpack.c.b16 %v2935, %v2934
        %v3446 = vpack.c.b16 %v2937, %v2936
        %v3447 = vpack.c.b16 %v2939, %v2938
        %v3448 = vpack.c.b16 %v2941, %v2940
        %v3449 = vpack.c.b16 %v2943, %v2942
        %v3450 = vpack.c.b16 %v2945, %v2944
        %v3451 = vpack.c.b16 %v2947, %v2946
        %v3452 = vpack.c.b16 %v2949, %v2948
        %v3453 = vpack.c.b16 %v2951, %v2950
        %v3454 = vpack.c.b16 %v2953, %v2952
        %v3455 = vpack.c.b16 %v2955, %v2954
        %v3456 = vpack.c.b16 %v2957, %v2956
        %v3457 = vpack.c.b16 %v2959, %v2958
        %v3458 = vpack.c.b16 %v2961, %v2960
        %v3459 = vpack.c.b16 %v2963, %v2962
        %v3460 = vpack.c.b16 %v2965, %v2964
        %v3461 = vpack.c.b16 %v2967, %v2966
        %v3462 = vpack.c.b16 %v2969, %v2968
        %v3463 = vpack.c.b16 %v2971, %v2970
        %v3464 = vpack.c.b16 %v2973, %v2972
        %v3465 = vpack.c.b16 %v2975, %v2974
        %v3466 = vpack.c.b16 %v2977, %v2976
        %v3467 = vpack.c.b16 %v2979, %v2978
        %v3468 = vpack.c.b16 %v2981, %v2980
        %v3469 = vpack.c.b16 %v2983, %v2982
        %v3470 = vpack.c.b16 %v2985, %v2984
        %v3471 = vpack.c.b16 %v2987, %v2986
        %v3472 = vpack.c.b16 %v2989, %v2988
        %v3473 = vpack.c.b16 %v2991, %v2990
        %v3474 = vpack.c.b16 %v2993, %v2992
        %v3475 = vpack.c.b16 %v2995, %v2994
        %v3476 = vpack.c.b16 %v2997, %v2996
        %v3477 = vpack.c.b16 %v2999, %v2998
        %v3478 = vpack.c.b16 %v3001, %v3000
        %v3479 = vpack.c.b16 %v3003, %v3002
        %v3480 = vpack.c.b16 %v3005, %v3004
        %v3481 = vpack.c.b16 %v3007, %v3006
        %v3482 = vpack.c.b16 %v3009, %v3008
        %v3483 = vpack.c.b16 %v3011, %v3010
        %v3484 = vpack.c.b16 %v3013, %v3012
        %v3485 = vpack.c.b16 %v3015, %v3014
        %v3486 = vpack.c.b16 %v3017, %v3016
        %v3487 = vpack.c.b16 %v3019, %v3018
        %v3488 = vpack.c.b16 %v3021, %v3020
        %v3489 = vpack.c.b16 %v3023, %v3022
        %v3490 = vpack.c.b16 %v3025, %v3024
        %v3491 = vpack.c.b16 %v3027, %v3026
        %v3492 = vpack.c.b16 %v3029, %v3028
        %v3493 = vpack.c.b16 %v3031, %v3030
        %v3494 = vpack.c.b16 %v3033, %v3032
        %v3495 = vpack.c.b16 %v3035, %v3034
        %v3496 = vpack.c.b16 %v3037, %v3036
        %v3497 = vpack.c.b16 %v3039, %v3038
        %v3498 = vpack.c.b16 %v3041, %v3040
        %v3499 = vpack.c.b16 %v3043, %v3042
        %v3500 = vpack.c.b16 %v3045, %v3044
        %v3501 = vpack.c.b16 %v3047, %v3046
        %v3502 = vpack.c.b16 %v3049, %v3048
        %v3503 = vpack.c.b16 %v3051, %v3050
        %v3504 = vpack.c.b16 %v3053, %v3052
        %v3505 = vpack.c.b16 %v3055, %v3054
        %v3506 = vpack.c.b16 %v3057, %v3056
        %v3507 = vpack.c.b16 %v3059, %v3058
        %v3508 = vpack.c.b16 %v3061, %v3060
        %v3509 = vpack.c.b16 %v3063, %v3062
        %v3510 = vpack.c.b16 %v3065, %v3064
        %v3511 = vpack.c.b16 %v3067, %v3066
        %v3512 = vpack.c.b16 %v3069, %v3068
        %v3513 = vpack.c.b16 %v3071, %v3070
        %v3514 = vpack.c.b16 %v3073, %v3072
        %v3515 = vpack.c.b16 %v3075, %v3074
        %v3516 = vpack.c.b16 %v3077, %v3076
        %v3517 = vpack.c.b16 %v3079, %v3078
        %v3518 = vpack.c.b16 %v3081, %v3080
        %v3519 = vpack.c.b16 %v3083, %v3082
        %v3520 = vpack.c.b16 %v3085, %v3084
        %v3521 = vpack.c.b16 %v3087, %v3086
        %v3522 = vpack.c.b16 %v3089, %v3088
        %v3523 = vpack.c.b16 %v3091, %v3090
        %v3524 = vpack.c.b16 %v3093, %v3092
        %v3525 = vpack.c.b16 %v3095, %v3094
        %v3526 = vpack.c.b16 %v3097, %v3096
        %v3527 = vpack.c.b16 %v3099, %v3098
        %v3528 = vpack.c.b16 %v3101, %v3100
        %v3529 = vpack.c.b16 %v3103, %v3102
        %v3530 = vpack.c.b16 %v3105, %v3104
        %v3531 = vpack.c.b16 %v3107, %v3106
        %v3532 = vpack.c.b16 %v3109, %v3108
        %v3533 = vpack.c.b16 %v3111, %v3110
        %v3534 = vpack.c.b16 %v3113, %v3112
        %v3535 = vpack.c.b16 %v3115, %v3114
        %v3536 = vpack.c.b16 %v3117, %v3116
        %v3537 = vpack.c.b16 %v3119, %v3118
        %v3538 = vpack.c.b16 %v3121, %v3120
        %v3539 = vpack.c.b16 %v3123, %v3122
        %3956 = vmatprep.subr.bf16.mxu0 0
        %3957 = vmatpush1.bf16.msra.mxu0 %v3124
        %3958 = vmatprep.subr.bf16.mxu0 0
        %3959 = vmatpush1.bf16.msra.mxu0 %v3125
        %3960 = vmatprep.subr.bf16.mxu0 0
        %3961 = vmatpush1.bf16.msra.mxu0 %v3126
        %3962 = vmatprep.subr.bf16.mxu0 0
        %3963 = vmatpush1.bf16.msra.mxu0 %v3127
        %3964 = vmatprep.subr.bf16.mxu0 0
        %3965 = vmatpush1.bf16.msra.mxu0 %v3128
        %3966 = vmatprep.subr.bf16.mxu0 0
        %3967 = vmatpush1.bf16.msra.mxu0 %v3129
        %3968 = vmatprep.subr.bf16.mxu0 0
        %3969 = vmatpush1.bf16.msra.mxu0 %v3130
        %3970 = vmatprep.subr.bf16.mxu0 0
        %3971 = vmatpush1.bf16.msra.mxu0 %v3131
        %3972 = vmatprep.subr.bf16.mxu0 0
        %3973 = vmatpush1.bf16.msra.mxu0 %v3132
        %3974 = vmatprep.subr.bf16.mxu0 0
        %3975 = vmatpush1.bf16.msra.mxu0 %v3133
        %3976 = vmatprep.subr.bf16.mxu0 0
        %3977 = vmatpush1.bf16.msra.mxu0 %v3134
        %3978 = vmatprep.subr.bf16.mxu0 0
        %3979 = vmatpush1.bf16.msra.mxu0 %v3135
        %3980 = vmatprep.subr.bf16.mxu0 0
        %3981 = vmatpush1.bf16.msra.mxu0 %v3136
        %3982 = vmatprep.subr.bf16.mxu0 0
        %3983 = vmatpush1.bf16.msra.mxu0 %v3137
        %3984 = vmatprep.subr.bf16.mxu0 0
        %3985 = vmatpush1.bf16.msra.mxu0 %v3138
        %3986 = vmatprep.subr.bf16.mxu0 0
        %3987 = vmatpush1.bf16.msra.mxu0 %v3139
        %3988 = vmatprep.mubr.bf16.mxu0 %v1127
        %3989 = vmatmul.mubr.bf16.gmra.mrb[0].mxu0 %v1113
        %v3990 = vpop.f32.mrb[0].mxu0
        %v3991 = vadd.f32 0.0, %v3990
        %v3992 = vpop.f32.mrb[0].mxu0
        %v3993 = vpop.f32.mrb[0].mxu0
        %v3994 = vpop.f32.mrb[0].mxu0
        %3995 = vdwg.mxu0
        %3996 = vmatprep.subr.bf16.mxu0 0
        %3997 = vmatpush1.bf16.msra.mxu0 %v3140
        %3998 = vmatprep.subr.bf16.mxu0 0
        %3999 = vmatpush1.bf16.msra.mxu0 %v3141
        %4000 = vmatprep.subr.bf16.mxu0 0
        %4001 = vmatpush1.bf16.msra.mxu0 %v3142
        %4002 = vmatprep.subr.bf16.mxu0 0
        %4003 = vmatpush1.bf16.msra.mxu0 %v3143
        %4004 = vmatprep.subr.bf16.mxu0 0
        %4005 = vmatpush1.bf16.msra.mxu0 %v3144
        %4006 = vmatprep.subr.bf16.mxu0 0
        %4007 = vmatpush1.bf16.msra.mxu0 %v3145
        %4008 = vmatprep.subr.bf16.mxu0 0
        %4009 = vmatpush1.bf16.msra.mxu0 %v3146
        %4010 = vmatprep.subr.bf16.mxu0 0
        %4011 = vmatpush1.bf16.msra.mxu0 %v3147
        %4012 = vmatprep.subr.bf16.mxu0 0
        %4013 = vmatpush1.bf16.msra.mxu0 %v3148
        %4014 = vmatprep.subr.bf16.mxu0 0
        %4015 = vmatpush1.bf16.msra.mxu0 %v3149
        %4016 = vmatprep.subr.bf16.mxu0 0
        %4017 = vmatpush1.bf16.msra.mxu0 %v3150
        %4018 = vmatprep.subr.bf16.mxu0 0
        %4019 = vmatpush1.bf16.msra.mxu0 %v3151
        %4020 = vmatprep.subr.bf16.mxu0 0
        %4021 = vmatpush1.bf16.msra.mxu0 %v3152
        %4022 = vmatprep.subr.bf16.mxu0 0
        %4023 = vmatpush1.bf16.msra.mxu0 %v3153
        %4024 = vmatprep.subr.bf16.mxu0 0
        %4025 = vmatpush1.bf16.msra.mxu0 %v3154
        %4026 = vmatprep.subr.bf16.mxu0 0
        %4027 = vmatpush1.bf16.msra.mxu0 %v3155
        %4028 = vmatprep.mubr.bf16.mxu0 %v1137
        %4029 = vmatmul.mubr.bf16.gmra.mrb[0].mxu0 %v1135
        %v4030 = vpop.f32.mrb[0].mxu0
        %v4031 = vadd.f32 %v3991, %v4030
        %v4032 = vpop.f32.mrb[0].mxu0
        %v4033 = vpop.f32.mrb[0].mxu0
        %v4034 = vpop.f32.mrb[0].mxu0
        %4035 = vdwg.mxu0
        %4036 = vmatprep.subr.bf16.mxu0 0
        %4037 = vmatpush1.bf16.msra.mxu0 %v3156
        %4038 = vmatprep.subr.bf16.mxu0 0
        %4039 = vmatpush1.bf16.msra.mxu0 %v3157
        %4040 = vmatprep.subr.bf16.mxu0 0
        %4041 = vmatpush1.bf16.msra.mxu0 %v3158
        %4042 = vmatprep.subr.bf16.mxu0 0
        %4043 = vmatpush1.bf16.msra.mxu0 %v3159
        %4044 = vmatprep.subr.bf16.mxu0 0
        %4045 = vmatpush1.bf16.msra.mxu0 %v3160
        %4046 = vmatprep.subr.bf16.mxu0 0
        %4047 = vmatpush1.bf16.msra.mxu0 %v3161
        %4048 = vmatprep.subr.bf16.mxu0 0
        %4049 = vmatpush1.bf16.msra.mxu0 %v3162
        %4050 = vmatprep.subr.bf16.mxu0 0
        %4051 = vmatpush1.bf16.msra.mxu0 %v3163
        %4052 = vmatprep.subr.bf16.mxu0 0
        %4053 = vmatpush1.bf16.msra.mxu0 %v3164
        %4054 = vmatprep.subr.bf16.mxu0 0
        %4055 = vmatpush1.bf16.msra.mxu0 %v3165
        %4056 = vmatprep.subr.bf16.mxu0 0
        %4057 = vmatpush1.bf16.msra.mxu0 %v3166
        %4058 = vmatprep.subr.bf16.mxu0 0
        %4059 = vmatpush1.bf16.msra.mxu0 %v3167
        %4060 = vmatprep.subr.bf16.mxu0 0
        %4061 = vmatpush1.bf16.msra.mxu0 %v3168
        %4062 = vmatprep.subr.bf16.mxu0 0
        %4063 = vmatpush1.bf16.msra.mxu0 %v3169
        %4064 = vmatprep.subr.bf16.mxu0 0
        %4065 = vmatpush1.bf16.msra.mxu0 %v3170
        %4066 = vmatprep.subr.bf16.mxu0 0
        %4067 = vmatpush1.bf16.msra.mxu0 %v3171
        %4068 = vmatprep.mubr.bf16.mxu0 %v1134
        %4069 = vmatmul.mubr.bf16.gmra.mrb[0].mxu0 %v1120
        %v4070 = vpop.f32.mrb[0].mxu0
        %v4071 = vadd.f32 %v4031, %v4070
        %v4072 = vpop.f32.mrb[0].mxu0
        %v4073 = vpop.f32.mrb[0].mxu0
        %v4074 = vpop.f32.mrb[0].mxu0
        %4075 = vdwg.mxu0
        %4076 = vmatprep.subr.bf16.mxu0 0
        %4077 = vmatpush1.bf16.msra.mxu0 %v3172
        %4078 = vmatprep.subr.bf16.mxu0 0
        %4079 = vmatpush1.bf16.msra.mxu0 %v3173
        %4080 = vmatprep.subr.bf16.mxu0 0
        %4081 = vmatpush1.bf16.msra.mxu0 %v3174
        %4082 = vmatprep.subr.bf16.mxu0 0
        %4083 = vmatpush1.bf16.msra.mxu0 %v3175
        %4084 = vmatprep.subr.bf16.mxu0 0
        %4085 = vmatpush1.bf16.msra.mxu0 %v3176
        %4086 = vmatprep.subr.bf16.mxu0 0
        %4087 = vmatpush1.bf16.msra.mxu0 %v3177
        %4088 = vmatprep.subr.bf16.mxu0 0
        %4089 = vmatpush1.bf16.msra.mxu0 %v3178
        %4090 = vmatprep.subr.bf16.mxu0 0
        %4091 = vmatpush1.bf16.msra.mxu0 %v3179
        %4092 = vmatprep.subr.bf16.mxu0 0
        %4093 = vmatpush1.bf16.msra.mxu0 %v3180
        %4094 = vmatprep.subr.bf16.mxu0 0
        %4095 = vmatpush1.bf16.msra.mxu0 %v3181
        %4096 = vmatprep.subr.bf16.mxu0 0
        %4097 = vmatpush1.bf16.msra.mxu0 %v3182
        %4098 = vmatprep.subr.bf16.mxu0 0
        %4099 = vmatpush1.bf16.msra.mxu0 %v3183
        %4100 = vmatprep.subr.bf16.mxu0 0
        %4101 = vmatpush1.bf16.msra.mxu0 %v3184
        %4102 = vmatprep.subr.bf16.mxu0 0
        %4103 = vmatpush1.bf16.msra.mxu0 %v3185
        %4104 = vmatprep.subr.bf16.mxu0 0
        %4105 = vmatpush1.bf16.msra.mxu0 %v3186
        %4106 = vmatprep.subr.bf16.mxu0 0
        %4107 = vmatpush1.bf16.msra.mxu0 %v3187
        %4108 = vmatprep.mubr.bf16.mxu0 %v1138
        %4109 = vmatmul.mubr.bf16.gmra.mrb[0].mxu0 %v1136
        %v4110 = vpop.f32.mrb[0].mxu0
        %v4111 = vadd.f32 %v4071, %v4110
        %v4112 = vpop.f32.mrb[0].mxu0
        %v4113 = vpop.f32.mrb[0].mxu0
        %v4114 = vpop.f32.mrb[0].mxu0
        %4115 = vdwg.mxu0
        %4116 = vmatprep.subr.bf16.mxu0 0
        %4117 = vmatpush1.bf16.msra.mxu0 %v3188
        %4118 = vmatprep.subr.bf16.mxu0 0
        %4119 = vmatpush1.bf16.msra.mxu0 %v3189
        %4120 = vmatprep.subr.bf16.mxu0 0
        %4121 = vmatpush1.bf16.msra.mxu0 %v3190
        %4122 = vmatprep.subr.bf16.mxu0 0
        %4123 = vmatpush1.bf16.msra.mxu0 %v3191
        %4124 = vmatprep.subr.bf16.mxu0 0
        %4125 = vmatpush1.bf16.msra.mxu0 %v3192
        %4126 = vmatprep.subr.bf16.mxu0 0
        %4127 = vmatpush1.bf16.msra.mxu0 %v3193
        %4128 = vmatprep.subr.bf16.mxu0 0
        %4129 = vmatpush1.bf16.msra.mxu0 %v3194
        %4130 = vmatprep.subr.bf16.mxu0 0
        %4131 = vmatpush1.bf16.msra.mxu0 %v3195
        %4132 = vmatprep.subr.bf16.mxu0 0
        %4133 = vmatpush1.bf16.msra.mxu0 %v3196
        %4134 = vmatprep.subr.bf16.mxu0 0
        %4135 = vmatpush1.bf16.msra.mxu0 %v3197
        %4136 = vmatprep.subr.bf16.mxu0 0
        %4137 = vmatpush1.bf16.msra.mxu0 %v3198
        %4138 = vmatprep.subr.bf16.mxu0 0
        %4139 = vmatpush1.bf16.msra.mxu0 %v3199
        %4140 = vmatprep.subr.bf16.mxu0 0
        %4141 = vmatpush1.bf16.msra.mxu0 %v3200
        %4142 = vmatprep.subr.bf16.mxu0 0
        %4143 = vmatpush1.bf16.msra.mxu0 %v3201
        %4144 = vmatprep.subr.bf16.mxu0 0
        %4145 = vmatpush1.bf16.msra.mxu0 %v3202
        %4146 = vmatprep.subr.bf16.mxu0 0
        %4147 = vmatpush1.bf16.msra.mxu0 %v3203
        %4148 = vmatprep.mubr.bf16.mxu0 %v1176
        %4149 = vmatmul.mubr.bf16.gmra.mrb[0].mxu0 %v1162
        %v4150 = vpop.f32.mrb[0].mxu0
        %v4151 = vadd.f32 %v4111, %v4150
        %v4152 = vpop.f32.mrb[0].mxu0
        %v4153 = vpop.f32.mrb[0].mxu0
        %v4154 = vpop.f32.mrb[0].mxu0
        %4155 = vdwg.mxu0
        %4156 = vmatprep.subr.bf16.mxu0 0
        %4157 = vmatpush1.bf16.msra.mxu0 %v3204
        %4158 = vmatprep.subr.bf16.mxu0 0
        %4159 = vmatpush1.bf16.msra.mxu0 %v3205
        %4160 = vmatprep.subr.bf16.mxu0 0
        %4161 = vmatpush1.bf16.msra.mxu0 %v3206
        %4162 = vmatprep.subr.bf16.mxu0 0
        %4163 = vmatpush1.bf16.msra.mxu0 %v3207
        %4164 = vmatprep.subr.bf16.mxu0 0
        %4165 = vmatpush1.bf16.msra.mxu0 %v3208
        %4166 = vmatprep.subr.bf16.mxu0 0
        %4167 = vmatpush1.bf16.msra.mxu0 %v3209
        %4168 = vmatprep.subr.bf16.mxu0 0
        %4169 = vmatpush1.bf16.msra.mxu0 %v3210
        %4170 = vmatprep.subr.bf16.mxu0 0
        %4171 = vmatpush1.bf16.msra.mxu0 %v3211
        %4172 = vmatprep.subr.bf16.mxu0 0
        %4173 = vmatpush1.bf16.msra.mxu0 %v3212
        %4174 = vmatprep.subr.bf16.mxu0 0
        %4175 = vmatpush1.bf16.msra.mxu0 %v3213
        %4176 = vmatprep.subr.bf16.mxu0 0
        %4177 = vmatpush1.bf16.msra.mxu0 %v3214
        %4178 = vmatprep.subr.bf16.mxu0 0
        %4179 = vmatpush1.bf16.msra.mxu0 %v3215
        %4180 = vmatprep.subr.bf16.mxu0 0
        %4181 = vmatpush1.bf16.msra.mxu0 %v3216
        %4182 = vmatprep.subr.bf16.mxu0 0
        %4183 = vmatpush1.bf16.msra.mxu0 %v3217
        %4184 = vmatprep.subr.bf16.mxu0 0
        %4185 = vmatpush1.bf16.msra.mxu0 %v3218
        %4186 = vmatprep.subr.bf16.mxu0 0
        %4187 = vmatpush1.bf16.msra.mxu0 %v3219
        %4188 = vmatprep.mubr.bf16.mxu0 %v1186
        %4189 = vmatmul.mubr.bf16.gmra.mrb[0].mxu0 %v1184
        %v4190 = vpop.f32.mrb[0].mxu0
        %v4191 = vadd.f32 %v4151, %v4190
        %v4192 = vpop.f32.mrb[0].mxu0
        %v4193 = vpop.f32.mrb[0].mxu0
        %v4194 = vpop.f32.mrb[0].mxu0
        %4195 = vdwg.mxu0
        %4196 = vmatprep.subr.bf16.mxu0 0
        %4197 = vmatpush1.bf16.msra.mxu0 %v3220
        %4198 = vmatprep.subr.bf16.mxu0 0
        %4199 = vmatpush1.bf16.msra.mxu0 %v3221
        %4200 = vmatprep.subr.bf16.mxu0 0
        %4201 = vmatpush1.bf16.msra.mxu0 %v3222
        %4202 = vmatprep.subr.bf16.mxu0 0
        %4203 = vmatpush1.bf16.msra.mxu0 %v3223
        %4204 = vmatprep.subr.bf16.mxu0 0
        %4205 = vmatpush1.bf16.msra.mxu0 %v3224
        %4206 = vmatprep.subr.bf16.mxu0 0
        %4207 = vmatpush1.bf16.msra.mxu0 %v3225
        %4208 = vmatprep.subr.bf16.mxu0 0
        %4209 = vmatpush1.bf16.msra.mxu0 %v3226
        %4210 = vmatprep.subr.bf16.mxu0 0
        %4211 = vmatpush1.bf16.msra.mxu0 %v3227
        %4212 = vmatprep.subr.bf16.mxu0 0
        %4213 = vmatpush1.bf16.msra.mxu0 %v3228
        %4214 = vmatprep.subr.bf16.mxu0 0
        %4215 = vmatpush1.bf16.msra.mxu0 %v3229
        %4216 = vmatprep.subr.bf16.mxu0 0
        %4217 = vmatpush1.bf16.msra.mxu0 %v3230
        %4218 = vmatprep.subr.bf16.mxu0 0
        %4219 = vmatpush1.bf16.msra.mxu0 %v3231
        %4220 = vmatprep.subr.bf16.mxu0 0
        %4221 = vmatpush1.bf16.msra.mxu0 %v3232
        %4222 = vmatprep.subr.bf16.mxu0 0
        %4223 = vmatpush1.bf16.msra.mxu0 %v3233
        %4224 = vmatprep.subr.bf16.mxu0 0
        %4225 = vmatpush1.bf16.msra.mxu0 %v3234
        %4226 = vmatprep.subr.bf16.mxu0 0
        %4227 = vmatpush1.bf16.msra.mxu0 %v3235
        %4228 = vmatprep.mubr.bf16.mxu0 %v1183
        %4229 = vmatmul.mubr.bf16.gmra.mrb[0].mxu0 %v1169
        %v4230 = vpop.f32.mrb[0].mxu0
        %v4231 = vadd.f32 %v4191, %v4230
        %v4232 = vpop.f32.mrb[0].mxu0
        %v4233 = vpop.f32.mrb[0].mxu0
        %v4234 = vpop.f32.mrb[0].mxu0
        %4235 = vdwg.mxu0
        %4236 = vmatprep.subr.bf16.mxu0 0
        %4237 = vmatpush1.bf16.msra.mxu0 %v3236
        %4238 = vmatprep.subr.bf16.mxu0 0
        %4239 = vmatpush1.bf16.msra.mxu0 %v3237
        %4240 = vmatprep.subr.bf16.mxu0 0
        %4241 = vmatpush1.bf16.msra.mxu0 %v3238
        %4242 = vmatprep.subr.bf16.mxu0 0
        %4243 = vmatpush1.bf16.msra.mxu0 %v3239
        %4244 = vmatprep.subr.bf16.mxu0 0
        %4245 = vmatpush1.bf16.msra.mxu0 %v3240
        %4246 = vmatprep.subr.bf16.mxu0 0
        %4247 = vmatpush1.bf16.msra.mxu0 %v3241
        %4248 = vmatprep.subr.bf16.mxu0 0
        %4249 = vmatpush1.bf16.msra.mxu0 %v3242
        %4250 = vmatprep.subr.bf16.mxu0 0
        %4251 = vmatpush1.bf16.msra.mxu0 %v3243
        %4252 = vmatprep.subr.bf16.mxu0 0
        %4253 = vmatpush1.bf16.msra.mxu0 %v3244
        %4254 = vmatprep.subr.bf16.mxu0 0
        %4255 = vmatpush1.bf16.msra.mxu0 %v3245
        %4256 = vmatprep.subr.bf16.mxu0 0
        %4257 = vmatpush1.bf16.msra.mxu0 %v3246
        %4258 = vmatprep.subr.bf16.mxu0 0
        %4259 = vmatpush1.bf16.msra.mxu0 %v3247
        %4260 = vmatprep.subr.bf16.mxu0 0
        %4261 = vmatpush1.bf16.msra.mxu0 %v3248
        %4262 = vmatprep.subr.bf16.mxu0 0
        %4263 = vmatpush1.bf16.msra.mxu0 %v3249
        %4264 = vmatprep.subr.bf16.mxu0 0
        %4265 = vmatpush1.bf16.msra.mxu0 %v3250
        %4266 = vmatprep.subr.bf16.mxu0 0
        %4267 = vmatpush1.bf16.msra.mxu0 %v3251
        %4268 = vmatprep.mubr.bf16.mxu0 %v1187
        %4269 = vmatmul.mubr.bf16.gmra.mrb[0].mxu0 %v1185
        %v4270 = vpop.f32.mrb[0].mxu0
        %v4271 = vadd.f32 %v4231, %v4270
        %v4272 = vpop.f32.mrb[0].mxu0
        %v4273 = vpop.f32.mrb[0].mxu0
        %v4274 = vpop.f32.mrb[0].mxu0
        %4275 = vdwg.mxu0
        %4276 = vmatprep.subr.bf16.mxu0 0
        %4277 = vmatpush1.bf16.msra.mxu0 %v3252
        %4278 = vmatprep.subr.bf16.mxu0 0
        %4279 = vmatpush1.bf16.msra.mxu0 %v3253
        %4280 = vmatprep.subr.bf16.mxu0 0
        %4281 = vmatpush1.bf16.msra.mxu0 %v3254
        %4282 = vmatprep.subr.bf16.mxu0 0
        %4283 = vmatpush1.bf16.msra.mxu0 %v3255
        %4284 = vmatprep.subr.bf16.mxu0 0
        %4285 = vmatpush1.bf16.msra.mxu0 %v3256
        %4286 = vmatprep.subr.bf16.mxu0 0
        %4287 = vmatpush1.bf16.msra.mxu0 %v3257
        %4288 = vmatprep.subr.bf16.mxu0 0
        %4289 = vmatpush1.bf16.msra.mxu0 %v3258
        %4290 = vmatprep.subr.bf16.mxu0 0
        %4291 = vmatpush1.bf16.msra.mxu0 %v3259
        %4292 = vmatprep.subr.bf16.mxu0 0
        %4293 = vmatpush1.bf16.msra.mxu0 %v3260
        %4294 = vmatprep.subr.bf16.mxu0 0
        %4295 = vmatpush1.bf16.msra.mxu0 %v3261
        %4296 = vmatprep.subr.bf16.mxu0 0
        %4297 = vmatpush1.bf16.msra.mxu0 %v3262
        %4298 = vmatprep.subr.bf16.mxu0 0
        %4299 = vmatpush1.bf16.msra.mxu0 %v3263
        %4300 = vmatprep.subr.bf16.mxu0 0
        %4301 = vmatpush1.bf16.msra.mxu0 %v3264
        %4302 = vmatprep.subr.bf16.mxu0 0
        %4303 = vmatpush1.bf16.msra.mxu0 %v3265
        %4304 = vmatprep.subr.bf16.mxu0 0
        %4305 = vmatpush1.bf16.msra.mxu0 %v3266
        %4306 = vmatprep.subr.bf16.mxu0 0
        %4307 = vmatpush1.bf16.msra.mxu0 %v3267
        %4308 = vmatprep.mubr.bf16.mxu0 %v1225
        %4309 = vmatmul.mubr.bf16.gmra.mrb[0].mxu0 %v1211
        %v4310 = vpop.f32.mrb[0].mxu0
        %v4311 = vadd.f32 %v4271, %v4310
        %v4312 = vpop.f32.mrb[0].mxu0
        %v4313 = vpop.f32.mrb[0].mxu0
        %v4314 = vpop.f32.mrb[0].mxu0
        %4315 = vdwg.mxu0
        %4316 = vmatprep.subr.bf16.mxu0 0
        %4317 = vmatpush1.bf16.msra.mxu0 %v3268
        %4318 = vmatprep.subr.bf16.mxu0 0
        %4319 = vmatpush1.bf16.msra.mxu0 %v3269
        %4320 = vmatprep.subr.bf16.mxu0 0
        %4321 = vmatpush1.bf16.msra.mxu0 %v3270
        %4322 = vmatprep.subr.bf16.mxu0 0
        %4323 = vmatpush1.bf16.msra.mxu0 %v3271
        %4324 = vmatprep.subr.bf16.mxu0 0
        %4325 = vmatpush1.bf16.msra.mxu0 %v3272
        %4326 = vmatprep.subr.bf16.mxu0 0
        %4327 = vmatpush1.bf16.msra.mxu0 %v3273
        %4328 = vmatprep.subr.bf16.mxu0 0
        %4329 = vmatpush1.bf16.msra.mxu0 %v3274
        %4330 = vmatprep.subr.bf16.mxu0 0
        %4331 = vmatpush1.bf16.msra.mxu0 %v3275
        %4332 = vmatprep.subr.bf16.mxu0 0
        %4333 = vmatpush1.bf16.msra.mxu0 %v3276
        %4334 = vmatprep.subr.bf16.mxu0 0
        %4335 = vmatpush1.bf16.msra.mxu0 %v3277
        %4336 = vmatprep.subr.bf16.mxu0 0
        %4337 = vmatpush1.bf16.msra.mxu0 %v3278
        %4338 = vmatprep.subr.bf16.mxu0 0
        %4339 = vmatpush1.bf16.msra.mxu0 %v3279
        %4340 = vmatprep.subr.bf16.mxu0 0
        %4341 = vmatpush1.bf16.msra.mxu0 %v3280
        %4342 = vmatprep.subr.bf16.mxu0 0
        %4343 = vmatpush1.bf16.msra.mxu0 %v3281
        %4344 = vmatprep.subr.bf16.mxu0 0
        %4345 = vmatpush1.bf16.msra.mxu0 %v3282
        %4346 = vmatprep.subr.bf16.mxu0 0
        %4347 = vmatpush1.bf16.msra.mxu0 %v3283
        %4348 = vmatprep.mubr.bf16.mxu0 %v1235
        %4349 = vmatmul.mubr.bf16.gmra.mrb[0].mxu0 %v1233
        %v4350 = vpop.f32.mrb[0].mxu0
        %v4351 = vadd.f32 %v4311, %v4350
        %v4352 = vpop.f32.mrb[0].mxu0
        %v4353 = vpop.f32.mrb[0].mxu0
        %v4354 = vpop.f32.mrb[0].mxu0
        %4355 = vdwg.mxu0
        %4356 = vmatprep.subr.bf16.mxu0 0
        %4357 = vmatpush1.bf16.msra.mxu0 %v3284
        %4358 = vmatprep.subr.bf16.mxu0 0
        %4359 = vmatpush1.bf16.msra.mxu0 %v3285
        %4360 = vmatprep.subr.bf16.mxu0 0
        %4361 = vmatpush1.bf16.msra.mxu0 %v3286
        %4362 = vmatprep.subr.bf16.mxu0 0
        %4363 = vmatpush1.bf16.msra.mxu0 %v3287
        %4364 = vmatprep.subr.bf16.mxu0 0
        %4365 = vmatpush1.bf16.msra.mxu0 %v3288
        %4366 = vmatprep.subr.bf16.mxu0 0
        %4367 = vmatpush1.bf16.msra.mxu0 %v3289
        %4368 = vmatprep.subr.bf16.mxu0 0
        %4369 = vmatpush1.bf16.msra.mxu0 %v3290
        %4370 = vmatprep.subr.bf16.mxu0 0
        %4371 = vmatpush1.bf16.msra.mxu0 %v3291
        %4372 = vmatprep.subr.bf16.mxu0 0
        %4373 = vmatpush1.bf16.msra.mxu0 %v3292
        %4374 = vmatprep.subr.bf16.mxu0 0
        %4375 = vmatpush1.bf16.msra.mxu0 %v3293
        %4376 = vmatprep.subr.bf16.mxu0 0
        %4377 = vmatpush1.bf16.msra.mxu0 %v3294
        %4378 = vmatprep.subr.bf16.mxu0 0
        %4379 = vmatpush1.bf16.msra.mxu0 %v3295
        %4380 = vmatprep.subr.bf16.mxu0 0
        %4381 = vmatpush1.bf16.msra.mxu0 %v3296
        %4382 = vmatprep.subr.bf16.mxu0 0
        %4383 = vmatpush1.bf16.msra.mxu0 %v3297
        %4384 = vmatprep.subr.bf16.mxu0 0
        %4385 = vmatpush1.bf16.msra.mxu0 %v3298
        %4386 = vmatprep.subr.bf16.mxu0 0
        %4387 = vmatpush1.bf16.msra.mxu0 %v3299
        %4388 = vmatprep.mubr.bf16.mxu0 %v1232
        %4389 = vmatmul.mubr.bf16.gmra.mrb[0].mxu0 %v1218
        %v4390 = vpop.f32.mrb[0].mxu0
        %v4391 = vadd.f32 %v4351, %v4390
        %v4392 = vpop.f32.mrb[0].mxu0
        %v4393 = vpop.f32.mrb[0].mxu0
        %v4394 = vpop.f32.mrb[0].mxu0
        %4395 = vdwg.mxu0
        %4396 = vmatprep.subr.bf16.mxu0 0
        %4397 = vmatpush1.bf16.msra.mxu0 %v3300
        %4398 = vmatprep.subr.bf16.mxu0 0
        %4399 = vmatpush1.bf16.msra.mxu0 %v3301
        %4400 = vmatprep.subr.bf16.mxu0 0
        %4401 = vmatpush1.bf16.msra.mxu0 %v3302
        %4402 = vmatprep.subr.bf16.mxu0 0
        %4403 = vmatpush1.bf16.msra.mxu0 %v3303
        %4404 = vmatprep.subr.bf16.mxu0 0
        %4405 = vmatpush1.bf16.msra.mxu0 %v3304
        %4406 = vmatprep.subr.bf16.mxu0 0
        %4407 = vmatpush1.bf16.msra.mxu0 %v3305
        %4408 = vmatprep.subr.bf16.mxu0 0
        %4409 = vmatpush1.bf16.msra.mxu0 %v3306
        %4410 = vmatprep.subr.bf16.mxu0 0
        %4411 = vmatpush1.bf16.msra.mxu0 %v3307
        %4412 = vmatprep.subr.bf16.mxu0 0
        %4413 = vmatpush1.bf16.msra.mxu0 %v3308
        %4414 = vmatprep.subr.bf16.mxu0 0
        %4415 = vmatpush1.bf16.msra.mxu0 %v3309
        %4416 = vmatprep.subr.bf16.mxu0 0
        %4417 = vmatpush1.bf16.msra.mxu0 %v3310
        %4418 = vmatprep.subr.bf16.mxu0 0
        %4419 = vmatpush1.bf16.msra.mxu0 %v3311
        %4420 = vmatprep.subr.bf16.mxu0 0
        %4421 = vmatpush1.bf16.msra.mxu0 %v3312
        %4422 = vmatprep.subr.bf16.mxu0 0
        %4423 = vmatpush1.bf16.msra.mxu0 %v3313
        %4424 = vmatprep.subr.bf16.mxu0 0
        %4425 = vmatpush1.bf16.msra.mxu0 %v3314
        %4426 = vmatprep.subr.bf16.mxu0 0
        %4427 = vmatpush1.bf16.msra.mxu0 %v3315
        %4428 = vmatprep.mubr.bf16.mxu0 %v1236
        %4429 = vmatmul.mubr.bf16.gmra.mrb[0].mxu0 %v1234
        %v4430 = vpop.f32.mrb[0].mxu0
        %v4431 = vadd.f32 %v4391, %v4430
        %v4432 = vpop.f32.mrb[0].mxu0
        %v4433 = vpop.f32.mrb[0].mxu0
        %v4434 = vpop.f32.mrb[0].mxu0
        %4435 = vdwg.mxu0
        %4436 = vmatprep.subr.bf16.mxu0 0
        %4437 = vmatpush1.bf16.msra.mxu0 %v3316
        %4438 = vmatprep.subr.bf16.mxu0 0
        %4439 = vmatpush1.bf16.msra.mxu0 %v3317
        %4440 = vmatprep.subr.bf16.mxu0 0
        %4441 = vmatpush1.bf16.msra.mxu0 %v3318
        %4442 = vmatprep.subr.bf16.mxu0 0
        %4443 = vmatpush1.bf16.msra.mxu0 %v3319
        %4444 = vmatprep.subr.bf16.mxu0 0
        %4445 = vmatpush1.bf16.msra.mxu0 %v3320
        %4446 = vmatprep.subr.bf16.mxu0 0
        %4447 = vmatpush1.bf16.msra.mxu0 %v3321
        %4448 = vmatprep.subr.bf16.mxu0 0
        %4449 = vmatpush1.bf16.msra.mxu0 %v3322
        %4450 = vmatprep.subr.bf16.mxu0 0
        %4451 = vmatpush1.bf16.msra.mxu0 %v3323
        %4452 = vmatprep.subr.bf16.mxu0 0
        %4453 = vmatpush1.bf16.msra.mxu0 %v3324
        %4454 = vmatprep.subr.bf16.mxu0 0
        %4455 = vmatpush1.bf16.msra.mxu0 %v3325
        %4456 = vmatprep.subr.bf16.mxu0 0
        %4457 = vmatpush1.bf16.msra.mxu0 %v3326
        %4458 = vmatprep.subr.bf16.mxu0 0
        %4459 = vmatpush1.bf16.msra.mxu0 %v3327
        %4460 = vmatprep.subr.bf16.mxu0 0
        %4461 = vmatpush1.bf16.msra.mxu0 %v3328
        %4462 = vmatprep.subr.bf16.mxu0 0
        %4463 = vmatpush1.bf16.msra.mxu0 %v3329
        %4464 = vmatprep.subr.bf16.mxu0 0
        %4465 = vmatpush1.bf16.msra.mxu0 %v3330
        %4466 = vmatprep.subr.bf16.mxu0 0
        %4467 = vmatpush1.bf16.msra.mxu0 %v3331
        %4468 = vmatprep.mubr.bf16.mxu0 %v1274
        %4469 = vmatmul.mubr.bf16.gmra.mrb[0].mxu0 %v1260
        %v4470 = vpop.f32.mrb[0].mxu0
        %v4471 = vadd.f32 %v4431, %v4470
        %v4472 = vpop.f32.mrb[0].mxu0
        %v4473 = vpop.f32.mrb[0].mxu0
        %v4474 = vpop.f32.mrb[0].mxu0
        %4475 = vdwg.mxu0
        %4476 = vmatprep.subr.bf16.mxu0 0
        %4477 = vmatpush1.bf16.msra.mxu0 %v3332
        %4478 = vmatprep.subr.bf16.mxu0 0
        %4479 = vmatpush1.bf16.msra.mxu0 %v3333
        %4480 = vmatprep.subr.bf16.mxu0 0
        %4481 = vmatpush1.bf16.msra.mxu0 %v3334
        %4482 = vmatprep.subr.bf16.mxu0 0
        %4483 = vmatpush1.bf16.msra.mxu0 %v3335
        %4484 = vmatprep.subr.bf16.mxu0 0
        %4485 = vmatpush1.bf16.msra.mxu0 %v3336
        %4486 = vmatprep.subr.bf16.mxu0 0
        %4487 = vmatpush1.bf16.msra.mxu0 %v3337
        %4488 = vmatprep.subr.bf16.mxu0 0
        %4489 = vmatpush1.bf16.msra.mxu0 %v3338
        %4490 = vmatprep.subr.bf16.mxu0 0
        %4491 = vmatpush1.bf16.msra.mxu0 %v3339
        %4492 = vmatprep.subr.bf16.mxu0 0
        %4493 = vmatpush1.bf16.msra.mxu0 %v3340
        %4494 = vmatprep.subr.bf16.mxu0 0
        %4495 = vmatpush1.bf16.msra.mxu0 %v3341
        %4496 = vmatprep.subr.bf16.mxu0 0
        %4497 = vmatpush1.bf16.msra.mxu0 %v3342
        %4498 = vmatprep.subr.bf16.mxu0 0
        %4499 = vmatpush1.bf16.msra.mxu0 %v3343
        %4500 = vmatprep.subr.bf16.mxu0 0
        %4501 = vmatpush1.bf16.msra.mxu0 %v3344
        %4502 = vmatprep.subr.bf16.mxu0 0
        %4503 = vmatpush1.bf16.msra.mxu0 %v3345
        %4504 = vmatprep.subr.bf16.mxu0 0
        %4505 = vmatpush1.bf16.msra.mxu0 %v3346
        %4506 = vmatprep.subr.bf16.mxu0 0
        %4507 = vmatpush1.bf16.msra.mxu0 %v3347
        %4508 = vmatprep.mubr.bf16.mxu0 %v1284
        %4509 = vmatmul.mubr.bf16.gmra.mrb[0].mxu0 %v1282
        %v4510 = vpop.f32.mrb[0].mxu0
        %v4511 = vadd.f32 %v4471, %v4510
        %v4512 = vpop.f32.mrb[0].mxu0
        %v4513 = vpop.f32.mrb[0].mxu0
        %v4514 = vpop.f32.mrb[0].mxu0
        %4515 = vdwg.mxu0
        %4516 = vmatprep.subr.bf16.mxu0 0
        %4517 = vmatpush1.bf16.msra.mxu0 %v3348
        %4518 = vmatprep.subr.bf16.mxu0 0
        %4519 = vmatpush1.bf16.msra.mxu0 %v3349
        %4520 = vmatprep.subr.bf16.mxu0 0
        %4521 = vmatpush1.bf16.msra.mxu0 %v3350
        %4522 = vmatprep.subr.bf16.mxu0 0
        %4523 = vmatpush1.bf16.msra.mxu0 %v3351
        %4524 = vmatprep.subr.bf16.mxu0 0
        %4525 = vmatpush1.bf16.msra.mxu0 %v3352
        %4526 = vmatprep.subr.bf16.mxu0 0
        %4527 = vmatpush1.bf16.msra.mxu0 %v3353
        %4528 = vmatprep.subr.bf16.mxu0 0
        %4529 = vmatpush1.bf16.msra.mxu0 %v3354
        %4530 = vmatprep.subr.bf16.mxu0 0
        %4531 = vmatpush1.bf16.msra.mxu0 %v3355
        %4532 = vmatprep.subr.bf16.mxu0 0
        %4533 = vmatpush1.bf16.msra.mxu0 %v3356
        %4534 = vmatprep.subr.bf16.mxu0 0
        %4535 = vmatpush1.bf16.msra.mxu0 %v3357
        %4536 = vmatprep.subr.bf16.mxu0 0
        %4537 = vmatpush1.bf16.msra.mxu0 %v3358
        %4538 = vmatprep.subr.bf16.mxu0 0
        %4539 = vmatpush1.bf16.msra.mxu0 %v3359
        %4540 = vmatprep.subr.bf16.mxu0 0
        %4541 = vmatpush1.bf16.msra.mxu0 %v3360
        %4542 = vmatprep.subr.bf16.mxu0 0
        %4543 = vmatpush1.bf16.msra.mxu0 %v3361
        %4544 = vmatprep.subr.bf16.mxu0 0
        %4545 = vmatpush1.bf16.msra.mxu0 %v3362
        %4546 = vmatprep.subr.bf16.mxu0 0
        %4547 = vmatpush1.bf16.msra.mxu0 %v3363
        %4548 = vmatprep.mubr.bf16.mxu0 %v1281
        %4549 = vmatmul.mubr.bf16.gmra.mrb[0].mxu0 %v1267
        %v4550 = vpop.f32.mrb[0].mxu0
        %v4551 = vadd.f32 %v4511, %v4550
        %v4552 = vpop.f32.mrb[0].mxu0
        %v4553 = vpop.f32.mrb[0].mxu0
        %v4554 = vpop.f32.mrb[0].mxu0
        %4555 = vdwg.mxu0
        %4556 = vmatprep.subr.bf16.mxu0 0
        %4557 = vmatpush1.bf16.msra.mxu0 %v3364
        %4558 = vmatprep.subr.bf16.mxu0 0
        %4559 = vmatpush1.bf16.msra.mxu0 %v3365
        %4560 = vmatprep.subr.bf16.mxu0 0
        %4561 = vmatpush1.bf16.msra.mxu0 %v3366
        %4562 = vmatprep.subr.bf16.mxu0 0
        %4563 = vmatpush1.bf16.msra.mxu0 %v3367
        %4564 = vmatprep.subr.bf16.mxu0 0
        %4565 = vmatpush1.bf16.msra.mxu0 %v3368
        %4566 = vmatprep.subr.bf16.mxu0 0
        %4567 = vmatpush1.bf16.msra.mxu0 %v3369
        %4568 = vmatprep.subr.bf16.mxu0 0
        %4569 = vmatpush1.bf16.msra.mxu0 %v3370
        %4570 = vmatprep.subr.bf16.mxu0 0
        %4571 = vmatpush1.bf16.msra.mxu0 %v3371
        %4572 = vmatprep.subr.bf16.mxu0 0
        %4573 = vmatpush1.bf16.msra.mxu0 %v3372
        %4574 = vmatprep.subr.bf16.mxu0 0
        %4575 = vmatpush1.bf16.msra.mxu0 %v3373
        %4576 = vmatprep.subr.bf16.mxu0 0
        %4577 = vmatpush1.bf16.msra.mxu0 %v3374
        %4578 = vmatprep.subr.bf16.mxu0 0
        %4579 = vmatpush1.bf16.msra.mxu0 %v3375
        %4580 = vmatprep.subr.bf16.mxu0 0
        %4581 = vmatpush1.bf16.msra.mxu0 %v3376
        %4582 = vmatprep.subr.bf16.mxu0 0
        %4583 = vmatpush1.bf16.msra.mxu0 %v3377
        %4584 = vmatprep.subr.bf16.mxu0 0
        %4585 = vmatpush1.bf16.msra.mxu0 %v3378
        %4586 = vmatprep.subr.bf16.mxu0 0
        %4587 = vmatpush1.bf16.msra.mxu0 %v3379
        %4588 = vmatprep.mubr.bf16.mxu0 %v1285
        %4589 = vmatmul.mubr.bf16.gmra.mrb[0].mxu0 %v1283
        %v4590 = vpop.f32.mrb[0].mxu0
        %v4591 = vadd.f32 %v4551, %v4590
        %v4592 = vpop.f32.mrb[0].mxu0
        %v4593 = vpop.f32.mrb[0].mxu0
        %v4594 = vpop.f32.mrb[0].mxu0
        %4595 = vdwg.mxu0
        %4596 = vmatprep.subr.bf16.mxu0 0
        %4597 = vmatpush1.bf16.msra.mxu0 %v3380
        %4598 = vmatprep.subr.bf16.mxu0 0
        %4599 = vmatpush1.bf16.msra.mxu0 %v3381
        %4600 = vmatprep.subr.bf16.mxu0 0
        %4601 = vmatpush1.bf16.msra.mxu0 %v3382
        %4602 = vmatprep.subr.bf16.mxu0 0
        %4603 = vmatpush1.bf16.msra.mxu0 %v3383
        %4604 = vmatprep.subr.bf16.mxu0 0
        %4605 = vmatpush1.bf16.msra.mxu0 %v3384
        %4606 = vmatprep.subr.bf16.mxu0 0
        %4607 = vmatpush1.bf16.msra.mxu0 %v3385
        %4608 = vmatprep.subr.bf16.mxu0 0
        %4609 = vmatpush1.bf16.msra.mxu0 %v3386
        %4610 = vmatprep.subr.bf16.mxu0 0
        %4611 = vmatpush1.bf16.msra.mxu0 %v3387
        %4612 = vmatprep.subr.bf16.mxu0 0
        %4613 = vmatpush1.bf16.msra.mxu0 %v3388
        %4614 = vmatprep.subr.bf16.mxu0 0
        %4615 = vmatpush1.bf16.msra.mxu0 %v3389
        %4616 = vmatprep.subr.bf16.mxu0 0
        %4617 = vmatpush1.bf16.msra.mxu0 %v3390
        %4618 = vmatprep.subr.bf16.mxu0 0
        %4619 = vmatpush1.bf16.msra.mxu0 %v3391
        %4620 = vmatprep.subr.bf16.mxu0 0
        %4621 = vmatpush1.bf16.msra.mxu0 %v3392
        %4622 = vmatprep.subr.bf16.mxu0 0
        %4623 = vmatpush1.bf16.msra.mxu0 %v3393
        %4624 = vmatprep.subr.bf16.mxu0 0
        %4625 = vmatpush1.bf16.msra.mxu0 %v3394
        %4626 = vmatprep.subr.bf16.mxu0 0
        %4627 = vmatpush1.bf16.msra.mxu0 %v3395
        %4628 = vmatprep.mubr.bf16.mxu0 %v1323
        %4629 = vmatmul.mubr.bf16.gmra.mrb[0].mxu0 %v1309
        %v4630 = vpop.f32.mrb[0].mxu0
        %v4631 = vadd.f32 %v4591, %v4630
        %v4632 = vpop.f32.mrb[0].mxu0
        %v4633 = vpop.f32.mrb[0].mxu0
        %v4634 = vpop.f32.mrb[0].mxu0
        %4635 = vdwg.mxu0
        %4636 = vmatprep.subr.bf16.mxu0 0
        %4637 = vmatpush1.bf16.msra.mxu0 %v3396
        %4638 = vmatprep.subr.bf16.mxu0 0
        %4639 = vmatpush1.bf16.msra.mxu0 %v3397
        %4640 = vmatprep.subr.bf16.mxu0 0
        %4641 = vmatpush1.bf16.msra.mxu0 %v3398
        %4642 = vmatprep.subr.bf16.mxu0 0
        %4643 = vmatpush1.bf16.msra.mxu0 %v3399
        %4644 = vmatprep.subr.bf16.mxu0 0
        %4645 = vmatpush1.bf16.msra.mxu0 %v3400
        %4646 = vmatprep.subr.bf16.mxu0 0
        %4647 = vmatpush1.bf16.msra.mxu0 %v3401
        %4648 = vmatprep.subr.bf16.mxu0 0
        %4649 = vmatpush1.bf16.msra.mxu0 %v3402
        %4650 = vmatprep.subr.bf16.mxu0 0
        %4651 = vmatpush1.bf16.msra.mxu0 %v3403
        %4652 = vmatprep.subr.bf16.mxu0 0
        %4653 = vmatpush1.bf16.msra.mxu0 %v3404
        %4654 = vmatprep.subr.bf16.mxu0 0
        %4655 = vmatpush1.bf16.msra.mxu0 %v3405
        %4656 = vmatprep.subr.bf16.mxu0 0
        %4657 = vmatpush1.bf16.msra.mxu0 %v3406
        %4658 = vmatprep.subr.bf16.mxu0 0
        %4659 = vmatpush1.bf16.msra.mxu0 %v3407
        %4660 = vmatprep.subr.bf16.mxu0 0
        %4661 = vmatpush1.bf16.msra.mxu0 %v3408
        %4662 = vmatprep.subr.bf16.mxu0 0
        %4663 = vmatpush1.bf16.msra.mxu0 %v3409
        %4664 = vmatprep.subr.bf16.mxu0 0
        %4665 = vmatpush1.bf16.msra.mxu0 %v3410
        %4666 = vmatprep.subr.bf16.mxu0 0
        %4667 = vmatpush1.bf16.msra.mxu0 %v3411
        %4668 = vmatprep.mubr.bf16.mxu0 %v1333
        %4669 = vmatmul.mubr.bf16.gmra.mrb[0].mxu0 %v1331
        %v4670 = vpop.f32.mrb[0].mxu0
        %v4671 = vadd.f32 %v4631, %v4670
        %v4672 = vpop.f32.mrb[0].mxu0
        %v4673 = vpop.f32.mrb[0].mxu0
        %v4674 = vpop.f32.mrb[0].mxu0
        %4675 = vdwg.mxu0
        %4676 = vmatprep.subr.bf16.mxu0 0
        %4677 = vmatpush1.bf16.msra.mxu0 %v3412
        %4678 = vmatprep.subr.bf16.mxu0 0
        %4679 = vmatpush1.bf16.msra.mxu0 %v3413
        %4680 = vmatprep.subr.bf16.mxu0 0
        %4681 = vmatpush1.bf16.msra.mxu0 %v3414
        %4682 = vmatprep.subr.bf16.mxu0 0
        %4683 = vmatpush1.bf16.msra.mxu0 %v3415
        %4684 = vmatprep.subr.bf16.mxu0 0
        %4685 = vmatpush1.bf16.msra.mxu0 %v3416
        %4686 = vmatprep.subr.bf16.mxu0 0
        %4687 = vmatpush1.bf16.msra.mxu0 %v3417
        %4688 = vmatprep.subr.bf16.mxu0 0
        %4689 = vmatpush1.bf16.msra.mxu0 %v3418
        %4690 = vmatprep.subr.bf16.mxu0 0
        %4691 = vmatpush1.bf16.msra.mxu0 %v3419
        %4692 = vmatprep.subr.bf16.mxu0 0
        %4693 = vmatpush1.bf16.msra.mxu0 %v3420
        %4694 = vmatprep.subr.bf16.mxu0 0
        %4695 = vmatpush1.bf16.msra.mxu0 %v3421
        %4696 = vmatprep.subr.bf16.mxu0 0
        %4697 = vmatpush1.bf16.msra.mxu0 %v3422
        %4698 = vmatprep.subr.bf16.mxu0 0
        %4699 = vmatpush1.bf16.msra.mxu0 %v3423
        %4700 = vmatprep.subr.bf16.mxu0 0
        %4701 = vmatpush1.bf16.msra.mxu0 %v3424
        %4702 = vmatprep.subr.bf16.mxu0 0
        %4703 = vmatpush1.bf16.msra.mxu0 %v3425
        %4704 = vmatprep.subr.bf16.mxu0 0
        %4705 = vmatpush1.bf16.msra.mxu0 %v3426
        %4706 = vmatprep.subr.bf16.mxu0 0
        %4707 = vmatpush1.bf16.msra.mxu0 %v3427
        %4708 = vmatprep.mubr.bf16.mxu0 %v1330
        %4709 = vmatmul.mubr.bf16.gmra.mrb[0].mxu0 %v1316
        %v4710 = vpop.f32.mrb[0].mxu0
        %v4711 = vadd.f32 %v4671, %v4710
        %v4712 = vpop.f32.mrb[0].mxu0
        %v4713 = vpop.f32.mrb[0].mxu0
        %v4714 = vpop.f32.mrb[0].mxu0
        %4715 = vdwg.mxu0
        %4716 = vmatprep.subr.bf16.mxu0 0
        %4717 = vmatpush1.bf16.msra.mxu0 %v3428
        %4718 = vmatprep.subr.bf16.mxu0 0
        %4719 = vmatpush1.bf16.msra.mxu0 %v3429
        %4720 = vmatprep.subr.bf16.mxu0 0
        %4721 = vmatpush1.bf16.msra.mxu0 %v3430
        %4722 = vmatprep.subr.bf16.mxu0 0
        %4723 = vmatpush1.bf16.msra.mxu0 %v3431
        %4724 = vmatprep.subr.bf16.mxu0 0
        %4725 = vmatpush1.bf16.msra.mxu0 %v3432
        %4726 = vmatprep.subr.bf16.mxu0 0
        %4727 = vmatpush1.bf16.msra.mxu0 %v3433
        %4728 = vmatprep.subr.bf16.mxu0 0
        %4729 = vmatpush1.bf16.msra.mxu0 %v3434
        %4730 = vmatprep.subr.bf16.mxu0 0
        %4731 = vmatpush1.bf16.msra.mxu0 %v3435
        %4732 = vmatprep.subr.bf16.mxu0 0
        %4733 = vmatpush1.bf16.msra.mxu0 %v3436
        %4734 = vmatprep.subr.bf16.mxu0 0
        %4735 = vmatpush1.bf16.msra.mxu0 %v3437
        %4736 = vmatprep.subr.bf16.mxu0 0
        %4737 = vmatpush1.bf16.msra.mxu0 %v3438
        %4738 = vmatprep.subr.bf16.mxu0 0
        %4739 = vmatpush1.bf16.msra.mxu0 %v3439
        %4740 = vmatprep.subr.bf16.mxu0 0
        %4741 = vmatpush1.bf16.msra.mxu0 %v3440
        %4742 = vmatprep.subr.bf16.mxu0 0
        %4743 = vmatpush1.bf16.msra.mxu0 %v3441
        %4744 = vmatprep.subr.bf16.mxu0 0
        %4745 = vmatpush1.bf16.msra.mxu0 %v3442
        %4746 = vmatprep.subr.bf16.mxu0 0
        %4747 = vmatpush1.bf16.msra.mxu0 %v3443
        %4748 = vmatprep.mubr.bf16.mxu0 %v1334
        %4749 = vmatmul.mubr.bf16.gmra.mrb[0].mxu0 %v1332
        %v4750 = vpop.f32.mrb[0].mxu0
        %v4751 = vadd.f32 %v4711, %v4750
        %v4752 = vpop.f32.mrb[0].mxu0
        %v4753 = vpop.f32.mrb[0].mxu0
        %v4754 = vpop.f32.mrb[0].mxu0
        %4755 = vdwg.mxu0
        %4756 = vmatprep.subr.bf16.mxu0 0
        %4757 = vmatpush1.bf16.msra.mxu0 %v3444
        %4758 = vmatprep.subr.bf16.mxu0 0
        %4759 = vmatpush1.bf16.msra.mxu0 %v3445
        %4760 = vmatprep.subr.bf16.mxu0 0
        %4761 = vmatpush1.bf16.msra.mxu0 %v3446
        %4762 = vmatprep.subr.bf16.mxu0 0
        %4763 = vmatpush1.bf16.msra.mxu0 %v3447
        %4764 = vmatprep.subr.bf16.mxu0 0
        %4765 = vmatpush1.bf16.msra.mxu0 %v3448
        %4766 = vmatprep.subr.bf16.mxu0 0
        %4767 = vmatpush1.bf16.msra.mxu0 %v3449
        %4768 = vmatprep.subr.bf16.mxu0 0
        %4769 = vmatpush1.bf16.msra.mxu0 %v3450
        %4770 = vmatprep.subr.bf16.mxu0 0
        %4771 = vmatpush1.bf16.msra.mxu0 %v3451
        %4772 = vmatprep.subr.bf16.mxu0 0
        %4773 = vmatpush1.bf16.msra.mxu0 %v3452
        %4774 = vmatprep.subr.bf16.mxu0 0
        %4775 = vmatpush1.bf16.msra.mxu0 %v3453
        %4776 = vmatprep.subr.bf16.mxu0 0
        %4777 = vmatpush1.bf16.msra.mxu0 %v3454
        %4778 = vmatprep.subr.bf16.mxu0 0
        %4779 = vmatpush1.bf16.msra.mxu0 %v3455
        %4780 = vmatprep.subr.bf16.mxu0 0
        %4781 = vmatpush1.bf16.msra.mxu0 %v3456
        %4782 = vmatprep.subr.bf16.mxu0 0
        %4783 = vmatpush1.bf16.msra.mxu0 %v3457
        %4784 = vmatprep.subr.bf16.mxu0 0
        %4785 = vmatpush1.bf16.msra.mxu0 %v3458
        %4786 = vmatprep.subr.bf16.mxu0 0
        %4787 = vmatpush1.bf16.msra.mxu0 %v3459
        %4788 = vmatprep.mubr.bf16.mxu0 %v1372
        %4789 = vmatmul.mubr.bf16.gmra.mrb[0].mxu0 %v1358
        %v4790 = vpop.f32.mrb[0].mxu0
        %v4791 = vadd.f32 %v4751, %v4790
        %v4792 = vpop.f32.mrb[0].mxu0
        %v4793 = vpop.f32.mrb[0].mxu0
        %v4794 = vpop.f32.mrb[0].mxu0
        %4795 = vdwg.mxu0
        %4796 = vmatprep.subr.bf16.mxu0 0
        %4797 = vmatpush1.bf16.msra.mxu0 %v3460
        %4798 = vmatprep.subr.bf16.mxu0 0
        %4799 = vmatpush1.bf16.msra.mxu0 %v3461
        %4800 = vmatprep.subr.bf16.mxu0 0
        %4801 = vmatpush1.bf16.msra.mxu0 %v3462
        %4802 = vmatprep.subr.bf16.mxu0 0
        %4803 = vmatpush1.bf16.msra.mxu0 %v3463
        %4804 = vmatprep.subr.bf16.mxu0 0
        %4805 = vmatpush1.bf16.msra.mxu0 %v3464
        %4806 = vmatprep.subr.bf16.mxu0 0
        %4807 = vmatpush1.bf16.msra.mxu0 %v3465
        %4808 = vmatprep.subr.bf16.mxu0 0
        %4809 = vmatpush1.bf16.msra.mxu0 %v3466
        %4810 = vmatprep.subr.bf16.mxu0 0
        %4811 = vmatpush1.bf16.msra.mxu0 %v3467
        %4812 = vmatprep.subr.bf16.mxu0 0
        %4813 = vmatpush1.bf16.msra.mxu0 %v3468
        %4814 = vmatprep.subr.bf16.mxu0 0
        %4815 = vmatpush1.bf16.msra.mxu0 %v3469
        %4816 = vmatprep.subr.bf16.mxu0 0
        %4817 = vmatpush1.bf16.msra.mxu0 %v3470
        %4818 = vmatprep.subr.bf16.mxu0 0
        %4819 = vmatpush1.bf16.msra.mxu0 %v3471
        %4820 = vmatprep.subr.bf16.mxu0 0
        %4821 = vmatpush1.bf16.msra.mxu0 %v3472
        %4822 = vmatprep.subr.bf16.mxu0 0
        %4823 = vmatpush1.bf16.msra.mxu0 %v3473
        %4824 = vmatprep.subr.bf16.mxu0 0
        %4825 = vmatpush1.bf16.msra.mxu0 %v3474
        %4826 = vmatprep.subr.bf16.mxu0 0
        %4827 = vmatpush1.bf16.msra.mxu0 %v3475
        %4828 = vmatprep.mubr.bf16.mxu0 %v1382
        %4829 = vmatmul.mubr.bf16.gmra.mrb[0].mxu0 %v1380
        %v4830 = vpop.f32.mrb[0].mxu0
        %v4831 = vadd.f32 %v4791, %v4830
        %v4832 = vpop.f32.mrb[0].mxu0
        %v4833 = vpop.f32.mrb[0].mxu0
        %v4834 = vpop.f32.mrb[0].mxu0
        %4835 = vdwg.mxu0
        %4836 = vmatprep.subr.bf16.mxu0 0
        %4837 = vmatpush1.bf16.msra.mxu0 %v3476
        %4838 = vmatprep.subr.bf16.mxu0 0
        %4839 = vmatpush1.bf16.msra.mxu0 %v3477
        %4840 = vmatprep.subr.bf16.mxu0 0
        %4841 = vmatpush1.bf16.msra.mxu0 %v3478
        %4842 = vmatprep.subr.bf16.mxu0 0
        %4843 = vmatpush1.bf16.msra.mxu0 %v3479
        %4844 = vmatprep.subr.bf16.mxu0 0
        %4845 = vmatpush1.bf16.msra.mxu0 %v3480
        %4846 = vmatprep.subr.bf16.mxu0 0
        %4847 = vmatpush1.bf16.msra.mxu0 %v3481
        %4848 = vmatprep.subr.bf16.mxu0 0
        %4849 = vmatpush1.bf16.msra.mxu0 %v3482
        %4850 = vmatprep.subr.bf16.mxu0 0
        %4851 = vmatpush1.bf16.msra.mxu0 %v3483
        %4852 = vmatprep.subr.bf16.mxu0 0
        %4853 = vmatpush1.bf16.msra.mxu0 %v3484
        %4854 = vmatprep.subr.bf16.mxu0 0
        %4855 = vmatpush1.bf16.msra.mxu0 %v3485
        %4856 = vmatprep.subr.bf16.mxu0 0
        %4857 = vmatpush1.bf16.msra.mxu0 %v3486
        %4858 = vmatprep.subr.bf16.mxu0 0
        %4859 = vmatpush1.bf16.msra.mxu0 %v3487
        %4860 = vmatprep.subr.bf16.mxu0 0
        %4861 = vmatpush1.bf16.msra.mxu0 %v3488
        %4862 = vmatprep.subr.bf16.mxu0 0
        %4863 = vmatpush1.bf16.msra.mxu0 %v3489
        %4864 = vmatprep.subr.bf16.mxu0 0
        %4865 = vmatpush1.bf16.msra.mxu0 %v3490
        %4866 = vmatprep.subr.bf16.mxu0 0
        %4867 = vmatpush1.bf16.msra.mxu0 %v3491
        %4868 = vmatprep.mubr.bf16.mxu0 %v1379
        %4869 = vmatmul.mubr.bf16.gmra.mrb[0].mxu0 %v1365
        %v4870 = vpop.f32.mrb[0].mxu0
        %v4871 = vadd.f32 %v4831, %v4870
        %v4872 = vpop.f32.mrb[0].mxu0
        %v4873 = vpop.f32.mrb[0].mxu0
        %v4874 = vpop.f32.mrb[0].mxu0
        %4875 = vdwg.mxu0
        %4876 = vmatprep.subr.bf16.mxu0 0
        %4877 = vmatpush1.bf16.msra.mxu0 %v3492
        %4878 = vmatprep.subr.bf16.mxu0 0
        %4879 = vmatpush1.bf16.msra.mxu0 %v3493
        %4880 = vmatprep.subr.bf16.mxu0 0
        %4881 = vmatpush1.bf16.msra.mxu0 %v3494
        %4882 = vmatprep.subr.bf16.mxu0 0
        %4883 = vmatpush1.bf16.msra.mxu0 %v3495
        %4884 = vmatprep.subr.bf16.mxu0 0
        %4885 = vmatpush1.bf16.msra.mxu0 %v3496
        %4886 = vmatprep.subr.bf16.mxu0 0
        %4887 = vmatpush1.bf16.msra.mxu0 %v3497
        %4888 = vmatprep.subr.bf16.mxu0 0
        %4889 = vmatpush1.bf16.msra.mxu0 %v3498
        %4890 = vmatprep.subr.bf16.mxu0 0
        %4891 = vmatpush1.bf16.msra.mxu0 %v3499
        %4892 = vmatprep.subr.bf16.mxu0 0
        %4893 = vmatpush1.bf16.msra.mxu0 %v3500
        %4894 = vmatprep.subr.bf16.mxu0 0
        %4895 = vmatpush1.bf16.msra.mxu0 %v3501
        %4896 = vmatprep.subr.bf16.mxu0 0
        %4897 = vmatpush1.bf16.msra.mxu0 %v3502
        %4898 = vmatprep.subr.bf16.mxu0 0
        %4899 = vmatpush1.bf16.msra.mxu0 %v3503
        %4900 = vmatprep.subr.bf16.mxu0 0
        %4901 = vmatpush1.bf16.msra.mxu0 %v3504
        %4902 = vmatprep.subr.bf16.mxu0 0
        %4903 = vmatpush1.bf16.msra.mxu0 %v3505
        %4904 = vmatprep.subr.bf16.mxu0 0
        %4905 = vmatpush1.bf16.msra.mxu0 %v3506
        %4906 = vmatprep.subr.bf16.mxu0 0
        %4907 = vmatpush1.bf16.msra.mxu0 %v3507
        %4908 = vmatprep.mubr.bf16.mxu0 %v1383
        %4909 = vmatmul.mubr.bf16.gmra.mrb[0].mxu0 %v1381
        %v4910 = vpop.f32.mrb[0].mxu0
        %v4911 = vadd.f32 %v4871, %v4910
        %v4912 = vpop.f32.mrb[0].mxu0
        %v4913 = vpop.f32.mrb[0].mxu0
        %v4914 = vpop.f32.mrb[0].mxu0
        %4915 = vdwg.mxu0
        %4916 = vmatprep.subr.bf16.mxu0 0
        %4917 = vmatpush1.bf16.msra.mxu0 %v3508
        %4918 = vmatprep.subr.bf16.mxu0 0
        %4919 = vmatpush1.bf16.msra.mxu0 %v3509
        %4920 = vmatprep.subr.bf16.mxu0 0
        %4921 = vmatpush1.bf16.msra.mxu0 %v3510
        %4922 = vmatprep.subr.bf16.mxu0 0
        %4923 = vmatpush1.bf16.msra.mxu0 %v3511
        %4924 = vmatprep.subr.bf16.mxu0 0
        %4925 = vmatpush1.bf16.msra.mxu0 %v3512
        %4926 = vmatprep.subr.bf16.mxu0 0
        %4927 = vmatpush1.bf16.msra.mxu0 %v3513
        %4928 = vmatprep.subr.bf16.mxu0 0
        %4929 = vmatpush1.bf16.msra.mxu0 %v3514
        %4930 = vmatprep.subr.bf16.mxu0 0
        %4931 = vmatpush1.bf16.msra.mxu0 %v3515
        %4932 = vmatprep.subr.bf16.mxu0 0
        %4933 = vmatpush1.bf16.msra.mxu0 %v3516
        %4934 = vmatprep.subr.bf16.mxu0 0
        %4935 = vmatpush1.bf16.msra.mxu0 %v3517
        %4936 = vmatprep.subr.bf16.mxu0 0
        %4937 = vmatpush1.bf16.msra.mxu0 %v3518
        %4938 = vmatprep.subr.bf16.mxu0 0
        %4939 = vmatpush1.bf16.msra.mxu0 %v3519
        %4940 = vmatprep.subr.bf16.mxu0 0
        %4941 = vmatpush1.bf16.msra.mxu0 %v3520
        %4942 = vmatprep.subr.bf16.mxu0 0
        %4943 = vmatpush1.bf16.msra.mxu0 %v3521
        %4944 = vmatprep.subr.bf16.mxu0 0
        %4945 = vmatpush1.bf16.msra.mxu0 %v3522
        %4946 = vmatprep.subr.bf16.mxu0 0
        %4947 = vmatpush1.bf16.msra.mxu0 %v3523
        %4948 = vmatprep.mubr.bf16.mxu0 %v1405
        %4949 = vmatmul.mubr.bf16.gmra.mrb[0].mxu0 %v1398
        %v4950 = vpop.f32.mrb[0].mxu0
        %v4951 = vadd.f32 %v4911, %v4950
        %v4952 = vpop.f32.mrb[0].mxu0
        %v4953 = vpop.f32.mrb[0].mxu0
        %v4954 = vpop.f32.mrb[0].mxu0
        %4955 = vdwg.mxu0
        %4956 = vmatprep.subr.bf16.mxu0 0
        %4957 = vmatpush1.bf16.msra.mxu0 %v3524
        %4958 = vmatprep.subr.bf16.mxu0 0
        %4959 = vmatpush1.bf16.msra.mxu0 %v3525
        %4960 = vmatprep.subr.bf16.mxu0 0
        %4961 = vmatpush1.bf16.msra.mxu0 %v3526
        %4962 = vmatprep.subr.bf16.mxu0 0
        %4963 = vmatpush1.bf16.msra.mxu0 %v3527
        %4964 = vmatprep.subr.bf16.mxu0 0
        %4965 = vmatpush1.bf16.msra.mxu0 %v3528
        %4966 = vmatprep.subr.bf16.mxu0 0
        %4967 = vmatpush1.bf16.msra.mxu0 %v3529
        %4968 = vmatprep.subr.bf16.mxu0 0
        %4969 = vmatpush1.bf16.msra.mxu0 %v3530
        %4970 = vmatprep.subr.bf16.mxu0 0
        %4971 = vmatpush1.bf16.msra.mxu0 %v3531
        %4972 = vmatprep.subr.bf16.mxu0 0
        %4973 = vmatpush1.bf16.msra.mxu0 %v3532
        %4974 = vmatprep.subr.bf16.mxu0 0
        %4975 = vmatpush1.bf16.msra.mxu0 %v3533
        %4976 = vmatprep.subr.bf16.mxu0 0
        %4977 = vmatpush1.bf16.msra.mxu0 %v3534
        %4978 = vmatprep.subr.bf16.mxu0 0
        %4979 = vmatpush1.bf16.msra.mxu0 %v3535
        %4980 = vmatprep.subr.bf16.mxu0 0
        %4981 = vmatpush1.bf16.msra.mxu0 %v3536
        %4982 = vmatprep.subr.bf16.mxu0 0
        %4983 = vmatpush1.bf16.msra.mxu0 %v3537
        %4984 = vmatprep.subr.bf16.mxu0 0
        %4985 = vmatpush1.bf16.msra.mxu0 %v3538
        %4986 = vmatprep.subr.bf16.mxu0 0
        %4987 = vmatpush1.bf16.msra.mxu0 %v3539
        %4988 = vmatprep.mubr.bf16.mxu0 %v1407
        %4989 = vmatmul.mubr.bf16.gmra.mrb[0].mxu0 %v1406
        %v4990 = vpop.f32.mrb[0].mxu0
        %v4991 = vadd.f32 %v4951, %v4990
        %v4992 = vpop.f32.mrb[0].mxu0
        %v4993 = vpop.f32.mrb[0].mxu0
        %v4994 = vpop.f32.mrb[0].mxu0
        %4995 = vdwg.mxu0
        %v4996 = vadd.f32 %v243, %v4991
        %4997 = vst [vmem:[#allocation2] sm:$0x3] %v4996
        %p4998 = scmp.eq.s32.totalorder %s22, 12
        // Predicated region
        $region41: #{convnet_forward.9} parent=31 // pred_check
          %p4999 = pneg %p4998
        $region42: #{convnet_forward.9} parent=31 // pred_check_branch
          %5001 = sbr.rel (%p4999) target = $region44
        $region43: #{convnet_forward.9} parent=31 // pred_region
          %v5002 = vld [vmem:[#allocation2] sm:$0x3]
          %v5003 = vld [vmem:[%s233] sm:$0x1]
          %v5005 = vlaneseq
          %v5006 = vshrl.u32 %v5005, 7
          %v5007 = vsub.s32 0, %v5006
          %v5008 = vrot.slane %v5003, %v5007
          %v5010 = vadd.f32 %v5002, %v5008
          %v5011 = vmax.f32 %v5010, 0.0
          %v5012 = vpack.c.bf16 %v5011, %v5011
          %5013 = vst [vmem:[%s236] sm:$0x1] %v5012
        $region44: #{convnet_forward.9} parent=31 // pred_fallthru
          _
        %p5014 = scmp.lt.s32.totalorder %s21, 1
        %s5015 = scalar_select %p5014, %s21, 1
        %s5016 = scalar_lea.vmem %s3, %s5015
        // Predicated region
        $region45: #{convnet_forward.9} parent=31 // pred_check
          %p5017 = pneg %p127
        $region46: #{convnet_forward.9} parent=31 // pred_check_branch
          %5019 = sbr.rel (%p5017) target = $region48
        $region47: #{convnet_forward.9} parent=31 // pred_region
          _
        $region48: #{convnet_forward.9} parent=31 // pred_fallthru
          _
      $region32: #{convnet_forward.9} parent=5 // pred_fallthru
        _
      %p5020 = scmp.le.s32.totalorder 2, %s12
      // Predicated region
      $region49: #{convnet_forward.9} parent=5 // pred_check
        %p5021 = pneg %p5020
      $region50: #{convnet_forward.9} parent=5 // pred_check_branch
        %5023 = sbr.rel (%p5021) target = $region52
      $region51: #{convnet_forward.9} parent=5 // pred_region
        %s5024 = ssub.s32 %s12, 2
        // Predicated region
        $region53: #{convnet_forward.9} parent=51 // pred_check
          %p5025 = pneg %p133
        $region54: #{convnet_forward.9} parent=51 // pred_check_branch
          %5027 = sbr.rel (%p5025) target = $region56
        $region55: #{convnet_forward.9} parent=51 // pred_region
          %p5028 = scmp.lt.s32.totalorder %s23, 1
          %s5029 = scalar_select %p5028, %s23, 1
          %s5030 = scalar_lea.vmem %s3, %s5029
        $region56: #{convnet_forward.9} parent=51 // pred_fallthru
          _
      $region52: #{convnet_forward.9} parent=5 // pred_fallthru
        _
    $region6: #{convnet_forward.9} parent=1 // loop_footer
      %s16 = sadd.s32 1, %s12
    $region7: #{convnet_forward.9} parent=1 // loop_footer_branch
      %11 = sbr.rel target = $region3
    $region8: #{convnet_forward.9} parent=1 // loop_exit
      _
    %5031 = vsyncpa [#allocation4], 1
    %s5032 = scalar_lea.sflag [#allocation4], 1
    %5033 = vsyncpa %s5032, 1

// kernel: convnet_forward.10
$region0: #{convnet_forward.10}
  #allocation0 [shape = 'u32[]', space=smem, size = 0x4, offset = 0x4, fixed_abs, tag = 'smem constant byte address 0x4 - core index']
  #allocation1 [shape = 'u32[144,128]{1,0:T(1,128)}', space=vmem, size = 0x12000, scoped, tag = 'internal scratch']
  #allocation2 [shape = 'f32[2,128]{1,0:T(2,128)}', space=vmem, size = 0x400, scoped, tag = 'scratch operand']
  %s0 = inlined_call_operand.vmem [shape: bf16[2,256], index: 0, kind: input, shape index: {}]
  %s1 = inlined_call_operand.vmem [shape: bf16[256,256], index: 1, kind: input, shape index: {}]
  %s2 = inlined_call_operand.vmem [shape: f32[1,256], index: 2, kind: input, shape index: {}]
  %s3 = inlined_call_operand.vmem [shape: bf16[2,256], index: 3, kind: output, shape index: {}]
  %s4 = sld [smem:[#allocation0]]
  $region94: #{convnet_forward.10} parent=0
    _
  %s6 = ssub.s32 1, %s4
  %s7 = scalar_select 0, %s6, %s4
  $region1: #{convnet_forward.10} parent=0
    #allocation3 [shape = 'u8[131072]{0}', space=vmem, size = 0x20000, scoped, tag = 'input window, operand 1']
    loop: start=0, step=1, limit=4
    $region2: #{convnet_forward.10} parent=1 // loop_pre_header
      _
    $region3: #{convnet_forward.10} parent=1 // loop_header
      %s9 = sphi 0, %s13
      %p10 = scmp.ge.s32.totalorder %s9, 4
      %s16 = sphi 0, %s28
      %s17 = sphi 0, %s24
      %s18 = sphi 0, %s16
      %s19 = sphi 0, %s17
      %s20 = sphi 0, %s18
      %s21 = sphi 0, %s19
      %s31 = sphi 0, %s33
      %s34 = sphi 0, %s31
      %s35 = sphi 0, %s34
      %s51 = sphi 0, %s35
      %s59 = sphi 0, %s61
      %s62 = sphi 0, %s59
      %s63 = sphi 0, %s62
      %s79 = sphi 0, %s63
      %s85 = sphi 0, %s87
      %s88 = sphi 0, %s85
      %s89 = sphi 0, %s88
      %s105 = sphi 0, %s89
      %s111 = sphi 0, %s113
      %s114 = sphi 0, %s111
      %s115 = sphi 0, %s114
      %s131 = sphi 0, %s115
    $region4: #{convnet_forward.10} parent=1 // loop_header_branch
      %12 = sbr.rel (%p10) target = $region8
    $region5: #{convnet_forward.10} parent=1 // loop_body
      %s14 = ssub.s32 %s9, 1
      %s15 = ssub.s32 %s9, 2
      %s22 = sadd.s32 1, %s17
      %p23 = scmp.ge.s32.totalorder %s22, 1
      %s24 = scalar_select %p23, 0, %s22
      %s25 = sadd.s32 1, %s16
      %s26 = scalar_select %p23, %s25, %s16
      %p27 = scmp.ge.s32.totalorder %s26, 2
      %s28 = scalar_select %p27, 0, %s26
      %s29 = ssub.s32 %s17, %s24
      %p30 = scmp.eq.s32.totalorder %s29, 0
      %s32 = sadd.s32 %s31, 1
      %s33 = scalar_select %p30, %s31, %s32
      %p36 = pneg %p30
      %p37 = scmp.eq.s32.totalorder %s9, 1
      %p38 = por %p36, %p37
      %p39 = scmp.ne.s32.totalorder %s31, %s34
      %p40 = scmp.eq.s32.totalorder %s9, 0
      %p41 = por %p39, %p40
      %p42 = scmp.ne.s32.totalorder %s31, %s34
      %p43 = scmp.eq.s32.totalorder %s14, 1
      %p44 = por %p42, %p43
      %p45 = scmp.ne.s32.totalorder %s34, %s35
      %p46 = scmp.eq.s32.totalorder %s14, 0
      %p47 = por %p45, %p46
      %p48 = scmp.ne.s32.totalorder %s34, %s35
      %p49 = scmp.eq.s32.totalorder %s15, 1
      %p50 = por %p48, %p49
      %p52 = scmp.ne.s32.totalorder %s35, %s51
      %p53 = scmp.eq.s32.totalorder %s15, 0
      %p54 = por %p52, %p53
      %s55 = ssub.s32 %s17, %s24
      %s56 = ssub.s32 %s16, %s28
      %s57 = sor.u32 %s55, %s56
      %p58 = scmp.eq.s32.totalorder %s57, 0
      %s60 = sadd.s32 %s59, 1
      %s61 = scalar_select %p58, %s59, %s60
      %p64 = pneg %p58
      %p65 = scmp.eq.s32.totalorder %s9, 1
      %p66 = por %p64, %p65
      %p67 = scmp.ne.s32.totalorder %s59, %s62
      %p68 = scmp.eq.s32.totalorder %s9, 0
      %p69 = por %p67, %p68
      %p70 = scmp.ne.s32.totalorder %s59, %s62
      %p71 = scmp.eq.s32.totalorder %s14, 1
      %p72 = por %p70, %p71
      %p73 = scmp.ne.s32.totalorder %s62, %s63
      %p74 = scmp.eq.s32.totalorder %s14, 0
      %p75 = por %p73, %p74
      %p76 = scmp.ne.s32.totalorder %s62, %s63
      %p77 = scmp.eq.s32.totalorder %s15, 1
      %p78 = por %p76, %p77
      %p80 = scmp.ne.s32.totalorder %s63, %s79
      %p81 = scmp.eq.s32.totalorder %s15, 0
      %p82 = por %p80, %p81
      %s83 = ssub.s32 %s16, %s28
      %p84 = scmp.eq.s32.totalorder %s83, 0
      %s86 = sadd.s32 %s85, 1
      %s87 = scalar_select %p84, %s85, %s86
      %p90 = pneg %p84
      %p91 = scmp.eq.s32.totalorder %s9, 1
      %p92 = por %p90, %p91
      %p93 = scmp.ne.s32.totalorder %s85, %s88
      %p94 = scmp.eq.s32.totalorder %s9, 0
      %p95 = por %p93, %p94
      %p96 = scmp.ne.s32.totalorder %s85, %s88
      %p97 = scmp.eq.s32.totalorder %s14, 1
      %p98 = por %p96, %p97
      %p99 = scmp.ne.s32.totalorder %s88, %s89
      %p100 = scmp.eq.s32.totalorder %s14, 0
      %p101 = por %p99, %p100
      %p102 = scmp.ne.s32.totalorder %s88, %s89
      %p103 = scmp.eq.s32.totalorder %s15, 1
      %p104 = por %p102, %p103
      %p106 = scmp.ne.s32.totalorder %s89, %s105
      %p107 = scmp.eq.s32.totalorder %s15, 0
      %p108 = por %p106, %p107
      %s109 = ssub.s32 %s16, %s28
      %p110 = scmp.eq.s32.totalorder %s109, 0
      %s112 = sadd.s32 %s111, 1
      %s113 = scalar_select %p110, %s111, %s112
      %p116 = pneg %p110
      %p117 = scmp.eq.s32.totalorder %s9, 1
      %p118 = por %p116, %p117
      %p119 = scmp.ne.s32.totalorder %s111, %s114
      %p120 = scmp.eq.s32.totalorder %s9, 0
      %p121 = por %p119, %p120
      %p122 = scmp.ne.s32.totalorder %s111, %s114
      %p123 = scmp.eq.s32.totalorder %s14, 1
      %p124 = por %p122, %p123
      %p125 = scmp.ne.s32.totalorder %s114, %s115
      %p126 = scmp.eq.s32.totalorder %s14, 0
      %p127 = por %p125, %p126
      %p128 = scmp.ne.s32.totalorder %s114, %s115
      %p129 = scmp.eq.s32.totalorder %s15, 1
      %p130 = por %p128, %p129
      %p132 = scmp.ne.s32.totalorder %s115, %s131
      %p133 = scmp.eq.s32.totalorder %s15, 0
      %p134 = por %p132, %p133
      %p135 = scmp.le.s32.totalorder 1, %s9
      %p136 = scmp.lt.s32.totalorder %s9, 3
      %p137 = pnand %p135, %p136
      %p138 = pneg %p137
      // Predicated region
      $region9: #{convnet_forward.10} parent=5 // pred_check
        _
      $region10: #{convnet_forward.10} parent=5 // pred_check_branch
        %140 = sbr.rel (%p137) target = $region12
      $region11: #{convnet_forward.10} parent=5 // pred_region
        %s141 = ssub.s32 %s9, 1
        // Predicated region
        $region13: #{convnet_forward.10} parent=11 // pred_check
          %p142 = pneg %p47
        $region14: #{convnet_forward.10} parent=11 // pred_check_branch
          %144 = sbr.rel (%p142) target = $region16
        $region15: #{convnet_forward.10} parent=11 // pred_region
          %s145 = smul.u32 2, %s19
          %p146 = scmp.lt.s32.totalorder %s145, 1
          %s147 = scalar_select %p146, %s145, 1
          %s148 = scalar_lea.vmem %s0, %s147
          %s149 = smul.u32 2, %s19
        $region16: #{convnet_forward.10} parent=11 // pred_fallthru
          _
      $region12: #{convnet_forward.10} parent=5 // pred_fallthru
        _
      %p150 = scmp.lt.s32.totalorder %s9, 2
      // Predicated region
      $region17: #{convnet_forward.10} parent=5 // pred_check
        %p151 = pneg %p150
      $region18: #{convnet_forward.10} parent=5 // pred_check_branch
        %153 = sbr.rel (%p151) target = $region20
      $region19: #{convnet_forward.10} parent=5 // pred_region
        // Predicated region
        $region21: #{convnet_forward.10} parent=19 // pred_check
          %p154 = pneg %p69
        $region22: #{convnet_forward.10} parent=19 // pred_check_branch
          %156 = sbr.rel (%p154) target = $region24
        $region23: #{convnet_forward.10} parent=19 // pred_region
          %s157 = sand.u32 %s59, 1
          %s158 = sand.u32 %s59, 1
          %s159 = smul.addr %s158, 128
          %s160 = scalar_lea.vmem [#allocation3], %s159
          %s161 = smul.u32 32, %s17
          %s162 = smul.addr %s161, 2
          %s163 = sadd.s32 %s16, %s162
          %s164 = smul.addr %s163, 4
          %s165 = scalar_lea.vmem %s1, %s164
          // Predicated region
          $region25: #{convnet_forward.10} parent=23 // pred_check
            _
          $region26: #{convnet_forward.10} parent=23 // pred_check_branch
            %167 = sbr.rel (0) target = $region28
          $region27: #{convnet_forward.10} parent=23 // pred_region
            // Predicated region
            $region29: #{convnet_forward.10} parent=27 // pred_check
              _
            $region30: #{convnet_forward.10} parent=27 // pred_check_branch
              %169 = sbr.rel target = $region32
            $region31: #{convnet_forward.10} parent=27 // pred_region
              // Predicated region
              $region44: #{convnet_forward.10} parent=31 // pred_check
                _
              $region45: #{convnet_forward.10} parent=31 // pred_check_branch
                %246 = sbr.rel (0) target = $region47
              $region46: #{convnet_forward.10} parent=31 // pred_region
                loop: start=0, step=1, limit=1
                $region48: #{convnet_forward.10} parent=46 // loop_pre_header
                  _
                $region49: #{convnet_forward.10} parent=46 // loop_header
                  %s248 = sphi 0, %s252
                  %p249 = scmp.ge.s32.totalorder %s248, 1
                  %s253 = sphi %s165, %s165
                  %s254 = sphi %s160, %s160
                $region50: #{convnet_forward.10} parent=46 // loop_header_branch
                  %251 = sbr.rel (%p249) target = $region54
                $region51: #{convnet_forward.10} parent=46 // loop_body
                  _
                $region52: #{convnet_forward.10} parent=46 // loop_footer
                  %s252 = sadd.s32 1, %s248
                $region53: #{convnet_forward.10} parent=46 // loop_footer_branch
                  %247 = sbr.rel target = $region49
                $region54: #{convnet_forward.10} parent=46 // loop_exit
                  _
                loop: start=0, step=1, limit=1
                $region55: #{convnet_forward.10} parent=46 // loop_pre_header
                  _
                $region56: #{convnet_forward.10} parent=46 // loop_header
                  %s257 = sphi 0, %s261
                  %p258 = scmp.ge.s32.totalorder %s257, 1
                  %s262 = sphi %s165, %s165
                  %s263 = sphi %s160, %s160
                $region57: #{convnet_forward.10} parent=46 // loop_header_branch
                  %260 = sbr.rel (%p258) target = $region61
                $region58: #{convnet_forward.10} parent=46 // loop_body
                  %v264 = vld [vmem:[%s262] sm:$0xf]
                  %265 = vst [vmem:[%s263] sm:$0xf] %v264
                  %v266 = vld [vmem:[%s262 + $0x8] sm:$0xf]
                  %267 = vst [vmem:[%s263 + $0x4] sm:$0xf] %v266
                  %v268 = vld [vmem:[%s262 + $0x10] sm:$0xf]
                  %269 = vst [vmem:[%s263 + $0x8] sm:$0xf] %v268
                  %v270 = vld [vmem:[%s262 + $0x18] sm:$0xf]
                  %271 = vst [vmem:[%s263 + $0xc] sm:$0xf] %v270
                  %v272 = vld [vmem:[%s262 + $0x20] sm:$0xf]
                  %273 = vst [vmem:[%s263 + $0x10] sm:$0xf] %v272
                  %v274 = vld [vmem:[%s262 + $0x28] sm:$0xf]
                  %275 = vst [vmem:[%s263 + $0x14] sm:$0xf] %v274
                  %v276 = vld [vmem:[%s262 + $0x30] sm:$0xf]
                  %277 = vst [vmem:[%s263 + $0x18] sm:$0xf] %v276
                  %v278 = vld [vmem:[%s262 + $0x38] sm:$0xf]
                  %279 = vst [vmem:[%s263 + $0x1c] sm:$0xf] %v278
                  %v280 = vld [vmem:[%s262 + $0x40] sm:$0xf]
                  %281 = vst [vmem:[%s263 + $0x20] sm:$0xf] %v280
                  %v282 = vld [vmem:[%s262 + $0x48] sm:$0xf]
                  %283 = vst [vmem:[%s263 + $0x24] sm:$0xf] %v282
                  %v284 = vld [vmem:[%s262 + $0x50] sm:$0xf]
                  %285 = vst [vmem:[%s263 + $0x28] sm:$0xf] %v284
                  %v286 = vld [vmem:[%s262 + $0x58] sm:$0xf]
                  %287 = vst [vmem:[%s263 + $0x2c] sm:$0xf] %v286
                  %v288 = vld [vmem:[%s262 + $0x60] sm:$0xf]
                  %289 = vst [vmem:[%s263 + $0x30] sm:$0xf] %v288
                  %v290 = vld [vmem:[%s262 + $0x68] sm:$0xf]
                  %291 = vst [vmem:[%s263 + $0x34] sm:$0xf] %v290
                  %v292 = vld [vmem:[%s262 + $0x70] sm:$0xf]
                  %293 = vst [vmem:[%s263 + $0x38] sm:$0xf] %v292
                  %v294 = vld [vmem:[%s262 + $0x78] sm:$0xf]
                  %295 = vst [vmem:[%s263 + $0x3c] sm:$0xf] %v294
                  %v296 = vld [vmem:[%s262 + $0x80] sm:$0xf]
                  %297 = vst [vmem:[%s263 + $0x40] sm:$0xf] %v296
                  %v298 = vld [vmem:[%s262 + $0x88] sm:$0xf]
                  %299 = vst [vmem:[%s263 + $0x44] sm:$0xf] %v298
                  %v300 = vld [vmem:[%s262 + $0x90] sm:$0xf]
                  %301 = vst [vmem:[%s263 + $0x48] sm:$0xf] %v300
                  %v302 = vld [vmem:[%s262 + $0x98] sm:$0xf]
                  %303 = vst [vmem:[%s263 + $0x4c] sm:$0xf] %v302
                  %v304 = vld [vmem:[%s262 + $0xa0] sm:$0xf]
                  %305 = vst [vmem:[%s263 + $0x50] sm:$0xf] %v304
                  %v306 = vld [vmem:[%s262 + $0xa8] sm:$0xf]
                  %307 = vst [vmem:[%s263 + $0x54] sm:$0xf] %v306
                  %v308 = vld [vmem:[%s262 + $0xb0] sm:$0xf]
                  %309 = vst [vmem:[%s263 + $0x58] sm:$0xf] %v308
                  %v310 = vld [vmem:[%s262 + $0xb8] sm:$0xf]
                  %311 = vst [vmem:[%s263 + $0x5c] sm:$0xf] %v310
                  %v312 = vld [vmem:[%s262 + $0xc0] sm:$0xf]
                  %313 = vst [vmem:[%s263 + $0x60] sm:$0xf] %v312
                  %v314 = vld [vmem:[%s262 + $0xc8] sm:$0xf]
                  %315 = vst [vmem:[%s263 + $0x64] sm:$0xf] %v314
                  %v316 = vld [vmem:[%s262 + $0xd0] sm:$0xf]
                  %317 = vst [vmem:[%s263 + $0x68] sm:$0xf] %v316
                  %v318 = vld [vmem:[%s262 + $0xd8] sm:$0xf]
                  %319 = vst [vmem:[%s263 + $0x6c] sm:$0xf] %v318
                  %v320 = vld [vmem:[%s262 + $0xe0] sm:$0xf]
                  %321 = vst [vmem:[%s263 + $0x70] sm:$0xf] %v320
                  %v322 = vld [vmem:[%s262 + $0xe8] sm:$0xf]
                  %323 = vst [vmem:[%s263 + $0x74] sm:$0xf] %v322
                  %v324 = vld [vmem:[%s262 + $0xf0] sm:$0xf]
                  %325 = vst [vmem:[%s263 + $0x78] sm:$0xf] %v324
                  %v326 = vld [vmem:[%s262 + $0xf8] sm:$0xf]
                  %327 = vst [vmem:[%s263 + $0x7c] sm:$0xf] %v326
                $region59: #{convnet_forward.10} parent=46 // loop_footer
                  %s261 = sadd.s32 1, %s257
                $region60: #{convnet_forward.10} parent=46 // loop_footer_branch
                  %256 = sbr.rel target = $region56
                $region61: #{convnet_forward.10} parent=46 // loop_exit
                  _
              $region47: #{convnet_forward.10} parent=31 // pred_fallthru
                _
            $region32: #{convnet_forward.10} parent=27 // pred_fallthru
              _
            // Predicated region
            $region33: #{convnet_forward.10} parent=27 // pred_check
              _
            $region34: #{convnet_forward.10} parent=27 // pred_check_branch
              %171 = sbr.rel (0) target = $region36
            $region35: #{convnet_forward.10} parent=27 // pred_region
              loop: start=0, step=1, limit=1
              $region37: #{convnet_forward.10} parent=35 // loop_pre_header
                _
              $region38: #{convnet_forward.10} parent=35 // loop_header
                %s174 = sphi 0, %s178
                %p175 = scmp.ge.s32.totalorder %s174, 1
                %s179 = sphi %s165, %s165
                %s180 = sphi %s160, %s160
              $region39: #{convnet_forward.10} parent=35 // loop_header_branch
                %177 = sbr.rel (%p175) target = $region43
              $region40: #{convnet_forward.10} parent=35 // loop_body
                %v181 = vld [vmem:[%s179] sm:$0xf]
                %182 = vst [vmem:[%s180] sm:$0xf] %v181
                %v183 = vld [vmem:[%s179 + $0x8] sm:$0xf]
                %184 = vst [vmem:[%s180 + $0x4] sm:$0xf] %v183
                %v185 = vld [vmem:[%s179 + $0x10] sm:$0xf]
                %186 = vst [vmem:[%s180 + $0x8] sm:$0xf] %v185
                %v187 = vld [vmem:[%s179 + $0x18] sm:$0xf]
                %188 = vst [vmem:[%s180 + $0xc] sm:$0xf] %v187
                %v189 = vld [vmem:[%s179 + $0x20] sm:$0xf]
                %190 = vst [vmem:[%s180 + $0x10] sm:$0xf] %v189
                %v191 = vld [vmem:[%s179 + $0x28] sm:$0xf]
                %192 = vst [vmem:[%s180 + $0x14] sm:$0xf] %v191
                %v193 = vld [vmem:[%s179 + $0x30] sm:$0xf]
                %194 = vst [vmem:[%s180 + $0x18] sm:$0xf] %v193
                %v195 = vld [vmem:[%s179 + $0x38] sm:$0xf]
                %196 = vst [vmem:[%s180 + $0x1c] sm:$0xf] %v195
                %v197 = vld [vmem:[%s179 + $0x40] sm:$0xf]
                %198 = vst [vmem:[%s180 + $0x20] sm:$0xf] %v197
                %v199 = vld [vmem:[%s179 + $0x48] sm:$0xf]
                %200 = vst [vmem:[%s180 + $0x24] sm:$0xf] %v199
                %v201 = vld [vmem:[%s179 + $0x50] sm:$0xf]
                %202 = vst [vmem:[%s180 + $0x28] sm:$0xf] %v201
                %v203 = vld [vmem:[%s179 + $0x58] sm:$0xf]
                %204 = vst [vmem:[%s180 + $0x2c] sm:$0xf] %v203
                %v205 = vld [vmem:[%s179 + $0x60] sm:$0xf]
                %206 = vst [vmem:[%s180 + $0x30] sm:$0xf] %v205
                %v207 = vld [vmem:[%s179 + $0x68] sm:$0xf]
                %208 = vst [vmem:[%s180 + $0x34] sm:$0xf] %v207
                %v209 = vld [vmem:[%s179 + $0x70] sm:$0xf]
                %210 = vst [vmem:[%s180 + $0x38] sm:$0xf] %v209
                %v211 = vld [vmem:[%s179 + $0x78] sm:$0xf]
                %212 = vst [vmem:[%s180 + $0x3c] sm:$0xf] %v211
                %v213 = vld [vmem:[%s179 + $0x80] sm:$0xf]
                %214 = vst [vmem:[%s180 + $0x40] sm:$0xf] %v213
                %v215 = vld [vmem:[%s179 + $0x88] sm:$0xf]
                %216 = vst [vmem:[%s180 + $0x44] sm:$0xf] %v215
                %v217 = vld [vmem:[%s179 + $0x90] sm:$0xf]
                %218 = vst [vmem:[%s180 + $0x48] sm:$0xf] %v217
                %v219 = vld [vmem:[%s179 + $0x98] sm:$0xf]
                %220 = vst [vmem:[%s180 + $0x4c] sm:$0xf] %v219
                %v221 = vld [vmem:[%s179 + $0xa0] sm:$0xf]
                %222 = vst [vmem:[%s180 + $0x50] sm:$0xf] %v221
                %v223 = vld [vmem:[%s179 + $0xa8] sm:$0xf]
                %224 = vst [vmem:[%s180 + $0x54] sm:$0xf] %v223
                %v225 = vld [vmem:[%s179 + $0xb0] sm:$0xf]
                %226 = vst [vmem:[%s180 + $0x58] sm:$0xf] %v225
                %v227 = vld [vmem:[%s179 + $0xb8] sm:$0xf]
                %228 = vst [vmem:[%s180 + $0x5c] sm:$0xf] %v227
                %v229 = vld [vmem:[%s179 + $0xc0] sm:$0xf]
                %230 = vst [vmem:[%s180 + $0x60] sm:$0xf] %v229
                %v231 = vld [vmem:[%s179 + $0xc8] sm:$0xf]
                %232 = vst [vmem:[%s180 + $0x64] sm:$0xf] %v231
                %v233 = vld [vmem:[%s179 + $0xd0] sm:$0xf]
                %234 = vst [vmem:[%s180 + $0x68] sm:$0xf] %v233
                %v235 = vld [vmem:[%s179 + $0xd8] sm:$0xf]
                %236 = vst [vmem:[%s180 + $0x6c] sm:$0xf] %v235
                %v237 = vld [vmem:[%s179 + $0xe0] sm:$0xf]
                %238 = vst [vmem:[%s180 + $0x70] sm:$0xf] %v237
                %v239 = vld [vmem:[%s179 + $0xe8] sm:$0xf]
                %240 = vst [vmem:[%s180 + $0x74] sm:$0xf] %v239
                %v241 = vld [vmem:[%s179 + $0xf0] sm:$0xf]
                %242 = vst [vmem:[%s180 + $0x78] sm:$0xf] %v241
                %v243 = vld [vmem:[%s179 + $0xf8] sm:$0xf]
                %244 = vst [vmem:[%s180 + $0x7c] sm:$0xf] %v243
              $region41: #{convnet_forward.10} parent=35 // loop_footer
                %s178 = sadd.s32 1, %s174
              $region42: #{convnet_forward.10} parent=35 // loop_footer_branch
                %173 = sbr.rel target = $region38
              $region43: #{convnet_forward.10} parent=35 // loop_exit
                _
            $region36: #{convnet_forward.10} parent=27 // pred_fallthru
              _
          $region28: #{convnet_forward.10} parent=23 // pred_fallthru
            _
          %328 = vnop
        $region24: #{convnet_forward.10} parent=19 // pred_fallthru
          _
        // Predicated region
        $region62: #{convnet_forward.10} parent=19 // pred_check
          %p329 = pneg %p95
        $region63: #{convnet_forward.10} parent=19 // pred_check_branch
          %331 = sbr.rel (%p329) target = $region65
        $region64: #{convnet_forward.10} parent=19 // pred_region
          %p332 = scmp.lt.s32.totalorder %s16, 1
          %s333 = scalar_select %p332, %s16, 1
          %s334 = scalar_lea.vmem %s2, %s333
        $region65: #{convnet_forward.10} parent=19 // pred_fallthru
          _
      $region20: #{convnet_forward.10} parent=5 // pred_fallthru
        _
      %p335 = scmp.le.s32.totalorder 1, %s9
      %p336 = scmp.lt.s32.totalorder %s9, 3
      %p337 = pnand %p335, %p336
      %p338 = pneg %p337
      // Predicated region
      $region66: #{convnet_forward.10} parent=5 // pred_check
        _
      $region67: #{convnet_forward.10} parent=5 // pred_check_branch
        %340 = sbr.rel (%p337) target = $region69
      $region68: #{convnet_forward.10} parent=5 // pred_region
        %s341 = ssub.s32 %s9, 1
        %s342 = sand.u32 %s62, 1
        %s343 = sand.u32 %s62, 1
        %s344 = smul.addr %s343, 128
        %s345 = scalar_lea.vmem [#allocation3], %s344
        // Predicated region
        $region70: #{convnet_forward.10} parent=68 // pred_check
          %p346 = pneg %p75
        $region71: #{convnet_forward.10} parent=68 // pred_check_branch
          %348 = sbr.rel (%p346) target = $region73
        $region72: #{convnet_forward.10} parent=68 // pred_region
          _
        $region73: #{convnet_forward.10} parent=68 // pred_fallthru
          _
        %s349 = smul.u32 2, %s19
        %p350 = scmp.lt.s32.totalorder %s349, 1
        %s351 = scalar_select %p350, %s349, 1
        %s352 = scalar_lea.vmem %s0, %s351
        %p353 = pneg %p47
        %p354 = pneg %p44
        %s355 = sand.u32 %s62, 1
        %s356 = sand.u32 %s62, 1
        %s357 = smul.addr %s356, 128
        %s358 = scalar_lea.vmem [#allocation3], %s357
        %p359 = pneg %p75
        %p360 = pneg %p72
        %p361 = scmp.lt.s32.totalorder %s18, 1
        %s362 = scalar_select %p361, %s18, 1
        %s363 = scalar_lea.vmem %s2, %s362
        %p364 = pneg %p101
        %p365 = pneg %p98
        %p366 = pneg %p127
        %p367 = pneg %p124
        %p368 = scmp.lt.s32.totalorder %s18, 1
        %s369 = scalar_select %p368, %s18, 1
        %s370 = scalar_lea.vmem %s3, %s369
        %s371 = smul.u32 2, %s19
        %p372 = scmp.lt.s32.totalorder %s371, 1
        %s373 = scalar_select %p372, %s371, 1
        %s374 = scalar_lea.vmem %s0, %s373
        %s375 = smul.u32 2, %s19
        %s376 = smul.u32 32, %s19
        %p377 = scmp.lt.s32.totalorder %s18, 1
        %s378 = scalar_select %p377, %s18, 1
        %s379 = scalar_lea.vmem %s2, %s378
        %p380 = scmp.lt.s32.totalorder %s18, 1
        %s381 = scalar_select %p380, %s18, 1
        %s382 = scalar_lea.vmem %s3, %s381
        %p384 = scmp.eq.s32.totalorder %s19, 0
        // Predicated region
        $region74: #{convnet_forward.10} parent=68 // pred_check
          %p385 = pneg %p384
        $region75: #{convnet_forward.10} parent=68 // pred_check_branch
          %387 = sbr.rel (%p385) target = $region77
        $region76: #{convnet_forward.10} parent=68 // pred_region
          %388 = vst [vmem:[#allocation2] sm:$0x3] 0.0
        $region77: #{convnet_forward.10} parent=68 // pred_fallthru
          _
        %v389 = vld [vmem:[#allocation2] sm:$0x3]
        %v390 = vld [vmem:[%s374] sm:$0x3]
        %v391 = vld [vmem:[%s345] sm:$0xf]
        %v392 = vld [vmem:[%s345 + $0x4] sm:$0xf]
        %v393 = vld [vmem:[%s345 + $0x8] sm:$0xf]
        %v394 = vld [vmem:[%s345 + $0xc] sm:$0xf]
        %v395 = vld [vmem:[%s345 + $0x10] sm:$0xf]
        %v396 = vld [vmem:[%s345 + $0x14] sm:$0xf]
        %v397 = vld [vmem:[%s345 + $0x18] sm:$0xf]
        %v398 = vld [vmem:[%s345 + $0x1c] sm:$0xf]
        %v399 = vld [vmem:[%s345 + $0x20] sm:$0xf]
        %v400 = vld [vmem:[%s345 + $0x24] sm:$0xf]
        %v401 = vld [vmem:[%s345 + $0x28] sm:$0xf]
        %v402 = vld [vmem:[%s345 + $0x2c] sm:$0xf]
        %v403 = vld [vmem:[%s345 + $0x30] sm:$0xf]
        %v404 = vld [vmem:[%s345 + $0x34] sm:$0xf]
        %v405 = vld [vmem:[%s345 + $0x38] sm:$0xf]
        %v406 = vld [vmem:[%s345 + $0x3c] sm:$0xf]
        %v407 = vld [vmem:[%s345 + $0x40] sm:$0xf]
        %v408 = vld [vmem:[%s345 + $0x44] sm:$0xf]
        %v409 = vld [vmem:[%s345 + $0x48] sm:$0xf]
        %v410 = vld [vmem:[%s345 + $0x4c] sm:$0xf]
        %v411 = vld [vmem:[%s345 + $0x50] sm:$0xf]
        %v412 = vld [vmem:[%s345 + $0x54] sm:$0xf]
        %v413 = vld [vmem:[%s345 + $0x58] sm:$0xf]
        %v414 = vld [vmem:[%s345 + $0x5c] sm:$0xf]
        %v415 = vld [vmem:[%s345 + $0x60] sm:$0xf]
        %v416 = vld [vmem:[%s345 + $0x64] sm:$0xf]
        %v417 = vld [vmem:[%s345 + $0x68] sm:$0xf]
        %v418 = vld [vmem:[%s345 + $0x6c] sm:$0xf]
        %v419 = vld [vmem:[%s345 + $0x70] sm:$0xf]
        %v420 = vld [vmem:[%s345 + $0x74] sm:$0xf]
        %v421 = vld [vmem:[%s345 + $0x78] sm:$0xf]
        %v422 = vld [vmem:[%s345 + $0x7c] sm:$0xf]
        %v425 = vunpack.c.l.s4 1966171168
        %v426 = vunpack.c.0.s8 %v425
        %v427 = vlaneseq
        %v428 = vshrl.u32 %v427, 7
        %v429 = vsub.s32 %v426, %v428
        %v430 = vrot.slane %v390, %v429
        %v431 = vcombine.high %v430, %v430
        %v433 = vunpack.c.l.s4 1966171168
        %v434 = vunpack.c.0.s8 %v433
        %v435 = vlaneseq
        %v436 = vshrl.u32 %v435, 7
        %v437 = vsub.s32 %v434, %v436
        %v438 = vrot.slane %v430, %v437
        %v440 = vunpack.c.l.s4 1966171168
        %v441 = vunpack.c.0.s8 %v440
        %v442 = vlaneseq
        %v443 = vshrl.u32 %v442, 7
        %v444 = vsub.s32 %v441, %v443
        %v445 = vrot.slane %v431, %v444
        %v480 = vunpack.c.l.b16 %v391
        %v481 = vunpack.c.l.b16 %v392
        %v482 = vunpack.c.l.b16 %v393
        %v483 = vunpack.c.l.b16 %v394
        %v484 = vunpack.c.l.b16 %v395
        %v485 = vunpack.c.l.b16 %v396
        %v486 = vunpack.c.l.b16 %v397
        %v487 = vunpack.c.l.b16 %v398
        %v488 = vunpack.c.l.b16 %v399
        %v489 = vunpack.c.l.b16 %v400
        %v490 = vunpack.c.l.b16 %v401
        %v491 = vunpack.c.l.b16 %v402
        %v492 = vunpack.c.l.b16 %v403
        %v493 = vunpack.c.l.b16 %v404
        %v494 = vunpack.c.l.b16 %v405
        %v495 = vunpack.c.l.b16 %v406
        %v496 = vunpack.c.l.b16 %v407
        %v497 = vunpack.c.l.b16 %v408
        %v498 = vunpack.c.l.b16 %v409
        %v499 = vunpack.c.l.b16 %v410
        %v500 = vunpack.c.l.b16 %v411
        %v501 = vunpack.c.l.b16 %v412
        %v502 = vunpack.c.l.b16 %v413
        %v503 = vunpack.c.l.b16 %v414
        %v504 = vunpack.c.l.b16 %v415
        %v505 = vunpack.c.l.b16 %v416
        %v506 = vunpack.c.l.b16 %v417
        %v507 = vunpack.c.l.b16 %v418
        %v508 = vunpack.c.l.b16 %v419
        %v509 = vunpack.c.l.b16 %v420
        %v510 = vunpack.c.l.b16 %v421
        %v511 = vunpack.c.l.b16 %v422
        %v512 = vpack.c.b16 %v481, %v480
        %v513 = vpack.c.b16 %v483, %v482
        %v514 = vpack.c.b16 %v485, %v484
        %v515 = vpack.c.b16 %v487, %v486
        %v516 = vpack.c.b16 %v489, %v488
        %v517 = vpack.c.b16 %v491, %v490
        %v518 = vpack.c.b16 %v493, %v492
        %v519 = vpack.c.b16 %v495, %v494
        %v520 = vpack.c.b16 %v497, %v496
        %v521 = vpack.c.b16 %v499, %v498
        %v522 = vpack.c.b16 %v501, %v500
        %v523 = vpack.c.b16 %v503, %v502
        %v524 = vpack.c.b16 %v505, %v504
        %v525 = vpack.c.b16 %v507, %v506
        %v526 = vpack.c.b16 %v509, %v508
        %v527 = vpack.c.b16 %v511, %v510
        %544 = vmatprep.subr.bf16.mxu0 0
        %545 = vmatpush1.bf16.msra.mxu0 %v512
        %546 = vmatprep.subr.bf16.mxu0 0
        %547 = vmatpush1.bf16.msra.mxu0 %v513
        %548 = vmatprep.subr.bf16.mxu0 0
        %549 = vmatpush1.bf16.msra.mxu0 %v514
        %550 = vmatprep.subr.bf16.mxu0 0
        %551 = vmatpush1.bf16.msra.mxu0 %v515
        %552 = vmatprep.subr.bf16.mxu0 0
        %553 = vmatpush1.bf16.msra.mxu0 %v516
        %554 = vmatprep.subr.bf16.mxu0 0
        %555 = vmatpush1.bf16.msra.mxu0 %v517
        %556 = vmatprep.subr.bf16.mxu0 0
        %557 = vmatpush1.bf16.msra.mxu0 %v518
        %558 = vmatprep.subr.bf16.mxu0 0
        %559 = vmatpush1.bf16.msra.mxu0 %v519
        %560 = vmatprep.subr.bf16.mxu0 0
        %561 = vmatpush1.bf16.msra.mxu0 %v520
        %562 = vmatprep.subr.bf16.mxu0 0
        %563 = vmatpush1.bf16.msra.mxu0 %v521
        %564 = vmatprep.subr.bf16.mxu0 0
        %565 = vmatpush1.bf16.msra.mxu0 %v522
        %566 = vmatprep.subr.bf16.mxu0 0
        %567 = vmatpush1.bf16.msra.mxu0 %v523
        %568 = vmatprep.subr.bf16.mxu0 0
        %569 = vmatpush1.bf16.msra.mxu0 %v524
        %570 = vmatprep.subr.bf16.mxu0 0
        %571 = vmatpush1.bf16.msra.mxu0 %v525
        %572 = vmatprep.subr.bf16.mxu0 0
        %573 = vmatpush1.bf16.msra.mxu0 %v526
        %574 = vmatprep.subr.bf16.mxu0 0
        %575 = vmatpush1.bf16.msra.mxu0 %v527
        %576 = vmatprep.mubr.bf16.mxu0 %v445
        %577 = vmatmul.mubr.bf16.gmra.mrb[0].mxu0 %v438
        %v578 = vpop.f32.mrb[0].mxu0
        %v579 = vadd.f32 0.0, %v578
        %v580 = vpop.f32.mrb[0].mxu0
        %v581 = vpop.f32.mrb[0].mxu0
        %v582 = vpop.f32.mrb[0].mxu0
        %583 = vdwg.mxu0
        %v584 = vadd.f32 %v389, %v579
        %585 = vst [vmem:[#allocation2] sm:$0x3] %v584
        // Predicated region
        $region78: #{convnet_forward.10} parent=68 // pred_check
          %p586 = pneg %p384
        $region79: #{convnet_forward.10} parent=68 // pred_check_branch
          %588 = sbr.rel (%p586) target = $region81
        $region80: #{convnet_forward.10} parent=68 // pred_region
          %v589 = vld [vmem:[#allocation2] sm:$0x3]
          %v590 = vld [vmem:[%s379] sm:$0x1]
          %v592 = vlaneseq
          %v593 = vshrl.u32 %v592, 7
          %v594 = vsub.s32 0, %v593
          %v595 = vrot.slane %v590, %v594
          %v597 = vadd.f32 %v589, %v595
          %v598 = vmax.f32 %v597, 0.0
          %v599 = vpack.c.bf16 %v598, %v598
          %600 = vst [vmem:[%s382] sm:$0x1] %v599
        $region81: #{convnet_forward.10} parent=68 // pred_fallthru
          _
        %p601 = scmp.lt.s32.totalorder %s18, 1
        %s602 = scalar_select %p601, %s18, 1
        %s603 = scalar_lea.vmem %s3, %s602
        // Predicated region
        $region82: #{convnet_forward.10} parent=68 // pred_check
          %p604 = pneg %p124
        $region83: #{convnet_forward.10} parent=68 // pred_check_branch
          %606 = sbr.rel (%p604) target = $region85
        $region84: #{convnet_forward.10} parent=68 // pred_region
          _
        $region85: #{convnet_forward.10} parent=68 // pred_fallthru
          _
      $region69: #{convnet_forward.10} parent=5 // pred_fallthru
        _
      %p607 = scmp.le.s32.totalorder 2, %s9
      // Predicated region
      $region86: #{convnet_forward.10} parent=5 // pred_check
        %p608 = pneg %p607
      $region87: #{convnet_forward.10} parent=5 // pred_check_branch
        %610 = sbr.rel (%p608) target = $region89
      $region88: #{convnet_forward.10} parent=5 // pred_region
        %s611 = ssub.s32 %s9, 2
        // Predicated region
        $region90: #{convnet_forward.10} parent=88 // pred_check
          %p612 = pneg %p130
        $region91: #{convnet_forward.10} parent=88 // pred_check_branch
          %614 = sbr.rel (%p612) target = $region93
        $region92: #{convnet_forward.10} parent=88 // pred_region
          %p615 = scmp.lt.s32.totalorder %s20, 1
          %s616 = scalar_select %p615, %s20, 1
          %s617 = scalar_lea.vmem %s3, %s616
        $region93: #{convnet_forward.10} parent=88 // pred_fallthru
          _
      $region89: #{convnet_forward.10} parent=5 // pred_fallthru
        _
    $region6: #{convnet_forward.10} parent=1 // loop_footer
      %s13 = sadd.s32 1, %s9
    $region7: #{convnet_forward.10} parent=1 // loop_footer_branch
      %8 = sbr.rel target = $region3
    $region8: #{convnet_forward.10} parent=1 // loop_exit
      _

// kernel: convnet_forward.11
$region0: #{convnet_forward.11}
  #allocation0 [shape = 'u32[]', space=smem, size = 0x4, offset = 0x4, fixed_abs, tag = 'smem constant byte address 0x4 - core index']
  #allocation1 [shape = 'u32[144,128]{1,0:T(1,128)}', space=vmem, size = 0x12000, scoped, tag = 'internal scratch']
  #allocation2 [shape = 'f32[2,2]{1,0:T(2,128)}', space=vmem, size = 0x400, scoped, tag = 'scratch operand']
  %s0 = inlined_call_operand.vmem [shape: bf16[2,256], index: 0, kind: input, shape index: {}]
  %s1 = inlined_call_operand.vmem [shape: bf16[256,2], index: 1, kind: input, shape index: {}]
  %s2 = inlined_call_operand.vmem [shape: f32[1,2], index: 2, kind: input, shape index: {}]
  %s3 = inlined_call_operand.hbm [shape: f32[2,2], index: 3, kind: output, shape index: {}]
  %s4 = sld [smem:[#allocation0]]
  $region30: #{convnet_forward.11} parent=0
    _
  %s6 = ssub.s32 1, %s4
  %s7 = scalar_select 0, %s6, %s4
  $region1: #{convnet_forward.11} parent=0
    #allocation3 [shape = 'u8[1024]{0}', space=vmem, size = 0x400, scoped, tag = 'output window, operand 0, single buffered']
    #allocation4 [shape = 's32[1]{0}', space=sflag, size = 0x4, scoped, tag = 'scoped memory for convnet_forward.11']
    %8 = vsyncpa [#allocation4], 0
    // Predicated region
    $region2: #{convnet_forward.11} parent=1 // pred_check
      _
    $region3: #{convnet_forward.11} parent=1 // pred_check_branch
      %10 = sbr.rel (0) target = $region5
    $region4: #{convnet_forward.11} parent=1 // pred_region
      _
    $region5: #{convnet_forward.11} parent=1 // pred_fallthru
      _
    // Predicated region
    $region6: #{convnet_forward.11} parent=1 // pred_check
      _
    $region7: #{convnet_forward.11} parent=1 // pred_check_branch
      %12 = sbr.rel (0) target = $region9
    $region8: #{convnet_forward.11} parent=1 // pred_region
      _
    $region9: #{convnet_forward.11} parent=1 // pred_fallthru
      _
    // Predicated region
    $region10: #{convnet_forward.11} parent=1 // pred_check
      _
    $region11: #{convnet_forward.11} parent=1 // pred_check_branch
      %14 = sbr.rel (0) target = $region13
    $region12: #{convnet_forward.11} parent=1 // pred_region
      _
    $region13: #{convnet_forward.11} parent=1 // pred_fallthru
      _
    %p16 = scmp.eq.s32.totalorder 0, 0
    // Predicated region
    $region14: #{convnet_forward.11} parent=1 // pred_check
      %p17 = pneg %p16
    $region15: #{convnet_forward.11} parent=1 // pred_check_branch
      %19 = sbr.rel (%p17) target = $region17
    $region16: #{convnet_forward.11} parent=1 // pred_region
      %vm20 = vcmask 9216
      %21 = vst.msk [vmem:[#allocation2] sm:$0x3] %vm20, 0.0
    $region17: #{convnet_forward.11} parent=1 // pred_fallthru
      _
    %v22 = vld [vmem:[#allocation2] sm:$0x3]
    %v23 = vld [vmem:[%s0] sm:$0x3]
    %v24 = vld [vmem:[%s1] sm:$0xf]
    %v25 = vld [vmem:[%s1 + $0x4] sm:$0xf]
    %v26 = vld [vmem:[%s1 + $0x8] sm:$0xf]
    %v27 = vld [vmem:[%s1 + $0xc] sm:$0xf]
    %v28 = vld [vmem:[%s1 + $0x10] sm:$0xf]
    %v29 = vld [vmem:[%s1 + $0x14] sm:$0xf]
    %v30 = vld [vmem:[%s1 + $0x18] sm:$0xf]
    %v31 = vld [vmem:[%s1 + $0x1c] sm:$0xf]
    %v32 = vld [vmem:[%s1 + $0x20] sm:$0xf]
    %v33 = vld [vmem:[%s1 + $0x24] sm:$0xf]
    %v34 = vld [vmem:[%s1 + $0x28] sm:$0xf]
    %v35 = vld [vmem:[%s1 + $0x2c] sm:$0xf]
    %v36 = vld [vmem:[%s1 + $0x30] sm:$0xf]
    %v37 = vld [vmem:[%s1 + $0x34] sm:$0xf]
    %v38 = vld [vmem:[%s1 + $0x38] sm:$0xf]
    %v39 = vld [vmem:[%s1 + $0x3c] sm:$0xf]
    %v40 = vld [vmem:[%s1 + $0x40] sm:$0xf]
    %v41 = vld [vmem:[%s1 + $0x44] sm:$0xf]
    %v42 = vld [vmem:[%s1 + $0x48] sm:$0xf]
    %v43 = vld [vmem:[%s1 + $0x4c] sm:$0xf]
    %v44 = vld [vmem:[%s1 + $0x50] sm:$0xf]
    %v45 = vld [vmem:[%s1 + $0x54] sm:$0xf]
    %v46 = vld [vmem:[%s1 + $0x58] sm:$0xf]
    %v47 = vld [vmem:[%s1 + $0x5c] sm:$0xf]
    %v48 = vld [vmem:[%s1 + $0x60] sm:$0xf]
    %v49 = vld [vmem:[%s1 + $0x64] sm:$0xf]
    %v50 = vld [vmem:[%s1 + $0x68] sm:$0xf]
    %v51 = vld [vmem:[%s1 + $0x6c] sm:$0xf]
    %v52 = vld [vmem:[%s1 + $0x70] sm:$0xf]
    %v53 = vld [vmem:[%s1 + $0x74] sm:$0xf]
    %v54 = vld [vmem:[%s1 + $0x78] sm:$0xf]
    %v55 = vld [vmem:[%s1 + $0x7c] sm:$0xf]
    %v58 = vunpack.c.l.s4 1966171168
    %v59 = vunpack.c.0.s8 %v58
    %v60 = vlaneseq
    %v61 = vshrl.u32 %v60, 7
    %v62 = vsub.s32 %v59, %v61
    %v63 = vrot.slane %v23, %v62
    %v64 = vcombine.high %v63, %v63
    %v66 = vunpack.c.l.s4 1966171168
    %v67 = vunpack.c.0.s8 %v66
    %v68 = vlaneseq
    %v69 = vshrl.u32 %v68, 7
    %v70 = vsub.s32 %v67, %v69
    %v71 = vrot.slane %v63, %v70
    %v73 = vunpack.c.l.s4 1966171168
    %v74 = vunpack.c.0.s8 %v73
    %v75 = vlaneseq
    %v76 = vshrl.u32 %v75, 7
    %v77 = vsub.s32 %v74, %v76
    %v78 = vrot.slane %v64, %v77
    %v113 = vunpack.c.l.b16 %v24
    %v114 = vunpack.c.l.b16 %v25
    %v115 = vunpack.c.l.b16 %v26
    %v116 = vunpack.c.l.b16 %v27
    %v117 = vunpack.c.l.b16 %v28
    %v118 = vunpack.c.l.b16 %v29
    %v119 = vunpack.c.l.b16 %v30
    %v120 = vunpack.c.l.b16 %v31
    %v121 = vunpack.c.l.b16 %v32
    %v122 = vunpack.c.l.b16 %v33
    %v123 = vunpack.c.l.b16 %v34
    %v124 = vunpack.c.l.b16 %v35
    %v125 = vunpack.c.l.b16 %v36
    %v126 = vunpack.c.l.b16 %v37
    %v127 = vunpack.c.l.b16 %v38
    %v128 = vunpack.c.l.b16 %v39
    %v129 = vunpack.c.l.b16 %v40
    %v130 = vunpack.c.l.b16 %v41
    %v131 = vunpack.c.l.b16 %v42
    %v132 = vunpack.c.l.b16 %v43
    %v133 = vunpack.c.l.b16 %v44
    %v134 = vunpack.c.l.b16 %v45
    %v135 = vunpack.c.l.b16 %v46
    %v136 = vunpack.c.l.b16 %v47
    %v137 = vunpack.c.l.b16 %v48
    %v138 = vunpack.c.l.b16 %v49
    %v139 = vunpack.c.l.b16 %v50
    %v140 = vunpack.c.l.b16 %v51
    %v141 = vunpack.c.l.b16 %v52
    %v142 = vunpack.c.l.b16 %v53
    %v143 = vunpack.c.l.b16 %v54
    %v144 = vunpack.c.l.b16 %v55
    %v145 = vpack.c.b16 %v114, %v113
    %v146 = vpack.c.b16 %v116, %v115
    %v147 = vpack.c.b16 %v118, %v117
    %v148 = vpack.c.b16 %v120, %v119
    %v149 = vpack.c.b16 %v122, %v121
    %v150 = vpack.c.b16 %v124, %v123
    %v151 = vpack.c.b16 %v126, %v125
    %v152 = vpack.c.b16 %v128, %v127
    %v153 = vpack.c.b16 %v130, %v129
    %v154 = vpack.c.b16 %v132, %v131
    %v155 = vpack.c.b16 %v134, %v133
    %v156 = vpack.c.b16 %v136, %v135
    %v157 = vpack.c.b16 %v138, %v137
    %v158 = vpack.c.b16 %v140, %v139
    %v159 = vpack.c.b16 %v142, %v141
    %v160 = vpack.c.b16 %v144, %v143
    %177 = vmatprep.subr.bf16.mxu0 0
    %178 = vmatpush1.bf16.msra.mxu0 %v145
    %179 = vmatprep.subr.bf16.mxu0 0
    %180 = vmatpush1.bf16.msra.mxu0 %v146
    %181 = vmatprep.subr.bf16.mxu0 0
    %182 = vmatpush1.bf16.msra.mxu0 %v147
    %183 = vmatprep.subr.bf16.mxu0 0
    %184 = vmatpush1.bf16.msra.mxu0 %v148
    %185 = vmatprep.subr.bf16.mxu0 0
    %186 = vmatpush1.bf16.msra.mxu0 %v149
    %187 = vmatprep.subr.bf16.mxu0 0
    %188 = vmatpush1.bf16.msra.mxu0 %v150
    %189 = vmatprep.subr.bf16.mxu0 0
    %190 = vmatpush1.bf16.msra.mxu0 %v151
    %191 = vmatprep.subr.bf16.mxu0 0
    %192 = vmatpush1.bf16.msra.mxu0 %v152
    %193 = vmatprep.subr.bf16.mxu0 0
    %194 = vmatpush1.bf16.msra.mxu0 %v153
    %195 = vmatprep.subr.bf16.mxu0 0
    %196 = vmatpush1.bf16.msra.mxu0 %v154
    %197 = vmatprep.subr.bf16.mxu0 0
    %198 = vmatpush1.bf16.msra.mxu0 %v155
    %199 = vmatprep.subr.bf16.mxu0 0
    %200 = vmatpush1.bf16.msra.mxu0 %v156
    %201 = vmatprep.subr.bf16.mxu0 0
    %202 = vmatpush1.bf16.msra.mxu0 %v157
    %203 = vmatprep.subr.bf16.mxu0 0
    %204 = vmatpush1.bf16.msra.mxu0 %v158
    %205 = vmatprep.subr.bf16.mxu0 0
    %206 = vmatpush1.bf16.msra.mxu0 %v159
    %207 = vmatprep.subr.bf16.mxu0 0
    %208 = vmatpush1.bf16.msra.mxu0 %v160
    %209 = vmatprep.mubr.bf16.mxu0 %v78
    %210 = vmatmul.mubr.bf16.gmra.mrb[0].mxu0 %v71
    %v211 = vpop.f32.mrb[0].mxu0
    %v212 = vadd.f32 0.0, %v211
    %v213 = vpop.f32.mrb[0].mxu0
    %v214 = vpop.f32.mrb[0].mxu0
    %v215 = vpop.f32.mrb[0].mxu0
    %216 = vdwg.mxu0
    %v217 = vadd.f32 %v22, %v212
    %vm218 = vcmask 9216
    %219 = vst.msk [vmem:[#allocation2] sm:$0x3] %vm218, %v217
    // Predicated region
    $region18: #{convnet_forward.11} parent=1 // pred_check
      %p220 = pneg %p16
    $region19: #{convnet_forward.11} parent=1 // pred_check_branch
      %222 = sbr.rel (%p220) target = $region21
    $region20: #{convnet_forward.11} parent=1 // pred_region
      %v223 = vld [vmem:[#allocation2] sm:$0x3]
      %v224 = vld [vmem:[%s2] sm:$0x1]
      %v226 = vlaneseq
      %v227 = vshrl.u32 %v226, 7
      %v228 = vsub.s32 0, %v227
      %v229 = vrot.slane %v224, %v228
      %v231 = vadd.f32 %v223, %v229
      %232 = vst.msk [vmem:[#allocation3] sm:$0x3] %vm218, %v231
    $region21: #{convnet_forward.11} parent=1 // pred_fallthru
      _
    // Predicated region
    $region22: #{convnet_forward.11} parent=1 // pred_check
      _
    $region23: #{convnet_forward.11} parent=1 // pred_check_branch
      %234 = sbr.rel (0) target = $region25
    $region24: #{convnet_forward.11} parent=1 // pred_region
      %s236 = ssub.s32 32, 32
      %237 = vsyncadd [#allocation4], %s236
      %s239 = sshll.u32 [#allocation3], 4
      %s240 = int_to_ptr.vmem [resolvable:$true] %s239
      %242 = dma.vmem_to_hbm [thread:$0]  %s240, 32, %s3, [#allocation4]
    $region25: #{convnet_forward.11} parent=1 // pred_fallthru
      _
    // Predicated region
    $region26: #{convnet_forward.11} parent=1 // pred_check
      _
    $region27: #{convnet_forward.11} parent=1 // pred_check_branch
      %244 = sbr.rel (0) target = $region29
    $region28: #{convnet_forward.11} parent=1 // pred_region
      %245 = dma.done [#allocation4], 32
    $region29: #{convnet_forward.11} parent=1 // pred_fallthru
      _
    %246 = vsyncpa [#allocation4], 1

</llo_original>
